<compile_context>
chip_gen: v5e
topology: v5e:2x2
jax: 0.10.0
libtpu: 0.0.40
codegen_flags: <defaults>
</compile_context>

<pallas_src>
import functools
import numpy as np
import jax
import jax.numpy as jnp
from jax.experimental import pallas as pl
from jax.experimental.pallas import tpu as pltpu

jax.config.update("jax_default_matmul_precision", "highest")

P = 32          # embedding size p
T = 2           # depth of MLP g (T1 in the paper)
FEAT = 3        # feature_fwd (feature_grad=False, lp_primal=False)


# ----------------------------- fused Pallas kernel --------------------------

def _fused_forward_kernel(*refs, L, dims):
    """Entire EmbedLayerUpdate forward (Linear/ReLU network), one launch.

    Layout: mu[i] is a (p, batch*d_i) f32 slab (embedding on sublanes,
    batch-major columns on lanes).  Per-layer network weights arrive as
    batch-block-diagonal matrices so each matmul covers the full batch.
    """
    it = iter(refs)
    scal_ref = next(it)                                       # (6,) f32 in SMEM
    n_feat = 3 * L + 2
    feat = [next(it) for _ in range(n_feat)]                  # (1, batch*d) rows
    w1_in, b1_in, w2_in, b2_in = (next(it) for _ in range(4))
    w1_th, b1_th, w2_th, b2_th = (next(it) for _ in range(4))
    wt1, bt1, wt2, bt2, wt3, bt3, wt4, bt4 = (next(it) for _ in range(8))
    fwd = [tuple(next(it) for _ in range(3)) for _ in range(L)]
    bwd = [tuple(next(it) for _ in range(3)) for _ in range(L)]
    outs = [next(it) for _ in range(L + 1)]

    # read scalars once, before any vector traffic
    t1f, t2f, t3f = scal_ref[0], scal_ref[1], scal_ref[2]
    t1b, t2b, t3b = scal_ref[3], scal_ref[4], scal_ref[5]

    # ---- per-node MLP g on a (p, batch*d) slab -------------------------------
    def node_mlp(rows, w1_ref, b1_ref, w2_ref, b2_ref):
        w1 = w1_ref[...]                                      # (p, 3)
        # first Linear has K=3: 3 rank-1 broadcast mul-adds on the VPU instead
        # of a padded tiny-K matmul (also avoids wrapper-side feature stacking)
        h = b1_ref[...] + w1[:, 0:1] * rows[0][...] + w1[:, 1:2] * rows[1][...]
        if len(rows) == 3:                                    # last layer: rho == 0
            h = h + w1[:, 2:3] * rows[2][...]
        h = jnp.maximum(h, 0.0)
        h = jnp.dot(w2_ref[...], h, preferred_element_type=jnp.float32) + b2_ref[...]
        return jnp.maximum(h, 0.0)                            # (p, batch*d)

    mu = [node_mlp(feat[0:3], w1_in, b1_in, w2_in, b2_in)]
    pos = 3
    for _ in range(1, L):
        mu.append(node_mlp(feat[pos:pos + 3], w1_th, b1_th, w2_th, b2_th))
        pos += 3
    mu.append(node_mlp(feat[pos:pos + 2], w1_th, b1_th, w2_th, b2_th))

    # ---- one message-passing step on (p, batch*d) slabs ----------------------
    #   embed_pass = Wp (mu_src @ A_blk + badd) + bp
    #   embed_sum  = (Ws (mu_src @ C)          + bs) * inv_post
    #   mu_dst     = relu(t1*mu_dst + t2*embed_pass + t3*embed_sum)
    def mp_step(src, dst, A_ref, badd_ref, C_ref, wp_ref, bp_ref, ws_ref, bs_ref,
                t1, t2, t3, inv_post):
        passed = jnp.dot(src, A_ref[...], preferred_element_type=jnp.float32)
        passed = passed + badd_ref[...]
        e_pass = jnp.dot(wp_ref[...], passed, preferred_element_type=jnp.float32)
        e_pass = e_pass + bp_ref[...]
        summed = jnp.dot(src, C_ref[...], preferred_element_type=jnp.float32)
        e_sum = jnp.dot(ws_ref[...], summed, preferred_element_type=jnp.float32)
        e_sum = e_sum + bs_ref[...]
        if inv_post != 1.0:                                   # static; skipped when 1
            e_sum = e_sum * inv_post
        return jnp.maximum(t1 * dst + t2 * e_pass + t3 * e_sum, 0.0)

    for idx in range(L):                                      # forward direction
        A, badd, C = fwd[idx]
        mu[idx + 1] = mp_step(mu[idx], mu[idx + 1], A, badd, C,
                              wt2, bt2, wt1, bt1, t1f, t2f, t3f, 1.0)

    for step, idx in enumerate(range(L, 0, -1)):              # backward direction
        A, badd, C = bwd[step]
        mu[idx - 1] = mp_step(mu[idx], mu[idx - 1], A, badd, C,
                              wt4, bt4, wt3, bt3, t1b, t2b, t3b,
                              1.0 / float(dims[idx - 1]))

    for i in range(L + 1):
        outs[i][...] = mu[i]

    # TODO(synk): Conv2d layers (conv / conv_transpose message passing and the
    # compute_D sum_vec normalization) are not implemented; this synthetic
    # network is Linear/ReLU only.


# -------------------- one-time static weight preprocessing ------------------

def preprocess_params(params, batch, dims, p):
    L = len(dims) - 1
    (w1i, b1i), (w2i, b2i) = params['thetas_input']
    (w1t, b1t), (w2t, b2t) = params['thetas']
    node_w = [w1i, b1i.reshape(p, 1), w2i, b2i.reshape(p, 1),
              w1t, b1t.reshape(p, 1), w2t, b2t.reshape(p, 1)]
    (wt1, bt1), (wt2, bt2), (wt3, bt3), (wt4, bt4) = params['theta_temps']
    temp_w = [wt1, bt1.reshape(p, 1), wt2, bt2.reshape(p, 1),
              wt3, bt3.reshape(p, 1), wt4, bt4.reshape(p, 1)]

    eye_b = jnp.eye(batch, dtype=jnp.float32)
    fwd_w, bwd_w = [], []
    for idx in range(L):                                      # forward MP weights
        w, b = params['net_W'][idx], params['net_b'][idx]     # (d_out, d_in), (d_out,)
        d_in, d_out = dims[idx], dims[idx + 1]
        fwd_w += [
            jnp.kron(eye_b, w.T),                                       # A_blk
            jnp.tile(b, batch).reshape(1, batch * d_out),               # badd
            jnp.kron(eye_b, jnp.full((d_in, d_out), 1.0 / d_out,
                                     dtype=jnp.float32)),               # sum/broadcast (pre_div folded)
        ]
    for idx in range(L, 0, -1):                               # backward MP weights
        w, b = params['net_W'][idx - 1], params['net_b'][idx - 1]
        d_out, d_in = dims[idx], dims[idx - 1]
        bwd_w += [
            jnp.kron(eye_b, w),                                         # A_blk
            jnp.tile(-(b @ w), batch).reshape(1, batch * d_in),         # badd  (-(b@W))
            jnp.kron(eye_b, jnp.ones((d_out, d_in), jnp.float32)),      # sum/broadcast
        ]
    scal = jnp.concatenate([params['test_for'], params['test_back']]).astype(jnp.float32)
    return {'scal': scal, 'node_w': node_w, 'temp_w': temp_w,
            'fwd_w': fwd_w, 'bwd_w': bwd_w}


def make_embed_layer_update(params, batch, dims, p):
    """Returns (jitted forward fn, preprocessed params pytree)."""
    L = len(dims) - 1
    prep = preprocess_params(params, batch, dims, p)
    n_inputs = 1 + (3 * L + 2) + 8 + 8 + 3 * L + 3 * L

    kernel = functools.partial(_fused_forward_kernel, L=L, dims=tuple(dims))
    fused_call = pl.pallas_call(
        kernel,
        out_shape=tuple(jax.ShapeDtypeStruct((p, batch * d), jnp.float32)
                        for d in dims),
        in_specs=([pl.BlockSpec(memory_space=pltpu.MemorySpace.SMEM)]      # scalars
                  + [pl.BlockSpec(memory_space=pltpu.MemorySpace.VMEM)]
                  * (n_inputs - 1)),
        out_specs=tuple(pl.BlockSpec(memory_space=pltpu.MemorySpace.VMEM)
                        for _ in range(L + 1)),
    )

    def forward(prep, image, lbs, ubs, rhos_prev):
        # feature rows -> (1, batch*d): contiguous (bitcast) reshapes only
        rows = [image.reshape(1, -1), lbs[0].reshape(1, -1), ubs[0].reshape(1, -1)]
        for i in range(1, L):
            rows += [lbs[i].reshape(1, -1), ubs[i].reshape(1, -1),
                     rhos_prev[i - 1][:, 0].reshape(1, -1)]
        rows += [lbs[L].reshape(1, -1), ubs[L].reshape(1, -1)]
        args = ([prep['scal']] + rows + prep['node_w'] + prep['temp_w']
                + prep['fwd_w'] + prep['bwd_w'])
        outs = fused_call(*args)
        # (p, batch*d) -> (p, batch, d): PyTorch mu_rho layout, row-major view
        return [o.reshape(p, batch, d) for o, d in zip(outs, dims)]

    return jax.jit(forward), prep


# ------------------------ pure-JAX reference (torch math) -------------------

def reference_forward(params, image, lbs, ubs, rhos_prev):
    L = len(params['net_W'])
    (wt1, bt1), (wt2, bt2), (wt3, bt3), (wt4, bt4) = params['theta_temps']
    t1f, t2f, t3f = params['test_for']
    t1b, t2b, t3b = params['test_back']

    def mlp(feat, thetas):
        h = feat
        for (w, b) in thetas:
            h = jax.nn.relu(h @ w.T + b)
        return jnp.transpose(h, (2, 0, 1))                    # (p, batch, d)

    mu = [mlp(jnp.stack([image, lbs[0], ubs[0]], axis=-1), params['thetas_input'])]
    for i in range(1, L + 1):
        rho_prev = jnp.zeros_like(ubs[i]) if i == L else rhos_prev[i - 1][:, 0]
        mu.append(mlp(jnp.stack([lbs[i], ubs[i], rho_prev], axis=-1), params['thetas']))

    for idx in range(L):
        w, b = params['net_W'][idx], params['net_b'][idx]
        d_out = w.shape[0]
        mu_prev = mu[idx]
        sum_mu = jnp.sum(mu_prev, axis=-1) / d_out
        embed_sum = (jnp.einsum('fe,eb->fb', wt1, sum_mu) + bt1[:, None])[:, :, None]
        fwd = jnp.einsum('ebj,kj->ebk', mu_prev, w) + b
        embed_pass = jnp.einsum('fe,ebk->fbk', wt2, fwd) + bt2[:, None, None]
        mu[idx + 1] = jax.nn.relu(t1f * mu[idx + 1] + t2f * embed_pass + t3f * embed_sum)

    for idx in range(L, 0, -1):
        w, b = params['net_W'][idx - 1], params['net_b'][idx - 1]
        d_in = w.shape[1]
        mu_prev = mu[idx]
        sum_mu = jnp.sum(mu_prev, axis=-1)
        embed_sum = ((jnp.einsum('fe,eb->fb', wt3, sum_mu) + bt3[:, None]) / d_in)[:, :, None]
        bwd = jnp.einsum('ebk,kj->ebj', mu_prev - b, w)
        embed_pass = jnp.einsum('fe,ebj->fbj', wt4, bwd) + bt4[:, None, None]
        mu[idx - 1] = jax.nn.relu(t1b * mu[idx - 1] + t2b * embed_pass + t3b * embed_sum)
    return mu


# ------------------------------ parameters ----------------------------------

def init_params(key, p, dims):
    keys = iter(jax.random.split(key, 32))

    def linear(out_f, in_f):
        bound = 1.0 / np.sqrt(in_f)
        w = jax.random.uniform(next(keys), (out_f, in_f), jnp.float32, -bound, bound)
        b = jax.random.uniform(next(keys), (out_f,), jnp.float32, -bound, bound)
        return w, b

    params = {
        'thetas_input': [linear(p, FEAT), linear(p, p)],      # T = 2
        'thetas': [linear(p, FEAT), linear(p, p)],            # T = 2
        'theta_temps': [linear(p, p) for _ in range(4)],      # theta_temp1..4
        'test_for': jax.random.uniform(next(keys), (3,), jnp.float32),   # theta_test{1,2,3}_for
        'test_back': jax.random.uniform(next(keys), (3,), jnp.float32),  # theta_test{1,2,3}_back
        'net_W': [], 'net_b': [],
    }
    for l in range(len(dims) - 1):                            # the verified Linear network
        w, b = linear(dims[l + 1], dims[l])
        params['net_W'].append(w)
        params['net_b'].append(b)
    return params


# --------------------------------- main --------------------------------------

if __name__ == "__main__":
    batch = 2
    dims = [16, 24, 8]          # Linear(16->24), ReLU, Linear(24->8)

    key = jax.random.PRNGKey(0)
    kp, kin = jax.random.split(key)
    params = init_params(kp, P, dims)

    ks = jax.random.split(kin, 8)
    image = jax.random.uniform(ks[0], (batch, dims[0]), jnp.float32)
    lbs, ubs = [], []
    for i, d in enumerate(dims):
        lo = jax.random.uniform(ks[1 + i], (batch, d), jnp.float32, -1.0, 0.0)
        hi = lo + jax.random.uniform(ks[4 + i], (batch, d), jnp.float32, 0.0, 1.0)
        lbs.append(lo)
        ubs.append(hi)
    rhos_prev = [jax.random.uniform(ks[7], (batch, 2, dims[1]), jnp.float32)]

    forward_fn, prep = make_embed_layer_update(params, batch, dims, P)
    mu_out = forward_fn(prep, image, lbs, ubs, rhos_prev)
    mu_out = jax.block_until_ready(mu_out)

    mu_ref = reference_forward(params, image, lbs, ubs, rhos_prev)
    for got, want in zip(mu_out, mu_ref):
        assert got.shape == want.shape and got.dtype == jnp.float32
        np.testing.assert_allclose(np.asarray(got), np.asarray(want),
                                   rtol=1e-4, atol=1e-4)

    print("KERNEL_OK")
</pallas_src>

<mosaic_0001>
module attributes {stable_mosaic.version = 11 : i64} {
  func.func @_fused_forward_kernel(%arg0: memref<6xf32, #tpu.memory_space<smem>>, %arg1: memref<1x32xf32, #tpu.memory_space<vmem>>, %arg2: memref<1x32xf32, #tpu.memory_space<vmem>>, %arg3: memref<1x32xf32, #tpu.memory_space<vmem>>, %arg4: memref<1x48xf32, #tpu.memory_space<vmem>>, %arg5: memref<1x48xf32, #tpu.memory_space<vmem>>, %arg6: memref<1x48xf32, #tpu.memory_space<vmem>>, %arg7: memref<1x16xf32, #tpu.memory_space<vmem>>, %arg8: memref<1x16xf32, #tpu.memory_space<vmem>>, %arg9: memref<32x3xf32, #tpu.memory_space<vmem>>, %arg10: memref<32x1xf32, #tpu.memory_space<vmem>>, %arg11: memref<32x32xf32, #tpu.memory_space<vmem>>, %arg12: memref<32x1xf32, #tpu.memory_space<vmem>>, %arg13: memref<32x3xf32, #tpu.memory_space<vmem>>, %arg14: memref<32x1xf32, #tpu.memory_space<vmem>>, %arg15: memref<32x32xf32, #tpu.memory_space<vmem>>, %arg16: memref<32x1xf32, #tpu.memory_space<vmem>>, %arg17: memref<32x32xf32, #tpu.memory_space<vmem>>, %arg18: memref<32x1xf32, #tpu.memory_space<vmem>>, %arg19: memref<32x32xf32, #tpu.memory_space<vmem>>, %arg20: memref<32x1xf32, #tpu.memory_space<vmem>>, %arg21: memref<32x32xf32, #tpu.memory_space<vmem>>, %arg22: memref<32x1xf32, #tpu.memory_space<vmem>>, %arg23: memref<32x32xf32, #tpu.memory_space<vmem>>, %arg24: memref<32x1xf32, #tpu.memory_space<vmem>>, %arg25: memref<32x48xf32, #tpu.memory_space<vmem>>, %arg26: memref<1x48xf32, #tpu.memory_space<vmem>>, %arg27: memref<32x48xf32, #tpu.memory_space<vmem>>, %arg28: memref<48x16xf32, #tpu.memory_space<vmem>>, %arg29: memref<1x16xf32, #tpu.memory_space<vmem>>, %arg30: memref<48x16xf32, #tpu.memory_space<vmem>>, %arg31: memref<16x48xf32, #tpu.memory_space<vmem>>, %arg32: memref<1x48xf32, #tpu.memory_space<vmem>>, %arg33: memref<16x48xf32, #tpu.memory_space<vmem>>, %arg34: memref<48x32xf32, #tpu.memory_space<vmem>>, %arg35: memref<1x32xf32, #tpu.memory_space<vmem>>, %arg36: memref<48x32xf32, #tpu.memory_space<vmem>>, %arg37: memref<32x32xf32, #tpu.memory_space<vmem>>, %arg38: memref<32x48xf32, #tpu.memory_space<vmem>>, %arg39: memref<32x16xf32, #tpu.memory_space<vmem>>) attributes {dimension_semantics = [], scalar_prefetch = 0 : i64, scratch_operands = 0 : i64, tpu.core_type = #tpu.core_type<tc>} {
    %c0 = arith.constant 0 : index
    %0 = memref.load %arg0[%c0] : memref<6xf32, #tpu.memory_space<smem>>
    %c1 = arith.constant 1 : index
    %1 = memref.load %arg0[%c1] : memref<6xf32, #tpu.memory_space<smem>>
    %c2 = arith.constant 2 : index
    %2 = memref.load %arg0[%c2] : memref<6xf32, #tpu.memory_space<smem>>
    %c3 = arith.constant 3 : index
    %3 = memref.load %arg0[%c3] : memref<6xf32, #tpu.memory_space<smem>>
    %c4 = arith.constant 4 : index
    %4 = memref.load %arg0[%c4] : memref<6xf32, #tpu.memory_space<smem>>
    %c5 = arith.constant 5 : index
    %5 = memref.load %arg0[%c5] : memref<6xf32, #tpu.memory_space<smem>>
    %c0_0 = arith.constant 0 : index
    %c0_1 = arith.constant 0 : index
    %6 = vector.load %arg9[%c0_0, %c0_1] : memref<32x3xf32, #tpu.memory_space<vmem>>, vector<32x3xf32>
    %c0_2 = arith.constant 0 : index
    %c0_3 = arith.constant 0 : index
    %7 = vector.load %arg10[%c0_2, %c0_3] : memref<32x1xf32, #tpu.memory_space<vmem>>, vector<32x1xf32>
    %8 = vector.extract_strided_slice %6 {offsets = [0, 0], sizes = [32, 1], strides = [1, 1]} : vector<32x3xf32> to vector<32x1xf32>
    %c0_4 = arith.constant 0 : index
    %c0_5 = arith.constant 0 : index
    %9 = vector.load %arg1[%c0_4, %c0_5] : memref<1x32xf32, #tpu.memory_space<vmem>>, vector<1x32xf32>
    %10 = vector.broadcast %8 : vector<32x1xf32> to vector<32x32xf32>
    %11 = vector.broadcast %9 : vector<1x32xf32> to vector<32x32xf32>
    %12 = arith.mulf %10, %11 : vector<32x32xf32>
    %13 = vector.broadcast %7 : vector<32x1xf32> to vector<32x32xf32>
    %14 = arith.addf %13, %12 : vector<32x32xf32>
    %15 = vector.extract_strided_slice %6 {offsets = [0, 1], sizes = [32, 1], strides = [1, 1]} : vector<32x3xf32> to vector<32x1xf32>
    %c0_6 = arith.constant 0 : index
    %c0_7 = arith.constant 0 : index
    %16 = vector.load %arg2[%c0_6, %c0_7] : memref<1x32xf32, #tpu.memory_space<vmem>>, vector<1x32xf32>
    %17 = vector.broadcast %15 : vector<32x1xf32> to vector<32x32xf32>
    %18 = vector.broadcast %16 : vector<1x32xf32> to vector<32x32xf32>
    %19 = arith.mulf %17, %18 : vector<32x32xf32>
    %20 = arith.addf %14, %19 : vector<32x32xf32>
    %21 = vector.extract_strided_slice %6 {offsets = [0, 2], sizes = [32, 1], strides = [1, 1]} : vector<32x3xf32> to vector<32x1xf32>
    %c0_8 = arith.constant 0 : index
    %c0_9 = arith.constant 0 : index
    %22 = vector.load %arg3[%c0_8, %c0_9] : memref<1x32xf32, #tpu.memory_space<vmem>>, vector<1x32xf32>
    %23 = vector.broadcast %21 : vector<32x1xf32> to vector<32x32xf32>
    %24 = vector.broadcast %22 : vector<1x32xf32> to vector<32x32xf32>
    %25 = arith.mulf %23, %24 : vector<32x32xf32>
    %26 = arith.addf %20, %25 : vector<32x32xf32>
    %cst = arith.constant 0.000000e+00 : f32
    %27 = vector.broadcast %cst : f32 to vector<32x32xf32>
    %28 = arith.maximumf %26, %27 : vector<32x32xf32>
    %c0_10 = arith.constant 0 : index
    %c0_11 = arith.constant 0 : index
    %29 = vector.load %arg11[%c0_10, %c0_11] : memref<32x32xf32, #tpu.memory_space<vmem>>, vector<32x32xf32>
    %cst_12 = arith.constant dense<0.000000e+00> : vector<32x32xf32>
    %30 = tpu.matmul %29, %28, %cst_12 {dimension_numbers = #tpu.dot_dimension_numbers<[1], [0], [0], [1], [0, 0, 1, 1], [], []>, precision = #tpu.contract_precision<fp32>} : vector<32x32xf32>, vector<32x32xf32>, vector<32x32xf32> -> vector<32x32xf32>
    %c0_13 = arith.constant 0 : index
    %c0_14 = arith.constant 0 : index
    %31 = vector.load %arg12[%c0_13, %c0_14] : memref<32x1xf32, #tpu.memory_space<vmem>>, vector<32x1xf32>
    %32 = vector.broadcast %31 : vector<32x1xf32> to vector<32x32xf32>
    %33 = arith.addf %30, %32 : vector<32x32xf32>
    %cst_15 = arith.constant 0.000000e+00 : f32
    %34 = vector.broadcast %cst_15 : f32 to vector<32x32xf32>
    %35 = arith.maximumf %33, %34 : vector<32x32xf32>
    %c0_16 = arith.constant 0 : index
    %c0_17 = arith.constant 0 : index
    %36 = vector.load %arg13[%c0_16, %c0_17] : memref<32x3xf32, #tpu.memory_space<vmem>>, vector<32x3xf32>
    %c0_18 = arith.constant 0 : index
    %c0_19 = arith.constant 0 : index
    %37 = vector.load %arg14[%c0_18, %c0_19] : memref<32x1xf32, #tpu.memory_space<vmem>>, vector<32x1xf32>
    %38 = vector.extract_strided_slice %36 {offsets = [0, 0], sizes = [32, 1], strides = [1, 1]} : vector<32x3xf32> to vector<32x1xf32>
    %c0_20 = arith.constant 0 : index
    %c0_21 = arith.constant 0 : index
    %39 = vector.load %arg4[%c0_20, %c0_21] : memref<1x48xf32, #tpu.memory_space<vmem>>, vector<1x48xf32>
    %40 = vector.broadcast %38 : vector<32x1xf32> to vector<32x48xf32>
    %41 = vector.broadcast %39 : vector<1x48xf32> to vector<32x48xf32>
    %42 = arith.mulf %40, %41 : vector<32x48xf32>
    %43 = vector.broadcast %37 : vector<32x1xf32> to vector<32x48xf32>
    %44 = arith.addf %43, %42 : vector<32x48xf32>
    %45 = vector.extract_strided_slice %36 {offsets = [0, 1], sizes = [32, 1], strides = [1, 1]} : vector<32x3xf32> to vector<32x1xf32>
    %c0_22 = arith.constant 0 : index
    %c0_23 = arith.constant 0 : index
    %46 = vector.load %arg5[%c0_22, %c0_23] : memref<1x48xf32, #tpu.memory_space<vmem>>, vector<1x48xf32>
    %47 = vector.broadcast %45 : vector<32x1xf32> to vector<32x48xf32>
    %48 = vector.broadcast %46 : vector<1x48xf32> to vector<32x48xf32>
    %49 = arith.mulf %47, %48 : vector<32x48xf32>
    %50 = arith.addf %44, %49 : vector<32x48xf32>
    %51 = vector.extract_strided_slice %36 {offsets = [0, 2], sizes = [32, 1], strides = [1, 1]} : vector<32x3xf32> to vector<32x1xf32>
    %c0_24 = arith.constant 0 : index
    %c0_25 = arith.constant 0 : index
    %52 = vector.load %arg6[%c0_24, %c0_25] : memref<1x48xf32, #tpu.memory_space<vmem>>, vector<1x48xf32>
    %53 = vector.broadcast %51 : vector<32x1xf32> to vector<32x48xf32>
    %54 = vector.broadcast %52 : vector<1x48xf32> to vector<32x48xf32>
    %55 = arith.mulf %53, %54 : vector<32x48xf32>
    %56 = arith.addf %50, %55 : vector<32x48xf32>
    %cst_26 = arith.constant 0.000000e+00 : f32
    %57 = vector.broadcast %cst_26 : f32 to vector<32x48xf32>
    %58 = arith.maximumf %56, %57 : vector<32x48xf32>
    %c0_27 = arith.constant 0 : index
    %c0_28 = arith.constant 0 : index
    %59 = vector.load %arg15[%c0_27, %c0_28] : memref<32x32xf32, #tpu.memory_space<vmem>>, vector<32x32xf32>
    %cst_29 = arith.constant dense<0.000000e+00> : vector<32x48xf32>
    %60 = tpu.matmul %59, %58, %cst_29 {dimension_numbers = #tpu.dot_dimension_numbers<[1], [0], [0], [1], [0, 0, 1, 1], [], []>, precision = #tpu.contract_precision<fp32>} : vector<32x32xf32>, vector<32x48xf32>, vector<32x48xf32> -> vector<32x48xf32>
    %c0_30 = arith.constant 0 : index
    %c0_31 = arith.constant 0 : index
    %61 = vector.load %arg16[%c0_30, %c0_31] : memref<32x1xf32, #tpu.memory_space<vmem>>, vector<32x1xf32>
    %62 = vector.broadcast %61 : vector<32x1xf32> to vector<32x48xf32>
    %63 = arith.addf %60, %62 : vector<32x48xf32>
    %cst_32 = arith.constant 0.000000e+00 : f32
    %64 = vector.broadcast %cst_32 : f32 to vector<32x48xf32>
    %65 = arith.maximumf %63, %64 : vector<32x48xf32>
    %c0_33 = arith.constant 0 : index
    %c0_34 = arith.constant 0 : index
    %66 = vector.load %arg13[%c0_33, %c0_34] : memref<32x3xf32, #tpu.memory_space<vmem>>, vector<32x3xf32>
    %c0_35 = arith.constant 0 : index
    %c0_36 = arith.constant 0 : index
    %67 = vector.load %arg14[%c0_35, %c0_36] : memref<32x1xf32, #tpu.memory_space<vmem>>, vector<32x1xf32>
    %68 = vector.extract_strided_slice %66 {offsets = [0, 0], sizes = [32, 1], strides = [1, 1]} : vector<32x3xf32> to vector<32x1xf32>
    %c0_37 = arith.constant 0 : index
    %c0_38 = arith.constant 0 : index
    %69 = vector.load %arg7[%c0_37, %c0_38] : memref<1x16xf32, #tpu.memory_space<vmem>>, vector<1x16xf32>
    %70 = vector.broadcast %68 : vector<32x1xf32> to vector<32x16xf32>
    %71 = vector.broadcast %69 : vector<1x16xf32> to vector<32x16xf32>
    %72 = arith.mulf %70, %71 : vector<32x16xf32>
    %73 = vector.broadcast %67 : vector<32x1xf32> to vector<32x16xf32>
    %74 = arith.addf %73, %72 : vector<32x16xf32>
    %75 = vector.extract_strided_slice %66 {offsets = [0, 1], sizes = [32, 1], strides = [1, 1]} : vector<32x3xf32> to vector<32x1xf32>
    %c0_39 = arith.constant 0 : index
    %c0_40 = arith.constant 0 : index
    %76 = vector.load %arg8[%c0_39, %c0_40] : memref<1x16xf32, #tpu.memory_space<vmem>>, vector<1x16xf32>
    %77 = vector.broadcast %75 : vector<32x1xf32> to vector<32x16xf32>
    %78 = vector.broadcast %76 : vector<1x16xf32> to vector<32x16xf32>
    %79 = arith.mulf %77, %78 : vector<32x16xf32>
    %80 = arith.addf %74, %79 : vector<32x16xf32>
    %cst_41 = arith.constant 0.000000e+00 : f32
    %81 = vector.broadcast %cst_41 : f32 to vector<32x16xf32>
    %82 = arith.maximumf %80, %81 : vector<32x16xf32>
    %c0_42 = arith.constant 0 : index
    %c0_43 = arith.constant 0 : index
    %83 = vector.load %arg15[%c0_42, %c0_43] : memref<32x32xf32, #tpu.memory_space<vmem>>, vector<32x32xf32>
    %cst_44 = arith.constant dense<0.000000e+00> : vector<32x16xf32>
    %84 = tpu.matmul %83, %82, %cst_44 {dimension_numbers = #tpu.dot_dimension_numbers<[1], [0], [0], [1], [0, 0, 1, 1], [], []>, precision = #tpu.contract_precision<fp32>} : vector<32x32xf32>, vector<32x16xf32>, vector<32x16xf32> -> vector<32x16xf32>
    %c0_45 = arith.constant 0 : index
    %c0_46 = arith.constant 0 : index
    %85 = vector.load %arg16[%c0_45, %c0_46] : memref<32x1xf32, #tpu.memory_space<vmem>>, vector<32x1xf32>
    %86 = vector.broadcast %85 : vector<32x1xf32> to vector<32x16xf32>
    %87 = arith.addf %84, %86 : vector<32x16xf32>
    %cst_47 = arith.constant 0.000000e+00 : f32
    %88 = vector.broadcast %cst_47 : f32 to vector<32x16xf32>
    %89 = arith.maximumf %87, %88 : vector<32x16xf32>
    %c0_48 = arith.constant 0 : index
    %c0_49 = arith.constant 0 : index
    %90 = vector.load %arg25[%c0_48, %c0_49] : memref<32x48xf32, #tpu.memory_space<vmem>>, vector<32x48xf32>
    %cst_50 = arith.constant dense<0.000000e+00> : vector<32x48xf32>
    %91 = tpu.matmul %35, %90, %cst_50 {dimension_numbers = #tpu.dot_dimension_numbers<[1], [0], [0], [1], [0, 0, 1, 1], [], []>, precision = #tpu.contract_precision<fp32>} : vector<32x32xf32>, vector<32x48xf32>, vector<32x48xf32> -> vector<32x48xf32>
    %c0_51 = arith.constant 0 : index
    %c0_52 = arith.constant 0 : index
    %92 = vector.load %arg26[%c0_51, %c0_52] : memref<1x48xf32, #tpu.memory_space<vmem>>, vector<1x48xf32>
    %93 = vector.broadcast %92 : vector<1x48xf32> to vector<32x48xf32>
    %94 = arith.addf %91, %93 : vector<32x48xf32>
    %c0_53 = arith.constant 0 : index
    %c0_54 = arith.constant 0 : index
    %95 = vector.load %arg19[%c0_53, %c0_54] : memref<32x32xf32, #tpu.memory_space<vmem>>, vector<32x32xf32>
    %cst_55 = arith.constant dense<0.000000e+00> : vector<32x48xf32>
    %96 = tpu.matmul %95, %94, %cst_55 {dimension_numbers = #tpu.dot_dimension_numbers<[1], [0], [0], [1], [0, 0, 1, 1], [], []>, precision = #tpu.contract_precision<fp32>} : vector<32x32xf32>, vector<32x48xf32>, vector<32x48xf32> -> vector<32x48xf32>
    %c0_56 = arith.constant 0 : index
    %c0_57 = arith.constant 0 : index
    %97 = vector.load %arg20[%c0_56, %c0_57] : memref<32x1xf32, #tpu.memory_space<vmem>>, vector<32x1xf32>
    %98 = vector.broadcast %97 : vector<32x1xf32> to vector<32x48xf32>
    %99 = arith.addf %96, %98 : vector<32x48xf32>
    %c0_58 = arith.constant 0 : index
    %c0_59 = arith.constant 0 : index
    %100 = vector.load %arg27[%c0_58, %c0_59] : memref<32x48xf32, #tpu.memory_space<vmem>>, vector<32x48xf32>
    %cst_60 = arith.constant dense<0.000000e+00> : vector<32x48xf32>
    %101 = tpu.matmul %35, %100, %cst_60 {dimension_numbers = #tpu.dot_dimension_numbers<[1], [0], [0], [1], [0, 0, 1, 1], [], []>, precision = #tpu.contract_precision<fp32>} : vector<32x32xf32>, vector<32x48xf32>, vector<32x48xf32> -> vector<32x48xf32>
    %c0_61 = arith.constant 0 : index
    %c0_62 = arith.constant 0 : index
    %102 = vector.load %arg17[%c0_61, %c0_62] : memref<32x32xf32, #tpu.memory_space<vmem>>, vector<32x32xf32>
    %cst_63 = arith.constant dense<0.000000e+00> : vector<32x48xf32>
    %103 = tpu.matmul %102, %101, %cst_63 {dimension_numbers = #tpu.dot_dimension_numbers<[1], [0], [0], [1], [0, 0, 1, 1], [], []>, precision = #tpu.contract_precision<fp32>} : vector<32x32xf32>, vector<32x48xf32>, vector<32x48xf32> -> vector<32x48xf32>
    %c0_64 = arith.constant 0 : index
    %c0_65 = arith.constant 0 : index
    %104 = vector.load %arg18[%c0_64, %c0_65] : memref<32x1xf32, #tpu.memory_space<vmem>>, vector<32x1xf32>
    %105 = vector.broadcast %104 : vector<32x1xf32> to vector<32x48xf32>
    %106 = arith.addf %103, %105 : vector<32x48xf32>
    %107 = vector.broadcast %0 : f32 to vector<32x48xf32>
    %108 = arith.mulf %107, %65 : vector<32x48xf32>
    %109 = vector.broadcast %1 : f32 to vector<32x48xf32>
    %110 = arith.mulf %109, %99 : vector<32x48xf32>
    %111 = arith.addf %108, %110 : vector<32x48xf32>
    %112 = vector.broadcast %2 : f32 to vector<32x48xf32>
    %113 = arith.mulf %112, %106 : vector<32x48xf32>
    %114 = arith.addf %111, %113 : vector<32x48xf32>
    %cst_66 = arith.constant 0.000000e+00 : f32
    %115 = vector.broadcast %cst_66 : f32 to vector<32x48xf32>
    %116 = arith.maximumf %114, %115 : vector<32x48xf32>
    %c0_67 = arith.constant 0 : index
    %c0_68 = arith.constant 0 : index
    %117 = vector.load %arg28[%c0_67, %c0_68] : memref<48x16xf32, #tpu.memory_space<vmem>>, vector<48x16xf32>
    %cst_69 = arith.constant dense<0.000000e+00> : vector<32x16xf32>
    %118 = tpu.matmul %116, %117, %cst_69 {dimension_numbers = #tpu.dot_dimension_numbers<[1], [0], [0], [1], [0, 0, 1, 1], [], []>, precision = #tpu.contract_precision<fp32>} : vector<32x48xf32>, vector<48x16xf32>, vector<32x16xf32> -> vector<32x16xf32>
    %c0_70 = arith.constant 0 : index
    %c0_71 = arith.constant 0 : index
    %119 = vector.load %arg29[%c0_70, %c0_71] : memref<1x16xf32, #tpu.memory_space<vmem>>, vector<1x16xf32>
    %120 = vector.broadcast %119 : vector<1x16xf32> to vector<32x16xf32>
    %121 = arith.addf %118, %120 : vector<32x16xf32>
    %c0_72 = arith.constant 0 : index
    %c0_73 = arith.constant 0 : index
    %122 = vector.load %arg19[%c0_72, %c0_73] : memref<32x32xf32, #tpu.memory_space<vmem>>, vector<32x32xf32>
    %cst_74 = arith.constant dense<0.000000e+00> : vector<32x16xf32>
    %123 = tpu.matmul %122, %121, %cst_74 {dimension_numbers = #tpu.dot_dimension_numbers<[1], [0], [0], [1], [0, 0, 1, 1], [], []>, precision = #tpu.contract_precision<fp32>} : vector<32x32xf32>, vector<32x16xf32>, vector<32x16xf32> -> vector<32x16xf32>
    %c0_75 = arith.constant 0 : index
    %c0_76 = arith.constant 0 : index
    %124 = vector.load %arg20[%c0_75, %c0_76] : memref<32x1xf32, #tpu.memory_space<vmem>>, vector<32x1xf32>
    %125 = vector.broadcast %124 : vector<32x1xf32> to vector<32x16xf32>
    %126 = arith.addf %123, %125 : vector<32x16xf32>
    %c0_77 = arith.constant 0 : index
    %c0_78 = arith.constant 0 : index
    %127 = vector.load %arg30[%c0_77, %c0_78] : memref<48x16xf32, #tpu.memory_space<vmem>>, vector<48x16xf32>
    %cst_79 = arith.constant dense<0.000000e+00> : vector<32x16xf32>
    %128 = tpu.matmul %116, %127, %cst_79 {dimension_numbers = #tpu.dot_dimension_numbers<[1], [0], [0], [1], [0, 0, 1, 1], [], []>, precision = #tpu.contract_precision<fp32>} : vector<32x48xf32>, vector<48x16xf32>, vector<32x16xf32> -> vector<32x16xf32>
    %c0_80 = arith.constant 0 : index
    %c0_81 = arith.constant 0 : index
    %129 = vector.load %arg17[%c0_80, %c0_81] : memref<32x32xf32, #tpu.memory_space<vmem>>, vector<32x32xf32>
    %cst_82 = arith.constant dense<0.000000e+00> : vector<32x16xf32>
    %130 = tpu.matmul %129, %128, %cst_82 {dimension_numbers = #tpu.dot_dimension_numbers<[1], [0], [0], [1], [0, 0, 1, 1], [], []>, precision = #tpu.contract_precision<fp32>} : vector<32x32xf32>, vector<32x16xf32>, vector<32x16xf32> -> vector<32x16xf32>
    %c0_83 = arith.constant 0 : index
    %c0_84 = arith.constant 0 : index
    %131 = vector.load %arg18[%c0_83, %c0_84] : memref<32x1xf32, #tpu.memory_space<vmem>>, vector<32x1xf32>
    %132 = vector.broadcast %131 : vector<32x1xf32> to vector<32x16xf32>
    %133 = arith.addf %130, %132 : vector<32x16xf32>
    %134 = vector.broadcast %0 : f32 to vector<32x16xf32>
    %135 = arith.mulf %134, %89 : vector<32x16xf32>
    %136 = vector.broadcast %1 : f32 to vector<32x16xf32>
    %137 = arith.mulf %136, %126 : vector<32x16xf32>
    %138 = arith.addf %135, %137 : vector<32x16xf32>
    %139 = vector.broadcast %2 : f32 to vector<32x16xf32>
    %140 = arith.mulf %139, %133 : vector<32x16xf32>
    %141 = arith.addf %138, %140 : vector<32x16xf32>
    %cst_85 = arith.constant 0.000000e+00 : f32
    %142 = vector.broadcast %cst_85 : f32 to vector<32x16xf32>
    %143 = arith.maximumf %141, %142 : vector<32x16xf32>
    %c0_86 = arith.constant 0 : index
    %c0_87 = arith.constant 0 : index
    %144 = vector.load %arg31[%c0_86, %c0_87] : memref<16x48xf32, #tpu.memory_space<vmem>>, vector<16x48xf32>
    %cst_88 = arith.constant dense<0.000000e+00> : vector<32x48xf32>
    %145 = tpu.matmul %143, %144, %cst_88 {dimension_numbers = #tpu.dot_dimension_numbers<[1], [0], [0], [1], [0, 0, 1, 1], [], []>, precision = #tpu.contract_precision<fp32>} : vector<32x16xf32>, vector<16x48xf32>, vector<32x48xf32> -> vector<32x48xf32>
    %c0_89 = arith.constant 0 : index
    %c0_90 = arith.constant 0 : index
    %146 = vector.load %arg32[%c0_89, %c0_90] : memref<1x48xf32, #tpu.memory_space<vmem>>, vector<1x48xf32>
    %147 = vector.broadcast %146 : vector<1x48xf32> to vector<32x48xf32>
    %148 = arith.addf %145, %147 : vector<32x48xf32>
    %c0_91 = arith.constant 0 : index
    %c0_92 = arith.constant 0 : index
    %149 = vector.load %arg23[%c0_91, %c0_92] : memref<32x32xf32, #tpu.memory_space<vmem>>, vector<32x32xf32>
    %cst_93 = arith.constant dense<0.000000e+00> : vector<32x48xf32>
    %150 = tpu.matmul %149, %148, %cst_93 {dimension_numbers = #tpu.dot_dimension_numbers<[1], [0], [0], [1], [0, 0, 1, 1], [], []>, precision = #tpu.contract_precision<fp32>} : vector<32x32xf32>, vector<32x48xf32>, vector<32x48xf32> -> vector<32x48xf32>
    %c0_94 = arith.constant 0 : index
    %c0_95 = arith.constant 0 : index
    %151 = vector.load %arg24[%c0_94, %c0_95] : memref<32x1xf32, #tpu.memory_space<vmem>>, vector<32x1xf32>
    %152 = vector.broadcast %151 : vector<32x1xf32> to vector<32x48xf32>
    %153 = arith.addf %150, %152 : vector<32x48xf32>
    %c0_96 = arith.constant 0 : index
    %c0_97 = arith.constant 0 : index
    %154 = vector.load %arg33[%c0_96, %c0_97] : memref<16x48xf32, #tpu.memory_space<vmem>>, vector<16x48xf32>
    %cst_98 = arith.constant dense<0.000000e+00> : vector<32x48xf32>
    %155 = tpu.matmul %143, %154, %cst_98 {dimension_numbers = #tpu.dot_dimension_numbers<[1], [0], [0], [1], [0, 0, 1, 1], [], []>, precision = #tpu.contract_precision<fp32>} : vector<32x16xf32>, vector<16x48xf32>, vector<32x48xf32> -> vector<32x48xf32>
    %c0_99 = arith.constant 0 : index
    %c0_100 = arith.constant 0 : index
    %156 = vector.load %arg21[%c0_99, %c0_100] : memref<32x32xf32, #tpu.memory_space<vmem>>, vector<32x32xf32>
    %cst_101 = arith.constant dense<0.000000e+00> : vector<32x48xf32>
    %157 = tpu.matmul %156, %155, %cst_101 {dimension_numbers = #tpu.dot_dimension_numbers<[1], [0], [0], [1], [0, 0, 1, 1], [], []>, precision = #tpu.contract_precision<fp32>} : vector<32x32xf32>, vector<32x48xf32>, vector<32x48xf32> -> vector<32x48xf32>
    %c0_102 = arith.constant 0 : index
    %c0_103 = arith.constant 0 : index
    %158 = vector.load %arg22[%c0_102, %c0_103] : memref<32x1xf32, #tpu.memory_space<vmem>>, vector<32x1xf32>
    %159 = vector.broadcast %158 : vector<32x1xf32> to vector<32x48xf32>
    %160 = arith.addf %157, %159 : vector<32x48xf32>
    %cst_104 = arith.constant 0.0416666679 : f32
    %161 = vector.broadcast %cst_104 : f32 to vector<32x48xf32>
    %162 = arith.mulf %160, %161 : vector<32x48xf32>
    %163 = vector.broadcast %3 : f32 to vector<32x48xf32>
    %164 = arith.mulf %163, %116 : vector<32x48xf32>
    %165 = vector.broadcast %4 : f32 to vector<32x48xf32>
    %166 = arith.mulf %165, %153 : vector<32x48xf32>
    %167 = arith.addf %164, %166 : vector<32x48xf32>
    %168 = vector.broadcast %5 : f32 to vector<32x48xf32>
    %169 = arith.mulf %168, %162 : vector<32x48xf32>
    %170 = arith.addf %167, %169 : vector<32x48xf32>
    %cst_105 = arith.constant 0.000000e+00 : f32
    %171 = vector.broadcast %cst_105 : f32 to vector<32x48xf32>
    %172 = arith.maximumf %170, %171 : vector<32x48xf32>
    %c0_106 = arith.constant 0 : index
    %c0_107 = arith.constant 0 : index
    %173 = vector.load %arg34[%c0_106, %c0_107] : memref<48x32xf32, #tpu.memory_space<vmem>>, vector<48x32xf32>
    %cst_108 = arith.constant dense<0.000000e+00> : vector<32x32xf32>
    %174 = tpu.matmul %172, %173, %cst_108 {dimension_numbers = #tpu.dot_dimension_numbers<[1], [0], [0], [1], [0, 0, 1, 1], [], []>, precision = #tpu.contract_precision<fp32>} : vector<32x48xf32>, vector<48x32xf32>, vector<32x32xf32> -> vector<32x32xf32>
    %c0_109 = arith.constant 0 : index
    %c0_110 = arith.constant 0 : index
    %175 = vector.load %arg35[%c0_109, %c0_110] : memref<1x32xf32, #tpu.memory_space<vmem>>, vector<1x32xf32>
    %176 = vector.broadcast %175 : vector<1x32xf32> to vector<32x32xf32>
    %177 = arith.addf %174, %176 : vector<32x32xf32>
    %c0_111 = arith.constant 0 : index
    %c0_112 = arith.constant 0 : index
    %178 = vector.load %arg23[%c0_111, %c0_112] : memref<32x32xf32, #tpu.memory_space<vmem>>, vector<32x32xf32>
    %cst_113 = arith.constant dense<0.000000e+00> : vector<32x32xf32>
    %179 = tpu.matmul %178, %177, %cst_113 {dimension_numbers = #tpu.dot_dimension_numbers<[1], [0], [0], [1], [0, 0, 1, 1], [], []>, precision = #tpu.contract_precision<fp32>} : vector<32x32xf32>, vector<32x32xf32>, vector<32x32xf32> -> vector<32x32xf32>
    %c0_114 = arith.constant 0 : index
    %c0_115 = arith.constant 0 : index
    %180 = vector.load %arg24[%c0_114, %c0_115] : memref<32x1xf32, #tpu.memory_space<vmem>>, vector<32x1xf32>
    %181 = vector.broadcast %180 : vector<32x1xf32> to vector<32x32xf32>
    %182 = arith.addf %179, %181 : vector<32x32xf32>
    %c0_116 = arith.constant 0 : index
    %c0_117 = arith.constant 0 : index
    %183 = vector.load %arg36[%c0_116, %c0_117] : memref<48x32xf32, #tpu.memory_space<vmem>>, vector<48x32xf32>
    %cst_118 = arith.constant dense<0.000000e+00> : vector<32x32xf32>
    %184 = tpu.matmul %172, %183, %cst_118 {dimension_numbers = #tpu.dot_dimension_numbers<[1], [0], [0], [1], [0, 0, 1, 1], [], []>, precision = #tpu.contract_precision<fp32>} : vector<32x48xf32>, vector<48x32xf32>, vector<32x32xf32> -> vector<32x32xf32>
    %c0_119 = arith.constant 0 : index
    %c0_120 = arith.constant 0 : index
    %185 = vector.load %arg21[%c0_119, %c0_120] : memref<32x32xf32, #tpu.memory_space<vmem>>, vector<32x32xf32>
    %cst_121 = arith.constant dense<0.000000e+00> : vector<32x32xf32>
    %186 = tpu.matmul %185, %184, %cst_121 {dimension_numbers = #tpu.dot_dimension_numbers<[1], [0], [0], [1], [0, 0, 1, 1], [], []>, precision = #tpu.contract_precision<fp32>} : vector<32x32xf32>, vector<32x32xf32>, vector<32x32xf32> -> vector<32x32xf32>
    %c0_122 = arith.constant 0 : index
    %c0_123 = arith.constant 0 : index
    %187 = vector.load %arg22[%c0_122, %c0_123] : memref<32x1xf32, #tpu.memory_space<vmem>>, vector<32x1xf32>
    %188 = vector.broadcast %187 : vector<32x1xf32> to vector<32x32xf32>
    %189 = arith.addf %186, %188 : vector<32x32xf32>
    %cst_124 = arith.constant 6.250000e-02 : f32
    %190 = vector.broadcast %cst_124 : f32 to vector<32x32xf32>
    %191 = arith.mulf %189, %190 : vector<32x32xf32>
    %192 = vector.broadcast %3 : f32 to vector<32x32xf32>
    %193 = arith.mulf %192, %35 : vector<32x32xf32>
    %194 = vector.broadcast %4 : f32 to vector<32x32xf32>
    %195 = arith.mulf %194, %182 : vector<32x32xf32>
    %196 = arith.addf %193, %195 : vector<32x32xf32>
    %197 = vector.broadcast %5 : f32 to vector<32x32xf32>
    %198 = arith.mulf %197, %191 : vector<32x32xf32>
    %199 = arith.addf %196, %198 : vector<32x32xf32>
    %cst_125 = arith.constant 0.000000e+00 : f32
    %200 = vector.broadcast %cst_125 : f32 to vector<32x32xf32>
    %201 = arith.maximumf %199, %200 : vector<32x32xf32>
    %c0_126 = arith.constant 0 : index
    %c0_127 = arith.constant 0 : index
    %202 = vector.load %arg37[%c0_126, %c0_127] : memref<32x32xf32, #tpu.memory_space<vmem>>, vector<32x32xf32>
    tpu.vector_store %arg37[%c0_126, %c0_127], %201 {strides = array<i32>} : memref<32x32xf32, #tpu.memory_space<vmem>>, vector<32x32xf32>,
    %c0_128 = arith.constant 0 : index
    %c0_129 = arith.constant 0 : index
    %203 = vector.load %arg38[%c0_128, %c0_129] : memref<32x48xf32, #tpu.memory_space<vmem>>, vector<32x48xf32>
    tpu.vector_store %arg38[%c0_128, %c0_129], %172 {strides = array<i32>} : memref<32x48xf32, #tpu.memory_space<vmem>>, vector<32x48xf32>,
    %c0_130 = arith.constant 0 : index
    %c0_131 = arith.constant 0 : index
    %204 = vector.load %arg39[%c0_130, %c0_131] : memref<32x16xf32, #tpu.memory_space<vmem>>, vector<32x16xf32>
    tpu.vector_store %arg39[%c0_130, %c0_131], %143 {strides = array<i32>} : memref<32x16xf32, #tpu.memory_space<vmem>>, vector<32x16xf32>,
    return
  }
}

</mosaic_0001>

<llo_original>
// kernel: forward.1
$region0: #{forward.1}
  #allocation0 [shape = 'u32[]', space=smem, size = 0x4, offset = 0x4, fixed_abs, tag = 'smem constant byte address 0x4 - core index']
  #allocation1 [shape = 'u32[72,128]{1,0:T(1,128)}', space=vmem, size = 0x9000, scoped, tag = 'internal scratch']
  %s0 = inlined_call_operand.smem [shape: u32[40], index: -1, kind: input, shape index: {}]
  %s1 = sld [smem:[%s0]]
  %s2 = scalar_lea.smem %s0, 1
  %s3 = sld [smem:[%s2]]
  %s4 = scalar_lea.smem %s0, 2
  %s5 = sld [smem:[%s4]]
  %s6 = scalar_lea.smem %s0, 3
  %s7 = sld [smem:[%s6]]
  %s8 = scalar_lea.smem %s0, 4
  %s9 = sld [smem:[%s8]]
  %s10 = scalar_lea.smem %s0, 5
  %s11 = sld [smem:[%s10]]
  %s12 = scalar_lea.smem %s0, 6
  %s13 = sld [smem:[%s12]]
  %s14 = scalar_lea.smem %s0, 7
  %s15 = sld [smem:[%s14]]
  %s16 = scalar_lea.smem %s0, 8
  %s17 = sld [smem:[%s16]]
  %s18 = scalar_lea.smem %s0, 9
  %s19 = sld [smem:[%s18]]
  %s20 = scalar_lea.smem %s0, 10
  %s21 = sld [smem:[%s20]]
  %s22 = scalar_lea.smem %s0, 11
  %s23 = sld [smem:[%s22]]
  %s24 = scalar_lea.smem %s0, 12
  %s25 = sld [smem:[%s24]]
  %s26 = scalar_lea.smem %s0, 13
  %s27 = sld [smem:[%s26]]
  %s28 = scalar_lea.smem %s0, 14
  %s29 = sld [smem:[%s28]]
  %s30 = scalar_lea.smem %s0, 15
  %s31 = sld [smem:[%s30]]
  %s32 = scalar_lea.smem %s0, 16
  %s33 = sld [smem:[%s32]]
  %s34 = scalar_lea.smem %s0, 17
  %s35 = sld [smem:[%s34]]
  %s36 = scalar_lea.smem %s0, 18
  %s37 = sld [smem:[%s36]]
  %s38 = scalar_lea.smem %s0, 19
  %s39 = sld [smem:[%s38]]
  %s40 = scalar_lea.smem %s0, 20
  %s41 = sld [smem:[%s40]]
  %s42 = scalar_lea.smem %s0, 21
  %s43 = sld [smem:[%s42]]
  %s44 = scalar_lea.smem %s0, 22
  %s45 = sld [smem:[%s44]]
  %s46 = scalar_lea.smem %s0, 23
  %s47 = sld [smem:[%s46]]
  %s48 = scalar_lea.smem %s0, 24
  %s49 = sld [smem:[%s48]]
  %s50 = scalar_lea.smem %s0, 25
  %s51 = sld [smem:[%s50]]
  %s52 = scalar_lea.smem %s0, 26
  %s53 = sld [smem:[%s52]]
  %s54 = scalar_lea.smem %s0, 27
  %s55 = sld [smem:[%s54]]
  %s56 = scalar_lea.smem %s0, 28
  %s57 = sld [smem:[%s56]]
  %s58 = scalar_lea.smem %s0, 29
  %s59 = sld [smem:[%s58]]
  %s60 = scalar_lea.smem %s0, 30
  %s61 = sld [smem:[%s60]]
  %s62 = scalar_lea.smem %s0, 31
  %s63 = sld [smem:[%s62]]
  %s64 = scalar_lea.smem %s0, 32
  %s65 = sld [smem:[%s64]]
  %s66 = scalar_lea.smem %s0, 33
  %s67 = sld [smem:[%s66]]
  %s68 = scalar_lea.smem %s0, 34
  %s69 = sld [smem:[%s68]]
  %s70 = scalar_lea.smem %s0, 35
  %s71 = sld [smem:[%s70]]
  %s72 = scalar_lea.smem %s0, 36
  %s73 = sld [smem:[%s72]]
  %s74 = scalar_lea.smem %s0, 37
  %s75 = sld [smem:[%s74]]
  %s76 = scalar_lea.smem %s0, 38
  %s77 = sld [smem:[%s76]]
  %s78 = scalar_lea.smem %s0, 39
  %s79 = sld [smem:[%s78]]
  %80 = xla_tuple %s75, %s77, %s79
  %s81 = sld [smem:[#allocation0]]
  $region178: #{forward.1} parent=0
    _
  %s83 = ssub.s32 1, %s81
  %s84 = scalar_select 0, %s83, %s81
  $region1: #{forward.1} parent=0
    #allocation2 [shape = 'u8[512]{0}', space=smem, size = 0x200, scoped, tag = 'input window, operand 0, single buffered']
    #allocation3 [shape = 's32[1]{0}', space=sflag, size = 0x4, scoped, tag = 'scoped memory for forward.1']
    %85 = vsyncpa [#allocation3], 0
    // Predicated region
    $region2: #{forward.1} parent=1 // pred_check
      _
    $region3: #{forward.1} parent=1 // pred_check_branch
      %87 = sbr.rel (0) target = $region5
    $region4: #{forward.1} parent=1 // pred_region
      %89 = vsyncadd [#allocation3], 0
      %s91 = sshll.u32 %s1, 4
      %s92 = int_to_ptr.vmem [resolvable:$true] %s91
      %94 = dma.vmem_to_smem %s92, 16, [#allocation2], [#allocation3]
    $region5: #{forward.1} parent=1 // pred_fallthru
      _
    // Predicated region
    $region6: #{forward.1} parent=1 // pred_check
      _
    $region7: #{forward.1} parent=1 // pred_check_branch
      %96 = sbr.rel (0) target = $region9
    $region8: #{forward.1} parent=1 // pred_region
      _
    $region9: #{forward.1} parent=1 // pred_fallthru
      _
    // Predicated region
    $region10: #{forward.1} parent=1 // pred_check
      _
    $region11: #{forward.1} parent=1 // pred_check_branch
      %98 = sbr.rel (0) target = $region13
    $region12: #{forward.1} parent=1 // pred_region
      _
    $region13: #{forward.1} parent=1 // pred_fallthru
      _
    // Predicated region
    $region14: #{forward.1} parent=1 // pred_check
      _
    $region15: #{forward.1} parent=1 // pred_check_branch
      %100 = sbr.rel (0) target = $region17
    $region16: #{forward.1} parent=1 // pred_region
      _
    $region17: #{forward.1} parent=1 // pred_fallthru
      _
    // Predicated region
    $region18: #{forward.1} parent=1 // pred_check
      _
    $region19: #{forward.1} parent=1 // pred_check_branch
      %102 = sbr.rel (0) target = $region21
    $region20: #{forward.1} parent=1 // pred_region
      _
    $region21: #{forward.1} parent=1 // pred_fallthru
      _
    // Predicated region
    $region22: #{forward.1} parent=1 // pred_check
      _
    $region23: #{forward.1} parent=1 // pred_check_branch
      %104 = sbr.rel (0) target = $region25
    $region24: #{forward.1} parent=1 // pred_region
      _
    $region25: #{forward.1} parent=1 // pred_fallthru
      _
    // Predicated region
    $region26: #{forward.1} parent=1 // pred_check
      _
    $region27: #{forward.1} parent=1 // pred_check_branch
      %106 = sbr.rel (0) target = $region29
    $region28: #{forward.1} parent=1 // pred_region
      _
    $region29: #{forward.1} parent=1 // pred_fallthru
      _
    // Predicated region
    $region30: #{forward.1} parent=1 // pred_check
      _
    $region31: #{forward.1} parent=1 // pred_check_branch
      %108 = sbr.rel (0) target = $region33
    $region32: #{forward.1} parent=1 // pred_region
      _
    $region33: #{forward.1} parent=1 // pred_fallthru
      _
    // Predicated region
    $region34: #{forward.1} parent=1 // pred_check
      _
    $region35: #{forward.1} parent=1 // pred_check_branch
      %110 = sbr.rel (0) target = $region37
    $region36: #{forward.1} parent=1 // pred_region
      _
    $region37: #{forward.1} parent=1 // pred_fallthru
      _
    // Predicated region
    $region38: #{forward.1} parent=1 // pred_check
      _
    $region39: #{forward.1} parent=1 // pred_check_branch
      %112 = sbr.rel (0) target = $region41
    $region40: #{forward.1} parent=1 // pred_region
      _
    $region41: #{forward.1} parent=1 // pred_fallthru
      _
    // Predicated region
    $region42: #{forward.1} parent=1 // pred_check
      _
    $region43: #{forward.1} parent=1 // pred_check_branch
      %114 = sbr.rel (0) target = $region45
    $region44: #{forward.1} parent=1 // pred_region
      _
    $region45: #{forward.1} parent=1 // pred_fallthru
      _
    // Predicated region
    $region46: #{forward.1} parent=1 // pred_check
      _
    $region47: #{forward.1} parent=1 // pred_check_branch
      %116 = sbr.rel (0) target = $region49
    $region48: #{forward.1} parent=1 // pred_region
      _
    $region49: #{forward.1} parent=1 // pred_fallthru
      _
    // Predicated region
    $region50: #{forward.1} parent=1 // pred_check
      _
    $region51: #{forward.1} parent=1 // pred_check_branch
      %118 = sbr.rel (0) target = $region53
    $region52: #{forward.1} parent=1 // pred_region
      _
    $region53: #{forward.1} parent=1 // pred_fallthru
      _
    // Predicated region
    $region54: #{forward.1} parent=1 // pred_check
      _
    $region55: #{forward.1} parent=1 // pred_check_branch
      %120 = sbr.rel (0) target = $region57
    $region56: #{forward.1} parent=1 // pred_region
      _
    $region57: #{forward.1} parent=1 // pred_fallthru
      _
    // Predicated region
    $region58: #{forward.1} parent=1 // pred_check
      _
    $region59: #{forward.1} parent=1 // pred_check_branch
      %122 = sbr.rel (0) target = $region61
    $region60: #{forward.1} parent=1 // pred_region
      _
    $region61: #{forward.1} parent=1 // pred_fallthru
      _
    // Predicated region
    $region62: #{forward.1} parent=1 // pred_check
      _
    $region63: #{forward.1} parent=1 // pred_check_branch
      %124 = sbr.rel (0) target = $region65
    $region64: #{forward.1} parent=1 // pred_region
      _
    $region65: #{forward.1} parent=1 // pred_fallthru
      _
    // Predicated region
    $region66: #{forward.1} parent=1 // pred_check
      _
    $region67: #{forward.1} parent=1 // pred_check_branch
      %126 = sbr.rel (0) target = $region69
    $region68: #{forward.1} parent=1 // pred_region
      _
    $region69: #{forward.1} parent=1 // pred_fallthru
      _
    // Predicated region
    $region70: #{forward.1} parent=1 // pred_check
      _
    $region71: #{forward.1} parent=1 // pred_check_branch
      %128 = sbr.rel (0) target = $region73
    $region72: #{forward.1} parent=1 // pred_region
      _
    $region73: #{forward.1} parent=1 // pred_fallthru
      _
    // Predicated region
    $region74: #{forward.1} parent=1 // pred_check
      _
    $region75: #{forward.1} parent=1 // pred_check_branch
      %130 = sbr.rel (0) target = $region77
    $region76: #{forward.1} parent=1 // pred_region
      _
    $region77: #{forward.1} parent=1 // pred_fallthru
      _
    // Predicated region
    $region78: #{forward.1} parent=1 // pred_check
      _
    $region79: #{forward.1} parent=1 // pred_check_branch
      %132 = sbr.rel (0) target = $region81
    $region80: #{forward.1} parent=1 // pred_region
      _
    $region81: #{forward.1} parent=1 // pred_fallthru
      _
    // Predicated region
    $region82: #{forward.1} parent=1 // pred_check
      _
    $region83: #{forward.1} parent=1 // pred_check_branch
      %134 = sbr.rel (0) target = $region85
    $region84: #{forward.1} parent=1 // pred_region
      _
    $region85: #{forward.1} parent=1 // pred_fallthru
      _
    // Predicated region
    $region86: #{forward.1} parent=1 // pred_check
      _
    $region87: #{forward.1} parent=1 // pred_check_branch
      %136 = sbr.rel (0) target = $region89
    $region88: #{forward.1} parent=1 // pred_region
      _
    $region89: #{forward.1} parent=1 // pred_fallthru
      _
    // Predicated region
    $region90: #{forward.1} parent=1 // pred_check
      _
    $region91: #{forward.1} parent=1 // pred_check_branch
      %138 = sbr.rel (0) target = $region93
    $region92: #{forward.1} parent=1 // pred_region
      _
    $region93: #{forward.1} parent=1 // pred_fallthru
      _
    // Predicated region
    $region94: #{forward.1} parent=1 // pred_check
      _
    $region95: #{forward.1} parent=1 // pred_check_branch
      %140 = sbr.rel (0) target = $region97
    $region96: #{forward.1} parent=1 // pred_region
      _
    $region97: #{forward.1} parent=1 // pred_fallthru
      _
    // Predicated region
    $region98: #{forward.1} parent=1 // pred_check
      _
    $region99: #{forward.1} parent=1 // pred_check_branch
      %142 = sbr.rel (0) target = $region101
    $region100: #{forward.1} parent=1 // pred_region
      _
    $region101: #{forward.1} parent=1 // pred_fallthru
      _
    // Predicated region
    $region102: #{forward.1} parent=1 // pred_check
      _
    $region103: #{forward.1} parent=1 // pred_check_branch
      %144 = sbr.rel (0) target = $region105
    $region104: #{forward.1} parent=1 // pred_region
      _
    $region105: #{forward.1} parent=1 // pred_fallthru
      _
    // Predicated region
    $region106: #{forward.1} parent=1 // pred_check
      _
    $region107: #{forward.1} parent=1 // pred_check_branch
      %146 = sbr.rel (0) target = $region109
    $region108: #{forward.1} parent=1 // pred_region
      _
    $region109: #{forward.1} parent=1 // pred_fallthru
      _
    // Predicated region
    $region110: #{forward.1} parent=1 // pred_check
      _
    $region111: #{forward.1} parent=1 // pred_check_branch
      %148 = sbr.rel (0) target = $region113
    $region112: #{forward.1} parent=1 // pred_region
      _
    $region113: #{forward.1} parent=1 // pred_fallthru
      _
    // Predicated region
    $region114: #{forward.1} parent=1 // pred_check
      _
    $region115: #{forward.1} parent=1 // pred_check_branch
      %150 = sbr.rel (0) target = $region117
    $region116: #{forward.1} parent=1 // pred_region
      _
    $region117: #{forward.1} parent=1 // pred_fallthru
      _
    // Predicated region
    $region118: #{forward.1} parent=1 // pred_check
      _
    $region119: #{forward.1} parent=1 // pred_check_branch
      %152 = sbr.rel (0) target = $region121
    $region120: #{forward.1} parent=1 // pred_region
      _
    $region121: #{forward.1} parent=1 // pred_fallthru
      _
    // Predicated region
    $region122: #{forward.1} parent=1 // pred_check
      _
    $region123: #{forward.1} parent=1 // pred_check_branch
      %154 = sbr.rel (0) target = $region125
    $region124: #{forward.1} parent=1 // pred_region
      _
    $region125: #{forward.1} parent=1 // pred_fallthru
      _
    // Predicated region
    $region126: #{forward.1} parent=1 // pred_check
      _
    $region127: #{forward.1} parent=1 // pred_check_branch
      %156 = sbr.rel (0) target = $region129
    $region128: #{forward.1} parent=1 // pred_region
      _
    $region129: #{forward.1} parent=1 // pred_fallthru
      _
    // Predicated region
    $region130: #{forward.1} parent=1 // pred_check
      _
    $region131: #{forward.1} parent=1 // pred_check_branch
      %158 = sbr.rel (0) target = $region133
    $region132: #{forward.1} parent=1 // pred_region
      _
    $region133: #{forward.1} parent=1 // pred_fallthru
      _
    // Predicated region
    $region134: #{forward.1} parent=1 // pred_check
      _
    $region135: #{forward.1} parent=1 // pred_check_branch
      %160 = sbr.rel (0) target = $region137
    $region136: #{forward.1} parent=1 // pred_region
      _
    $region137: #{forward.1} parent=1 // pred_fallthru
      _
    // Predicated region
    $region138: #{forward.1} parent=1 // pred_check
      _
    $region139: #{forward.1} parent=1 // pred_check_branch
      %162 = sbr.rel (0) target = $region141
    $region140: #{forward.1} parent=1 // pred_region
      _
    $region141: #{forward.1} parent=1 // pred_fallthru
      _
    // Predicated region
    $region142: #{forward.1} parent=1 // pred_check
      _
    $region143: #{forward.1} parent=1 // pred_check_branch
      %164 = sbr.rel (0) target = $region145
    $region144: #{forward.1} parent=1 // pred_region
      _
    $region145: #{forward.1} parent=1 // pred_fallthru
      _
    // Predicated region
    $region146: #{forward.1} parent=1 // pred_check
      _
    $region147: #{forward.1} parent=1 // pred_check_branch
      %166 = sbr.rel (0) target = $region149
    $region148: #{forward.1} parent=1 // pred_region
      _
    $region149: #{forward.1} parent=1 // pred_fallthru
      _
    // Predicated region
    $region150: #{forward.1} parent=1 // pred_check
      _
    $region151: #{forward.1} parent=1 // pred_check_branch
      %168 = sbr.rel (0) target = $region153
    $region152: #{forward.1} parent=1 // pred_region
      %170 = dma.done [#allocation3], 16
    $region153: #{forward.1} parent=1 // pred_fallthru
      _
    %171 = sfence
    %s172 = sld [smem:[#allocation2]]
    %s173 = sld [smem:[#allocation2 + $0x1]]
    %s174 = sld [smem:[#allocation2 + $0x2]]
    %s175 = sld [smem:[#allocation2 + $0x3]]
    %s176 = sld [smem:[#allocation2 + $0x4]]
    %s177 = sld [smem:[#allocation2 + $0x5]]
    %v178 = vld [vmem:[%s19] sm:$0xff]
    %v179 = vld [vmem:[%s19 + $0x8] sm:$0xff]
    %v180 = vld [vmem:[%s19 + $0x10] sm:$0xff]
    %v181 = vld [vmem:[%s19 + $0x18] sm:$0xff]
    %v182 = vld [vmem:[%s21] sm:$0xff]
    %v183 = vld [vmem:[%s21 + $0x8] sm:$0xff]
    %v184 = vld [vmem:[%s21 + $0x10] sm:$0xff]
    %v185 = vld [vmem:[%s21 + $0x18] sm:$0xff]
    %v186 = vld [vmem:[%s3] sm:$0x1]
    %188 = vset.pattern.permute.xlu0 0
    %189 = vperm.xlu0 %188, %v178
    %v190 = vpop.permute.xlu0 %189
    %193 = vset.pattern.permute.xlu0 0
    %194 = vperm.xlu0 %193, %v179
    %v195 = vpop.permute.xlu0 %194
    %198 = vset.pattern.permute.xlu0 0
    %199 = vperm.xlu0 %198, %v180
    %v200 = vpop.permute.xlu0 %199
    %203 = vset.pattern.permute.xlu0 0
    %204 = vperm.xlu0 %203, %v181
    %v205 = vpop.permute.xlu0 %204
    %v208 = vperm.slane %v186, 0
    %v210 = vmul.f32 %v190, %v208
    %v211 = vmul.f32 %v195, %v208
    %v212 = vmul.f32 %v200, %v208
    %v213 = vmul.f32 %v205, %v208
    %215 = vset.pattern.permute.xlu0 0
    %216 = vperm.xlu0 %215, %v182
    %v217 = vpop.permute.xlu0 %216
    %220 = vset.pattern.permute.xlu0 0
    %221 = vperm.xlu0 %220, %v183
    %v222 = vpop.permute.xlu0 %221
    %225 = vset.pattern.permute.xlu0 0
    %226 = vperm.xlu0 %225, %v184
    %v227 = vpop.permute.xlu0 %226
    %230 = vset.pattern.permute.xlu0 0
    %231 = vperm.xlu0 %230, %v185
    %v232 = vpop.permute.xlu0 %231
    %v234 = vadd.f32 %v217, %v210
    %v235 = vadd.f32 %v222, %v211
    %v236 = vadd.f32 %v227, %v212
    %v237 = vadd.f32 %v232, %v213
    %v238 = vld [vmem:[%s5] sm:$0x1]
    %239 = vset.pattern.permute.xlu0 1
    %240 = vperm.xlu0 %239, %v178
    %v241 = vpop.permute.xlu0 %240
    %243 = vset.pattern.permute.xlu0 1
    %244 = vperm.xlu0 %243, %v179
    %v245 = vpop.permute.xlu0 %244
    %247 = vset.pattern.permute.xlu0 1
    %248 = vperm.xlu0 %247, %v180
    %v249 = vpop.permute.xlu0 %248
    %251 = vset.pattern.permute.xlu0 1
    %252 = vperm.xlu0 %251, %v181
    %v253 = vpop.permute.xlu0 %252
    %v256 = vperm.slane %v238, 0
    %v258 = vmul.f32 %v241, %v256
    %v259 = vmul.f32 %v245, %v256
    %v260 = vmul.f32 %v249, %v256
    %v261 = vmul.f32 %v253, %v256
    %v262 = vadd.f32 %v234, %v258
    %v263 = vadd.f32 %v235, %v259
    %v264 = vadd.f32 %v236, %v260
    %v265 = vadd.f32 %v237, %v261
    %v266 = vld [vmem:[%s7] sm:$0x1]
    %267 = vset.pattern.permute.xlu0 2
    %268 = vperm.xlu0 %267, %v178
    %v269 = vpop.permute.xlu0 %268
    %271 = vset.pattern.permute.xlu0 2
    %272 = vperm.xlu0 %271, %v179
    %v273 = vpop.permute.xlu0 %272
    %275 = vset.pattern.permute.xlu0 2
    %276 = vperm.xlu0 %275, %v180
    %v277 = vpop.permute.xlu0 %276
    %279 = vset.pattern.permute.xlu0 2
    %280 = vperm.xlu0 %279, %v181
    %v281 = vpop.permute.xlu0 %280
    %v284 = vperm.slane %v266, 0
    %v286 = vmul.f32 %v269, %v284
    %v287 = vmul.f32 %v273, %v284
    %v288 = vmul.f32 %v277, %v284
    %v289 = vmul.f32 %v281, %v284
    %v290 = vadd.f32 %v262, %v286
    %v291 = vadd.f32 %v263, %v287
    %v292 = vadd.f32 %v264, %v288
    %v293 = vadd.f32 %v265, %v289
    %v294 = vmax.f32 %v290, 0.0
    %v295 = vmax.f32 %v291, 0.0
    %v296 = vmax.f32 %v292, 0.0
    %v297 = vmax.f32 %v293, 0.0
    %v298 = vld [vmem:[%s23] sm:$0xff]
    %v299 = vld [vmem:[%s23 + $0x8] sm:$0xff]
    %v300 = vld [vmem:[%s23 + $0x10] sm:$0xff]
    %v301 = vld [vmem:[%s23 + $0x18] sm:$0xff]
    %v302 = vld [vmem:[%s25] sm:$0xff]
    %v303 = vld [vmem:[%s25 + $0x8] sm:$0xff]
    %v304 = vld [vmem:[%s25 + $0x10] sm:$0xff]
    %v305 = vld [vmem:[%s25 + $0x18] sm:$0xff]
    %307 = vset.pattern.permute.xlu0 0
    %308 = vperm.xlu0 %307, %v302
    %v309 = vpop.permute.xlu0 %308
    %312 = vset.pattern.permute.xlu0 0
    %313 = vperm.xlu0 %312, %v303
    %v314 = vpop.permute.xlu0 %313
    %317 = vset.pattern.permute.xlu0 0
    %318 = vperm.xlu0 %317, %v304
    %v319 = vpop.permute.xlu0 %318
    %322 = vset.pattern.permute.xlu0 0
    %323 = vperm.xlu0 %322, %v305
    %v324 = vpop.permute.xlu0 %323
    %vm326 = vcmask 261120
    %v328 = vsel %vm326, %v298, 0
    %v331 = vsel %vm326, %v299, 0
    %v334 = vsel %vm326, %v300, 0
    %v337 = vsel %vm326, %v301, 0
    %339 = vmatpush.msra.mxu0 0.0
    %340 = vmatpush.msra.mxu0 0.0
    %341 = vmatpush.msra.mxu0 0.0
    %342 = vmatpush.msra.mxu0 0.0
    %343 = vmatpush.msra.mxu0 0.0
    %344 = vmatpush.msra.mxu0 0.0
    %345 = vmatpush.msra.mxu0 0.0
    %346 = vmatpush.msra.mxu0 0.0
    %347 = vmatpush.msra.mxu0 0.0
    %348 = vmatpush.msra.mxu0 0.0
    %349 = vmatpush.msra.mxu0 0.0
    %350 = vmatpush.msra.mxu0 0.0
    %v351 = vand.u32 %v297, 4294901760
    %352 = vmatpush.msra.mxu0 %v351
    %v353 = vand.u32 %v296, 4294901760
    %354 = vmatpush.msra.mxu0 %v353
    %v355 = vand.u32 %v295, 4294901760
    %356 = vmatpush.msra.mxu0 %v355
    %v357 = vand.u32 %v294, 4294901760
    %358 = vmatpush.msra.mxu0 %v357
    %v359 = vand.u32 %v328, 4294901760
    %v360 = vsub.f32 %v328, %v359
    %v361 = vand.u32 %v360, 4294901760
    %v362 = vsub.f32 %v360, %v361
    %v363 = vand.u32 %v362, 4294901760
    %364 = vmatmul.f32.gmra.mxu0 %v363
    %v365 = vpop.f32.mrf.mxu0
    %v366 = vadd.f32 %v309, %v365
    %v367 = vand.u32 %v331, 4294901760
    %v368 = vsub.f32 %v331, %v367
    %v369 = vand.u32 %v368, 4294901760
    %v370 = vsub.f32 %v368, %v369
    %v371 = vand.u32 %v370, 4294901760
    %372 = vmatmul.f32.gmra.mxu0 %v371
    %v373 = vpop.f32.mrf.mxu0
    %v374 = vadd.f32 %v314, %v373
    %v375 = vand.u32 %v334, 4294901760
    %v376 = vsub.f32 %v334, %v375
    %v377 = vand.u32 %v376, 4294901760
    %v378 = vsub.f32 %v376, %v377
    %v379 = vand.u32 %v378, 4294901760
    %380 = vmatmul.f32.gmra.mxu0 %v379
    %v381 = vpop.f32.mrf.mxu0
    %v382 = vadd.f32 %v319, %v381
    %v383 = vand.u32 %v337, 4294901760
    %v384 = vsub.f32 %v337, %v383
    %v385 = vand.u32 %v384, 4294901760
    %v386 = vsub.f32 %v384, %v385
    %v387 = vand.u32 %v386, 4294901760
    %388 = vmatmul.f32.gmra.mxu0 %v387
    %v389 = vpop.f32.mrf.mxu0
    %v390 = vadd.f32 %v324, %v389
    %391 = vdwg.mxu0
    %392 = vmatpush.msra.mxu0 0.0
    %393 = vmatpush.msra.mxu0 0.0
    %394 = vmatpush.msra.mxu0 0.0
    %395 = vmatpush.msra.mxu0 0.0
    %396 = vmatpush.msra.mxu0 0.0
    %397 = vmatpush.msra.mxu0 0.0
    %398 = vmatpush.msra.mxu0 0.0
    %399 = vmatpush.msra.mxu0 0.0
    %400 = vmatpush.msra.mxu0 0.0
    %401 = vmatpush.msra.mxu0 0.0
    %402 = vmatpush.msra.mxu0 0.0
    %403 = vmatpush.msra.mxu0 0.0
    %v404 = vand.u32 %v297, 4294901760
    %v405 = vsub.f32 %v297, %v404
    %v406 = vand.u32 %v405, 4294901760
    %v407 = vsub.f32 %v405, %v406
    %v408 = vand.u32 %v407, 4294901760
    %409 = vmatpush.msra.mxu0 %v408
    %v410 = vand.u32 %v296, 4294901760
    %v411 = vsub.f32 %v296, %v410
    %v412 = vand.u32 %v411, 4294901760
    %v413 = vsub.f32 %v411, %v412
    %v414 = vand.u32 %v413, 4294901760
    %415 = vmatpush.msra.mxu0 %v414
    %v416 = vand.u32 %v295, 4294901760
    %v417 = vsub.f32 %v295, %v416
    %v418 = vand.u32 %v417, 4294901760
    %v419 = vsub.f32 %v417, %v418
    %v420 = vand.u32 %v419, 4294901760
    %421 = vmatpush.msra.mxu0 %v420
    %v422 = vand.u32 %v294, 4294901760
    %v423 = vsub.f32 %v294, %v422
    %v424 = vand.u32 %v423, 4294901760
    %v425 = vsub.f32 %v423, %v424
    %v426 = vand.u32 %v425, 4294901760
    %427 = vmatpush.msra.mxu0 %v426
    %v428 = vand.u32 %v328, 4294901760
    %429 = vmatmul.f32.gmra.mxu0 %v428
    %v430 = vpop.f32.mrf.mxu0
    %v431 = vadd.f32 %v366, %v430
    %v432 = vand.u32 %v331, 4294901760
    %433 = vmatmul.f32.gmra.mxu0 %v432
    %v434 = vpop.f32.mrf.mxu0
    %v435 = vadd.f32 %v374, %v434
    %v436 = vand.u32 %v334, 4294901760
    %437 = vmatmul.f32.gmra.mxu0 %v436
    %v438 = vpop.f32.mrf.mxu0
    %v439 = vadd.f32 %v382, %v438
    %v440 = vand.u32 %v337, 4294901760
    %441 = vmatmul.f32.gmra.mxu0 %v440
    %v442 = vpop.f32.mrf.mxu0
    %v443 = vadd.f32 %v390, %v442
    %444 = vdwg.mxu0
    %445 = vmatpush.msra.mxu0 0.0
    %446 = vmatpush.msra.mxu0 0.0
    %447 = vmatpush.msra.mxu0 0.0
    %448 = vmatpush.msra.mxu0 0.0
    %449 = vmatpush.msra.mxu0 0.0
    %450 = vmatpush.msra.mxu0 0.0
    %451 = vmatpush.msra.mxu0 0.0
    %452 = vmatpush.msra.mxu0 0.0
    %453 = vmatpush.msra.mxu0 0.0
    %454 = vmatpush.msra.mxu0 0.0
    %455 = vmatpush.msra.mxu0 0.0
    %456 = vmatpush.msra.mxu0 0.0
    %v457 = vand.u32 %v297, 4294901760
    %v458 = vsub.f32 %v297, %v457
    %459 = vmatpush.msra.mxu0 %v458
    %v460 = vand.u32 %v296, 4294901760
    %v461 = vsub.f32 %v296, %v460
    %462 = vmatpush.msra.mxu0 %v461
    %v463 = vand.u32 %v295, 4294901760
    %v464 = vsub.f32 %v295, %v463
    %465 = vmatpush.msra.mxu0 %v464
    %v466 = vand.u32 %v294, 4294901760
    %v467 = vsub.f32 %v294, %v466
    %468 = vmatpush.msra.mxu0 %v467
    %v469 = vand.u32 %v328, 4294901760
    %v470 = vsub.f32 %v328, %v469
    %471 = vmatmul.f32.gmra.mxu0 %v470
    %v472 = vpop.f32.mrf.mxu0
    %v473 = vadd.f32 %v431, %v472
    %v474 = vand.u32 %v331, 4294901760
    %v475 = vsub.f32 %v331, %v474
    %476 = vmatmul.f32.gmra.mxu0 %v475
    %v477 = vpop.f32.mrf.mxu0
    %v478 = vadd.f32 %v435, %v477
    %v479 = vand.u32 %v334, 4294901760
    %v480 = vsub.f32 %v334, %v479
    %481 = vmatmul.f32.gmra.mxu0 %v480
    %v482 = vpop.f32.mrf.mxu0
    %v483 = vadd.f32 %v439, %v482
    %v484 = vand.u32 %v337, 4294901760
    %v485 = vsub.f32 %v337, %v484
    %486 = vmatmul.f32.gmra.mxu0 %v485
    %v487 = vpop.f32.mrf.mxu0
    %v488 = vadd.f32 %v443, %v487
    %489 = vdwg.mxu0
    %490 = vmatpush.msra.mxu0 0.0
    %491 = vmatpush.msra.mxu0 0.0
    %492 = vmatpush.msra.mxu0 0.0
    %493 = vmatpush.msra.mxu0 0.0
    %494 = vmatpush.msra.mxu0 0.0
    %495 = vmatpush.msra.mxu0 0.0
    %496 = vmatpush.msra.mxu0 0.0
    %497 = vmatpush.msra.mxu0 0.0
    %498 = vmatpush.msra.mxu0 0.0
    %499 = vmatpush.msra.mxu0 0.0
    %500 = vmatpush.msra.mxu0 0.0
    %501 = vmatpush.msra.mxu0 0.0
    %v502 = vand.u32 %v297, 4294901760
    %503 = vmatpush.msra.mxu0 %v502
    %v504 = vand.u32 %v296, 4294901760
    %505 = vmatpush.msra.mxu0 %v504
    %v506 = vand.u32 %v295, 4294901760
    %507 = vmatpush.msra.mxu0 %v506
    %v508 = vand.u32 %v294, 4294901760
    %509 = vmatpush.msra.mxu0 %v508
    %v510 = vand.u32 %v328, 4294901760
    %v511 = vsub.f32 %v328, %v510
    %v512 = vand.u32 %v511, 4294901760
    %513 = vmatmul.f32.gmra.mxu0 %v512
    %v514 = vpop.f32.mrf.mxu0
    %v515 = vadd.f32 %v473, %v514
    %v516 = vand.u32 %v331, 4294901760
    %v517 = vsub.f32 %v331, %v516
    %v518 = vand.u32 %v517, 4294901760
    %519 = vmatmul.f32.gmra.mxu0 %v518
    %v520 = vpop.f32.mrf.mxu0
    %v521 = vadd.f32 %v478, %v520
    %v522 = vand.u32 %v334, 4294901760
    %v523 = vsub.f32 %v334, %v522
    %v524 = vand.u32 %v523, 4294901760
    %525 = vmatmul.f32.gmra.mxu0 %v524
    %v526 = vpop.f32.mrf.mxu0
    %v527 = vadd.f32 %v483, %v526
    %v528 = vand.u32 %v337, 4294901760
    %v529 = vsub.f32 %v337, %v528
    %v530 = vand.u32 %v529, 4294901760
    %531 = vmatmul.f32.gmra.mxu0 %v530
    %v532 = vpop.f32.mrf.mxu0
    %v533 = vadd.f32 %v488, %v532
    %534 = vdwg.mxu0
    %535 = vmatpush.msra.mxu0 0.0
    %536 = vmatpush.msra.mxu0 0.0
    %537 = vmatpush.msra.mxu0 0.0
    %538 = vmatpush.msra.mxu0 0.0
    %539 = vmatpush.msra.mxu0 0.0
    %540 = vmatpush.msra.mxu0 0.0
    %541 = vmatpush.msra.mxu0 0.0
    %542 = vmatpush.msra.mxu0 0.0
    %543 = vmatpush.msra.mxu0 0.0
    %544 = vmatpush.msra.mxu0 0.0
    %545 = vmatpush.msra.mxu0 0.0
    %546 = vmatpush.msra.mxu0 0.0
    %v547 = vand.u32 %v297, 4294901760
    %v548 = vsub.f32 %v297, %v547
    %v549 = vand.u32 %v548, 4294901760
    %550 = vmatpush.msra.mxu0 %v549
    %v551 = vand.u32 %v296, 4294901760
    %v552 = vsub.f32 %v296, %v551
    %v553 = vand.u32 %v552, 4294901760
    %554 = vmatpush.msra.mxu0 %v553
    %v555 = vand.u32 %v295, 4294901760
    %v556 = vsub.f32 %v295, %v555
    %v557 = vand.u32 %v556, 4294901760
    %558 = vmatpush.msra.mxu0 %v557
    %v559 = vand.u32 %v294, 4294901760
    %v560 = vsub.f32 %v294, %v559
    %v561 = vand.u32 %v560, 4294901760
    %562 = vmatpush.msra.mxu0 %v561
    %v563 = vand.u32 %v328, 4294901760
    %564 = vmatmul.f32.gmra.mxu0 %v563
    %v565 = vpop.f32.mrf.mxu0
    %v566 = vadd.f32 %v515, %v565
    %v567 = vand.u32 %v331, 4294901760
    %568 = vmatmul.f32.gmra.mxu0 %v567
    %v569 = vpop.f32.mrf.mxu0
    %v570 = vadd.f32 %v521, %v569
    %v571 = vand.u32 %v334, 4294901760
    %572 = vmatmul.f32.gmra.mxu0 %v571
    %v573 = vpop.f32.mrf.mxu0
    %v574 = vadd.f32 %v527, %v573
    %v575 = vand.u32 %v337, 4294901760
    %576 = vmatmul.f32.gmra.mxu0 %v575
    %v577 = vpop.f32.mrf.mxu0
    %v578 = vadd.f32 %v533, %v577
    %579 = vdwg.mxu0
    %580 = vmatpush.msra.mxu0 0.0
    %581 = vmatpush.msra.mxu0 0.0
    %582 = vmatpush.msra.mxu0 0.0
    %583 = vmatpush.msra.mxu0 0.0
    %584 = vmatpush.msra.mxu0 0.0
    %585 = vmatpush.msra.mxu0 0.0
    %586 = vmatpush.msra.mxu0 0.0
    %587 = vmatpush.msra.mxu0 0.0
    %588 = vmatpush.msra.mxu0 0.0
    %589 = vmatpush.msra.mxu0 0.0
    %590 = vmatpush.msra.mxu0 0.0
    %591 = vmatpush.msra.mxu0 0.0
    %v592 = vand.u32 %v297, 4294901760
    %593 = vmatpush.msra.mxu0 %v592
    %v594 = vand.u32 %v296, 4294901760
    %595 = vmatpush.msra.mxu0 %v594
    %v596 = vand.u32 %v295, 4294901760
    %597 = vmatpush.msra.mxu0 %v596
    %v598 = vand.u32 %v294, 4294901760
    %599 = vmatpush.msra.mxu0 %v598
    %v600 = vand.u32 %v328, 4294901760
    %601 = vmatmul.f32.gmra.mxu0 %v600
    %v602 = vpop.f32.mrf.mxu0
    %v603 = vadd.f32 %v566, %v602
    %v604 = vand.u32 %v331, 4294901760
    %605 = vmatmul.f32.gmra.mxu0 %v604
    %v606 = vpop.f32.mrf.mxu0
    %v607 = vadd.f32 %v570, %v606
    %v608 = vand.u32 %v334, 4294901760
    %609 = vmatmul.f32.gmra.mxu0 %v608
    %v610 = vpop.f32.mrf.mxu0
    %v611 = vadd.f32 %v574, %v610
    %v612 = vand.u32 %v337, 4294901760
    %613 = vmatmul.f32.gmra.mxu0 %v612
    %v614 = vpop.f32.mrf.mxu0
    %v615 = vadd.f32 %v578, %v614
    %616 = vdwg.mxu0
    %v617 = vmax.f32 %v603, 0.0
    %v618 = vmax.f32 %v607, 0.0
    %v619 = vmax.f32 %v611, 0.0
    %v620 = vmax.f32 %v615, 0.0
    %v621 = vld [vmem:[%s27] sm:$0xff]
    %v622 = vld [vmem:[%s27 + $0x8] sm:$0xff]
    %v623 = vld [vmem:[%s27 + $0x10] sm:$0xff]
    %v624 = vld [vmem:[%s27 + $0x18] sm:$0xff]
    %v625 = vld [vmem:[%s29] sm:$0xff]
    %v626 = vld [vmem:[%s29 + $0x8] sm:$0xff]
    %v627 = vld [vmem:[%s29 + $0x10] sm:$0xff]
    %v628 = vld [vmem:[%s29 + $0x18] sm:$0xff]
    %v629 = vld [vmem:[%s9] sm:$0x1]
    %631 = vset.pattern.permute.xlu0 0
    %632 = vperm.xlu0 %631, %v621
    %v633 = vpop.permute.xlu0 %632
    %636 = vset.pattern.permute.xlu0 0
    %637 = vperm.xlu0 %636, %v622
    %v638 = vpop.permute.xlu0 %637
    %641 = vset.pattern.permute.xlu0 0
    %642 = vperm.xlu0 %641, %v623
    %v643 = vpop.permute.xlu0 %642
    %646 = vset.pattern.permute.xlu0 0
    %647 = vperm.xlu0 %646, %v624
    %v648 = vpop.permute.xlu0 %647
    %v651 = vperm.slane %v629, 0
    %v653 = vmul.f32 %v633, %v651
    %v654 = vmul.f32 %v638, %v651
    %v655 = vmul.f32 %v643, %v651
    %v656 = vmul.f32 %v648, %v651
    %658 = vset.pattern.permute.xlu0 0
    %659 = vperm.xlu0 %658, %v625
    %v660 = vpop.permute.xlu0 %659
    %663 = vset.pattern.permute.xlu0 0
    %664 = vperm.xlu0 %663, %v626
    %v665 = vpop.permute.xlu0 %664
    %668 = vset.pattern.permute.xlu0 0
    %669 = vperm.xlu0 %668, %v627
    %v670 = vpop.permute.xlu0 %669
    %673 = vset.pattern.permute.xlu0 0
    %674 = vperm.xlu0 %673, %v628
    %v675 = vpop.permute.xlu0 %674
    %v677 = vadd.f32 %v660, %v653
    %v678 = vadd.f32 %v665, %v654
    %v679 = vadd.f32 %v670, %v655
    %v680 = vadd.f32 %v675, %v656
    %v681 = vld [vmem:[%s11] sm:$0x1]
    %682 = vset.pattern.permute.xlu0 1
    %683 = vperm.xlu0 %682, %v621
    %v684 = vpop.permute.xlu0 %683
    %686 = vset.pattern.permute.xlu0 1
    %687 = vperm.xlu0 %686, %v622
    %v688 = vpop.permute.xlu0 %687
    %690 = vset.pattern.permute.xlu0 1
    %691 = vperm.xlu0 %690, %v623
    %v692 = vpop.permute.xlu0 %691
    %694 = vset.pattern.permute.xlu0 1
    %695 = vperm.xlu0 %694, %v624
    %v696 = vpop.permute.xlu0 %695
    %v699 = vperm.slane %v681, 0
    %v701 = vmul.f32 %v684, %v699
    %v702 = vmul.f32 %v688, %v699
    %v703 = vmul.f32 %v692, %v699
    %v704 = vmul.f32 %v696, %v699
    %v705 = vadd.f32 %v677, %v701
    %v706 = vadd.f32 %v678, %v702
    %v707 = vadd.f32 %v679, %v703
    %v708 = vadd.f32 %v680, %v704
    %v709 = vld [vmem:[%s13] sm:$0x1]
    %710 = vset.pattern.permute.xlu0 2
    %711 = vperm.xlu0 %710, %v621
    %v712 = vpop.permute.xlu0 %711
    %714 = vset.pattern.permute.xlu0 2
    %715 = vperm.xlu0 %714, %v622
    %v716 = vpop.permute.xlu0 %715
    %718 = vset.pattern.permute.xlu0 2
    %719 = vperm.xlu0 %718, %v623
    %v720 = vpop.permute.xlu0 %719
    %722 = vset.pattern.permute.xlu0 2
    %723 = vperm.xlu0 %722, %v624
    %v724 = vpop.permute.xlu0 %723
    %v727 = vperm.slane %v709, 0
    %v729 = vmul.f32 %v712, %v727
    %v730 = vmul.f32 %v716, %v727
    %v731 = vmul.f32 %v720, %v727
    %v732 = vmul.f32 %v724, %v727
    %v733 = vadd.f32 %v705, %v729
    %v734 = vadd.f32 %v706, %v730
    %v735 = vadd.f32 %v707, %v731
    %v736 = vadd.f32 %v708, %v732
    %v737 = vmax.f32 %v733, 0.0
    %v738 = vmax.f32 %v734, 0.0
    %v739 = vmax.f32 %v735, 0.0
    %v740 = vmax.f32 %v736, 0.0
    %v741 = vld [vmem:[%s31] sm:$0xff]
    %v742 = vld [vmem:[%s31 + $0x8] sm:$0xff]
    %v743 = vld [vmem:[%s31 + $0x10] sm:$0xff]
    %v744 = vld [vmem:[%s31 + $0x18] sm:$0xff]
    %v745 = vld [vmem:[%s33] sm:$0xff]
    %v746 = vld [vmem:[%s33 + $0x8] sm:$0xff]
    %v747 = vld [vmem:[%s33 + $0x10] sm:$0xff]
    %v748 = vld [vmem:[%s33 + $0x18] sm:$0xff]
    %750 = vset.pattern.permute.xlu0 0
    %751 = vperm.xlu0 %750, %v745
    %v752 = vpop.permute.xlu0 %751
    %755 = vset.pattern.permute.xlu0 0
    %756 = vperm.xlu0 %755, %v746
    %v757 = vpop.permute.xlu0 %756
    %760 = vset.pattern.permute.xlu0 0
    %761 = vperm.xlu0 %760, %v747
    %v762 = vpop.permute.xlu0 %761
    %765 = vset.pattern.permute.xlu0 0
    %766 = vperm.xlu0 %765, %v748
    %v767 = vpop.permute.xlu0 %766
    %v770 = vsel %vm326, %v741, 0
    %v773 = vsel %vm326, %v742, 0
    %v776 = vsel %vm326, %v743, 0
    %v779 = vsel %vm326, %v744, 0
    %781 = vmatpush.msra.mxu0 0.0
    %782 = vmatpush.msra.mxu0 0.0
    %783 = vmatpush.msra.mxu0 0.0
    %784 = vmatpush.msra.mxu0 0.0
    %785 = vmatpush.msra.mxu0 0.0
    %786 = vmatpush.msra.mxu0 0.0
    %787 = vmatpush.msra.mxu0 0.0
    %788 = vmatpush.msra.mxu0 0.0
    %789 = vmatpush.msra.mxu0 0.0
    %790 = vmatpush.msra.mxu0 0.0
    %791 = vmatpush.msra.mxu0 0.0
    %792 = vmatpush.msra.mxu0 0.0
    %v793 = vand.u32 %v740, 4294901760
    %794 = vmatpush.msra.mxu0 %v793
    %v795 = vand.u32 %v739, 4294901760
    %796 = vmatpush.msra.mxu0 %v795
    %v797 = vand.u32 %v738, 4294901760
    %798 = vmatpush.msra.mxu0 %v797
    %v799 = vand.u32 %v737, 4294901760
    %800 = vmatpush.msra.mxu0 %v799
    %v801 = vand.u32 %v770, 4294901760
    %v802 = vsub.f32 %v770, %v801
    %v803 = vand.u32 %v802, 4294901760
    %v804 = vsub.f32 %v802, %v803
    %v805 = vand.u32 %v804, 4294901760
    %806 = vmatmul.f32.gmra.mxu0 %v805
    %v807 = vpop.f32.mrf.mxu0
    %v808 = vadd.f32 %v752, %v807
    %v809 = vand.u32 %v773, 4294901760
    %v810 = vsub.f32 %v773, %v809
    %v811 = vand.u32 %v810, 4294901760
    %v812 = vsub.f32 %v810, %v811
    %v813 = vand.u32 %v812, 4294901760
    %814 = vmatmul.f32.gmra.mxu0 %v813
    %v815 = vpop.f32.mrf.mxu0
    %v816 = vadd.f32 %v757, %v815
    %v817 = vand.u32 %v776, 4294901760
    %v818 = vsub.f32 %v776, %v817
    %v819 = vand.u32 %v818, 4294901760
    %v820 = vsub.f32 %v818, %v819
    %v821 = vand.u32 %v820, 4294901760
    %822 = vmatmul.f32.gmra.mxu0 %v821
    %v823 = vpop.f32.mrf.mxu0
    %v824 = vadd.f32 %v762, %v823
    %v825 = vand.u32 %v779, 4294901760
    %v826 = vsub.f32 %v779, %v825
    %v827 = vand.u32 %v826, 4294901760
    %v828 = vsub.f32 %v826, %v827
    %v829 = vand.u32 %v828, 4294901760
    %830 = vmatmul.f32.gmra.mxu0 %v829
    %v831 = vpop.f32.mrf.mxu0
    %v832 = vadd.f32 %v767, %v831
    %833 = vdwg.mxu0
    %834 = vmatpush.msra.mxu0 0.0
    %835 = vmatpush.msra.mxu0 0.0
    %836 = vmatpush.msra.mxu0 0.0
    %837 = vmatpush.msra.mxu0 0.0
    %838 = vmatpush.msra.mxu0 0.0
    %839 = vmatpush.msra.mxu0 0.0
    %840 = vmatpush.msra.mxu0 0.0
    %841 = vmatpush.msra.mxu0 0.0
    %842 = vmatpush.msra.mxu0 0.0
    %843 = vmatpush.msra.mxu0 0.0
    %844 = vmatpush.msra.mxu0 0.0
    %845 = vmatpush.msra.mxu0 0.0
    %v846 = vand.u32 %v740, 4294901760
    %v847 = vsub.f32 %v740, %v846
    %v848 = vand.u32 %v847, 4294901760
    %v849 = vsub.f32 %v847, %v848
    %v850 = vand.u32 %v849, 4294901760
    %851 = vmatpush.msra.mxu0 %v850
    %v852 = vand.u32 %v739, 4294901760
    %v853 = vsub.f32 %v739, %v852
    %v854 = vand.u32 %v853, 4294901760
    %v855 = vsub.f32 %v853, %v854
    %v856 = vand.u32 %v855, 4294901760
    %857 = vmatpush.msra.mxu0 %v856
    %v858 = vand.u32 %v738, 4294901760
    %v859 = vsub.f32 %v738, %v858
    %v860 = vand.u32 %v859, 4294901760
    %v861 = vsub.f32 %v859, %v860
    %v862 = vand.u32 %v861, 4294901760
    %863 = vmatpush.msra.mxu0 %v862
    %v864 = vand.u32 %v737, 4294901760
    %v865 = vsub.f32 %v737, %v864
    %v866 = vand.u32 %v865, 4294901760
    %v867 = vsub.f32 %v865, %v866
    %v868 = vand.u32 %v867, 4294901760
    %869 = vmatpush.msra.mxu0 %v868
    %v870 = vand.u32 %v770, 4294901760
    %871 = vmatmul.f32.gmra.mxu0 %v870
    %v872 = vpop.f32.mrf.mxu0
    %v873 = vadd.f32 %v808, %v872
    %v874 = vand.u32 %v773, 4294901760
    %875 = vmatmul.f32.gmra.mxu0 %v874
    %v876 = vpop.f32.mrf.mxu0
    %v877 = vadd.f32 %v816, %v876
    %v878 = vand.u32 %v776, 4294901760
    %879 = vmatmul.f32.gmra.mxu0 %v878
    %v880 = vpop.f32.mrf.mxu0
    %v881 = vadd.f32 %v824, %v880
    %v882 = vand.u32 %v779, 4294901760
    %883 = vmatmul.f32.gmra.mxu0 %v882
    %v884 = vpop.f32.mrf.mxu0
    %v885 = vadd.f32 %v832, %v884
    %886 = vdwg.mxu0
    %887 = vmatpush.msra.mxu0 0.0
    %888 = vmatpush.msra.mxu0 0.0
    %889 = vmatpush.msra.mxu0 0.0
    %890 = vmatpush.msra.mxu0 0.0
    %891 = vmatpush.msra.mxu0 0.0
    %892 = vmatpush.msra.mxu0 0.0
    %893 = vmatpush.msra.mxu0 0.0
    %894 = vmatpush.msra.mxu0 0.0
    %895 = vmatpush.msra.mxu0 0.0
    %896 = vmatpush.msra.mxu0 0.0
    %897 = vmatpush.msra.mxu0 0.0
    %898 = vmatpush.msra.mxu0 0.0
    %v899 = vand.u32 %v740, 4294901760
    %v900 = vsub.f32 %v740, %v899
    %901 = vmatpush.msra.mxu0 %v900
    %v902 = vand.u32 %v739, 4294901760
    %v903 = vsub.f32 %v739, %v902
    %904 = vmatpush.msra.mxu0 %v903
    %v905 = vand.u32 %v738, 4294901760
    %v906 = vsub.f32 %v738, %v905
    %907 = vmatpush.msra.mxu0 %v906
    %v908 = vand.u32 %v737, 4294901760
    %v909 = vsub.f32 %v737, %v908
    %910 = vmatpush.msra.mxu0 %v909
    %v911 = vand.u32 %v770, 4294901760
    %v912 = vsub.f32 %v770, %v911
    %913 = vmatmul.f32.gmra.mxu0 %v912
    %v914 = vpop.f32.mrf.mxu0
    %v915 = vadd.f32 %v873, %v914
    %v916 = vand.u32 %v773, 4294901760
    %v917 = vsub.f32 %v773, %v916
    %918 = vmatmul.f32.gmra.mxu0 %v917
    %v919 = vpop.f32.mrf.mxu0
    %v920 = vadd.f32 %v877, %v919
    %v921 = vand.u32 %v776, 4294901760
    %v922 = vsub.f32 %v776, %v921
    %923 = vmatmul.f32.gmra.mxu0 %v922
    %v924 = vpop.f32.mrf.mxu0
    %v925 = vadd.f32 %v881, %v924
    %v926 = vand.u32 %v779, 4294901760
    %v927 = vsub.f32 %v779, %v926
    %928 = vmatmul.f32.gmra.mxu0 %v927
    %v929 = vpop.f32.mrf.mxu0
    %v930 = vadd.f32 %v885, %v929
    %931 = vdwg.mxu0
    %932 = vmatpush.msra.mxu0 0.0
    %933 = vmatpush.msra.mxu0 0.0
    %934 = vmatpush.msra.mxu0 0.0
    %935 = vmatpush.msra.mxu0 0.0
    %936 = vmatpush.msra.mxu0 0.0
    %937 = vmatpush.msra.mxu0 0.0
    %938 = vmatpush.msra.mxu0 0.0
    %939 = vmatpush.msra.mxu0 0.0
    %940 = vmatpush.msra.mxu0 0.0
    %941 = vmatpush.msra.mxu0 0.0
    %942 = vmatpush.msra.mxu0 0.0
    %943 = vmatpush.msra.mxu0 0.0
    %v944 = vand.u32 %v740, 4294901760
    %945 = vmatpush.msra.mxu0 %v944
    %v946 = vand.u32 %v739, 4294901760
    %947 = vmatpush.msra.mxu0 %v946
    %v948 = vand.u32 %v738, 4294901760
    %949 = vmatpush.msra.mxu0 %v948
    %v950 = vand.u32 %v737, 4294901760
    %951 = vmatpush.msra.mxu0 %v950
    %v952 = vand.u32 %v770, 4294901760
    %v953 = vsub.f32 %v770, %v952
    %v954 = vand.u32 %v953, 4294901760
    %955 = vmatmul.f32.gmra.mxu0 %v954
    %v956 = vpop.f32.mrf.mxu0
    %v957 = vadd.f32 %v915, %v956
    %v958 = vand.u32 %v773, 4294901760
    %v959 = vsub.f32 %v773, %v958
    %v960 = vand.u32 %v959, 4294901760
    %961 = vmatmul.f32.gmra.mxu0 %v960
    %v962 = vpop.f32.mrf.mxu0
    %v963 = vadd.f32 %v920, %v962
    %v964 = vand.u32 %v776, 4294901760
    %v965 = vsub.f32 %v776, %v964
    %v966 = vand.u32 %v965, 4294901760
    %967 = vmatmul.f32.gmra.mxu0 %v966
    %v968 = vpop.f32.mrf.mxu0
    %v969 = vadd.f32 %v925, %v968
    %v970 = vand.u32 %v779, 4294901760
    %v971 = vsub.f32 %v779, %v970
    %v972 = vand.u32 %v971, 4294901760
    %973 = vmatmul.f32.gmra.mxu0 %v972
    %v974 = vpop.f32.mrf.mxu0
    %v975 = vadd.f32 %v930, %v974
    %976 = vdwg.mxu0
    %977 = vmatpush.msra.mxu0 0.0
    %978 = vmatpush.msra.mxu0 0.0
    %979 = vmatpush.msra.mxu0 0.0
    %980 = vmatpush.msra.mxu0 0.0
    %981 = vmatpush.msra.mxu0 0.0
    %982 = vmatpush.msra.mxu0 0.0
    %983 = vmatpush.msra.mxu0 0.0
    %984 = vmatpush.msra.mxu0 0.0
    %985 = vmatpush.msra.mxu0 0.0
    %986 = vmatpush.msra.mxu0 0.0
    %987 = vmatpush.msra.mxu0 0.0
    %988 = vmatpush.msra.mxu0 0.0
    %v989 = vand.u32 %v740, 4294901760
    %v990 = vsub.f32 %v740, %v989
    %v991 = vand.u32 %v990, 4294901760
    %992 = vmatpush.msra.mxu0 %v991
    %v993 = vand.u32 %v739, 4294901760
    %v994 = vsub.f32 %v739, %v993
    %v995 = vand.u32 %v994, 4294901760
    %996 = vmatpush.msra.mxu0 %v995
    %v997 = vand.u32 %v738, 4294901760
    %v998 = vsub.f32 %v738, %v997
    %v999 = vand.u32 %v998, 4294901760
    %1000 = vmatpush.msra.mxu0 %v999
    %v1001 = vand.u32 %v737, 4294901760
    %v1002 = vsub.f32 %v737, %v1001
    %v1003 = vand.u32 %v1002, 4294901760
    %1004 = vmatpush.msra.mxu0 %v1003
    %v1005 = vand.u32 %v770, 4294901760
    %1006 = vmatmul.f32.gmra.mxu0 %v1005
    %v1007 = vpop.f32.mrf.mxu0
    %v1008 = vadd.f32 %v957, %v1007
    %v1009 = vand.u32 %v773, 4294901760
    %1010 = vmatmul.f32.gmra.mxu0 %v1009
    %v1011 = vpop.f32.mrf.mxu0
    %v1012 = vadd.f32 %v963, %v1011
    %v1013 = vand.u32 %v776, 4294901760
    %1014 = vmatmul.f32.gmra.mxu0 %v1013
    %v1015 = vpop.f32.mrf.mxu0
    %v1016 = vadd.f32 %v969, %v1015
    %v1017 = vand.u32 %v779, 4294901760
    %1018 = vmatmul.f32.gmra.mxu0 %v1017
    %v1019 = vpop.f32.mrf.mxu0
    %v1020 = vadd.f32 %v975, %v1019
    %1021 = vdwg.mxu0
    %1022 = vmatpush.msra.mxu0 0.0
    %1023 = vmatpush.msra.mxu0 0.0
    %1024 = vmatpush.msra.mxu0 0.0
    %1025 = vmatpush.msra.mxu0 0.0
    %1026 = vmatpush.msra.mxu0 0.0
    %1027 = vmatpush.msra.mxu0 0.0
    %1028 = vmatpush.msra.mxu0 0.0
    %1029 = vmatpush.msra.mxu0 0.0
    %1030 = vmatpush.msra.mxu0 0.0
    %1031 = vmatpush.msra.mxu0 0.0
    %1032 = vmatpush.msra.mxu0 0.0
    %1033 = vmatpush.msra.mxu0 0.0
    %v1034 = vand.u32 %v740, 4294901760
    %1035 = vmatpush.msra.mxu0 %v1034
    %v1036 = vand.u32 %v739, 4294901760
    %1037 = vmatpush.msra.mxu0 %v1036
    %v1038 = vand.u32 %v738, 4294901760
    %1039 = vmatpush.msra.mxu0 %v1038
    %v1040 = vand.u32 %v737, 4294901760
    %1041 = vmatpush.msra.mxu0 %v1040
    %v1042 = vand.u32 %v770, 4294901760
    %1043 = vmatmul.f32.gmra.mxu0 %v1042
    %v1044 = vpop.f32.mrf.mxu0
    %v1045 = vadd.f32 %v1008, %v1044
    %v1046 = vand.u32 %v773, 4294901760
    %1047 = vmatmul.f32.gmra.mxu0 %v1046
    %v1048 = vpop.f32.mrf.mxu0
    %v1049 = vadd.f32 %v1012, %v1048
    %v1050 = vand.u32 %v776, 4294901760
    %1051 = vmatmul.f32.gmra.mxu0 %v1050
    %v1052 = vpop.f32.mrf.mxu0
    %v1053 = vadd.f32 %v1016, %v1052
    %v1054 = vand.u32 %v779, 4294901760
    %1055 = vmatmul.f32.gmra.mxu0 %v1054
    %v1056 = vpop.f32.mrf.mxu0
    %v1057 = vadd.f32 %v1020, %v1056
    %1058 = vdwg.mxu0
    %v1059 = vmax.f32 %v1045, 0.0
    %v1060 = vmax.f32 %v1049, 0.0
    %v1061 = vmax.f32 %v1053, 0.0
    %v1062 = vmax.f32 %v1057, 0.0
    %v1063 = vld [vmem:[%s15] sm:$0x1]
    %v1065 = vperm.slane %v1063, 0
    %v1067 = vmul.f32 %v633, %v1065
    %v1068 = vmul.f32 %v638, %v1065
    %v1069 = vmul.f32 %v643, %v1065
    %v1070 = vmul.f32 %v648, %v1065
    %v1071 = vadd.f32 %v660, %v1067
    %v1072 = vadd.f32 %v665, %v1068
    %v1073 = vadd.f32 %v670, %v1069
    %v1074 = vadd.f32 %v675, %v1070
    %v1075 = vld [vmem:[%s17] sm:$0x1]
    %v1077 = vperm.slane %v1075, 0
    %v1079 = vmul.f32 %v684, %v1077
    %v1080 = vmul.f32 %v688, %v1077
    %v1081 = vmul.f32 %v692, %v1077
    %v1082 = vmul.f32 %v696, %v1077
    %v1083 = vadd.f32 %v1071, %v1079
    %v1084 = vadd.f32 %v1072, %v1080
    %v1085 = vadd.f32 %v1073, %v1081
    %v1086 = vadd.f32 %v1074, %v1082
    %v1087 = vmax.f32 %v1083, 0.0
    %v1088 = vmax.f32 %v1084, 0.0
    %v1089 = vmax.f32 %v1085, 0.0
    %v1090 = vmax.f32 %v1086, 0.0
    %1091 = vmatpush.msra.mxu0 0.0
    %1092 = vmatpush.msra.mxu0 0.0
    %1093 = vmatpush.msra.mxu0 0.0
    %1094 = vmatpush.msra.mxu0 0.0
    %1095 = vmatpush.msra.mxu0 0.0
    %1096 = vmatpush.msra.mxu0 0.0
    %1097 = vmatpush.msra.mxu0 0.0
    %1098 = vmatpush.msra.mxu0 0.0
    %1099 = vmatpush.msra.mxu0 0.0
    %1100 = vmatpush.msra.mxu0 0.0
    %1101 = vmatpush.msra.mxu0 0.0
    %1102 = vmatpush.msra.mxu0 0.0
    %v1103 = vand.u32 %v1090, 4294901760
    %1104 = vmatpush.msra.mxu0 %v1103
    %v1105 = vand.u32 %v1089, 4294901760
    %1106 = vmatpush.msra.mxu0 %v1105
    %v1107 = vand.u32 %v1088, 4294901760
    %1108 = vmatpush.msra.mxu0 %v1107
    %v1109 = vand.u32 %v1087, 4294901760
    %1110 = vmatpush.msra.mxu0 %v1109
    %v1111 = vand.u32 %v770, 4294901760
    %v1112 = vsub.f32 %v770, %v1111
    %v1113 = vand.u32 %v1112, 4294901760
    %v1114 = vsub.f32 %v1112, %v1113
    %v1115 = vand.u32 %v1114, 4294901760
    %1116 = vmatmul.f32.gmra.mxu0 %v1115
    %v1117 = vpop.f32.mrf.mxu0
    %v1118 = vadd.f32 %v752, %v1117
    %v1119 = vand.u32 %v773, 4294901760
    %v1120 = vsub.f32 %v773, %v1119
    %v1121 = vand.u32 %v1120, 4294901760
    %v1122 = vsub.f32 %v1120, %v1121
    %v1123 = vand.u32 %v1122, 4294901760
    %1124 = vmatmul.f32.gmra.mxu0 %v1123
    %v1125 = vpop.f32.mrf.mxu0
    %v1126 = vadd.f32 %v757, %v1125
    %v1127 = vand.u32 %v776, 4294901760
    %v1128 = vsub.f32 %v776, %v1127
    %v1129 = vand.u32 %v1128, 4294901760
    %v1130 = vsub.f32 %v1128, %v1129
    %v1131 = vand.u32 %v1130, 4294901760
    %1132 = vmatmul.f32.gmra.mxu0 %v1131
    %v1133 = vpop.f32.mrf.mxu0
    %v1134 = vadd.f32 %v762, %v1133
    %v1135 = vand.u32 %v779, 4294901760
    %v1136 = vsub.f32 %v779, %v1135
    %v1137 = vand.u32 %v1136, 4294901760
    %v1138 = vsub.f32 %v1136, %v1137
    %v1139 = vand.u32 %v1138, 4294901760
    %1140 = vmatmul.f32.gmra.mxu0 %v1139
    %v1141 = vpop.f32.mrf.mxu0
    %v1142 = vadd.f32 %v767, %v1141
    %1143 = vdwg.mxu0
    %1144 = vmatpush.msra.mxu0 0.0
    %1145 = vmatpush.msra.mxu0 0.0
    %1146 = vmatpush.msra.mxu0 0.0
    %1147 = vmatpush.msra.mxu0 0.0
    %1148 = vmatpush.msra.mxu0 0.0
    %1149 = vmatpush.msra.mxu0 0.0
    %1150 = vmatpush.msra.mxu0 0.0
    %1151 = vmatpush.msra.mxu0 0.0
    %1152 = vmatpush.msra.mxu0 0.0
    %1153 = vmatpush.msra.mxu0 0.0
    %1154 = vmatpush.msra.mxu0 0.0
    %1155 = vmatpush.msra.mxu0 0.0
    %v1156 = vand.u32 %v1090, 4294901760
    %v1157 = vsub.f32 %v1090, %v1156
    %v1158 = vand.u32 %v1157, 4294901760
    %v1159 = vsub.f32 %v1157, %v1158
    %v1160 = vand.u32 %v1159, 4294901760
    %1161 = vmatpush.msra.mxu0 %v1160
    %v1162 = vand.u32 %v1089, 4294901760
    %v1163 = vsub.f32 %v1089, %v1162
    %v1164 = vand.u32 %v1163, 4294901760
    %v1165 = vsub.f32 %v1163, %v1164
    %v1166 = vand.u32 %v1165, 4294901760
    %1167 = vmatpush.msra.mxu0 %v1166
    %v1168 = vand.u32 %v1088, 4294901760
    %v1169 = vsub.f32 %v1088, %v1168
    %v1170 = vand.u32 %v1169, 4294901760
    %v1171 = vsub.f32 %v1169, %v1170
    %v1172 = vand.u32 %v1171, 4294901760
    %1173 = vmatpush.msra.mxu0 %v1172
    %v1174 = vand.u32 %v1087, 4294901760
    %v1175 = vsub.f32 %v1087, %v1174
    %v1176 = vand.u32 %v1175, 4294901760
    %v1177 = vsub.f32 %v1175, %v1176
    %v1178 = vand.u32 %v1177, 4294901760
    %1179 = vmatpush.msra.mxu0 %v1178
    %v1180 = vand.u32 %v770, 4294901760
    %1181 = vmatmul.f32.gmra.mxu0 %v1180
    %v1182 = vpop.f32.mrf.mxu0
    %v1183 = vadd.f32 %v1118, %v1182
    %v1184 = vand.u32 %v773, 4294901760
    %1185 = vmatmul.f32.gmra.mxu0 %v1184
    %v1186 = vpop.f32.mrf.mxu0
    %v1187 = vadd.f32 %v1126, %v1186
    %v1188 = vand.u32 %v776, 4294901760
    %1189 = vmatmul.f32.gmra.mxu0 %v1188
    %v1190 = vpop.f32.mrf.mxu0
    %v1191 = vadd.f32 %v1134, %v1190
    %v1192 = vand.u32 %v779, 4294901760
    %1193 = vmatmul.f32.gmra.mxu0 %v1192
    %v1194 = vpop.f32.mrf.mxu0
    %v1195 = vadd.f32 %v1142, %v1194
    %1196 = vdwg.mxu0
    %1197 = vmatpush.msra.mxu0 0.0
    %1198 = vmatpush.msra.mxu0 0.0
    %1199 = vmatpush.msra.mxu0 0.0
    %1200 = vmatpush.msra.mxu0 0.0
    %1201 = vmatpush.msra.mxu0 0.0
    %1202 = vmatpush.msra.mxu0 0.0
    %1203 = vmatpush.msra.mxu0 0.0
    %1204 = vmatpush.msra.mxu0 0.0
    %1205 = vmatpush.msra.mxu0 0.0
    %1206 = vmatpush.msra.mxu0 0.0
    %1207 = vmatpush.msra.mxu0 0.0
    %1208 = vmatpush.msra.mxu0 0.0
    %v1209 = vand.u32 %v1090, 4294901760
    %v1210 = vsub.f32 %v1090, %v1209
    %1211 = vmatpush.msra.mxu0 %v1210
    %v1212 = vand.u32 %v1089, 4294901760
    %v1213 = vsub.f32 %v1089, %v1212
    %1214 = vmatpush.msra.mxu0 %v1213
    %v1215 = vand.u32 %v1088, 4294901760
    %v1216 = vsub.f32 %v1088, %v1215
    %1217 = vmatpush.msra.mxu0 %v1216
    %v1218 = vand.u32 %v1087, 4294901760
    %v1219 = vsub.f32 %v1087, %v1218
    %1220 = vmatpush.msra.mxu0 %v1219
    %v1221 = vand.u32 %v770, 4294901760
    %v1222 = vsub.f32 %v770, %v1221
    %1223 = vmatmul.f32.gmra.mxu0 %v1222
    %v1224 = vpop.f32.mrf.mxu0
    %v1225 = vadd.f32 %v1183, %v1224
    %v1226 = vand.u32 %v773, 4294901760
    %v1227 = vsub.f32 %v773, %v1226
    %1228 = vmatmul.f32.gmra.mxu0 %v1227
    %v1229 = vpop.f32.mrf.mxu0
    %v1230 = vadd.f32 %v1187, %v1229
    %v1231 = vand.u32 %v776, 4294901760
    %v1232 = vsub.f32 %v776, %v1231
    %1233 = vmatmul.f32.gmra.mxu0 %v1232
    %v1234 = vpop.f32.mrf.mxu0
    %v1235 = vadd.f32 %v1191, %v1234
    %v1236 = vand.u32 %v779, 4294901760
    %v1237 = vsub.f32 %v779, %v1236
    %1238 = vmatmul.f32.gmra.mxu0 %v1237
    %v1239 = vpop.f32.mrf.mxu0
    %v1240 = vadd.f32 %v1195, %v1239
    %1241 = vdwg.mxu0
    %1242 = vmatpush.msra.mxu0 0.0
    %1243 = vmatpush.msra.mxu0 0.0
    %1244 = vmatpush.msra.mxu0 0.0
    %1245 = vmatpush.msra.mxu0 0.0
    %1246 = vmatpush.msra.mxu0 0.0
    %1247 = vmatpush.msra.mxu0 0.0
    %1248 = vmatpush.msra.mxu0 0.0
    %1249 = vmatpush.msra.mxu0 0.0
    %1250 = vmatpush.msra.mxu0 0.0
    %1251 = vmatpush.msra.mxu0 0.0
    %1252 = vmatpush.msra.mxu0 0.0
    %1253 = vmatpush.msra.mxu0 0.0
    %v1254 = vand.u32 %v1090, 4294901760
    %1255 = vmatpush.msra.mxu0 %v1254
    %v1256 = vand.u32 %v1089, 4294901760
    %1257 = vmatpush.msra.mxu0 %v1256
    %v1258 = vand.u32 %v1088, 4294901760
    %1259 = vmatpush.msra.mxu0 %v1258
    %v1260 = vand.u32 %v1087, 4294901760
    %1261 = vmatpush.msra.mxu0 %v1260
    %v1262 = vand.u32 %v770, 4294901760
    %v1263 = vsub.f32 %v770, %v1262
    %v1264 = vand.u32 %v1263, 4294901760
    %1265 = vmatmul.f32.gmra.mxu0 %v1264
    %v1266 = vpop.f32.mrf.mxu0
    %v1267 = vadd.f32 %v1225, %v1266
    %v1268 = vand.u32 %v773, 4294901760
    %v1269 = vsub.f32 %v773, %v1268
    %v1270 = vand.u32 %v1269, 4294901760
    %1271 = vmatmul.f32.gmra.mxu0 %v1270
    %v1272 = vpop.f32.mrf.mxu0
    %v1273 = vadd.f32 %v1230, %v1272
    %v1274 = vand.u32 %v776, 4294901760
    %v1275 = vsub.f32 %v776, %v1274
    %v1276 = vand.u32 %v1275, 4294901760
    %1277 = vmatmul.f32.gmra.mxu0 %v1276
    %v1278 = vpop.f32.mrf.mxu0
    %v1279 = vadd.f32 %v1235, %v1278
    %v1280 = vand.u32 %v779, 4294901760
    %v1281 = vsub.f32 %v779, %v1280
    %v1282 = vand.u32 %v1281, 4294901760
    %1283 = vmatmul.f32.gmra.mxu0 %v1282
    %v1284 = vpop.f32.mrf.mxu0
    %v1285 = vadd.f32 %v1240, %v1284
    %1286 = vdwg.mxu0
    %1287 = vmatpush.msra.mxu0 0.0
    %1288 = vmatpush.msra.mxu0 0.0
    %1289 = vmatpush.msra.mxu0 0.0
    %1290 = vmatpush.msra.mxu0 0.0
    %1291 = vmatpush.msra.mxu0 0.0
    %1292 = vmatpush.msra.mxu0 0.0
    %1293 = vmatpush.msra.mxu0 0.0
    %1294 = vmatpush.msra.mxu0 0.0
    %1295 = vmatpush.msra.mxu0 0.0
    %1296 = vmatpush.msra.mxu0 0.0
    %1297 = vmatpush.msra.mxu0 0.0
    %1298 = vmatpush.msra.mxu0 0.0
    %v1299 = vand.u32 %v1090, 4294901760
    %v1300 = vsub.f32 %v1090, %v1299
    %v1301 = vand.u32 %v1300, 4294901760
    %1302 = vmatpush.msra.mxu0 %v1301
    %v1303 = vand.u32 %v1089, 4294901760
    %v1304 = vsub.f32 %v1089, %v1303
    %v1305 = vand.u32 %v1304, 4294901760
    %1306 = vmatpush.msra.mxu0 %v1305
    %v1307 = vand.u32 %v1088, 4294901760
    %v1308 = vsub.f32 %v1088, %v1307
    %v1309 = vand.u32 %v1308, 4294901760
    %1310 = vmatpush.msra.mxu0 %v1309
    %v1311 = vand.u32 %v1087, 4294901760
    %v1312 = vsub.f32 %v1087, %v1311
    %v1313 = vand.u32 %v1312, 4294901760
    %1314 = vmatpush.msra.mxu0 %v1313
    %v1315 = vand.u32 %v770, 4294901760
    %1316 = vmatmul.f32.gmra.mxu0 %v1315
    %v1317 = vpop.f32.mrf.mxu0
    %v1318 = vadd.f32 %v1267, %v1317
    %v1319 = vand.u32 %v773, 4294901760
    %1320 = vmatmul.f32.gmra.mxu0 %v1319
    %v1321 = vpop.f32.mrf.mxu0
    %v1322 = vadd.f32 %v1273, %v1321
    %v1323 = vand.u32 %v776, 4294901760
    %1324 = vmatmul.f32.gmra.mxu0 %v1323
    %v1325 = vpop.f32.mrf.mxu0
    %v1326 = vadd.f32 %v1279, %v1325
    %v1327 = vand.u32 %v779, 4294901760
    %1328 = vmatmul.f32.gmra.mxu0 %v1327
    %v1329 = vpop.f32.mrf.mxu0
    %v1330 = vadd.f32 %v1285, %v1329
    %1331 = vdwg.mxu0
    %1332 = vmatpush.msra.mxu0 0.0
    %1333 = vmatpush.msra.mxu0 0.0
    %1334 = vmatpush.msra.mxu0 0.0
    %1335 = vmatpush.msra.mxu0 0.0
    %1336 = vmatpush.msra.mxu0 0.0
    %1337 = vmatpush.msra.mxu0 0.0
    %1338 = vmatpush.msra.mxu0 0.0
    %1339 = vmatpush.msra.mxu0 0.0
    %1340 = vmatpush.msra.mxu0 0.0
    %1341 = vmatpush.msra.mxu0 0.0
    %1342 = vmatpush.msra.mxu0 0.0
    %1343 = vmatpush.msra.mxu0 0.0
    %v1344 = vand.u32 %v1090, 4294901760
    %1345 = vmatpush.msra.mxu0 %v1344
    %v1346 = vand.u32 %v1089, 4294901760
    %1347 = vmatpush.msra.mxu0 %v1346
    %v1348 = vand.u32 %v1088, 4294901760
    %1349 = vmatpush.msra.mxu0 %v1348
    %v1350 = vand.u32 %v1087, 4294901760
    %1351 = vmatpush.msra.mxu0 %v1350
    %v1352 = vand.u32 %v770, 4294901760
    %1353 = vmatmul.f32.gmra.mxu0 %v1352
    %v1354 = vpop.f32.mrf.mxu0
    %v1355 = vadd.f32 %v1318, %v1354
    %v1356 = vand.u32 %v773, 4294901760
    %1357 = vmatmul.f32.gmra.mxu0 %v1356
    %v1358 = vpop.f32.mrf.mxu0
    %v1359 = vadd.f32 %v1322, %v1358
    %v1360 = vand.u32 %v776, 4294901760
    %1361 = vmatmul.f32.gmra.mxu0 %v1360
    %v1362 = vpop.f32.mrf.mxu0
    %v1363 = vadd.f32 %v1326, %v1362
    %v1364 = vand.u32 %v779, 4294901760
    %1365 = vmatmul.f32.gmra.mxu0 %v1364
    %v1366 = vpop.f32.mrf.mxu0
    %v1367 = vadd.f32 %v1330, %v1366
    %1368 = vdwg.mxu0
    %v1369 = vmax.f32 %v1355, 0.0
    %v1370 = vmax.f32 %v1359, 0.0
    %v1371 = vmax.f32 %v1363, 0.0
    %v1372 = vmax.f32 %v1367, 0.0
    %v1373 = vld [vmem:[%s51] sm:$0xff]
    %v1374 = vld [vmem:[%s51 + $0x8] sm:$0xff]
    %v1375 = vld [vmem:[%s51 + $0x10] sm:$0xff]
    %v1376 = vld [vmem:[%s51 + $0x18] sm:$0xff]
    %v1377 = vld [vmem:[%s53] sm:$0x1]
    %v1379 = vperm.slane %v1377, 0
    %v1382 = vsel %vm326, %v617, 0
    %v1385 = vsel %vm326, %v618, 0
    %v1388 = vsel %vm326, %v619, 0
    %v1391 = vsel %vm326, %v620, 0
    %1393 = vmatpush.msra.mxu0 0.0
    %1394 = vmatpush.msra.mxu0 0.0
    %1395 = vmatpush.msra.mxu0 0.0
    %1396 = vmatpush.msra.mxu0 0.0
    %1397 = vmatpush.msra.mxu0 0.0
    %1398 = vmatpush.msra.mxu0 0.0
    %1399 = vmatpush.msra.mxu0 0.0
    %1400 = vmatpush.msra.mxu0 0.0
    %1401 = vmatpush.msra.mxu0 0.0
    %1402 = vmatpush.msra.mxu0 0.0
    %1403 = vmatpush.msra.mxu0 0.0
    %1404 = vmatpush.msra.mxu0 0.0
    %v1405 = vand.u32 %v1376, 4294901760
    %1406 = vmatpush.msra.mxu0 %v1405
    %v1407 = vand.u32 %v1375, 4294901760
    %1408 = vmatpush.msra.mxu0 %v1407
    %v1409 = vand.u32 %v1374, 4294901760
    %1410 = vmatpush.msra.mxu0 %v1409
    %v1411 = vand.u32 %v1373, 4294901760
    %1412 = vmatpush.msra.mxu0 %v1411
    %v1413 = vand.u32 %v1382, 4294901760
    %v1414 = vsub.f32 %v1382, %v1413
    %v1415 = vand.u32 %v1414, 4294901760
    %v1416 = vsub.f32 %v1414, %v1415
    %v1417 = vand.u32 %v1416, 4294901760
    %1418 = vmatmul.f32.gmra.mxu0 %v1417
    %v1419 = vpop.f32.mrf.mxu0
    %v1420 = vadd.f32 %v1379, %v1419
    %v1421 = vand.u32 %v1385, 4294901760
    %v1422 = vsub.f32 %v1385, %v1421
    %v1423 = vand.u32 %v1422, 4294901760
    %v1424 = vsub.f32 %v1422, %v1423
    %v1425 = vand.u32 %v1424, 4294901760
    %1426 = vmatmul.f32.gmra.mxu0 %v1425
    %v1427 = vpop.f32.mrf.mxu0
    %v1428 = vadd.f32 %v1379, %v1427
    %v1429 = vand.u32 %v1388, 4294901760
    %v1430 = vsub.f32 %v1388, %v1429
    %v1431 = vand.u32 %v1430, 4294901760
    %v1432 = vsub.f32 %v1430, %v1431
    %v1433 = vand.u32 %v1432, 4294901760
    %1434 = vmatmul.f32.gmra.mxu0 %v1433
    %v1435 = vpop.f32.mrf.mxu0
    %v1436 = vadd.f32 %v1379, %v1435
    %v1437 = vand.u32 %v1391, 4294901760
    %v1438 = vsub.f32 %v1391, %v1437
    %v1439 = vand.u32 %v1438, 4294901760
    %v1440 = vsub.f32 %v1438, %v1439
    %v1441 = vand.u32 %v1440, 4294901760
    %1442 = vmatmul.f32.gmra.mxu0 %v1441
    %v1443 = vpop.f32.mrf.mxu0
    %v1444 = vadd.f32 %v1379, %v1443
    %1445 = vdwg.mxu0
    %1446 = vmatpush.msra.mxu0 0.0
    %1447 = vmatpush.msra.mxu0 0.0
    %1448 = vmatpush.msra.mxu0 0.0
    %1449 = vmatpush.msra.mxu0 0.0
    %1450 = vmatpush.msra.mxu0 0.0
    %1451 = vmatpush.msra.mxu0 0.0
    %1452 = vmatpush.msra.mxu0 0.0
    %1453 = vmatpush.msra.mxu0 0.0
    %1454 = vmatpush.msra.mxu0 0.0
    %1455 = vmatpush.msra.mxu0 0.0
    %1456 = vmatpush.msra.mxu0 0.0
    %1457 = vmatpush.msra.mxu0 0.0
    %v1458 = vand.u32 %v1376, 4294901760
    %v1459 = vsub.f32 %v1376, %v1458
    %v1460 = vand.u32 %v1459, 4294901760
    %v1461 = vsub.f32 %v1459, %v1460
    %v1462 = vand.u32 %v1461, 4294901760
    %1463 = vmatpush.msra.mxu0 %v1462
    %v1464 = vand.u32 %v1375, 4294901760
    %v1465 = vsub.f32 %v1375, %v1464
    %v1466 = vand.u32 %v1465, 4294901760
    %v1467 = vsub.f32 %v1465, %v1466
    %v1468 = vand.u32 %v1467, 4294901760
    %1469 = vmatpush.msra.mxu0 %v1468
    %v1470 = vand.u32 %v1374, 4294901760
    %v1471 = vsub.f32 %v1374, %v1470
    %v1472 = vand.u32 %v1471, 4294901760
    %v1473 = vsub.f32 %v1471, %v1472
    %v1474 = vand.u32 %v1473, 4294901760
    %1475 = vmatpush.msra.mxu0 %v1474
    %v1476 = vand.u32 %v1373, 4294901760
    %v1477 = vsub.f32 %v1373, %v1476
    %v1478 = vand.u32 %v1477, 4294901760
    %v1479 = vsub.f32 %v1477, %v1478
    %v1480 = vand.u32 %v1479, 4294901760
    %1481 = vmatpush.msra.mxu0 %v1480
    %v1482 = vand.u32 %v1382, 4294901760
    %1483 = vmatmul.f32.gmra.mxu0 %v1482
    %v1484 = vpop.f32.mrf.mxu0
    %v1485 = vadd.f32 %v1420, %v1484
    %v1486 = vand.u32 %v1385, 4294901760
    %1487 = vmatmul.f32.gmra.mxu0 %v1486
    %v1488 = vpop.f32.mrf.mxu0
    %v1489 = vadd.f32 %v1428, %v1488
    %v1490 = vand.u32 %v1388, 4294901760
    %1491 = vmatmul.f32.gmra.mxu0 %v1490
    %v1492 = vpop.f32.mrf.mxu0
    %v1493 = vadd.f32 %v1436, %v1492
    %v1494 = vand.u32 %v1391, 4294901760
    %1495 = vmatmul.f32.gmra.mxu0 %v1494
    %v1496 = vpop.f32.mrf.mxu0
    %v1497 = vadd.f32 %v1444, %v1496
    %1498 = vdwg.mxu0
    %1499 = vmatpush.msra.mxu0 0.0
    %1500 = vmatpush.msra.mxu0 0.0
    %1501 = vmatpush.msra.mxu0 0.0
    %1502 = vmatpush.msra.mxu0 0.0
    %1503 = vmatpush.msra.mxu0 0.0
    %1504 = vmatpush.msra.mxu0 0.0
    %1505 = vmatpush.msra.mxu0 0.0
    %1506 = vmatpush.msra.mxu0 0.0
    %1507 = vmatpush.msra.mxu0 0.0
    %1508 = vmatpush.msra.mxu0 0.0
    %1509 = vmatpush.msra.mxu0 0.0
    %1510 = vmatpush.msra.mxu0 0.0
    %v1511 = vand.u32 %v1376, 4294901760
    %v1512 = vsub.f32 %v1376, %v1511
    %1513 = vmatpush.msra.mxu0 %v1512
    %v1514 = vand.u32 %v1375, 4294901760
    %v1515 = vsub.f32 %v1375, %v1514
    %1516 = vmatpush.msra.mxu0 %v1515
    %v1517 = vand.u32 %v1374, 4294901760
    %v1518 = vsub.f32 %v1374, %v1517
    %1519 = vmatpush.msra.mxu0 %v1518
    %v1520 = vand.u32 %v1373, 4294901760
    %v1521 = vsub.f32 %v1373, %v1520
    %1522 = vmatpush.msra.mxu0 %v1521
    %v1523 = vand.u32 %v1382, 4294901760
    %v1524 = vsub.f32 %v1382, %v1523
    %1525 = vmatmul.f32.gmra.mxu0 %v1524
    %v1526 = vpop.f32.mrf.mxu0
    %v1527 = vadd.f32 %v1485, %v1526
    %v1528 = vand.u32 %v1385, 4294901760
    %v1529 = vsub.f32 %v1385, %v1528
    %1530 = vmatmul.f32.gmra.mxu0 %v1529
    %v1531 = vpop.f32.mrf.mxu0
    %v1532 = vadd.f32 %v1489, %v1531
    %v1533 = vand.u32 %v1388, 4294901760
    %v1534 = vsub.f32 %v1388, %v1533
    %1535 = vmatmul.f32.gmra.mxu0 %v1534
    %v1536 = vpop.f32.mrf.mxu0
    %v1537 = vadd.f32 %v1493, %v1536
    %v1538 = vand.u32 %v1391, 4294901760
    %v1539 = vsub.f32 %v1391, %v1538
    %1540 = vmatmul.f32.gmra.mxu0 %v1539
    %v1541 = vpop.f32.mrf.mxu0
    %v1542 = vadd.f32 %v1497, %v1541
    %1543 = vdwg.mxu0
    %1544 = vmatpush.msra.mxu0 0.0
    %1545 = vmatpush.msra.mxu0 0.0
    %1546 = vmatpush.msra.mxu0 0.0
    %1547 = vmatpush.msra.mxu0 0.0
    %1548 = vmatpush.msra.mxu0 0.0
    %1549 = vmatpush.msra.mxu0 0.0
    %1550 = vmatpush.msra.mxu0 0.0
    %1551 = vmatpush.msra.mxu0 0.0
    %1552 = vmatpush.msra.mxu0 0.0
    %1553 = vmatpush.msra.mxu0 0.0
    %1554 = vmatpush.msra.mxu0 0.0
    %1555 = vmatpush.msra.mxu0 0.0
    %v1556 = vand.u32 %v1376, 4294901760
    %1557 = vmatpush.msra.mxu0 %v1556
    %v1558 = vand.u32 %v1375, 4294901760
    %1559 = vmatpush.msra.mxu0 %v1558
    %v1560 = vand.u32 %v1374, 4294901760
    %1561 = vmatpush.msra.mxu0 %v1560
    %v1562 = vand.u32 %v1373, 4294901760
    %1563 = vmatpush.msra.mxu0 %v1562
    %v1564 = vand.u32 %v1382, 4294901760
    %v1565 = vsub.f32 %v1382, %v1564
    %v1566 = vand.u32 %v1565, 4294901760
    %1567 = vmatmul.f32.gmra.mxu0 %v1566
    %v1568 = vpop.f32.mrf.mxu0
    %v1569 = vadd.f32 %v1527, %v1568
    %v1570 = vand.u32 %v1385, 4294901760
    %v1571 = vsub.f32 %v1385, %v1570
    %v1572 = vand.u32 %v1571, 4294901760
    %1573 = vmatmul.f32.gmra.mxu0 %v1572
    %v1574 = vpop.f32.mrf.mxu0
    %v1575 = vadd.f32 %v1532, %v1574
    %v1576 = vand.u32 %v1388, 4294901760
    %v1577 = vsub.f32 %v1388, %v1576
    %v1578 = vand.u32 %v1577, 4294901760
    %1579 = vmatmul.f32.gmra.mxu0 %v1578
    %v1580 = vpop.f32.mrf.mxu0
    %v1581 = vadd.f32 %v1537, %v1580
    %v1582 = vand.u32 %v1391, 4294901760
    %v1583 = vsub.f32 %v1391, %v1582
    %v1584 = vand.u32 %v1583, 4294901760
    %1585 = vmatmul.f32.gmra.mxu0 %v1584
    %v1586 = vpop.f32.mrf.mxu0
    %v1587 = vadd.f32 %v1542, %v1586
    %1588 = vdwg.mxu0
    %1589 = vmatpush.msra.mxu0 0.0
    %1590 = vmatpush.msra.mxu0 0.0
    %1591 = vmatpush.msra.mxu0 0.0
    %1592 = vmatpush.msra.mxu0 0.0
    %1593 = vmatpush.msra.mxu0 0.0
    %1594 = vmatpush.msra.mxu0 0.0
    %1595 = vmatpush.msra.mxu0 0.0
    %1596 = vmatpush.msra.mxu0 0.0
    %1597 = vmatpush.msra.mxu0 0.0
    %1598 = vmatpush.msra.mxu0 0.0
    %1599 = vmatpush.msra.mxu0 0.0
    %1600 = vmatpush.msra.mxu0 0.0
    %v1601 = vand.u32 %v1376, 4294901760
    %v1602 = vsub.f32 %v1376, %v1601
    %v1603 = vand.u32 %v1602, 4294901760
    %1604 = vmatpush.msra.mxu0 %v1603
    %v1605 = vand.u32 %v1375, 4294901760
    %v1606 = vsub.f32 %v1375, %v1605
    %v1607 = vand.u32 %v1606, 4294901760
    %1608 = vmatpush.msra.mxu0 %v1607
    %v1609 = vand.u32 %v1374, 4294901760
    %v1610 = vsub.f32 %v1374, %v1609
    %v1611 = vand.u32 %v1610, 4294901760
    %1612 = vmatpush.msra.mxu0 %v1611
    %v1613 = vand.u32 %v1373, 4294901760
    %v1614 = vsub.f32 %v1373, %v1613
    %v1615 = vand.u32 %v1614, 4294901760
    %1616 = vmatpush.msra.mxu0 %v1615
    %v1617 = vand.u32 %v1382, 4294901760
    %1618 = vmatmul.f32.gmra.mxu0 %v1617
    %v1619 = vpop.f32.mrf.mxu0
    %v1620 = vadd.f32 %v1569, %v1619
    %v1621 = vand.u32 %v1385, 4294901760
    %1622 = vmatmul.f32.gmra.mxu0 %v1621
    %v1623 = vpop.f32.mrf.mxu0
    %v1624 = vadd.f32 %v1575, %v1623
    %v1625 = vand.u32 %v1388, 4294901760
    %1626 = vmatmul.f32.gmra.mxu0 %v1625
    %v1627 = vpop.f32.mrf.mxu0
    %v1628 = vadd.f32 %v1581, %v1627
    %v1629 = vand.u32 %v1391, 4294901760
    %1630 = vmatmul.f32.gmra.mxu0 %v1629
    %v1631 = vpop.f32.mrf.mxu0
    %v1632 = vadd.f32 %v1587, %v1631
    %1633 = vdwg.mxu0
    %1634 = vmatpush.msra.mxu0 0.0
    %1635 = vmatpush.msra.mxu0 0.0
    %1636 = vmatpush.msra.mxu0 0.0
    %1637 = vmatpush.msra.mxu0 0.0
    %1638 = vmatpush.msra.mxu0 0.0
    %1639 = vmatpush.msra.mxu0 0.0
    %1640 = vmatpush.msra.mxu0 0.0
    %1641 = vmatpush.msra.mxu0 0.0
    %1642 = vmatpush.msra.mxu0 0.0
    %1643 = vmatpush.msra.mxu0 0.0
    %1644 = vmatpush.msra.mxu0 0.0
    %1645 = vmatpush.msra.mxu0 0.0
    %v1646 = vand.u32 %v1376, 4294901760
    %1647 = vmatpush.msra.mxu0 %v1646
    %v1648 = vand.u32 %v1375, 4294901760
    %1649 = vmatpush.msra.mxu0 %v1648
    %v1650 = vand.u32 %v1374, 4294901760
    %1651 = vmatpush.msra.mxu0 %v1650
    %v1652 = vand.u32 %v1373, 4294901760
    %1653 = vmatpush.msra.mxu0 %v1652
    %v1654 = vand.u32 %v1382, 4294901760
    %1655 = vmatmul.f32.gmra.mxu0 %v1654
    %v1656 = vpop.f32.mrf.mxu0
    %v1657 = vadd.f32 %v1620, %v1656
    %v1658 = vand.u32 %v1385, 4294901760
    %1659 = vmatmul.f32.gmra.mxu0 %v1658
    %v1660 = vpop.f32.mrf.mxu0
    %v1661 = vadd.f32 %v1624, %v1660
    %v1662 = vand.u32 %v1388, 4294901760
    %1663 = vmatmul.f32.gmra.mxu0 %v1662
    %v1664 = vpop.f32.mrf.mxu0
    %v1665 = vadd.f32 %v1628, %v1664
    %v1666 = vand.u32 %v1391, 4294901760
    %1667 = vmatmul.f32.gmra.mxu0 %v1666
    %v1668 = vpop.f32.mrf.mxu0
    %v1669 = vadd.f32 %v1632, %v1668
    %1670 = vdwg.mxu0
    %v1671 = vld [vmem:[%s39] sm:$0xff]
    %v1672 = vld [vmem:[%s39 + $0x8] sm:$0xff]
    %v1673 = vld [vmem:[%s39 + $0x10] sm:$0xff]
    %v1674 = vld [vmem:[%s39 + $0x18] sm:$0xff]
    %v1675 = vld [vmem:[%s41] sm:$0xff]
    %v1676 = vld [vmem:[%s41 + $0x8] sm:$0xff]
    %v1677 = vld [vmem:[%s41 + $0x10] sm:$0xff]
    %v1678 = vld [vmem:[%s41 + $0x18] sm:$0xff]
    %1680 = vset.pattern.permute.xlu0 0
    %1681 = vperm.xlu0 %1680, %v1675
    %v1682 = vpop.permute.xlu0 %1681
    %1685 = vset.pattern.permute.xlu0 0
    %1686 = vperm.xlu0 %1685, %v1676
    %v1687 = vpop.permute.xlu0 %1686
    %1690 = vset.pattern.permute.xlu0 0
    %1691 = vperm.xlu0 %1690, %v1677
    %v1692 = vpop.permute.xlu0 %1691
    %1695 = vset.pattern.permute.xlu0 0
    %1696 = vperm.xlu0 %1695, %v1678
    %v1697 = vpop.permute.xlu0 %1696
    %v1700 = vsel %vm326, %v1671, 0
    %v1703 = vsel %vm326, %v1672, 0
    %v1706 = vsel %vm326, %v1673, 0
    %v1709 = vsel %vm326, %v1674, 0
    %1711 = vmatpush.msra.mxu0 0.0
    %1712 = vmatpush.msra.mxu0 0.0
    %1713 = vmatpush.msra.mxu0 0.0
    %1714 = vmatpush.msra.mxu0 0.0
    %1715 = vmatpush.msra.mxu0 0.0
    %1716 = vmatpush.msra.mxu0 0.0
    %1717 = vmatpush.msra.mxu0 0.0
    %1718 = vmatpush.msra.mxu0 0.0
    %1719 = vmatpush.msra.mxu0 0.0
    %1720 = vmatpush.msra.mxu0 0.0
    %1721 = vmatpush.msra.mxu0 0.0
    %1722 = vmatpush.msra.mxu0 0.0
    %v1723 = vand.u32 %v1669, 4294901760
    %1724 = vmatpush.msra.mxu0 %v1723
    %v1725 = vand.u32 %v1665, 4294901760
    %1726 = vmatpush.msra.mxu0 %v1725
    %v1727 = vand.u32 %v1661, 4294901760
    %1728 = vmatpush.msra.mxu0 %v1727
    %v1729 = vand.u32 %v1657, 4294901760
    %1730 = vmatpush.msra.mxu0 %v1729
    %v1731 = vand.u32 %v1700, 4294901760
    %v1732 = vsub.f32 %v1700, %v1731
    %v1733 = vand.u32 %v1732, 4294901760
    %v1734 = vsub.f32 %v1732, %v1733
    %v1735 = vand.u32 %v1734, 4294901760
    %1736 = vmatmul.f32.gmra.mxu0 %v1735
    %v1737 = vpop.f32.mrf.mxu0
    %v1738 = vadd.f32 %v1682, %v1737
    %v1739 = vand.u32 %v1703, 4294901760
    %v1740 = vsub.f32 %v1703, %v1739
    %v1741 = vand.u32 %v1740, 4294901760
    %v1742 = vsub.f32 %v1740, %v1741
    %v1743 = vand.u32 %v1742, 4294901760
    %1744 = vmatmul.f32.gmra.mxu0 %v1743
    %v1745 = vpop.f32.mrf.mxu0
    %v1746 = vadd.f32 %v1687, %v1745
    %v1747 = vand.u32 %v1706, 4294901760
    %v1748 = vsub.f32 %v1706, %v1747
    %v1749 = vand.u32 %v1748, 4294901760
    %v1750 = vsub.f32 %v1748, %v1749
    %v1751 = vand.u32 %v1750, 4294901760
    %1752 = vmatmul.f32.gmra.mxu0 %v1751
    %v1753 = vpop.f32.mrf.mxu0
    %v1754 = vadd.f32 %v1692, %v1753
    %v1755 = vand.u32 %v1709, 4294901760
    %v1756 = vsub.f32 %v1709, %v1755
    %v1757 = vand.u32 %v1756, 4294901760
    %v1758 = vsub.f32 %v1756, %v1757
    %v1759 = vand.u32 %v1758, 4294901760
    %1760 = vmatmul.f32.gmra.mxu0 %v1759
    %v1761 = vpop.f32.mrf.mxu0
    %v1762 = vadd.f32 %v1697, %v1761
    %1763 = vdwg.mxu0
    %1764 = vmatpush.msra.mxu0 0.0
    %1765 = vmatpush.msra.mxu0 0.0
    %1766 = vmatpush.msra.mxu0 0.0
    %1767 = vmatpush.msra.mxu0 0.0
    %1768 = vmatpush.msra.mxu0 0.0
    %1769 = vmatpush.msra.mxu0 0.0
    %1770 = vmatpush.msra.mxu0 0.0
    %1771 = vmatpush.msra.mxu0 0.0
    %1772 = vmatpush.msra.mxu0 0.0
    %1773 = vmatpush.msra.mxu0 0.0
    %1774 = vmatpush.msra.mxu0 0.0
    %1775 = vmatpush.msra.mxu0 0.0
    %v1776 = vand.u32 %v1669, 4294901760
    %v1777 = vsub.f32 %v1669, %v1776
    %v1778 = vand.u32 %v1777, 4294901760
    %v1779 = vsub.f32 %v1777, %v1778
    %v1780 = vand.u32 %v1779, 4294901760
    %1781 = vmatpush.msra.mxu0 %v1780
    %v1782 = vand.u32 %v1665, 4294901760
    %v1783 = vsub.f32 %v1665, %v1782
    %v1784 = vand.u32 %v1783, 4294901760
    %v1785 = vsub.f32 %v1783, %v1784
    %v1786 = vand.u32 %v1785, 4294901760
    %1787 = vmatpush.msra.mxu0 %v1786
    %v1788 = vand.u32 %v1661, 4294901760
    %v1789 = vsub.f32 %v1661, %v1788
    %v1790 = vand.u32 %v1789, 4294901760
    %v1791 = vsub.f32 %v1789, %v1790
    %v1792 = vand.u32 %v1791, 4294901760
    %1793 = vmatpush.msra.mxu0 %v1792
    %v1794 = vand.u32 %v1657, 4294901760
    %v1795 = vsub.f32 %v1657, %v1794
    %v1796 = vand.u32 %v1795, 4294901760
    %v1797 = vsub.f32 %v1795, %v1796
    %v1798 = vand.u32 %v1797, 4294901760
    %1799 = vmatpush.msra.mxu0 %v1798
    %v1800 = vand.u32 %v1700, 4294901760
    %1801 = vmatmul.f32.gmra.mxu0 %v1800
    %v1802 = vpop.f32.mrf.mxu0
    %v1803 = vadd.f32 %v1738, %v1802
    %v1804 = vand.u32 %v1703, 4294901760
    %1805 = vmatmul.f32.gmra.mxu0 %v1804
    %v1806 = vpop.f32.mrf.mxu0
    %v1807 = vadd.f32 %v1746, %v1806
    %v1808 = vand.u32 %v1706, 4294901760
    %1809 = vmatmul.f32.gmra.mxu0 %v1808
    %v1810 = vpop.f32.mrf.mxu0
    %v1811 = vadd.f32 %v1754, %v1810
    %v1812 = vand.u32 %v1709, 4294901760
    %1813 = vmatmul.f32.gmra.mxu0 %v1812
    %v1814 = vpop.f32.mrf.mxu0
    %v1815 = vadd.f32 %v1762, %v1814
    %1816 = vdwg.mxu0
    %1817 = vmatpush.msra.mxu0 0.0
    %1818 = vmatpush.msra.mxu0 0.0
    %1819 = vmatpush.msra.mxu0 0.0
    %1820 = vmatpush.msra.mxu0 0.0
    %1821 = vmatpush.msra.mxu0 0.0
    %1822 = vmatpush.msra.mxu0 0.0
    %1823 = vmatpush.msra.mxu0 0.0
    %1824 = vmatpush.msra.mxu0 0.0
    %1825 = vmatpush.msra.mxu0 0.0
    %1826 = vmatpush.msra.mxu0 0.0
    %1827 = vmatpush.msra.mxu0 0.0
    %1828 = vmatpush.msra.mxu0 0.0
    %v1829 = vand.u32 %v1669, 4294901760
    %v1830 = vsub.f32 %v1669, %v1829
    %1831 = vmatpush.msra.mxu0 %v1830
    %v1832 = vand.u32 %v1665, 4294901760
    %v1833 = vsub.f32 %v1665, %v1832
    %1834 = vmatpush.msra.mxu0 %v1833
    %v1835 = vand.u32 %v1661, 4294901760
    %v1836 = vsub.f32 %v1661, %v1835
    %1837 = vmatpush.msra.mxu0 %v1836
    %v1838 = vand.u32 %v1657, 4294901760
    %v1839 = vsub.f32 %v1657, %v1838
    %1840 = vmatpush.msra.mxu0 %v1839
    %v1841 = vand.u32 %v1700, 4294901760
    %v1842 = vsub.f32 %v1700, %v1841
    %1843 = vmatmul.f32.gmra.mxu0 %v1842
    %v1844 = vpop.f32.mrf.mxu0
    %v1845 = vadd.f32 %v1803, %v1844
    %v1846 = vand.u32 %v1703, 4294901760
    %v1847 = vsub.f32 %v1703, %v1846
    %1848 = vmatmul.f32.gmra.mxu0 %v1847
    %v1849 = vpop.f32.mrf.mxu0
    %v1850 = vadd.f32 %v1807, %v1849
    %v1851 = vand.u32 %v1706, 4294901760
    %v1852 = vsub.f32 %v1706, %v1851
    %1853 = vmatmul.f32.gmra.mxu0 %v1852
    %v1854 = vpop.f32.mrf.mxu0
    %v1855 = vadd.f32 %v1811, %v1854
    %v1856 = vand.u32 %v1709, 4294901760
    %v1857 = vsub.f32 %v1709, %v1856
    %1858 = vmatmul.f32.gmra.mxu0 %v1857
    %v1859 = vpop.f32.mrf.mxu0
    %v1860 = vadd.f32 %v1815, %v1859
    %1861 = vdwg.mxu0
    %1862 = vmatpush.msra.mxu0 0.0
    %1863 = vmatpush.msra.mxu0 0.0
    %1864 = vmatpush.msra.mxu0 0.0
    %1865 = vmatpush.msra.mxu0 0.0
    %1866 = vmatpush.msra.mxu0 0.0
    %1867 = vmatpush.msra.mxu0 0.0
    %1868 = vmatpush.msra.mxu0 0.0
    %1869 = vmatpush.msra.mxu0 0.0
    %1870 = vmatpush.msra.mxu0 0.0
    %1871 = vmatpush.msra.mxu0 0.0
    %1872 = vmatpush.msra.mxu0 0.0
    %1873 = vmatpush.msra.mxu0 0.0
    %v1874 = vand.u32 %v1669, 4294901760
    %1875 = vmatpush.msra.mxu0 %v1874
    %v1876 = vand.u32 %v1665, 4294901760
    %1877 = vmatpush.msra.mxu0 %v1876
    %v1878 = vand.u32 %v1661, 4294901760
    %1879 = vmatpush.msra.mxu0 %v1878
    %v1880 = vand.u32 %v1657, 4294901760
    %1881 = vmatpush.msra.mxu0 %v1880
    %v1882 = vand.u32 %v1700, 4294901760
    %v1883 = vsub.f32 %v1700, %v1882
    %v1884 = vand.u32 %v1883, 4294901760
    %1885 = vmatmul.f32.gmra.mxu0 %v1884
    %v1886 = vpop.f32.mrf.mxu0
    %v1887 = vadd.f32 %v1845, %v1886
    %v1888 = vand.u32 %v1703, 4294901760
    %v1889 = vsub.f32 %v1703, %v1888
    %v1890 = vand.u32 %v1889, 4294901760
    %1891 = vmatmul.f32.gmra.mxu0 %v1890
    %v1892 = vpop.f32.mrf.mxu0
    %v1893 = vadd.f32 %v1850, %v1892
    %v1894 = vand.u32 %v1706, 4294901760
    %v1895 = vsub.f32 %v1706, %v1894
    %v1896 = vand.u32 %v1895, 4294901760
    %1897 = vmatmul.f32.gmra.mxu0 %v1896
    %v1898 = vpop.f32.mrf.mxu0
    %v1899 = vadd.f32 %v1855, %v1898
    %v1900 = vand.u32 %v1709, 4294901760
    %v1901 = vsub.f32 %v1709, %v1900
    %v1902 = vand.u32 %v1901, 4294901760
    %1903 = vmatmul.f32.gmra.mxu0 %v1902
    %v1904 = vpop.f32.mrf.mxu0
    %v1905 = vadd.f32 %v1860, %v1904
    %1906 = vdwg.mxu0
    %1907 = vmatpush.msra.mxu0 0.0
    %1908 = vmatpush.msra.mxu0 0.0
    %1909 = vmatpush.msra.mxu0 0.0
    %1910 = vmatpush.msra.mxu0 0.0
    %1911 = vmatpush.msra.mxu0 0.0
    %1912 = vmatpush.msra.mxu0 0.0
    %1913 = vmatpush.msra.mxu0 0.0
    %1914 = vmatpush.msra.mxu0 0.0
    %1915 = vmatpush.msra.mxu0 0.0
    %1916 = vmatpush.msra.mxu0 0.0
    %1917 = vmatpush.msra.mxu0 0.0
    %1918 = vmatpush.msra.mxu0 0.0
    %v1919 = vand.u32 %v1669, 4294901760
    %v1920 = vsub.f32 %v1669, %v1919
    %v1921 = vand.u32 %v1920, 4294901760
    %1922 = vmatpush.msra.mxu0 %v1921
    %v1923 = vand.u32 %v1665, 4294901760
    %v1924 = vsub.f32 %v1665, %v1923
    %v1925 = vand.u32 %v1924, 4294901760
    %1926 = vmatpush.msra.mxu0 %v1925
    %v1927 = vand.u32 %v1661, 4294901760
    %v1928 = vsub.f32 %v1661, %v1927
    %v1929 = vand.u32 %v1928, 4294901760
    %1930 = vmatpush.msra.mxu0 %v1929
    %v1931 = vand.u32 %v1657, 4294901760
    %v1932 = vsub.f32 %v1657, %v1931
    %v1933 = vand.u32 %v1932, 4294901760
    %1934 = vmatpush.msra.mxu0 %v1933
    %v1935 = vand.u32 %v1700, 4294901760
    %1936 = vmatmul.f32.gmra.mxu0 %v1935
    %v1937 = vpop.f32.mrf.mxu0
    %v1938 = vadd.f32 %v1887, %v1937
    %v1939 = vand.u32 %v1703, 4294901760
    %1940 = vmatmul.f32.gmra.mxu0 %v1939
    %v1941 = vpop.f32.mrf.mxu0
    %v1942 = vadd.f32 %v1893, %v1941
    %v1943 = vand.u32 %v1706, 4294901760
    %1944 = vmatmul.f32.gmra.mxu0 %v1943
    %v1945 = vpop.f32.mrf.mxu0
    %v1946 = vadd.f32 %v1899, %v1945
    %v1947 = vand.u32 %v1709, 4294901760
    %1948 = vmatmul.f32.gmra.mxu0 %v1947
    %v1949 = vpop.f32.mrf.mxu0
    %v1950 = vadd.f32 %v1905, %v1949
    %1951 = vdwg.mxu0
    %1952 = vmatpush.msra.mxu0 0.0
    %1953 = vmatpush.msra.mxu0 0.0
    %1954 = vmatpush.msra.mxu0 0.0
    %1955 = vmatpush.msra.mxu0 0.0
    %1956 = vmatpush.msra.mxu0 0.0
    %1957 = vmatpush.msra.mxu0 0.0
    %1958 = vmatpush.msra.mxu0 0.0
    %1959 = vmatpush.msra.mxu0 0.0
    %1960 = vmatpush.msra.mxu0 0.0
    %1961 = vmatpush.msra.mxu0 0.0
    %1962 = vmatpush.msra.mxu0 0.0
    %1963 = vmatpush.msra.mxu0 0.0
    %v1964 = vand.u32 %v1669, 4294901760
    %1965 = vmatpush.msra.mxu0 %v1964
    %v1966 = vand.u32 %v1665, 4294901760
    %1967 = vmatpush.msra.mxu0 %v1966
    %v1968 = vand.u32 %v1661, 4294901760
    %1969 = vmatpush.msra.mxu0 %v1968
    %v1970 = vand.u32 %v1657, 4294901760
    %1971 = vmatpush.msra.mxu0 %v1970
    %v1972 = vand.u32 %v1700, 4294901760
    %1973 = vmatmul.f32.gmra.mxu0 %v1972
    %v1974 = vpop.f32.mrf.mxu0
    %v1975 = vadd.f32 %v1938, %v1974
    %v1976 = vand.u32 %v1703, 4294901760
    %1977 = vmatmul.f32.gmra.mxu0 %v1976
    %v1978 = vpop.f32.mrf.mxu0
    %v1979 = vadd.f32 %v1942, %v1978
    %v1980 = vand.u32 %v1706, 4294901760
    %1981 = vmatmul.f32.gmra.mxu0 %v1980
    %v1982 = vpop.f32.mrf.mxu0
    %v1983 = vadd.f32 %v1946, %v1982
    %v1984 = vand.u32 %v1709, 4294901760
    %1985 = vmatmul.f32.gmra.mxu0 %v1984
    %v1986 = vpop.f32.mrf.mxu0
    %v1987 = vadd.f32 %v1950, %v1986
    %1988 = vdwg.mxu0
    %v1989 = vld [vmem:[%s55] sm:$0xff]
    %v1990 = vld [vmem:[%s55 + $0x8] sm:$0xff]
    %v1991 = vld [vmem:[%s55 + $0x10] sm:$0xff]
    %v1992 = vld [vmem:[%s55 + $0x18] sm:$0xff]
    %1993 = vmatpush.msra.mxu0 0.0
    %1994 = vmatpush.msra.mxu0 0.0
    %1995 = vmatpush.msra.mxu0 0.0
    %1996 = vmatpush.msra.mxu0 0.0
    %1997 = vmatpush.msra.mxu0 0.0
    %1998 = vmatpush.msra.mxu0 0.0
    %1999 = vmatpush.msra.mxu0 0.0
    %2000 = vmatpush.msra.mxu0 0.0
    %2001 = vmatpush.msra.mxu0 0.0
    %2002 = vmatpush.msra.mxu0 0.0
    %2003 = vmatpush.msra.mxu0 0.0
    %2004 = vmatpush.msra.mxu0 0.0
    %v2005 = vand.u32 %v1992, 4294901760
    %2006 = vmatpush.msra.mxu0 %v2005
    %v2007 = vand.u32 %v1991, 4294901760
    %2008 = vmatpush.msra.mxu0 %v2007
    %v2009 = vand.u32 %v1990, 4294901760
    %2010 = vmatpush.msra.mxu0 %v2009
    %v2011 = vand.u32 %v1989, 4294901760
    %2012 = vmatpush.msra.mxu0 %v2011
    %v2013 = vand.u32 %v1382, 4294901760
    %v2014 = vsub.f32 %v1382, %v2013
    %v2015 = vand.u32 %v2014, 4294901760
    %v2016 = vsub.f32 %v2014, %v2015
    %v2017 = vand.u32 %v2016, 4294901760
    %2018 = vmatmul.f32.gmra.mxu0 %v2017
    %v2019 = vpop.f32.mrf.mxu0
    %v2020 = vadd.f32 0.0, %v2019
    %v2021 = vand.u32 %v1385, 4294901760
    %v2022 = vsub.f32 %v1385, %v2021
    %v2023 = vand.u32 %v2022, 4294901760
    %v2024 = vsub.f32 %v2022, %v2023
    %v2025 = vand.u32 %v2024, 4294901760
    %2026 = vmatmul.f32.gmra.mxu0 %v2025
    %v2027 = vpop.f32.mrf.mxu0
    %v2028 = vadd.f32 0.0, %v2027
    %v2029 = vand.u32 %v1388, 4294901760
    %v2030 = vsub.f32 %v1388, %v2029
    %v2031 = vand.u32 %v2030, 4294901760
    %v2032 = vsub.f32 %v2030, %v2031
    %v2033 = vand.u32 %v2032, 4294901760
    %2034 = vmatmul.f32.gmra.mxu0 %v2033
    %v2035 = vpop.f32.mrf.mxu0
    %v2036 = vadd.f32 0.0, %v2035
    %v2037 = vand.u32 %v1391, 4294901760
    %v2038 = vsub.f32 %v1391, %v2037
    %v2039 = vand.u32 %v2038, 4294901760
    %v2040 = vsub.f32 %v2038, %v2039
    %v2041 = vand.u32 %v2040, 4294901760
    %2042 = vmatmul.f32.gmra.mxu0 %v2041
    %v2043 = vpop.f32.mrf.mxu0
    %v2044 = vadd.f32 0.0, %v2043
    %2045 = vdwg.mxu0
    %2046 = vmatpush.msra.mxu0 0.0
    %2047 = vmatpush.msra.mxu0 0.0
    %2048 = vmatpush.msra.mxu0 0.0
    %2049 = vmatpush.msra.mxu0 0.0
    %2050 = vmatpush.msra.mxu0 0.0
    %2051 = vmatpush.msra.mxu0 0.0
    %2052 = vmatpush.msra.mxu0 0.0
    %2053 = vmatpush.msra.mxu0 0.0
    %2054 = vmatpush.msra.mxu0 0.0
    %2055 = vmatpush.msra.mxu0 0.0
    %2056 = vmatpush.msra.mxu0 0.0
    %2057 = vmatpush.msra.mxu0 0.0
    %v2058 = vand.u32 %v1992, 4294901760
    %v2059 = vsub.f32 %v1992, %v2058
    %v2060 = vand.u32 %v2059, 4294901760
    %v2061 = vsub.f32 %v2059, %v2060
    %v2062 = vand.u32 %v2061, 4294901760
    %2063 = vmatpush.msra.mxu0 %v2062
    %v2064 = vand.u32 %v1991, 4294901760
    %v2065 = vsub.f32 %v1991, %v2064
    %v2066 = vand.u32 %v2065, 4294901760
    %v2067 = vsub.f32 %v2065, %v2066
    %v2068 = vand.u32 %v2067, 4294901760
    %2069 = vmatpush.msra.mxu0 %v2068
    %v2070 = vand.u32 %v1990, 4294901760
    %v2071 = vsub.f32 %v1990, %v2070
    %v2072 = vand.u32 %v2071, 4294901760
    %v2073 = vsub.f32 %v2071, %v2072
    %v2074 = vand.u32 %v2073, 4294901760
    %2075 = vmatpush.msra.mxu0 %v2074
    %v2076 = vand.u32 %v1989, 4294901760
    %v2077 = vsub.f32 %v1989, %v2076
    %v2078 = vand.u32 %v2077, 4294901760
    %v2079 = vsub.f32 %v2077, %v2078
    %v2080 = vand.u32 %v2079, 4294901760
    %2081 = vmatpush.msra.mxu0 %v2080
    %v2082 = vand.u32 %v1382, 4294901760
    %2083 = vmatmul.f32.gmra.mxu0 %v2082
    %v2084 = vpop.f32.mrf.mxu0
    %v2085 = vadd.f32 %v2020, %v2084
    %v2086 = vand.u32 %v1385, 4294901760
    %2087 = vmatmul.f32.gmra.mxu0 %v2086
    %v2088 = vpop.f32.mrf.mxu0
    %v2089 = vadd.f32 %v2028, %v2088
    %v2090 = vand.u32 %v1388, 4294901760
    %2091 = vmatmul.f32.gmra.mxu0 %v2090
    %v2092 = vpop.f32.mrf.mxu0
    %v2093 = vadd.f32 %v2036, %v2092
    %v2094 = vand.u32 %v1391, 4294901760
    %2095 = vmatmul.f32.gmra.mxu0 %v2094
    %v2096 = vpop.f32.mrf.mxu0
    %v2097 = vadd.f32 %v2044, %v2096
    %2098 = vdwg.mxu0
    %2099 = vmatpush.msra.mxu0 0.0
    %2100 = vmatpush.msra.mxu0 0.0
    %2101 = vmatpush.msra.mxu0 0.0
    %2102 = vmatpush.msra.mxu0 0.0
    %2103 = vmatpush.msra.mxu0 0.0
    %2104 = vmatpush.msra.mxu0 0.0
    %2105 = vmatpush.msra.mxu0 0.0
    %2106 = vmatpush.msra.mxu0 0.0
    %2107 = vmatpush.msra.mxu0 0.0
    %2108 = vmatpush.msra.mxu0 0.0
    %2109 = vmatpush.msra.mxu0 0.0
    %2110 = vmatpush.msra.mxu0 0.0
    %v2111 = vand.u32 %v1992, 4294901760
    %v2112 = vsub.f32 %v1992, %v2111
    %2113 = vmatpush.msra.mxu0 %v2112
    %v2114 = vand.u32 %v1991, 4294901760
    %v2115 = vsub.f32 %v1991, %v2114
    %2116 = vmatpush.msra.mxu0 %v2115
    %v2117 = vand.u32 %v1990, 4294901760
    %v2118 = vsub.f32 %v1990, %v2117
    %2119 = vmatpush.msra.mxu0 %v2118
    %v2120 = vand.u32 %v1989, 4294901760
    %v2121 = vsub.f32 %v1989, %v2120
    %2122 = vmatpush.msra.mxu0 %v2121
    %v2123 = vand.u32 %v1382, 4294901760
    %v2124 = vsub.f32 %v1382, %v2123
    %2125 = vmatmul.f32.gmra.mxu0 %v2124
    %v2126 = vpop.f32.mrf.mxu0
    %v2127 = vadd.f32 %v2085, %v2126
    %v2128 = vand.u32 %v1385, 4294901760
    %v2129 = vsub.f32 %v1385, %v2128
    %2130 = vmatmul.f32.gmra.mxu0 %v2129
    %v2131 = vpop.f32.mrf.mxu0
    %v2132 = vadd.f32 %v2089, %v2131
    %v2133 = vand.u32 %v1388, 4294901760
    %v2134 = vsub.f32 %v1388, %v2133
    %2135 = vmatmul.f32.gmra.mxu0 %v2134
    %v2136 = vpop.f32.mrf.mxu0
    %v2137 = vadd.f32 %v2093, %v2136
    %v2138 = vand.u32 %v1391, 4294901760
    %v2139 = vsub.f32 %v1391, %v2138
    %2140 = vmatmul.f32.gmra.mxu0 %v2139
    %v2141 = vpop.f32.mrf.mxu0
    %v2142 = vadd.f32 %v2097, %v2141
    %2143 = vdwg.mxu0
    %2144 = vmatpush.msra.mxu0 0.0
    %2145 = vmatpush.msra.mxu0 0.0
    %2146 = vmatpush.msra.mxu0 0.0
    %2147 = vmatpush.msra.mxu0 0.0
    %2148 = vmatpush.msra.mxu0 0.0
    %2149 = vmatpush.msra.mxu0 0.0
    %2150 = vmatpush.msra.mxu0 0.0
    %2151 = vmatpush.msra.mxu0 0.0
    %2152 = vmatpush.msra.mxu0 0.0
    %2153 = vmatpush.msra.mxu0 0.0
    %2154 = vmatpush.msra.mxu0 0.0
    %2155 = vmatpush.msra.mxu0 0.0
    %v2156 = vand.u32 %v1992, 4294901760
    %2157 = vmatpush.msra.mxu0 %v2156
    %v2158 = vand.u32 %v1991, 4294901760
    %2159 = vmatpush.msra.mxu0 %v2158
    %v2160 = vand.u32 %v1990, 4294901760
    %2161 = vmatpush.msra.mxu0 %v2160
    %v2162 = vand.u32 %v1989, 4294901760
    %2163 = vmatpush.msra.mxu0 %v2162
    %v2164 = vand.u32 %v1382, 4294901760
    %v2165 = vsub.f32 %v1382, %v2164
    %v2166 = vand.u32 %v2165, 4294901760
    %2167 = vmatmul.f32.gmra.mxu0 %v2166
    %v2168 = vpop.f32.mrf.mxu0
    %v2169 = vadd.f32 %v2127, %v2168
    %v2170 = vand.u32 %v1385, 4294901760
    %v2171 = vsub.f32 %v1385, %v2170
    %v2172 = vand.u32 %v2171, 4294901760
    %2173 = vmatmul.f32.gmra.mxu0 %v2172
    %v2174 = vpop.f32.mrf.mxu0
    %v2175 = vadd.f32 %v2132, %v2174
    %v2176 = vand.u32 %v1388, 4294901760
    %v2177 = vsub.f32 %v1388, %v2176
    %v2178 = vand.u32 %v2177, 4294901760
    %2179 = vmatmul.f32.gmra.mxu0 %v2178
    %v2180 = vpop.f32.mrf.mxu0
    %v2181 = vadd.f32 %v2137, %v2180
    %v2182 = vand.u32 %v1391, 4294901760
    %v2183 = vsub.f32 %v1391, %v2182
    %v2184 = vand.u32 %v2183, 4294901760
    %2185 = vmatmul.f32.gmra.mxu0 %v2184
    %v2186 = vpop.f32.mrf.mxu0
    %v2187 = vadd.f32 %v2142, %v2186
    %2188 = vdwg.mxu0
    %2189 = vmatpush.msra.mxu0 0.0
    %2190 = vmatpush.msra.mxu0 0.0
    %2191 = vmatpush.msra.mxu0 0.0
    %2192 = vmatpush.msra.mxu0 0.0
    %2193 = vmatpush.msra.mxu0 0.0
    %2194 = vmatpush.msra.mxu0 0.0
    %2195 = vmatpush.msra.mxu0 0.0
    %2196 = vmatpush.msra.mxu0 0.0
    %2197 = vmatpush.msra.mxu0 0.0
    %2198 = vmatpush.msra.mxu0 0.0
    %2199 = vmatpush.msra.mxu0 0.0
    %2200 = vmatpush.msra.mxu0 0.0
    %v2201 = vand.u32 %v1992, 4294901760
    %v2202 = vsub.f32 %v1992, %v2201
    %v2203 = vand.u32 %v2202, 4294901760
    %2204 = vmatpush.msra.mxu0 %v2203
    %v2205 = vand.u32 %v1991, 4294901760
    %v2206 = vsub.f32 %v1991, %v2205
    %v2207 = vand.u32 %v2206, 4294901760
    %2208 = vmatpush.msra.mxu0 %v2207
    %v2209 = vand.u32 %v1990, 4294901760
    %v2210 = vsub.f32 %v1990, %v2209
    %v2211 = vand.u32 %v2210, 4294901760
    %2212 = vmatpush.msra.mxu0 %v2211
    %v2213 = vand.u32 %v1989, 4294901760
    %v2214 = vsub.f32 %v1989, %v2213
    %v2215 = vand.u32 %v2214, 4294901760
    %2216 = vmatpush.msra.mxu0 %v2215
    %v2217 = vand.u32 %v1382, 4294901760
    %2218 = vmatmul.f32.gmra.mxu0 %v2217
    %v2219 = vpop.f32.mrf.mxu0
    %v2220 = vadd.f32 %v2169, %v2219
    %v2221 = vand.u32 %v1385, 4294901760
    %2222 = vmatmul.f32.gmra.mxu0 %v2221
    %v2223 = vpop.f32.mrf.mxu0
    %v2224 = vadd.f32 %v2175, %v2223
    %v2225 = vand.u32 %v1388, 4294901760
    %2226 = vmatmul.f32.gmra.mxu0 %v2225
    %v2227 = vpop.f32.mrf.mxu0
    %v2228 = vadd.f32 %v2181, %v2227
    %v2229 = vand.u32 %v1391, 4294901760
    %2230 = vmatmul.f32.gmra.mxu0 %v2229
    %v2231 = vpop.f32.mrf.mxu0
    %v2232 = vadd.f32 %v2187, %v2231
    %2233 = vdwg.mxu0
    %2234 = vmatpush.msra.mxu0 0.0
    %2235 = vmatpush.msra.mxu0 0.0
    %2236 = vmatpush.msra.mxu0 0.0
    %2237 = vmatpush.msra.mxu0 0.0
    %2238 = vmatpush.msra.mxu0 0.0
    %2239 = vmatpush.msra.mxu0 0.0
    %2240 = vmatpush.msra.mxu0 0.0
    %2241 = vmatpush.msra.mxu0 0.0
    %2242 = vmatpush.msra.mxu0 0.0
    %2243 = vmatpush.msra.mxu0 0.0
    %2244 = vmatpush.msra.mxu0 0.0
    %2245 = vmatpush.msra.mxu0 0.0
    %v2246 = vand.u32 %v1992, 4294901760
    %2247 = vmatpush.msra.mxu0 %v2246
    %v2248 = vand.u32 %v1991, 4294901760
    %2249 = vmatpush.msra.mxu0 %v2248
    %v2250 = vand.u32 %v1990, 4294901760
    %2251 = vmatpush.msra.mxu0 %v2250
    %v2252 = vand.u32 %v1989, 4294901760
    %2253 = vmatpush.msra.mxu0 %v2252
    %v2254 = vand.u32 %v1382, 4294901760
    %2255 = vmatmul.f32.gmra.mxu0 %v2254
    %v2256 = vpop.f32.mrf.mxu0
    %v2257 = vadd.f32 %v2220, %v2256
    %v2258 = vand.u32 %v1385, 4294901760
    %2259 = vmatmul.f32.gmra.mxu0 %v2258
    %v2260 = vpop.f32.mrf.mxu0
    %v2261 = vadd.f32 %v2224, %v2260
    %v2262 = vand.u32 %v1388, 4294901760
    %2263 = vmatmul.f32.gmra.mxu0 %v2262
    %v2264 = vpop.f32.mrf.mxu0
    %v2265 = vadd.f32 %v2228, %v2264
    %v2266 = vand.u32 %v1391, 4294901760
    %2267 = vmatmul.f32.gmra.mxu0 %v2266
    %v2268 = vpop.f32.mrf.mxu0
    %v2269 = vadd.f32 %v2232, %v2268
    %2270 = vdwg.mxu0
    %v2271 = vld [vmem:[%s35] sm:$0xff]
    %v2272 = vld [vmem:[%s35 + $0x8] sm:$0xff]
    %v2273 = vld [vmem:[%s35 + $0x10] sm:$0xff]
    %v2274 = vld [vmem:[%s35 + $0x18] sm:$0xff]
    %v2275 = vld [vmem:[%s37] sm:$0xff]
    %v2276 = vld [vmem:[%s37 + $0x8] sm:$0xff]
    %v2277 = vld [vmem:[%s37 + $0x10] sm:$0xff]
    %v2278 = vld [vmem:[%s37 + $0x18] sm:$0xff]
    %2280 = vset.pattern.permute.xlu0 0
    %2281 = vperm.xlu0 %2280, %v2275
    %v2282 = vpop.permute.xlu0 %2281
    %2285 = vset.pattern.permute.xlu0 0
    %2286 = vperm.xlu0 %2285, %v2276
    %v2287 = vpop.permute.xlu0 %2286
    %2290 = vset.pattern.permute.xlu0 0
    %2291 = vperm.xlu0 %2290, %v2277
    %v2292 = vpop.permute.xlu0 %2291
    %2295 = vset.pattern.permute.xlu0 0
    %2296 = vperm.xlu0 %2295, %v2278
    %v2297 = vpop.permute.xlu0 %2296
    %v2300 = vsel %vm326, %v2271, 0
    %v2303 = vsel %vm326, %v2272, 0
    %v2306 = vsel %vm326, %v2273, 0
    %v2309 = vsel %vm326, %v2274, 0
    %2311 = vmatpush.msra.mxu0 0.0
    %2312 = vmatpush.msra.mxu0 0.0
    %2313 = vmatpush.msra.mxu0 0.0
    %2314 = vmatpush.msra.mxu0 0.0
    %2315 = vmatpush.msra.mxu0 0.0
    %2316 = vmatpush.msra.mxu0 0.0
    %2317 = vmatpush.msra.mxu0 0.0
    %2318 = vmatpush.msra.mxu0 0.0
    %2319 = vmatpush.msra.mxu0 0.0
    %2320 = vmatpush.msra.mxu0 0.0
    %2321 = vmatpush.msra.mxu0 0.0
    %2322 = vmatpush.msra.mxu0 0.0
    %v2323 = vand.u32 %v2269, 4294901760
    %2324 = vmatpush.msra.mxu0 %v2323
    %v2325 = vand.u32 %v2265, 4294901760
    %2326 = vmatpush.msra.mxu0 %v2325
    %v2327 = vand.u32 %v2261, 4294901760
    %2328 = vmatpush.msra.mxu0 %v2327
    %v2329 = vand.u32 %v2257, 4294901760
    %2330 = vmatpush.msra.mxu0 %v2329
    %v2331 = vand.u32 %v2300, 4294901760
    %v2332 = vsub.f32 %v2300, %v2331
    %v2333 = vand.u32 %v2332, 4294901760
    %v2334 = vsub.f32 %v2332, %v2333
    %v2335 = vand.u32 %v2334, 4294901760
    %2336 = vmatmul.f32.gmra.mxu0 %v2335
    %v2337 = vpop.f32.mrf.mxu0
    %v2338 = vadd.f32 %v2282, %v2337
    %v2339 = vand.u32 %v2303, 4294901760
    %v2340 = vsub.f32 %v2303, %v2339
    %v2341 = vand.u32 %v2340, 4294901760
    %v2342 = vsub.f32 %v2340, %v2341
    %v2343 = vand.u32 %v2342, 4294901760
    %2344 = vmatmul.f32.gmra.mxu0 %v2343
    %v2345 = vpop.f32.mrf.mxu0
    %v2346 = vadd.f32 %v2287, %v2345
    %v2347 = vand.u32 %v2306, 4294901760
    %v2348 = vsub.f32 %v2306, %v2347
    %v2349 = vand.u32 %v2348, 4294901760
    %v2350 = vsub.f32 %v2348, %v2349
    %v2351 = vand.u32 %v2350, 4294901760
    %2352 = vmatmul.f32.gmra.mxu0 %v2351
    %v2353 = vpop.f32.mrf.mxu0
    %v2354 = vadd.f32 %v2292, %v2353
    %v2355 = vand.u32 %v2309, 4294901760
    %v2356 = vsub.f32 %v2309, %v2355
    %v2357 = vand.u32 %v2356, 4294901760
    %v2358 = vsub.f32 %v2356, %v2357
    %v2359 = vand.u32 %v2358, 4294901760
    %2360 = vmatmul.f32.gmra.mxu0 %v2359
    %v2361 = vpop.f32.mrf.mxu0
    %v2362 = vadd.f32 %v2297, %v2361
    %2363 = vdwg.mxu0
    %2364 = vmatpush.msra.mxu0 0.0
    %2365 = vmatpush.msra.mxu0 0.0
    %2366 = vmatpush.msra.mxu0 0.0
    %2367 = vmatpush.msra.mxu0 0.0
    %2368 = vmatpush.msra.mxu0 0.0
    %2369 = vmatpush.msra.mxu0 0.0
    %2370 = vmatpush.msra.mxu0 0.0
    %2371 = vmatpush.msra.mxu0 0.0
    %2372 = vmatpush.msra.mxu0 0.0
    %2373 = vmatpush.msra.mxu0 0.0
    %2374 = vmatpush.msra.mxu0 0.0
    %2375 = vmatpush.msra.mxu0 0.0
    %v2376 = vand.u32 %v2269, 4294901760
    %v2377 = vsub.f32 %v2269, %v2376
    %v2378 = vand.u32 %v2377, 4294901760
    %v2379 = vsub.f32 %v2377, %v2378
    %v2380 = vand.u32 %v2379, 4294901760
    %2381 = vmatpush.msra.mxu0 %v2380
    %v2382 = vand.u32 %v2265, 4294901760
    %v2383 = vsub.f32 %v2265, %v2382
    %v2384 = vand.u32 %v2383, 4294901760
    %v2385 = vsub.f32 %v2383, %v2384
    %v2386 = vand.u32 %v2385, 4294901760
    %2387 = vmatpush.msra.mxu0 %v2386
    %v2388 = vand.u32 %v2261, 4294901760
    %v2389 = vsub.f32 %v2261, %v2388
    %v2390 = vand.u32 %v2389, 4294901760
    %v2391 = vsub.f32 %v2389, %v2390
    %v2392 = vand.u32 %v2391, 4294901760
    %2393 = vmatpush.msra.mxu0 %v2392
    %v2394 = vand.u32 %v2257, 4294901760
    %v2395 = vsub.f32 %v2257, %v2394
    %v2396 = vand.u32 %v2395, 4294901760
    %v2397 = vsub.f32 %v2395, %v2396
    %v2398 = vand.u32 %v2397, 4294901760
    %2399 = vmatpush.msra.mxu0 %v2398
    %v2400 = vand.u32 %v2300, 4294901760
    %2401 = vmatmul.f32.gmra.mxu0 %v2400
    %v2402 = vpop.f32.mrf.mxu0
    %v2403 = vadd.f32 %v2338, %v2402
    %v2404 = vand.u32 %v2303, 4294901760
    %2405 = vmatmul.f32.gmra.mxu0 %v2404
    %v2406 = vpop.f32.mrf.mxu0
    %v2407 = vadd.f32 %v2346, %v2406
    %v2408 = vand.u32 %v2306, 4294901760
    %2409 = vmatmul.f32.gmra.mxu0 %v2408
    %v2410 = vpop.f32.mrf.mxu0
    %v2411 = vadd.f32 %v2354, %v2410
    %v2412 = vand.u32 %v2309, 4294901760
    %2413 = vmatmul.f32.gmra.mxu0 %v2412
    %v2414 = vpop.f32.mrf.mxu0
    %v2415 = vadd.f32 %v2362, %v2414
    %2416 = vdwg.mxu0
    %2417 = vmatpush.msra.mxu0 0.0
    %2418 = vmatpush.msra.mxu0 0.0
    %2419 = vmatpush.msra.mxu0 0.0
    %2420 = vmatpush.msra.mxu0 0.0
    %2421 = vmatpush.msra.mxu0 0.0
    %2422 = vmatpush.msra.mxu0 0.0
    %2423 = vmatpush.msra.mxu0 0.0
    %2424 = vmatpush.msra.mxu0 0.0
    %2425 = vmatpush.msra.mxu0 0.0
    %2426 = vmatpush.msra.mxu0 0.0
    %2427 = vmatpush.msra.mxu0 0.0
    %2428 = vmatpush.msra.mxu0 0.0
    %v2429 = vand.u32 %v2269, 4294901760
    %v2430 = vsub.f32 %v2269, %v2429
    %2431 = vmatpush.msra.mxu0 %v2430
    %v2432 = vand.u32 %v2265, 4294901760
    %v2433 = vsub.f32 %v2265, %v2432
    %2434 = vmatpush.msra.mxu0 %v2433
    %v2435 = vand.u32 %v2261, 4294901760
    %v2436 = vsub.f32 %v2261, %v2435
    %2437 = vmatpush.msra.mxu0 %v2436
    %v2438 = vand.u32 %v2257, 4294901760
    %v2439 = vsub.f32 %v2257, %v2438
    %2440 = vmatpush.msra.mxu0 %v2439
    %v2441 = vand.u32 %v2300, 4294901760
    %v2442 = vsub.f32 %v2300, %v2441
    %2443 = vmatmul.f32.gmra.mxu0 %v2442
    %v2444 = vpop.f32.mrf.mxu0
    %v2445 = vadd.f32 %v2403, %v2444
    %v2446 = vand.u32 %v2303, 4294901760
    %v2447 = vsub.f32 %v2303, %v2446
    %2448 = vmatmul.f32.gmra.mxu0 %v2447
    %v2449 = vpop.f32.mrf.mxu0
    %v2450 = vadd.f32 %v2407, %v2449
    %v2451 = vand.u32 %v2306, 4294901760
    %v2452 = vsub.f32 %v2306, %v2451
    %2453 = vmatmul.f32.gmra.mxu0 %v2452
    %v2454 = vpop.f32.mrf.mxu0
    %v2455 = vadd.f32 %v2411, %v2454
    %v2456 = vand.u32 %v2309, 4294901760
    %v2457 = vsub.f32 %v2309, %v2456
    %2458 = vmatmul.f32.gmra.mxu0 %v2457
    %v2459 = vpop.f32.mrf.mxu0
    %v2460 = vadd.f32 %v2415, %v2459
    %2461 = vdwg.mxu0
    %2462 = vmatpush.msra.mxu0 0.0
    %2463 = vmatpush.msra.mxu0 0.0
    %2464 = vmatpush.msra.mxu0 0.0
    %2465 = vmatpush.msra.mxu0 0.0
    %2466 = vmatpush.msra.mxu0 0.0
    %2467 = vmatpush.msra.mxu0 0.0
    %2468 = vmatpush.msra.mxu0 0.0
    %2469 = vmatpush.msra.mxu0 0.0
    %2470 = vmatpush.msra.mxu0 0.0
    %2471 = vmatpush.msra.mxu0 0.0
    %2472 = vmatpush.msra.mxu0 0.0
    %2473 = vmatpush.msra.mxu0 0.0
    %v2474 = vand.u32 %v2269, 4294901760
    %2475 = vmatpush.msra.mxu0 %v2474
    %v2476 = vand.u32 %v2265, 4294901760
    %2477 = vmatpush.msra.mxu0 %v2476
    %v2478 = vand.u32 %v2261, 4294901760
    %2479 = vmatpush.msra.mxu0 %v2478
    %v2480 = vand.u32 %v2257, 4294901760
    %2481 = vmatpush.msra.mxu0 %v2480
    %v2482 = vand.u32 %v2300, 4294901760
    %v2483 = vsub.f32 %v2300, %v2482
    %v2484 = vand.u32 %v2483, 4294901760
    %2485 = vmatmul.f32.gmra.mxu0 %v2484
    %v2486 = vpop.f32.mrf.mxu0
    %v2487 = vadd.f32 %v2445, %v2486
    %v2488 = vand.u32 %v2303, 4294901760
    %v2489 = vsub.f32 %v2303, %v2488
    %v2490 = vand.u32 %v2489, 4294901760
    %2491 = vmatmul.f32.gmra.mxu0 %v2490
    %v2492 = vpop.f32.mrf.mxu0
    %v2493 = vadd.f32 %v2450, %v2492
    %v2494 = vand.u32 %v2306, 4294901760
    %v2495 = vsub.f32 %v2306, %v2494
    %v2496 = vand.u32 %v2495, 4294901760
    %2497 = vmatmul.f32.gmra.mxu0 %v2496
    %v2498 = vpop.f32.mrf.mxu0
    %v2499 = vadd.f32 %v2455, %v2498
    %v2500 = vand.u32 %v2309, 4294901760
    %v2501 = vsub.f32 %v2309, %v2500
    %v2502 = vand.u32 %v2501, 4294901760
    %2503 = vmatmul.f32.gmra.mxu0 %v2502
    %v2504 = vpop.f32.mrf.mxu0
    %v2505 = vadd.f32 %v2460, %v2504
    %2506 = vdwg.mxu0
    %2507 = vmatpush.msra.mxu0 0.0
    %2508 = vmatpush.msra.mxu0 0.0
    %2509 = vmatpush.msra.mxu0 0.0
    %2510 = vmatpush.msra.mxu0 0.0
    %2511 = vmatpush.msra.mxu0 0.0
    %2512 = vmatpush.msra.mxu0 0.0
    %2513 = vmatpush.msra.mxu0 0.0
    %2514 = vmatpush.msra.mxu0 0.0
    %2515 = vmatpush.msra.mxu0 0.0
    %2516 = vmatpush.msra.mxu0 0.0
    %2517 = vmatpush.msra.mxu0 0.0
    %2518 = vmatpush.msra.mxu0 0.0
    %v2519 = vand.u32 %v2269, 4294901760
    %v2520 = vsub.f32 %v2269, %v2519
    %v2521 = vand.u32 %v2520, 4294901760
    %2522 = vmatpush.msra.mxu0 %v2521
    %v2523 = vand.u32 %v2265, 4294901760
    %v2524 = vsub.f32 %v2265, %v2523
    %v2525 = vand.u32 %v2524, 4294901760
    %2526 = vmatpush.msra.mxu0 %v2525
    %v2527 = vand.u32 %v2261, 4294901760
    %v2528 = vsub.f32 %v2261, %v2527
    %v2529 = vand.u32 %v2528, 4294901760
    %2530 = vmatpush.msra.mxu0 %v2529
    %v2531 = vand.u32 %v2257, 4294901760
    %v2532 = vsub.f32 %v2257, %v2531
    %v2533 = vand.u32 %v2532, 4294901760
    %2534 = vmatpush.msra.mxu0 %v2533
    %v2535 = vand.u32 %v2300, 4294901760
    %2536 = vmatmul.f32.gmra.mxu0 %v2535
    %v2537 = vpop.f32.mrf.mxu0
    %v2538 = vadd.f32 %v2487, %v2537
    %v2539 = vand.u32 %v2303, 4294901760
    %2540 = vmatmul.f32.gmra.mxu0 %v2539
    %v2541 = vpop.f32.mrf.mxu0
    %v2542 = vadd.f32 %v2493, %v2541
    %v2543 = vand.u32 %v2306, 4294901760
    %2544 = vmatmul.f32.gmra.mxu0 %v2543
    %v2545 = vpop.f32.mrf.mxu0
    %v2546 = vadd.f32 %v2499, %v2545
    %v2547 = vand.u32 %v2309, 4294901760
    %2548 = vmatmul.f32.gmra.mxu0 %v2547
    %v2549 = vpop.f32.mrf.mxu0
    %v2550 = vadd.f32 %v2505, %v2549
    %2551 = vdwg.mxu0
    %2552 = vmatpush.msra.mxu0 0.0
    %2553 = vmatpush.msra.mxu0 0.0
    %2554 = vmatpush.msra.mxu0 0.0
    %2555 = vmatpush.msra.mxu0 0.0
    %2556 = vmatpush.msra.mxu0 0.0
    %2557 = vmatpush.msra.mxu0 0.0
    %2558 = vmatpush.msra.mxu0 0.0
    %2559 = vmatpush.msra.mxu0 0.0
    %2560 = vmatpush.msra.mxu0 0.0
    %2561 = vmatpush.msra.mxu0 0.0
    %2562 = vmatpush.msra.mxu0 0.0
    %2563 = vmatpush.msra.mxu0 0.0
    %v2564 = vand.u32 %v2269, 4294901760
    %2565 = vmatpush.msra.mxu0 %v2564
    %v2566 = vand.u32 %v2265, 4294901760
    %2567 = vmatpush.msra.mxu0 %v2566
    %v2568 = vand.u32 %v2261, 4294901760
    %2569 = vmatpush.msra.mxu0 %v2568
    %v2570 = vand.u32 %v2257, 4294901760
    %2571 = vmatpush.msra.mxu0 %v2570
    %v2572 = vand.u32 %v2300, 4294901760
    %2573 = vmatmul.f32.gmra.mxu0 %v2572
    %v2574 = vpop.f32.mrf.mxu0
    %v2575 = vadd.f32 %v2538, %v2574
    %v2576 = vand.u32 %v2303, 4294901760
    %2577 = vmatmul.f32.gmra.mxu0 %v2576
    %v2578 = vpop.f32.mrf.mxu0
    %v2579 = vadd.f32 %v2542, %v2578
    %v2580 = vand.u32 %v2306, 4294901760
    %2581 = vmatmul.f32.gmra.mxu0 %v2580
    %v2582 = vpop.f32.mrf.mxu0
    %v2583 = vadd.f32 %v2546, %v2582
    %v2584 = vand.u32 %v2309, 4294901760
    %2585 = vmatmul.f32.gmra.mxu0 %v2584
    %v2586 = vpop.f32.mrf.mxu0
    %v2587 = vadd.f32 %v2550, %v2586
    %2588 = vdwg.mxu0
    %v2589 = vstv %s172
    %v2590 = vmul.f32 %v2589, %v1059
    %v2591 = vmul.f32 %v2589, %v1060
    %v2592 = vmul.f32 %v2589, %v1061
    %v2593 = vmul.f32 %v2589, %v1062
    %v2594 = vstv %s173
    %v2595 = vmul.f32 %v2594, %v1975
    %v2596 = vmul.f32 %v2594, %v1979
    %v2597 = vmul.f32 %v2594, %v1983
    %v2598 = vmul.f32 %v2594, %v1987
    %v2599 = vadd.f32 %v2590, %v2595
    %v2600 = vadd.f32 %v2591, %v2596
    %v2601 = vadd.f32 %v2592, %v2597
    %v2602 = vadd.f32 %v2593, %v2598
    %v2603 = vstv %s174
    %v2604 = vmul.f32 %v2603, %v2575
    %v2605 = vmul.f32 %v2603, %v2579
    %v2606 = vmul.f32 %v2603, %v2583
    %v2607 = vmul.f32 %v2603, %v2587
    %v2608 = vadd.f32 %v2599, %v2604
    %v2609 = vadd.f32 %v2600, %v2605
    %v2610 = vadd.f32 %v2601, %v2606
    %v2611 = vadd.f32 %v2602, %v2607
    %v2612 = vmax.f32 %v2608, 0.0
    %v2613 = vmax.f32 %v2609, 0.0
    %v2614 = vmax.f32 %v2610, 0.0
    %v2615 = vmax.f32 %v2611, 0.0
    %v2616 = vld [vmem:[%s57] sm:$0xff]
    %v2617 = vld [vmem:[%s57 + $0x8] sm:$0xff]
    %v2618 = vld [vmem:[%s57 + $0x10] sm:$0xff]
    %v2619 = vld [vmem:[%s57 + $0x18] sm:$0xff]
    %v2620 = vld [vmem:[%s57 + $0x20] sm:$0xff]
    %v2621 = vld [vmem:[%s57 + $0x28] sm:$0xff]
    %v2622 = vld [vmem:[%s59] sm:$0x1]
    %v2624 = vperm.slane %v2622, 0
    %vm2626 = vcmask 392192
    %v2628 = vsel %vm2626, %v2612, 0
    %v2631 = vsel %vm2626, %v2613, 0
    %v2634 = vsel %vm2626, %v2614, 0
    %v2637 = vsel %vm2626, %v2615, 0
    %2639 = vmatpush.msra.mxu0 0.0
    %2640 = vmatpush.msra.mxu0 0.0
    %2641 = vmatpush.msra.mxu0 0.0
    %2642 = vmatpush.msra.mxu0 0.0
    %2643 = vmatpush.msra.mxu0 0.0
    %2644 = vmatpush.msra.mxu0 0.0
    %2645 = vmatpush.msra.mxu0 0.0
    %2646 = vmatpush.msra.mxu0 0.0
    %2647 = vmatpush.msra.mxu0 0.0
    %2648 = vmatpush.msra.mxu0 0.0
    %v2649 = vand.u32 %v2621, 4294901760
    %2650 = vmatpush.msra.mxu0 %v2649
    %v2651 = vand.u32 %v2620, 4294901760
    %2652 = vmatpush.msra.mxu0 %v2651
    %v2653 = vand.u32 %v2619, 4294901760
    %2654 = vmatpush.msra.mxu0 %v2653
    %v2655 = vand.u32 %v2618, 4294901760
    %2656 = vmatpush.msra.mxu0 %v2655
    %v2657 = vand.u32 %v2617, 4294901760
    %2658 = vmatpush.msra.mxu0 %v2657
    %v2659 = vand.u32 %v2616, 4294901760
    %2660 = vmatpush.msra.mxu0 %v2659
    %v2661 = vand.u32 %v2628, 4294901760
    %v2662 = vsub.f32 %v2628, %v2661
    %v2663 = vand.u32 %v2662, 4294901760
    %v2664 = vsub.f32 %v2662, %v2663
    %v2665 = vand.u32 %v2664, 4294901760
    %2666 = vmatmul.f32.gmra.mxu0 %v2665
    %v2667 = vpop.f32.mrf.mxu0
    %v2668 = vadd.f32 %v2624, %v2667
    %v2669 = vand.u32 %v2631, 4294901760
    %v2670 = vsub.f32 %v2631, %v2669
    %v2671 = vand.u32 %v2670, 4294901760
    %v2672 = vsub.f32 %v2670, %v2671
    %v2673 = vand.u32 %v2672, 4294901760
    %2674 = vmatmul.f32.gmra.mxu0 %v2673
    %v2675 = vpop.f32.mrf.mxu0
    %v2676 = vadd.f32 %v2624, %v2675
    %v2677 = vand.u32 %v2634, 4294901760
    %v2678 = vsub.f32 %v2634, %v2677
    %v2679 = vand.u32 %v2678, 4294901760
    %v2680 = vsub.f32 %v2678, %v2679
    %v2681 = vand.u32 %v2680, 4294901760
    %2682 = vmatmul.f32.gmra.mxu0 %v2681
    %v2683 = vpop.f32.mrf.mxu0
    %v2684 = vadd.f32 %v2624, %v2683
    %v2685 = vand.u32 %v2637, 4294901760
    %v2686 = vsub.f32 %v2637, %v2685
    %v2687 = vand.u32 %v2686, 4294901760
    %v2688 = vsub.f32 %v2686, %v2687
    %v2689 = vand.u32 %v2688, 4294901760
    %2690 = vmatmul.f32.gmra.mxu0 %v2689
    %v2691 = vpop.f32.mrf.mxu0
    %v2692 = vadd.f32 %v2624, %v2691
    %2693 = vdwg.mxu0
    %2694 = vmatpush.msra.mxu0 0.0
    %2695 = vmatpush.msra.mxu0 0.0
    %2696 = vmatpush.msra.mxu0 0.0
    %2697 = vmatpush.msra.mxu0 0.0
    %2698 = vmatpush.msra.mxu0 0.0
    %2699 = vmatpush.msra.mxu0 0.0
    %2700 = vmatpush.msra.mxu0 0.0
    %2701 = vmatpush.msra.mxu0 0.0
    %2702 = vmatpush.msra.mxu0 0.0
    %2703 = vmatpush.msra.mxu0 0.0
    %v2704 = vand.u32 %v2621, 4294901760
    %v2705 = vsub.f32 %v2621, %v2704
    %v2706 = vand.u32 %v2705, 4294901760
    %v2707 = vsub.f32 %v2705, %v2706
    %v2708 = vand.u32 %v2707, 4294901760
    %2709 = vmatpush.msra.mxu0 %v2708
    %v2710 = vand.u32 %v2620, 4294901760
    %v2711 = vsub.f32 %v2620, %v2710
    %v2712 = vand.u32 %v2711, 4294901760
    %v2713 = vsub.f32 %v2711, %v2712
    %v2714 = vand.u32 %v2713, 4294901760
    %2715 = vmatpush.msra.mxu0 %v2714
    %v2716 = vand.u32 %v2619, 4294901760
    %v2717 = vsub.f32 %v2619, %v2716
    %v2718 = vand.u32 %v2717, 4294901760
    %v2719 = vsub.f32 %v2717, %v2718
    %v2720 = vand.u32 %v2719, 4294901760
    %2721 = vmatpush.msra.mxu0 %v2720
    %v2722 = vand.u32 %v2618, 4294901760
    %v2723 = vsub.f32 %v2618, %v2722
    %v2724 = vand.u32 %v2723, 4294901760
    %v2725 = vsub.f32 %v2723, %v2724
    %v2726 = vand.u32 %v2725, 4294901760
    %2727 = vmatpush.msra.mxu0 %v2726
    %v2728 = vand.u32 %v2617, 4294901760
    %v2729 = vsub.f32 %v2617, %v2728
    %v2730 = vand.u32 %v2729, 4294901760
    %v2731 = vsub.f32 %v2729, %v2730
    %v2732 = vand.u32 %v2731, 4294901760
    %2733 = vmatpush.msra.mxu0 %v2732
    %v2734 = vand.u32 %v2616, 4294901760
    %v2735 = vsub.f32 %v2616, %v2734
    %v2736 = vand.u32 %v2735, 4294901760
    %v2737 = vsub.f32 %v2735, %v2736
    %v2738 = vand.u32 %v2737, 4294901760
    %2739 = vmatpush.msra.mxu0 %v2738
    %v2740 = vand.u32 %v2628, 4294901760
    %2741 = vmatmul.f32.gmra.mxu0 %v2740
    %v2742 = vpop.f32.mrf.mxu0
    %v2743 = vadd.f32 %v2668, %v2742
    %v2744 = vand.u32 %v2631, 4294901760
    %2745 = vmatmul.f32.gmra.mxu0 %v2744
    %v2746 = vpop.f32.mrf.mxu0
    %v2747 = vadd.f32 %v2676, %v2746
    %v2748 = vand.u32 %v2634, 4294901760
    %2749 = vmatmul.f32.gmra.mxu0 %v2748
    %v2750 = vpop.f32.mrf.mxu0
    %v2751 = vadd.f32 %v2684, %v2750
    %v2752 = vand.u32 %v2637, 4294901760
    %2753 = vmatmul.f32.gmra.mxu0 %v2752
    %v2754 = vpop.f32.mrf.mxu0
    %v2755 = vadd.f32 %v2692, %v2754
    %2756 = vdwg.mxu0
    %2757 = vmatpush.msra.mxu0 0.0
    %2758 = vmatpush.msra.mxu0 0.0
    %2759 = vmatpush.msra.mxu0 0.0
    %2760 = vmatpush.msra.mxu0 0.0
    %2761 = vmatpush.msra.mxu0 0.0
    %2762 = vmatpush.msra.mxu0 0.0
    %2763 = vmatpush.msra.mxu0 0.0
    %2764 = vmatpush.msra.mxu0 0.0
    %2765 = vmatpush.msra.mxu0 0.0
    %2766 = vmatpush.msra.mxu0 0.0
    %v2767 = vand.u32 %v2621, 4294901760
    %v2768 = vsub.f32 %v2621, %v2767
    %2769 = vmatpush.msra.mxu0 %v2768
    %v2770 = vand.u32 %v2620, 4294901760
    %v2771 = vsub.f32 %v2620, %v2770
    %2772 = vmatpush.msra.mxu0 %v2771
    %v2773 = vand.u32 %v2619, 4294901760
    %v2774 = vsub.f32 %v2619, %v2773
    %2775 = vmatpush.msra.mxu0 %v2774
    %v2776 = vand.u32 %v2618, 4294901760
    %v2777 = vsub.f32 %v2618, %v2776
    %2778 = vmatpush.msra.mxu0 %v2777
    %v2779 = vand.u32 %v2617, 4294901760
    %v2780 = vsub.f32 %v2617, %v2779
    %2781 = vmatpush.msra.mxu0 %v2780
    %v2782 = vand.u32 %v2616, 4294901760
    %v2783 = vsub.f32 %v2616, %v2782
    %2784 = vmatpush.msra.mxu0 %v2783
    %v2785 = vand.u32 %v2628, 4294901760
    %v2786 = vsub.f32 %v2628, %v2785
    %2787 = vmatmul.f32.gmra.mxu0 %v2786
    %v2788 = vpop.f32.mrf.mxu0
    %v2789 = vadd.f32 %v2743, %v2788
    %v2790 = vand.u32 %v2631, 4294901760
    %v2791 = vsub.f32 %v2631, %v2790
    %2792 = vmatmul.f32.gmra.mxu0 %v2791
    %v2793 = vpop.f32.mrf.mxu0
    %v2794 = vadd.f32 %v2747, %v2793
    %v2795 = vand.u32 %v2634, 4294901760
    %v2796 = vsub.f32 %v2634, %v2795
    %2797 = vmatmul.f32.gmra.mxu0 %v2796
    %v2798 = vpop.f32.mrf.mxu0
    %v2799 = vadd.f32 %v2751, %v2798
    %v2800 = vand.u32 %v2637, 4294901760
    %v2801 = vsub.f32 %v2637, %v2800
    %2802 = vmatmul.f32.gmra.mxu0 %v2801
    %v2803 = vpop.f32.mrf.mxu0
    %v2804 = vadd.f32 %v2755, %v2803
    %2805 = vdwg.mxu0
    %2806 = vmatpush.msra.mxu0 0.0
    %2807 = vmatpush.msra.mxu0 0.0
    %2808 = vmatpush.msra.mxu0 0.0
    %2809 = vmatpush.msra.mxu0 0.0
    %2810 = vmatpush.msra.mxu0 0.0
    %2811 = vmatpush.msra.mxu0 0.0
    %2812 = vmatpush.msra.mxu0 0.0
    %2813 = vmatpush.msra.mxu0 0.0
    %2814 = vmatpush.msra.mxu0 0.0
    %2815 = vmatpush.msra.mxu0 0.0
    %v2816 = vand.u32 %v2621, 4294901760
    %2817 = vmatpush.msra.mxu0 %v2816
    %v2818 = vand.u32 %v2620, 4294901760
    %2819 = vmatpush.msra.mxu0 %v2818
    %v2820 = vand.u32 %v2619, 4294901760
    %2821 = vmatpush.msra.mxu0 %v2820
    %v2822 = vand.u32 %v2618, 4294901760
    %2823 = vmatpush.msra.mxu0 %v2822
    %v2824 = vand.u32 %v2617, 4294901760
    %2825 = vmatpush.msra.mxu0 %v2824
    %v2826 = vand.u32 %v2616, 4294901760
    %2827 = vmatpush.msra.mxu0 %v2826
    %v2828 = vand.u32 %v2628, 4294901760
    %v2829 = vsub.f32 %v2628, %v2828
    %v2830 = vand.u32 %v2829, 4294901760
    %2831 = vmatmul.f32.gmra.mxu0 %v2830
    %v2832 = vpop.f32.mrf.mxu0
    %v2833 = vadd.f32 %v2789, %v2832
    %v2834 = vand.u32 %v2631, 4294901760
    %v2835 = vsub.f32 %v2631, %v2834
    %v2836 = vand.u32 %v2835, 4294901760
    %2837 = vmatmul.f32.gmra.mxu0 %v2836
    %v2838 = vpop.f32.mrf.mxu0
    %v2839 = vadd.f32 %v2794, %v2838
    %v2840 = vand.u32 %v2634, 4294901760
    %v2841 = vsub.f32 %v2634, %v2840
    %v2842 = vand.u32 %v2841, 4294901760
    %2843 = vmatmul.f32.gmra.mxu0 %v2842
    %v2844 = vpop.f32.mrf.mxu0
    %v2845 = vadd.f32 %v2799, %v2844
    %v2846 = vand.u32 %v2637, 4294901760
    %v2847 = vsub.f32 %v2637, %v2846
    %v2848 = vand.u32 %v2847, 4294901760
    %2849 = vmatmul.f32.gmra.mxu0 %v2848
    %v2850 = vpop.f32.mrf.mxu0
    %v2851 = vadd.f32 %v2804, %v2850
    %2852 = vdwg.mxu0
    %2853 = vmatpush.msra.mxu0 0.0
    %2854 = vmatpush.msra.mxu0 0.0
    %2855 = vmatpush.msra.mxu0 0.0
    %2856 = vmatpush.msra.mxu0 0.0
    %2857 = vmatpush.msra.mxu0 0.0
    %2858 = vmatpush.msra.mxu0 0.0
    %2859 = vmatpush.msra.mxu0 0.0
    %2860 = vmatpush.msra.mxu0 0.0
    %2861 = vmatpush.msra.mxu0 0.0
    %2862 = vmatpush.msra.mxu0 0.0
    %v2863 = vand.u32 %v2621, 4294901760
    %v2864 = vsub.f32 %v2621, %v2863
    %v2865 = vand.u32 %v2864, 4294901760
    %2866 = vmatpush.msra.mxu0 %v2865
    %v2867 = vand.u32 %v2620, 4294901760
    %v2868 = vsub.f32 %v2620, %v2867
    %v2869 = vand.u32 %v2868, 4294901760
    %2870 = vmatpush.msra.mxu0 %v2869
    %v2871 = vand.u32 %v2619, 4294901760
    %v2872 = vsub.f32 %v2619, %v2871
    %v2873 = vand.u32 %v2872, 4294901760
    %2874 = vmatpush.msra.mxu0 %v2873
    %v2875 = vand.u32 %v2618, 4294901760
    %v2876 = vsub.f32 %v2618, %v2875
    %v2877 = vand.u32 %v2876, 4294901760
    %2878 = vmatpush.msra.mxu0 %v2877
    %v2879 = vand.u32 %v2617, 4294901760
    %v2880 = vsub.f32 %v2617, %v2879
    %v2881 = vand.u32 %v2880, 4294901760
    %2882 = vmatpush.msra.mxu0 %v2881
    %v2883 = vand.u32 %v2616, 4294901760
    %v2884 = vsub.f32 %v2616, %v2883
    %v2885 = vand.u32 %v2884, 4294901760
    %2886 = vmatpush.msra.mxu0 %v2885
    %v2887 = vand.u32 %v2628, 4294901760
    %2888 = vmatmul.f32.gmra.mxu0 %v2887
    %v2889 = vpop.f32.mrf.mxu0
    %v2890 = vadd.f32 %v2833, %v2889
    %v2891 = vand.u32 %v2631, 4294901760
    %2892 = vmatmul.f32.gmra.mxu0 %v2891
    %v2893 = vpop.f32.mrf.mxu0
    %v2894 = vadd.f32 %v2839, %v2893
    %v2895 = vand.u32 %v2634, 4294901760
    %2896 = vmatmul.f32.gmra.mxu0 %v2895
    %v2897 = vpop.f32.mrf.mxu0
    %v2898 = vadd.f32 %v2845, %v2897
    %v2899 = vand.u32 %v2637, 4294901760
    %2900 = vmatmul.f32.gmra.mxu0 %v2899
    %v2901 = vpop.f32.mrf.mxu0
    %v2902 = vadd.f32 %v2851, %v2901
    %2903 = vdwg.mxu0
    %2904 = vmatpush.msra.mxu0 0.0
    %2905 = vmatpush.msra.mxu0 0.0
    %2906 = vmatpush.msra.mxu0 0.0
    %2907 = vmatpush.msra.mxu0 0.0
    %2908 = vmatpush.msra.mxu0 0.0
    %2909 = vmatpush.msra.mxu0 0.0
    %2910 = vmatpush.msra.mxu0 0.0
    %2911 = vmatpush.msra.mxu0 0.0
    %2912 = vmatpush.msra.mxu0 0.0
    %2913 = vmatpush.msra.mxu0 0.0
    %v2914 = vand.u32 %v2621, 4294901760
    %2915 = vmatpush.msra.mxu0 %v2914
    %v2916 = vand.u32 %v2620, 4294901760
    %2917 = vmatpush.msra.mxu0 %v2916
    %v2918 = vand.u32 %v2619, 4294901760
    %2919 = vmatpush.msra.mxu0 %v2918
    %v2920 = vand.u32 %v2618, 4294901760
    %2921 = vmatpush.msra.mxu0 %v2920
    %v2922 = vand.u32 %v2617, 4294901760
    %2923 = vmatpush.msra.mxu0 %v2922
    %v2924 = vand.u32 %v2616, 4294901760
    %2925 = vmatpush.msra.mxu0 %v2924
    %v2926 = vand.u32 %v2628, 4294901760
    %2927 = vmatmul.f32.gmra.mxu0 %v2926
    %v2928 = vpop.f32.mrf.mxu0
    %v2929 = vadd.f32 %v2890, %v2928
    %v2930 = vand.u32 %v2631, 4294901760
    %2931 = vmatmul.f32.gmra.mxu0 %v2930
    %v2932 = vpop.f32.mrf.mxu0
    %v2933 = vadd.f32 %v2894, %v2932
    %v2934 = vand.u32 %v2634, 4294901760
    %2935 = vmatmul.f32.gmra.mxu0 %v2934
    %v2936 = vpop.f32.mrf.mxu0
    %v2937 = vadd.f32 %v2898, %v2936
    %v2938 = vand.u32 %v2637, 4294901760
    %2939 = vmatmul.f32.gmra.mxu0 %v2938
    %v2940 = vpop.f32.mrf.mxu0
    %v2941 = vadd.f32 %v2902, %v2940
    %2942 = vdwg.mxu0
    %2943 = vmatpush.msra.mxu0 0.0
    %2944 = vmatpush.msra.mxu0 0.0
    %2945 = vmatpush.msra.mxu0 0.0
    %2946 = vmatpush.msra.mxu0 0.0
    %2947 = vmatpush.msra.mxu0 0.0
    %2948 = vmatpush.msra.mxu0 0.0
    %2949 = vmatpush.msra.mxu0 0.0
    %2950 = vmatpush.msra.mxu0 0.0
    %2951 = vmatpush.msra.mxu0 0.0
    %2952 = vmatpush.msra.mxu0 0.0
    %2953 = vmatpush.msra.mxu0 0.0
    %2954 = vmatpush.msra.mxu0 0.0
    %v2955 = vand.u32 %v2941, 4294901760
    %2956 = vmatpush.msra.mxu0 %v2955
    %v2957 = vand.u32 %v2937, 4294901760
    %2958 = vmatpush.msra.mxu0 %v2957
    %v2959 = vand.u32 %v2933, 4294901760
    %2960 = vmatpush.msra.mxu0 %v2959
    %v2961 = vand.u32 %v2929, 4294901760
    %2962 = vmatpush.msra.mxu0 %v2961
    %v2963 = vand.u32 %v1700, 4294901760
    %v2964 = vsub.f32 %v1700, %v2963
    %v2965 = vand.u32 %v2964, 4294901760
    %v2966 = vsub.f32 %v2964, %v2965
    %v2967 = vand.u32 %v2966, 4294901760
    %2968 = vmatmul.f32.gmra.mxu0 %v2967
    %v2969 = vpop.f32.mrf.mxu0
    %v2970 = vadd.f32 %v1682, %v2969
    %v2971 = vand.u32 %v1703, 4294901760
    %v2972 = vsub.f32 %v1703, %v2971
    %v2973 = vand.u32 %v2972, 4294901760
    %v2974 = vsub.f32 %v2972, %v2973
    %v2975 = vand.u32 %v2974, 4294901760
    %2976 = vmatmul.f32.gmra.mxu0 %v2975
    %v2977 = vpop.f32.mrf.mxu0
    %v2978 = vadd.f32 %v1687, %v2977
    %v2979 = vand.u32 %v1706, 4294901760
    %v2980 = vsub.f32 %v1706, %v2979
    %v2981 = vand.u32 %v2980, 4294901760
    %v2982 = vsub.f32 %v2980, %v2981
    %v2983 = vand.u32 %v2982, 4294901760
    %2984 = vmatmul.f32.gmra.mxu0 %v2983
    %v2985 = vpop.f32.mrf.mxu0
    %v2986 = vadd.f32 %v1692, %v2985
    %v2987 = vand.u32 %v1709, 4294901760
    %v2988 = vsub.f32 %v1709, %v2987
    %v2989 = vand.u32 %v2988, 4294901760
    %v2990 = vsub.f32 %v2988, %v2989
    %v2991 = vand.u32 %v2990, 4294901760
    %2992 = vmatmul.f32.gmra.mxu0 %v2991
    %v2993 = vpop.f32.mrf.mxu0
    %v2994 = vadd.f32 %v1697, %v2993
    %2995 = vdwg.mxu0
    %2996 = vmatpush.msra.mxu0 0.0
    %2997 = vmatpush.msra.mxu0 0.0
    %2998 = vmatpush.msra.mxu0 0.0
    %2999 = vmatpush.msra.mxu0 0.0
    %3000 = vmatpush.msra.mxu0 0.0
    %3001 = vmatpush.msra.mxu0 0.0
    %3002 = vmatpush.msra.mxu0 0.0
    %3003 = vmatpush.msra.mxu0 0.0
    %3004 = vmatpush.msra.mxu0 0.0
    %3005 = vmatpush.msra.mxu0 0.0
    %3006 = vmatpush.msra.mxu0 0.0
    %3007 = vmatpush.msra.mxu0 0.0
    %v3008 = vand.u32 %v2941, 4294901760
    %v3009 = vsub.f32 %v2941, %v3008
    %v3010 = vand.u32 %v3009, 4294901760
    %v3011 = vsub.f32 %v3009, %v3010
    %v3012 = vand.u32 %v3011, 4294901760
    %3013 = vmatpush.msra.mxu0 %v3012
    %v3014 = vand.u32 %v2937, 4294901760
    %v3015 = vsub.f32 %v2937, %v3014
    %v3016 = vand.u32 %v3015, 4294901760
    %v3017 = vsub.f32 %v3015, %v3016
    %v3018 = vand.u32 %v3017, 4294901760
    %3019 = vmatpush.msra.mxu0 %v3018
    %v3020 = vand.u32 %v2933, 4294901760
    %v3021 = vsub.f32 %v2933, %v3020
    %v3022 = vand.u32 %v3021, 4294901760
    %v3023 = vsub.f32 %v3021, %v3022
    %v3024 = vand.u32 %v3023, 4294901760
    %3025 = vmatpush.msra.mxu0 %v3024
    %v3026 = vand.u32 %v2929, 4294901760
    %v3027 = vsub.f32 %v2929, %v3026
    %v3028 = vand.u32 %v3027, 4294901760
    %v3029 = vsub.f32 %v3027, %v3028
    %v3030 = vand.u32 %v3029, 4294901760
    %3031 = vmatpush.msra.mxu0 %v3030
    %v3032 = vand.u32 %v1700, 4294901760
    %3033 = vmatmul.f32.gmra.mxu0 %v3032
    %v3034 = vpop.f32.mrf.mxu0
    %v3035 = vadd.f32 %v2970, %v3034
    %v3036 = vand.u32 %v1703, 4294901760
    %3037 = vmatmul.f32.gmra.mxu0 %v3036
    %v3038 = vpop.f32.mrf.mxu0
    %v3039 = vadd.f32 %v2978, %v3038
    %v3040 = vand.u32 %v1706, 4294901760
    %3041 = vmatmul.f32.gmra.mxu0 %v3040
    %v3042 = vpop.f32.mrf.mxu0
    %v3043 = vadd.f32 %v2986, %v3042
    %v3044 = vand.u32 %v1709, 4294901760
    %3045 = vmatmul.f32.gmra.mxu0 %v3044
    %v3046 = vpop.f32.mrf.mxu0
    %v3047 = vadd.f32 %v2994, %v3046
    %3048 = vdwg.mxu0
    %3049 = vmatpush.msra.mxu0 0.0
    %3050 = vmatpush.msra.mxu0 0.0
    %3051 = vmatpush.msra.mxu0 0.0
    %3052 = vmatpush.msra.mxu0 0.0
    %3053 = vmatpush.msra.mxu0 0.0
    %3054 = vmatpush.msra.mxu0 0.0
    %3055 = vmatpush.msra.mxu0 0.0
    %3056 = vmatpush.msra.mxu0 0.0
    %3057 = vmatpush.msra.mxu0 0.0
    %3058 = vmatpush.msra.mxu0 0.0
    %3059 = vmatpush.msra.mxu0 0.0
    %3060 = vmatpush.msra.mxu0 0.0
    %v3061 = vand.u32 %v2941, 4294901760
    %v3062 = vsub.f32 %v2941, %v3061
    %3063 = vmatpush.msra.mxu0 %v3062
    %v3064 = vand.u32 %v2937, 4294901760
    %v3065 = vsub.f32 %v2937, %v3064
    %3066 = vmatpush.msra.mxu0 %v3065
    %v3067 = vand.u32 %v2933, 4294901760
    %v3068 = vsub.f32 %v2933, %v3067
    %3069 = vmatpush.msra.mxu0 %v3068
    %v3070 = vand.u32 %v2929, 4294901760
    %v3071 = vsub.f32 %v2929, %v3070
    %3072 = vmatpush.msra.mxu0 %v3071
    %v3073 = vand.u32 %v1700, 4294901760
    %v3074 = vsub.f32 %v1700, %v3073
    %3075 = vmatmul.f32.gmra.mxu0 %v3074
    %v3076 = vpop.f32.mrf.mxu0
    %v3077 = vadd.f32 %v3035, %v3076
    %v3078 = vand.u32 %v1703, 4294901760
    %v3079 = vsub.f32 %v1703, %v3078
    %3080 = vmatmul.f32.gmra.mxu0 %v3079
    %v3081 = vpop.f32.mrf.mxu0
    %v3082 = vadd.f32 %v3039, %v3081
    %v3083 = vand.u32 %v1706, 4294901760
    %v3084 = vsub.f32 %v1706, %v3083
    %3085 = vmatmul.f32.gmra.mxu0 %v3084
    %v3086 = vpop.f32.mrf.mxu0
    %v3087 = vadd.f32 %v3043, %v3086
    %v3088 = vand.u32 %v1709, 4294901760
    %v3089 = vsub.f32 %v1709, %v3088
    %3090 = vmatmul.f32.gmra.mxu0 %v3089
    %v3091 = vpop.f32.mrf.mxu0
    %v3092 = vadd.f32 %v3047, %v3091
    %3093 = vdwg.mxu0
    %3094 = vmatpush.msra.mxu0 0.0
    %3095 = vmatpush.msra.mxu0 0.0
    %3096 = vmatpush.msra.mxu0 0.0
    %3097 = vmatpush.msra.mxu0 0.0
    %3098 = vmatpush.msra.mxu0 0.0
    %3099 = vmatpush.msra.mxu0 0.0
    %3100 = vmatpush.msra.mxu0 0.0
    %3101 = vmatpush.msra.mxu0 0.0
    %3102 = vmatpush.msra.mxu0 0.0
    %3103 = vmatpush.msra.mxu0 0.0
    %3104 = vmatpush.msra.mxu0 0.0
    %3105 = vmatpush.msra.mxu0 0.0
    %v3106 = vand.u32 %v2941, 4294901760
    %3107 = vmatpush.msra.mxu0 %v3106
    %v3108 = vand.u32 %v2937, 4294901760
    %3109 = vmatpush.msra.mxu0 %v3108
    %v3110 = vand.u32 %v2933, 4294901760
    %3111 = vmatpush.msra.mxu0 %v3110
    %v3112 = vand.u32 %v2929, 4294901760
    %3113 = vmatpush.msra.mxu0 %v3112
    %v3114 = vand.u32 %v1700, 4294901760
    %v3115 = vsub.f32 %v1700, %v3114
    %v3116 = vand.u32 %v3115, 4294901760
    %3117 = vmatmul.f32.gmra.mxu0 %v3116
    %v3118 = vpop.f32.mrf.mxu0
    %v3119 = vadd.f32 %v3077, %v3118
    %v3120 = vand.u32 %v1703, 4294901760
    %v3121 = vsub.f32 %v1703, %v3120
    %v3122 = vand.u32 %v3121, 4294901760
    %3123 = vmatmul.f32.gmra.mxu0 %v3122
    %v3124 = vpop.f32.mrf.mxu0
    %v3125 = vadd.f32 %v3082, %v3124
    %v3126 = vand.u32 %v1706, 4294901760
    %v3127 = vsub.f32 %v1706, %v3126
    %v3128 = vand.u32 %v3127, 4294901760
    %3129 = vmatmul.f32.gmra.mxu0 %v3128
    %v3130 = vpop.f32.mrf.mxu0
    %v3131 = vadd.f32 %v3087, %v3130
    %v3132 = vand.u32 %v1709, 4294901760
    %v3133 = vsub.f32 %v1709, %v3132
    %v3134 = vand.u32 %v3133, 4294901760
    %3135 = vmatmul.f32.gmra.mxu0 %v3134
    %v3136 = vpop.f32.mrf.mxu0
    %v3137 = vadd.f32 %v3092, %v3136
    %3138 = vdwg.mxu0
    %3139 = vmatpush.msra.mxu0 0.0
    %3140 = vmatpush.msra.mxu0 0.0
    %3141 = vmatpush.msra.mxu0 0.0
    %3142 = vmatpush.msra.mxu0 0.0
    %3143 = vmatpush.msra.mxu0 0.0
    %3144 = vmatpush.msra.mxu0 0.0
    %3145 = vmatpush.msra.mxu0 0.0
    %3146 = vmatpush.msra.mxu0 0.0
    %3147 = vmatpush.msra.mxu0 0.0
    %3148 = vmatpush.msra.mxu0 0.0
    %3149 = vmatpush.msra.mxu0 0.0
    %3150 = vmatpush.msra.mxu0 0.0
    %v3151 = vand.u32 %v2941, 4294901760
    %v3152 = vsub.f32 %v2941, %v3151
    %v3153 = vand.u32 %v3152, 4294901760
    %3154 = vmatpush.msra.mxu0 %v3153
    %v3155 = vand.u32 %v2937, 4294901760
    %v3156 = vsub.f32 %v2937, %v3155
    %v3157 = vand.u32 %v3156, 4294901760
    %3158 = vmatpush.msra.mxu0 %v3157
    %v3159 = vand.u32 %v2933, 4294901760
    %v3160 = vsub.f32 %v2933, %v3159
    %v3161 = vand.u32 %v3160, 4294901760
    %3162 = vmatpush.msra.mxu0 %v3161
    %v3163 = vand.u32 %v2929, 4294901760
    %v3164 = vsub.f32 %v2929, %v3163
    %v3165 = vand.u32 %v3164, 4294901760
    %3166 = vmatpush.msra.mxu0 %v3165
    %v3167 = vand.u32 %v1700, 4294901760
    %3168 = vmatmul.f32.gmra.mxu0 %v3167
    %v3169 = vpop.f32.mrf.mxu0
    %v3170 = vadd.f32 %v3119, %v3169
    %v3171 = vand.u32 %v1703, 4294901760
    %3172 = vmatmul.f32.gmra.mxu0 %v3171
    %v3173 = vpop.f32.mrf.mxu0
    %v3174 = vadd.f32 %v3125, %v3173
    %v3175 = vand.u32 %v1706, 4294901760
    %3176 = vmatmul.f32.gmra.mxu0 %v3175
    %v3177 = vpop.f32.mrf.mxu0
    %v3178 = vadd.f32 %v3131, %v3177
    %v3179 = vand.u32 %v1709, 4294901760
    %3180 = vmatmul.f32.gmra.mxu0 %v3179
    %v3181 = vpop.f32.mrf.mxu0
    %v3182 = vadd.f32 %v3137, %v3181
    %3183 = vdwg.mxu0
    %3184 = vmatpush.msra.mxu0 0.0
    %3185 = vmatpush.msra.mxu0 0.0
    %3186 = vmatpush.msra.mxu0 0.0
    %3187 = vmatpush.msra.mxu0 0.0
    %3188 = vmatpush.msra.mxu0 0.0
    %3189 = vmatpush.msra.mxu0 0.0
    %3190 = vmatpush.msra.mxu0 0.0
    %3191 = vmatpush.msra.mxu0 0.0
    %3192 = vmatpush.msra.mxu0 0.0
    %3193 = vmatpush.msra.mxu0 0.0
    %3194 = vmatpush.msra.mxu0 0.0
    %3195 = vmatpush.msra.mxu0 0.0
    %v3196 = vand.u32 %v2941, 4294901760
    %3197 = vmatpush.msra.mxu0 %v3196
    %v3198 = vand.u32 %v2937, 4294901760
    %3199 = vmatpush.msra.mxu0 %v3198
    %v3200 = vand.u32 %v2933, 4294901760
    %3201 = vmatpush.msra.mxu0 %v3200
    %v3202 = vand.u32 %v2929, 4294901760
    %3203 = vmatpush.msra.mxu0 %v3202
    %v3204 = vand.u32 %v1700, 4294901760
    %3205 = vmatmul.f32.gmra.mxu0 %v3204
    %v3206 = vpop.f32.mrf.mxu0
    %v3207 = vadd.f32 %v3170, %v3206
    %v3208 = vand.u32 %v1703, 4294901760
    %3209 = vmatmul.f32.gmra.mxu0 %v3208
    %v3210 = vpop.f32.mrf.mxu0
    %v3211 = vadd.f32 %v3174, %v3210
    %v3212 = vand.u32 %v1706, 4294901760
    %3213 = vmatmul.f32.gmra.mxu0 %v3212
    %v3214 = vpop.f32.mrf.mxu0
    %v3215 = vadd.f32 %v3178, %v3214
    %v3216 = vand.u32 %v1709, 4294901760
    %3217 = vmatmul.f32.gmra.mxu0 %v3216
    %v3218 = vpop.f32.mrf.mxu0
    %v3219 = vadd.f32 %v3182, %v3218
    %3220 = vdwg.mxu0
    %v3221 = vld [vmem:[%s61] sm:$0xff]
    %v3222 = vld [vmem:[%s61 + $0x8] sm:$0xff]
    %v3223 = vld [vmem:[%s61 + $0x10] sm:$0xff]
    %v3224 = vld [vmem:[%s61 + $0x18] sm:$0xff]
    %v3225 = vld [vmem:[%s61 + $0x20] sm:$0xff]
    %v3226 = vld [vmem:[%s61 + $0x28] sm:$0xff]
    %3227 = vmatpush.msra.mxu0 0.0
    %3228 = vmatpush.msra.mxu0 0.0
    %3229 = vmatpush.msra.mxu0 0.0
    %3230 = vmatpush.msra.mxu0 0.0
    %3231 = vmatpush.msra.mxu0 0.0
    %3232 = vmatpush.msra.mxu0 0.0
    %3233 = vmatpush.msra.mxu0 0.0
    %3234 = vmatpush.msra.mxu0 0.0
    %3235 = vmatpush.msra.mxu0 0.0
    %3236 = vmatpush.msra.mxu0 0.0
    %v3237 = vand.u32 %v3226, 4294901760
    %3238 = vmatpush.msra.mxu0 %v3237
    %v3239 = vand.u32 %v3225, 4294901760
    %3240 = vmatpush.msra.mxu0 %v3239
    %v3241 = vand.u32 %v3224, 4294901760
    %3242 = vmatpush.msra.mxu0 %v3241
    %v3243 = vand.u32 %v3223, 4294901760
    %3244 = vmatpush.msra.mxu0 %v3243
    %v3245 = vand.u32 %v3222, 4294901760
    %3246 = vmatpush.msra.mxu0 %v3245
    %v3247 = vand.u32 %v3221, 4294901760
    %3248 = vmatpush.msra.mxu0 %v3247
    %v3249 = vand.u32 %v2628, 4294901760
    %v3250 = vsub.f32 %v2628, %v3249
    %v3251 = vand.u32 %v3250, 4294901760
    %v3252 = vsub.f32 %v3250, %v3251
    %v3253 = vand.u32 %v3252, 4294901760
    %3254 = vmatmul.f32.gmra.mxu0 %v3253
    %v3255 = vpop.f32.mrf.mxu0
    %v3256 = vadd.f32 0.0, %v3255
    %v3257 = vand.u32 %v2631, 4294901760
    %v3258 = vsub.f32 %v2631, %v3257
    %v3259 = vand.u32 %v3258, 4294901760
    %v3260 = vsub.f32 %v3258, %v3259
    %v3261 = vand.u32 %v3260, 4294901760
    %3262 = vmatmul.f32.gmra.mxu0 %v3261
    %v3263 = vpop.f32.mrf.mxu0
    %v3264 = vadd.f32 0.0, %v3263
    %v3265 = vand.u32 %v2634, 4294901760
    %v3266 = vsub.f32 %v2634, %v3265
    %v3267 = vand.u32 %v3266, 4294901760
    %v3268 = vsub.f32 %v3266, %v3267
    %v3269 = vand.u32 %v3268, 4294901760
    %3270 = vmatmul.f32.gmra.mxu0 %v3269
    %v3271 = vpop.f32.mrf.mxu0
    %v3272 = vadd.f32 0.0, %v3271
    %v3273 = vand.u32 %v2637, 4294901760
    %v3274 = vsub.f32 %v2637, %v3273
    %v3275 = vand.u32 %v3274, 4294901760
    %v3276 = vsub.f32 %v3274, %v3275
    %v3277 = vand.u32 %v3276, 4294901760
    %3278 = vmatmul.f32.gmra.mxu0 %v3277
    %v3279 = vpop.f32.mrf.mxu0
    %v3280 = vadd.f32 0.0, %v3279
    %3281 = vdwg.mxu0
    %3282 = vmatpush.msra.mxu0 0.0
    %3283 = vmatpush.msra.mxu0 0.0
    %3284 = vmatpush.msra.mxu0 0.0
    %3285 = vmatpush.msra.mxu0 0.0
    %3286 = vmatpush.msra.mxu0 0.0
    %3287 = vmatpush.msra.mxu0 0.0
    %3288 = vmatpush.msra.mxu0 0.0
    %3289 = vmatpush.msra.mxu0 0.0
    %3290 = vmatpush.msra.mxu0 0.0
    %3291 = vmatpush.msra.mxu0 0.0
    %v3292 = vand.u32 %v3226, 4294901760
    %v3293 = vsub.f32 %v3226, %v3292
    %v3294 = vand.u32 %v3293, 4294901760
    %v3295 = vsub.f32 %v3293, %v3294
    %v3296 = vand.u32 %v3295, 4294901760
    %3297 = vmatpush.msra.mxu0 %v3296
    %v3298 = vand.u32 %v3225, 4294901760
    %v3299 = vsub.f32 %v3225, %v3298
    %v3300 = vand.u32 %v3299, 4294901760
    %v3301 = vsub.f32 %v3299, %v3300
    %v3302 = vand.u32 %v3301, 4294901760
    %3303 = vmatpush.msra.mxu0 %v3302
    %v3304 = vand.u32 %v3224, 4294901760
    %v3305 = vsub.f32 %v3224, %v3304
    %v3306 = vand.u32 %v3305, 4294901760
    %v3307 = vsub.f32 %v3305, %v3306
    %v3308 = vand.u32 %v3307, 4294901760
    %3309 = vmatpush.msra.mxu0 %v3308
    %v3310 = vand.u32 %v3223, 4294901760
    %v3311 = vsub.f32 %v3223, %v3310
    %v3312 = vand.u32 %v3311, 4294901760
    %v3313 = vsub.f32 %v3311, %v3312
    %v3314 = vand.u32 %v3313, 4294901760
    %3315 = vmatpush.msra.mxu0 %v3314
    %v3316 = vand.u32 %v3222, 4294901760
    %v3317 = vsub.f32 %v3222, %v3316
    %v3318 = vand.u32 %v3317, 4294901760
    %v3319 = vsub.f32 %v3317, %v3318
    %v3320 = vand.u32 %v3319, 4294901760
    %3321 = vmatpush.msra.mxu0 %v3320
    %v3322 = vand.u32 %v3221, 4294901760
    %v3323 = vsub.f32 %v3221, %v3322
    %v3324 = vand.u32 %v3323, 4294901760
    %v3325 = vsub.f32 %v3323, %v3324
    %v3326 = vand.u32 %v3325, 4294901760
    %3327 = vmatpush.msra.mxu0 %v3326
    %v3328 = vand.u32 %v2628, 4294901760
    %3329 = vmatmul.f32.gmra.mxu0 %v3328
    %v3330 = vpop.f32.mrf.mxu0
    %v3331 = vadd.f32 %v3256, %v3330
    %v3332 = vand.u32 %v2631, 4294901760
    %3333 = vmatmul.f32.gmra.mxu0 %v3332
    %v3334 = vpop.f32.mrf.mxu0
    %v3335 = vadd.f32 %v3264, %v3334
    %v3336 = vand.u32 %v2634, 4294901760
    %3337 = vmatmul.f32.gmra.mxu0 %v3336
    %v3338 = vpop.f32.mrf.mxu0
    %v3339 = vadd.f32 %v3272, %v3338
    %v3340 = vand.u32 %v2637, 4294901760
    %3341 = vmatmul.f32.gmra.mxu0 %v3340
    %v3342 = vpop.f32.mrf.mxu0
    %v3343 = vadd.f32 %v3280, %v3342
    %3344 = vdwg.mxu0
    %3345 = vmatpush.msra.mxu0 0.0
    %3346 = vmatpush.msra.mxu0 0.0
    %3347 = vmatpush.msra.mxu0 0.0
    %3348 = vmatpush.msra.mxu0 0.0
    %3349 = vmatpush.msra.mxu0 0.0
    %3350 = vmatpush.msra.mxu0 0.0
    %3351 = vmatpush.msra.mxu0 0.0
    %3352 = vmatpush.msra.mxu0 0.0
    %3353 = vmatpush.msra.mxu0 0.0
    %3354 = vmatpush.msra.mxu0 0.0
    %v3355 = vand.u32 %v3226, 4294901760
    %v3356 = vsub.f32 %v3226, %v3355
    %3357 = vmatpush.msra.mxu0 %v3356
    %v3358 = vand.u32 %v3225, 4294901760
    %v3359 = vsub.f32 %v3225, %v3358
    %3360 = vmatpush.msra.mxu0 %v3359
    %v3361 = vand.u32 %v3224, 4294901760
    %v3362 = vsub.f32 %v3224, %v3361
    %3363 = vmatpush.msra.mxu0 %v3362
    %v3364 = vand.u32 %v3223, 4294901760
    %v3365 = vsub.f32 %v3223, %v3364
    %3366 = vmatpush.msra.mxu0 %v3365
    %v3367 = vand.u32 %v3222, 4294901760
    %v3368 = vsub.f32 %v3222, %v3367
    %3369 = vmatpush.msra.mxu0 %v3368
    %v3370 = vand.u32 %v3221, 4294901760
    %v3371 = vsub.f32 %v3221, %v3370
    %3372 = vmatpush.msra.mxu0 %v3371
    %v3373 = vand.u32 %v2628, 4294901760
    %v3374 = vsub.f32 %v2628, %v3373
    %3375 = vmatmul.f32.gmra.mxu0 %v3374
    %v3376 = vpop.f32.mrf.mxu0
    %v3377 = vadd.f32 %v3331, %v3376
    %v3378 = vand.u32 %v2631, 4294901760
    %v3379 = vsub.f32 %v2631, %v3378
    %3380 = vmatmul.f32.gmra.mxu0 %v3379
    %v3381 = vpop.f32.mrf.mxu0
    %v3382 = vadd.f32 %v3335, %v3381
    %v3383 = vand.u32 %v2634, 4294901760
    %v3384 = vsub.f32 %v2634, %v3383
    %3385 = vmatmul.f32.gmra.mxu0 %v3384
    %v3386 = vpop.f32.mrf.mxu0
    %v3387 = vadd.f32 %v3339, %v3386
    %v3388 = vand.u32 %v2637, 4294901760
    %v3389 = vsub.f32 %v2637, %v3388
    %3390 = vmatmul.f32.gmra.mxu0 %v3389
    %v3391 = vpop.f32.mrf.mxu0
    %v3392 = vadd.f32 %v3343, %v3391
    %3393 = vdwg.mxu0
    %3394 = vmatpush.msra.mxu0 0.0
    %3395 = vmatpush.msra.mxu0 0.0
    %3396 = vmatpush.msra.mxu0 0.0
    %3397 = vmatpush.msra.mxu0 0.0
    %3398 = vmatpush.msra.mxu0 0.0
    %3399 = vmatpush.msra.mxu0 0.0
    %3400 = vmatpush.msra.mxu0 0.0
    %3401 = vmatpush.msra.mxu0 0.0
    %3402 = vmatpush.msra.mxu0 0.0
    %3403 = vmatpush.msra.mxu0 0.0
    %v3404 = vand.u32 %v3226, 4294901760
    %3405 = vmatpush.msra.mxu0 %v3404
    %v3406 = vand.u32 %v3225, 4294901760
    %3407 = vmatpush.msra.mxu0 %v3406
    %v3408 = vand.u32 %v3224, 4294901760
    %3409 = vmatpush.msra.mxu0 %v3408
    %v3410 = vand.u32 %v3223, 4294901760
    %3411 = vmatpush.msra.mxu0 %v3410
    %v3412 = vand.u32 %v3222, 4294901760
    %3413 = vmatpush.msra.mxu0 %v3412
    %v3414 = vand.u32 %v3221, 4294901760
    %3415 = vmatpush.msra.mxu0 %v3414
    %v3416 = vand.u32 %v2628, 4294901760
    %v3417 = vsub.f32 %v2628, %v3416
    %v3418 = vand.u32 %v3417, 4294901760
    %3419 = vmatmul.f32.gmra.mxu0 %v3418
    %v3420 = vpop.f32.mrf.mxu0
    %v3421 = vadd.f32 %v3377, %v3420
    %v3422 = vand.u32 %v2631, 4294901760
    %v3423 = vsub.f32 %v2631, %v3422
    %v3424 = vand.u32 %v3423, 4294901760
    %3425 = vmatmul.f32.gmra.mxu0 %v3424
    %v3426 = vpop.f32.mrf.mxu0
    %v3427 = vadd.f32 %v3382, %v3426
    %v3428 = vand.u32 %v2634, 4294901760
    %v3429 = vsub.f32 %v2634, %v3428
    %v3430 = vand.u32 %v3429, 4294901760
    %3431 = vmatmul.f32.gmra.mxu0 %v3430
    %v3432 = vpop.f32.mrf.mxu0
    %v3433 = vadd.f32 %v3387, %v3432
    %v3434 = vand.u32 %v2637, 4294901760
    %v3435 = vsub.f32 %v2637, %v3434
    %v3436 = vand.u32 %v3435, 4294901760
    %3437 = vmatmul.f32.gmra.mxu0 %v3436
    %v3438 = vpop.f32.mrf.mxu0
    %v3439 = vadd.f32 %v3392, %v3438
    %3440 = vdwg.mxu0
    %3441 = vmatpush.msra.mxu0 0.0
    %3442 = vmatpush.msra.mxu0 0.0
    %3443 = vmatpush.msra.mxu0 0.0
    %3444 = vmatpush.msra.mxu0 0.0
    %3445 = vmatpush.msra.mxu0 0.0
    %3446 = vmatpush.msra.mxu0 0.0
    %3447 = vmatpush.msra.mxu0 0.0
    %3448 = vmatpush.msra.mxu0 0.0
    %3449 = vmatpush.msra.mxu0 0.0
    %3450 = vmatpush.msra.mxu0 0.0
    %v3451 = vand.u32 %v3226, 4294901760
    %v3452 = vsub.f32 %v3226, %v3451
    %v3453 = vand.u32 %v3452, 4294901760
    %3454 = vmatpush.msra.mxu0 %v3453
    %v3455 = vand.u32 %v3225, 4294901760
    %v3456 = vsub.f32 %v3225, %v3455
    %v3457 = vand.u32 %v3456, 4294901760
    %3458 = vmatpush.msra.mxu0 %v3457
    %v3459 = vand.u32 %v3224, 4294901760
    %v3460 = vsub.f32 %v3224, %v3459
    %v3461 = vand.u32 %v3460, 4294901760
    %3462 = vmatpush.msra.mxu0 %v3461
    %v3463 = vand.u32 %v3223, 4294901760
    %v3464 = vsub.f32 %v3223, %v3463
    %v3465 = vand.u32 %v3464, 4294901760
    %3466 = vmatpush.msra.mxu0 %v3465
    %v3467 = vand.u32 %v3222, 4294901760
    %v3468 = vsub.f32 %v3222, %v3467
    %v3469 = vand.u32 %v3468, 4294901760
    %3470 = vmatpush.msra.mxu0 %v3469
    %v3471 = vand.u32 %v3221, 4294901760
    %v3472 = vsub.f32 %v3221, %v3471
    %v3473 = vand.u32 %v3472, 4294901760
    %3474 = vmatpush.msra.mxu0 %v3473
    %v3475 = vand.u32 %v2628, 4294901760
    %3476 = vmatmul.f32.gmra.mxu0 %v3475
    %v3477 = vpop.f32.mrf.mxu0
    %v3478 = vadd.f32 %v3421, %v3477
    %v3479 = vand.u32 %v2631, 4294901760
    %3480 = vmatmul.f32.gmra.mxu0 %v3479
    %v3481 = vpop.f32.mrf.mxu0
    %v3482 = vadd.f32 %v3427, %v3481
    %v3483 = vand.u32 %v2634, 4294901760
    %3484 = vmatmul.f32.gmra.mxu0 %v3483
    %v3485 = vpop.f32.mrf.mxu0
    %v3486 = vadd.f32 %v3433, %v3485
    %v3487 = vand.u32 %v2637, 4294901760
    %3488 = vmatmul.f32.gmra.mxu0 %v3487
    %v3489 = vpop.f32.mrf.mxu0
    %v3490 = vadd.f32 %v3439, %v3489
    %3491 = vdwg.mxu0
    %3492 = vmatpush.msra.mxu0 0.0
    %3493 = vmatpush.msra.mxu0 0.0
    %3494 = vmatpush.msra.mxu0 0.0
    %3495 = vmatpush.msra.mxu0 0.0
    %3496 = vmatpush.msra.mxu0 0.0
    %3497 = vmatpush.msra.mxu0 0.0
    %3498 = vmatpush.msra.mxu0 0.0
    %3499 = vmatpush.msra.mxu0 0.0
    %3500 = vmatpush.msra.mxu0 0.0
    %3501 = vmatpush.msra.mxu0 0.0
    %v3502 = vand.u32 %v3226, 4294901760
    %3503 = vmatpush.msra.mxu0 %v3502
    %v3504 = vand.u32 %v3225, 4294901760
    %3505 = vmatpush.msra.mxu0 %v3504
    %v3506 = vand.u32 %v3224, 4294901760
    %3507 = vmatpush.msra.mxu0 %v3506
    %v3508 = vand.u32 %v3223, 4294901760
    %3509 = vmatpush.msra.mxu0 %v3508
    %v3510 = vand.u32 %v3222, 4294901760
    %3511 = vmatpush.msra.mxu0 %v3510
    %v3512 = vand.u32 %v3221, 4294901760
    %3513 = vmatpush.msra.mxu0 %v3512
    %v3514 = vand.u32 %v2628, 4294901760
    %3515 = vmatmul.f32.gmra.mxu0 %v3514
    %v3516 = vpop.f32.mrf.mxu0
    %v3517 = vadd.f32 %v3478, %v3516
    %v3518 = vand.u32 %v2631, 4294901760
    %3519 = vmatmul.f32.gmra.mxu0 %v3518
    %v3520 = vpop.f32.mrf.mxu0
    %v3521 = vadd.f32 %v3482, %v3520
    %v3522 = vand.u32 %v2634, 4294901760
    %3523 = vmatmul.f32.gmra.mxu0 %v3522
    %v3524 = vpop.f32.mrf.mxu0
    %v3525 = vadd.f32 %v3486, %v3524
    %v3526 = vand.u32 %v2637, 4294901760
    %3527 = vmatmul.f32.gmra.mxu0 %v3526
    %v3528 = vpop.f32.mrf.mxu0
    %v3529 = vadd.f32 %v3490, %v3528
    %3530 = vdwg.mxu0
    %3531 = vmatpush.msra.mxu0 0.0
    %3532 = vmatpush.msra.mxu0 0.0
    %3533 = vmatpush.msra.mxu0 0.0
    %3534 = vmatpush.msra.mxu0 0.0
    %3535 = vmatpush.msra.mxu0 0.0
    %3536 = vmatpush.msra.mxu0 0.0
    %3537 = vmatpush.msra.mxu0 0.0
    %3538 = vmatpush.msra.mxu0 0.0
    %3539 = vmatpush.msra.mxu0 0.0
    %3540 = vmatpush.msra.mxu0 0.0
    %3541 = vmatpush.msra.mxu0 0.0
    %3542 = vmatpush.msra.mxu0 0.0
    %v3543 = vand.u32 %v3529, 4294901760
    %3544 = vmatpush.msra.mxu0 %v3543
    %v3545 = vand.u32 %v3525, 4294901760
    %3546 = vmatpush.msra.mxu0 %v3545
    %v3547 = vand.u32 %v3521, 4294901760
    %3548 = vmatpush.msra.mxu0 %v3547
    %v3549 = vand.u32 %v3517, 4294901760
    %3550 = vmatpush.msra.mxu0 %v3549
    %v3551 = vand.u32 %v2300, 4294901760
    %v3552 = vsub.f32 %v2300, %v3551
    %v3553 = vand.u32 %v3552, 4294901760
    %v3554 = vsub.f32 %v3552, %v3553
    %v3555 = vand.u32 %v3554, 4294901760
    %3556 = vmatmul.f32.gmra.mxu0 %v3555
    %v3557 = vpop.f32.mrf.mxu0
    %v3558 = vadd.f32 %v2282, %v3557
    %v3559 = vand.u32 %v2303, 4294901760
    %v3560 = vsub.f32 %v2303, %v3559
    %v3561 = vand.u32 %v3560, 4294901760
    %v3562 = vsub.f32 %v3560, %v3561
    %v3563 = vand.u32 %v3562, 4294901760
    %3564 = vmatmul.f32.gmra.mxu0 %v3563
    %v3565 = vpop.f32.mrf.mxu0
    %v3566 = vadd.f32 %v2287, %v3565
    %v3567 = vand.u32 %v2306, 4294901760
    %v3568 = vsub.f32 %v2306, %v3567
    %v3569 = vand.u32 %v3568, 4294901760
    %v3570 = vsub.f32 %v3568, %v3569
    %v3571 = vand.u32 %v3570, 4294901760
    %3572 = vmatmul.f32.gmra.mxu0 %v3571
    %v3573 = vpop.f32.mrf.mxu0
    %v3574 = vadd.f32 %v2292, %v3573
    %v3575 = vand.u32 %v2309, 4294901760
    %v3576 = vsub.f32 %v2309, %v3575
    %v3577 = vand.u32 %v3576, 4294901760
    %v3578 = vsub.f32 %v3576, %v3577
    %v3579 = vand.u32 %v3578, 4294901760
    %3580 = vmatmul.f32.gmra.mxu0 %v3579
    %v3581 = vpop.f32.mrf.mxu0
    %v3582 = vadd.f32 %v2297, %v3581
    %3583 = vdwg.mxu0
    %3584 = vmatpush.msra.mxu0 0.0
    %3585 = vmatpush.msra.mxu0 0.0
    %3586 = vmatpush.msra.mxu0 0.0
    %3587 = vmatpush.msra.mxu0 0.0
    %3588 = vmatpush.msra.mxu0 0.0
    %3589 = vmatpush.msra.mxu0 0.0
    %3590 = vmatpush.msra.mxu0 0.0
    %3591 = vmatpush.msra.mxu0 0.0
    %3592 = vmatpush.msra.mxu0 0.0
    %3593 = vmatpush.msra.mxu0 0.0
    %3594 = vmatpush.msra.mxu0 0.0
    %3595 = vmatpush.msra.mxu0 0.0
    %v3596 = vand.u32 %v3529, 4294901760
    %v3597 = vsub.f32 %v3529, %v3596
    %v3598 = vand.u32 %v3597, 4294901760
    %v3599 = vsub.f32 %v3597, %v3598
    %v3600 = vand.u32 %v3599, 4294901760
    %3601 = vmatpush.msra.mxu0 %v3600
    %v3602 = vand.u32 %v3525, 4294901760
    %v3603 = vsub.f32 %v3525, %v3602
    %v3604 = vand.u32 %v3603, 4294901760
    %v3605 = vsub.f32 %v3603, %v3604
    %v3606 = vand.u32 %v3605, 4294901760
    %3607 = vmatpush.msra.mxu0 %v3606
    %v3608 = vand.u32 %v3521, 4294901760
    %v3609 = vsub.f32 %v3521, %v3608
    %v3610 = vand.u32 %v3609, 4294901760
    %v3611 = vsub.f32 %v3609, %v3610
    %v3612 = vand.u32 %v3611, 4294901760
    %3613 = vmatpush.msra.mxu0 %v3612
    %v3614 = vand.u32 %v3517, 4294901760
    %v3615 = vsub.f32 %v3517, %v3614
    %v3616 = vand.u32 %v3615, 4294901760
    %v3617 = vsub.f32 %v3615, %v3616
    %v3618 = vand.u32 %v3617, 4294901760
    %3619 = vmatpush.msra.mxu0 %v3618
    %v3620 = vand.u32 %v2300, 4294901760
    %3621 = vmatmul.f32.gmra.mxu0 %v3620
    %v3622 = vpop.f32.mrf.mxu0
    %v3623 = vadd.f32 %v3558, %v3622
    %v3624 = vand.u32 %v2303, 4294901760
    %3625 = vmatmul.f32.gmra.mxu0 %v3624
    %v3626 = vpop.f32.mrf.mxu0
    %v3627 = vadd.f32 %v3566, %v3626
    %v3628 = vand.u32 %v2306, 4294901760
    %3629 = vmatmul.f32.gmra.mxu0 %v3628
    %v3630 = vpop.f32.mrf.mxu0
    %v3631 = vadd.f32 %v3574, %v3630
    %v3632 = vand.u32 %v2309, 4294901760
    %3633 = vmatmul.f32.gmra.mxu0 %v3632
    %v3634 = vpop.f32.mrf.mxu0
    %v3635 = vadd.f32 %v3582, %v3634
    %3636 = vdwg.mxu0
    %3637 = vmatpush.msra.mxu0 0.0
    %3638 = vmatpush.msra.mxu0 0.0
    %3639 = vmatpush.msra.mxu0 0.0
    %3640 = vmatpush.msra.mxu0 0.0
    %3641 = vmatpush.msra.mxu0 0.0
    %3642 = vmatpush.msra.mxu0 0.0
    %3643 = vmatpush.msra.mxu0 0.0
    %3644 = vmatpush.msra.mxu0 0.0
    %3645 = vmatpush.msra.mxu0 0.0
    %3646 = vmatpush.msra.mxu0 0.0
    %3647 = vmatpush.msra.mxu0 0.0
    %3648 = vmatpush.msra.mxu0 0.0
    %v3649 = vand.u32 %v3529, 4294901760
    %v3650 = vsub.f32 %v3529, %v3649
    %3651 = vmatpush.msra.mxu0 %v3650
    %v3652 = vand.u32 %v3525, 4294901760
    %v3653 = vsub.f32 %v3525, %v3652
    %3654 = vmatpush.msra.mxu0 %v3653
    %v3655 = vand.u32 %v3521, 4294901760
    %v3656 = vsub.f32 %v3521, %v3655
    %3657 = vmatpush.msra.mxu0 %v3656
    %v3658 = vand.u32 %v3517, 4294901760
    %v3659 = vsub.f32 %v3517, %v3658
    %3660 = vmatpush.msra.mxu0 %v3659
    %v3661 = vand.u32 %v2300, 4294901760
    %v3662 = vsub.f32 %v2300, %v3661
    %3663 = vmatmul.f32.gmra.mxu0 %v3662
    %v3664 = vpop.f32.mrf.mxu0
    %v3665 = vadd.f32 %v3623, %v3664
    %v3666 = vand.u32 %v2303, 4294901760
    %v3667 = vsub.f32 %v2303, %v3666
    %3668 = vmatmul.f32.gmra.mxu0 %v3667
    %v3669 = vpop.f32.mrf.mxu0
    %v3670 = vadd.f32 %v3627, %v3669
    %v3671 = vand.u32 %v2306, 4294901760
    %v3672 = vsub.f32 %v2306, %v3671
    %3673 = vmatmul.f32.gmra.mxu0 %v3672
    %v3674 = vpop.f32.mrf.mxu0
    %v3675 = vadd.f32 %v3631, %v3674
    %v3676 = vand.u32 %v2309, 4294901760
    %v3677 = vsub.f32 %v2309, %v3676
    %3678 = vmatmul.f32.gmra.mxu0 %v3677
    %v3679 = vpop.f32.mrf.mxu0
    %v3680 = vadd.f32 %v3635, %v3679
    %3681 = vdwg.mxu0
    %3682 = vmatpush.msra.mxu0 0.0
    %3683 = vmatpush.msra.mxu0 0.0
    %3684 = vmatpush.msra.mxu0 0.0
    %3685 = vmatpush.msra.mxu0 0.0
    %3686 = vmatpush.msra.mxu0 0.0
    %3687 = vmatpush.msra.mxu0 0.0
    %3688 = vmatpush.msra.mxu0 0.0
    %3689 = vmatpush.msra.mxu0 0.0
    %3690 = vmatpush.msra.mxu0 0.0
    %3691 = vmatpush.msra.mxu0 0.0
    %3692 = vmatpush.msra.mxu0 0.0
    %3693 = vmatpush.msra.mxu0 0.0
    %v3694 = vand.u32 %v3529, 4294901760
    %3695 = vmatpush.msra.mxu0 %v3694
    %v3696 = vand.u32 %v3525, 4294901760
    %3697 = vmatpush.msra.mxu0 %v3696
    %v3698 = vand.u32 %v3521, 4294901760
    %3699 = vmatpush.msra.mxu0 %v3698
    %v3700 = vand.u32 %v3517, 4294901760
    %3701 = vmatpush.msra.mxu0 %v3700
    %v3702 = vand.u32 %v2300, 4294901760
    %v3703 = vsub.f32 %v2300, %v3702
    %v3704 = vand.u32 %v3703, 4294901760
    %3705 = vmatmul.f32.gmra.mxu0 %v3704
    %v3706 = vpop.f32.mrf.mxu0
    %v3707 = vadd.f32 %v3665, %v3706
    %v3708 = vand.u32 %v2303, 4294901760
    %v3709 = vsub.f32 %v2303, %v3708
    %v3710 = vand.u32 %v3709, 4294901760
    %3711 = vmatmul.f32.gmra.mxu0 %v3710
    %v3712 = vpop.f32.mrf.mxu0
    %v3713 = vadd.f32 %v3670, %v3712
    %v3714 = vand.u32 %v2306, 4294901760
    %v3715 = vsub.f32 %v2306, %v3714
    %v3716 = vand.u32 %v3715, 4294901760
    %3717 = vmatmul.f32.gmra.mxu0 %v3716
    %v3718 = vpop.f32.mrf.mxu0
    %v3719 = vadd.f32 %v3675, %v3718
    %v3720 = vand.u32 %v2309, 4294901760
    %v3721 = vsub.f32 %v2309, %v3720
    %v3722 = vand.u32 %v3721, 4294901760
    %3723 = vmatmul.f32.gmra.mxu0 %v3722
    %v3724 = vpop.f32.mrf.mxu0
    %v3725 = vadd.f32 %v3680, %v3724
    %3726 = vdwg.mxu0
    %3727 = vmatpush.msra.mxu0 0.0
    %3728 = vmatpush.msra.mxu0 0.0
    %3729 = vmatpush.msra.mxu0 0.0
    %3730 = vmatpush.msra.mxu0 0.0
    %3731 = vmatpush.msra.mxu0 0.0
    %3732 = vmatpush.msra.mxu0 0.0
    %3733 = vmatpush.msra.mxu0 0.0
    %3734 = vmatpush.msra.mxu0 0.0
    %3735 = vmatpush.msra.mxu0 0.0
    %3736 = vmatpush.msra.mxu0 0.0
    %3737 = vmatpush.msra.mxu0 0.0
    %3738 = vmatpush.msra.mxu0 0.0
    %v3739 = vand.u32 %v3529, 4294901760
    %v3740 = vsub.f32 %v3529, %v3739
    %v3741 = vand.u32 %v3740, 4294901760
    %3742 = vmatpush.msra.mxu0 %v3741
    %v3743 = vand.u32 %v3525, 4294901760
    %v3744 = vsub.f32 %v3525, %v3743
    %v3745 = vand.u32 %v3744, 4294901760
    %3746 = vmatpush.msra.mxu0 %v3745
    %v3747 = vand.u32 %v3521, 4294901760
    %v3748 = vsub.f32 %v3521, %v3747
    %v3749 = vand.u32 %v3748, 4294901760
    %3750 = vmatpush.msra.mxu0 %v3749
    %v3751 = vand.u32 %v3517, 4294901760
    %v3752 = vsub.f32 %v3517, %v3751
    %v3753 = vand.u32 %v3752, 4294901760
    %3754 = vmatpush.msra.mxu0 %v3753
    %v3755 = vand.u32 %v2300, 4294901760
    %3756 = vmatmul.f32.gmra.mxu0 %v3755
    %v3757 = vpop.f32.mrf.mxu0
    %v3758 = vadd.f32 %v3707, %v3757
    %v3759 = vand.u32 %v2303, 4294901760
    %3760 = vmatmul.f32.gmra.mxu0 %v3759
    %v3761 = vpop.f32.mrf.mxu0
    %v3762 = vadd.f32 %v3713, %v3761
    %v3763 = vand.u32 %v2306, 4294901760
    %3764 = vmatmul.f32.gmra.mxu0 %v3763
    %v3765 = vpop.f32.mrf.mxu0
    %v3766 = vadd.f32 %v3719, %v3765
    %v3767 = vand.u32 %v2309, 4294901760
    %3768 = vmatmul.f32.gmra.mxu0 %v3767
    %v3769 = vpop.f32.mrf.mxu0
    %v3770 = vadd.f32 %v3725, %v3769
    %3771 = vdwg.mxu0
    %3772 = vmatpush.msra.mxu0 0.0
    %3773 = vmatpush.msra.mxu0 0.0
    %3774 = vmatpush.msra.mxu0 0.0
    %3775 = vmatpush.msra.mxu0 0.0
    %3776 = vmatpush.msra.mxu0 0.0
    %3777 = vmatpush.msra.mxu0 0.0
    %3778 = vmatpush.msra.mxu0 0.0
    %3779 = vmatpush.msra.mxu0 0.0
    %3780 = vmatpush.msra.mxu0 0.0
    %3781 = vmatpush.msra.mxu0 0.0
    %3782 = vmatpush.msra.mxu0 0.0
    %3783 = vmatpush.msra.mxu0 0.0
    %v3784 = vand.u32 %v3529, 4294901760
    %3785 = vmatpush.msra.mxu0 %v3784
    %v3786 = vand.u32 %v3525, 4294901760
    %3787 = vmatpush.msra.mxu0 %v3786
    %v3788 = vand.u32 %v3521, 4294901760
    %3789 = vmatpush.msra.mxu0 %v3788
    %v3790 = vand.u32 %v3517, 4294901760
    %3791 = vmatpush.msra.mxu0 %v3790
    %v3792 = vand.u32 %v2300, 4294901760
    %3793 = vmatmul.f32.gmra.mxu0 %v3792
    %v3794 = vpop.f32.mrf.mxu0
    %v3795 = vadd.f32 %v3758, %v3794
    %v3796 = vand.u32 %v2303, 4294901760
    %3797 = vmatmul.f32.gmra.mxu0 %v3796
    %v3798 = vpop.f32.mrf.mxu0
    %v3799 = vadd.f32 %v3762, %v3798
    %v3800 = vand.u32 %v2306, 4294901760
    %3801 = vmatmul.f32.gmra.mxu0 %v3800
    %v3802 = vpop.f32.mrf.mxu0
    %v3803 = vadd.f32 %v3766, %v3802
    %v3804 = vand.u32 %v2309, 4294901760
    %3805 = vmatmul.f32.gmra.mxu0 %v3804
    %v3806 = vpop.f32.mrf.mxu0
    %v3807 = vadd.f32 %v3770, %v3806
    %3808 = vdwg.mxu0
    %v3809 = vmul.f32 %v2589, %v1369
    %v3810 = vmul.f32 %v2589, %v1370
    %v3811 = vmul.f32 %v2589, %v1371
    %v3812 = vmul.f32 %v2589, %v1372
    %v3813 = vmul.f32 %v2594, %v3207
    %v3814 = vmul.f32 %v2594, %v3211
    %v3815 = vmul.f32 %v2594, %v3215
    %v3816 = vmul.f32 %v2594, %v3219
    %v3817 = vadd.f32 %v3809, %v3813
    %v3818 = vadd.f32 %v3810, %v3814
    %v3819 = vadd.f32 %v3811, %v3815
    %v3820 = vadd.f32 %v3812, %v3816
    %v3821 = vmul.f32 %v2603, %v3795
    %v3822 = vmul.f32 %v2603, %v3799
    %v3823 = vmul.f32 %v2603, %v3803
    %v3824 = vmul.f32 %v2603, %v3807
    %v3825 = vadd.f32 %v3817, %v3821
    %v3826 = vadd.f32 %v3818, %v3822
    %v3827 = vadd.f32 %v3819, %v3823
    %v3828 = vadd.f32 %v3820, %v3824
    %v3829 = vmax.f32 %v3825, 0.0
    %v3830 = vmax.f32 %v3826, 0.0
    %v3831 = vmax.f32 %v3827, 0.0
    %v3832 = vmax.f32 %v3828, 0.0
    %v3833 = vld [vmem:[%s63] sm:$0xff]
    %v3834 = vld [vmem:[%s63 + $0x8] sm:$0xff]
    %v3835 = vld [vmem:[%s65] sm:$0x1]
    %v3837 = vperm.slane %v3835, 0
    %vm3839 = vcmask 130048
    %v3841 = vsel %vm3839, %v3829, 0
    %v3844 = vsel %vm3839, %v3830, 0
    %v3847 = vsel %vm3839, %v3831, 0
    %v3850 = vsel %vm3839, %v3832, 0
    %3852 = vmatpush.msra.mxu0 0.0
    %3853 = vmatpush.msra.mxu0 0.0
    %3854 = vmatpush.msra.mxu0 0.0
    %3855 = vmatpush.msra.mxu0 0.0
    %3856 = vmatpush.msra.mxu0 0.0
    %3857 = vmatpush.msra.mxu0 0.0
    %3858 = vmatpush.msra.mxu0 0.0
    %3859 = vmatpush.msra.mxu0 0.0
    %3860 = vmatpush.msra.mxu0 0.0
    %3861 = vmatpush.msra.mxu0 0.0
    %3862 = vmatpush.msra.mxu0 0.0
    %3863 = vmatpush.msra.mxu0 0.0
    %3864 = vmatpush.msra.mxu0 0.0
    %3865 = vmatpush.msra.mxu0 0.0
    %v3866 = vand.u32 %v3834, 4294901760
    %3867 = vmatpush.msra.mxu0 %v3866
    %v3868 = vand.u32 %v3833, 4294901760
    %3869 = vmatpush.msra.mxu0 %v3868
    %v3870 = vand.u32 %v3841, 4294901760
    %v3871 = vsub.f32 %v3841, %v3870
    %v3872 = vand.u32 %v3871, 4294901760
    %v3873 = vsub.f32 %v3871, %v3872
    %v3874 = vand.u32 %v3873, 4294901760
    %3875 = vmatmul.f32.gmra.mxu0 %v3874
    %v3876 = vpop.f32.mrf.mxu0
    %v3877 = vadd.f32 %v3837, %v3876
    %v3878 = vand.u32 %v3844, 4294901760
    %v3879 = vsub.f32 %v3844, %v3878
    %v3880 = vand.u32 %v3879, 4294901760
    %v3881 = vsub.f32 %v3879, %v3880
    %v3882 = vand.u32 %v3881, 4294901760
    %3883 = vmatmul.f32.gmra.mxu0 %v3882
    %v3884 = vpop.f32.mrf.mxu0
    %v3885 = vadd.f32 %v3837, %v3884
    %v3886 = vand.u32 %v3847, 4294901760
    %v3887 = vsub.f32 %v3847, %v3886
    %v3888 = vand.u32 %v3887, 4294901760
    %v3889 = vsub.f32 %v3887, %v3888
    %v3890 = vand.u32 %v3889, 4294901760
    %3891 = vmatmul.f32.gmra.mxu0 %v3890
    %v3892 = vpop.f32.mrf.mxu0
    %v3893 = vadd.f32 %v3837, %v3892
    %v3894 = vand.u32 %v3850, 4294901760
    %v3895 = vsub.f32 %v3850, %v3894
    %v3896 = vand.u32 %v3895, 4294901760
    %v3897 = vsub.f32 %v3895, %v3896
    %v3898 = vand.u32 %v3897, 4294901760
    %3899 = vmatmul.f32.gmra.mxu0 %v3898
    %v3900 = vpop.f32.mrf.mxu0
    %v3901 = vadd.f32 %v3837, %v3900
    %3902 = vdwg.mxu0
    %3903 = vmatpush.msra.mxu0 0.0
    %3904 = vmatpush.msra.mxu0 0.0
    %3905 = vmatpush.msra.mxu0 0.0
    %3906 = vmatpush.msra.mxu0 0.0
    %3907 = vmatpush.msra.mxu0 0.0
    %3908 = vmatpush.msra.mxu0 0.0
    %3909 = vmatpush.msra.mxu0 0.0
    %3910 = vmatpush.msra.mxu0 0.0
    %3911 = vmatpush.msra.mxu0 0.0
    %3912 = vmatpush.msra.mxu0 0.0
    %3913 = vmatpush.msra.mxu0 0.0
    %3914 = vmatpush.msra.mxu0 0.0
    %3915 = vmatpush.msra.mxu0 0.0
    %3916 = vmatpush.msra.mxu0 0.0
    %v3917 = vand.u32 %v3834, 4294901760
    %v3918 = vsub.f32 %v3834, %v3917
    %v3919 = vand.u32 %v3918, 4294901760
    %v3920 = vsub.f32 %v3918, %v3919
    %v3921 = vand.u32 %v3920, 4294901760
    %3922 = vmatpush.msra.mxu0 %v3921
    %v3923 = vand.u32 %v3833, 4294901760
    %v3924 = vsub.f32 %v3833, %v3923
    %v3925 = vand.u32 %v3924, 4294901760
    %v3926 = vsub.f32 %v3924, %v3925
    %v3927 = vand.u32 %v3926, 4294901760
    %3928 = vmatpush.msra.mxu0 %v3927
    %v3929 = vand.u32 %v3841, 4294901760
    %3930 = vmatmul.f32.gmra.mxu0 %v3929
    %v3931 = vpop.f32.mrf.mxu0
    %v3932 = vadd.f32 %v3877, %v3931
    %v3933 = vand.u32 %v3844, 4294901760
    %3934 = vmatmul.f32.gmra.mxu0 %v3933
    %v3935 = vpop.f32.mrf.mxu0
    %v3936 = vadd.f32 %v3885, %v3935
    %v3937 = vand.u32 %v3847, 4294901760
    %3938 = vmatmul.f32.gmra.mxu0 %v3937
    %v3939 = vpop.f32.mrf.mxu0
    %v3940 = vadd.f32 %v3893, %v3939
    %v3941 = vand.u32 %v3850, 4294901760
    %3942 = vmatmul.f32.gmra.mxu0 %v3941
    %v3943 = vpop.f32.mrf.mxu0
    %v3944 = vadd.f32 %v3901, %v3943
    %3945 = vdwg.mxu0
    %3946 = vmatpush.msra.mxu0 0.0
    %3947 = vmatpush.msra.mxu0 0.0
    %3948 = vmatpush.msra.mxu0 0.0
    %3949 = vmatpush.msra.mxu0 0.0
    %3950 = vmatpush.msra.mxu0 0.0
    %3951 = vmatpush.msra.mxu0 0.0
    %3952 = vmatpush.msra.mxu0 0.0
    %3953 = vmatpush.msra.mxu0 0.0
    %3954 = vmatpush.msra.mxu0 0.0
    %3955 = vmatpush.msra.mxu0 0.0
    %3956 = vmatpush.msra.mxu0 0.0
    %3957 = vmatpush.msra.mxu0 0.0
    %3958 = vmatpush.msra.mxu0 0.0
    %3959 = vmatpush.msra.mxu0 0.0
    %v3960 = vand.u32 %v3834, 4294901760
    %v3961 = vsub.f32 %v3834, %v3960
    %3962 = vmatpush.msra.mxu0 %v3961
    %v3963 = vand.u32 %v3833, 4294901760
    %v3964 = vsub.f32 %v3833, %v3963
    %3965 = vmatpush.msra.mxu0 %v3964
    %v3966 = vand.u32 %v3841, 4294901760
    %v3967 = vsub.f32 %v3841, %v3966
    %3968 = vmatmul.f32.gmra.mxu0 %v3967
    %v3969 = vpop.f32.mrf.mxu0
    %v3970 = vadd.f32 %v3932, %v3969
    %v3971 = vand.u32 %v3844, 4294901760
    %v3972 = vsub.f32 %v3844, %v3971
    %3973 = vmatmul.f32.gmra.mxu0 %v3972
    %v3974 = vpop.f32.mrf.mxu0
    %v3975 = vadd.f32 %v3936, %v3974
    %v3976 = vand.u32 %v3847, 4294901760
    %v3977 = vsub.f32 %v3847, %v3976
    %3978 = vmatmul.f32.gmra.mxu0 %v3977
    %v3979 = vpop.f32.mrf.mxu0
    %v3980 = vadd.f32 %v3940, %v3979
    %v3981 = vand.u32 %v3850, 4294901760
    %v3982 = vsub.f32 %v3850, %v3981
    %3983 = vmatmul.f32.gmra.mxu0 %v3982
    %v3984 = vpop.f32.mrf.mxu0
    %v3985 = vadd.f32 %v3944, %v3984
    %3986 = vdwg.mxu0
    %3987 = vmatpush.msra.mxu0 0.0
    %3988 = vmatpush.msra.mxu0 0.0
    %3989 = vmatpush.msra.mxu0 0.0
    %3990 = vmatpush.msra.mxu0 0.0
    %3991 = vmatpush.msra.mxu0 0.0
    %3992 = vmatpush.msra.mxu0 0.0
    %3993 = vmatpush.msra.mxu0 0.0
    %3994 = vmatpush.msra.mxu0 0.0
    %3995 = vmatpush.msra.mxu0 0.0
    %3996 = vmatpush.msra.mxu0 0.0
    %3997 = vmatpush.msra.mxu0 0.0
    %3998 = vmatpush.msra.mxu0 0.0
    %3999 = vmatpush.msra.mxu0 0.0
    %4000 = vmatpush.msra.mxu0 0.0
    %v4001 = vand.u32 %v3834, 4294901760
    %4002 = vmatpush.msra.mxu0 %v4001
    %v4003 = vand.u32 %v3833, 4294901760
    %4004 = vmatpush.msra.mxu0 %v4003
    %v4005 = vand.u32 %v3841, 4294901760
    %v4006 = vsub.f32 %v3841, %v4005
    %v4007 = vand.u32 %v4006, 4294901760
    %4008 = vmatmul.f32.gmra.mxu0 %v4007
    %v4009 = vpop.f32.mrf.mxu0
    %v4010 = vadd.f32 %v3970, %v4009
    %v4011 = vand.u32 %v3844, 4294901760
    %v4012 = vsub.f32 %v3844, %v4011
    %v4013 = vand.u32 %v4012, 4294901760
    %4014 = vmatmul.f32.gmra.mxu0 %v4013
    %v4015 = vpop.f32.mrf.mxu0
    %v4016 = vadd.f32 %v3975, %v4015
    %v4017 = vand.u32 %v3847, 4294901760
    %v4018 = vsub.f32 %v3847, %v4017
    %v4019 = vand.u32 %v4018, 4294901760
    %4020 = vmatmul.f32.gmra.mxu0 %v4019
    %v4021 = vpop.f32.mrf.mxu0
    %v4022 = vadd.f32 %v3980, %v4021
    %v4023 = vand.u32 %v3850, 4294901760
    %v4024 = vsub.f32 %v3850, %v4023
    %v4025 = vand.u32 %v4024, 4294901760
    %4026 = vmatmul.f32.gmra.mxu0 %v4025
    %v4027 = vpop.f32.mrf.mxu0
    %v4028 = vadd.f32 %v3985, %v4027
    %4029 = vdwg.mxu0
    %4030 = vmatpush.msra.mxu0 0.0
    %4031 = vmatpush.msra.mxu0 0.0
    %4032 = vmatpush.msra.mxu0 0.0
    %4033 = vmatpush.msra.mxu0 0.0
    %4034 = vmatpush.msra.mxu0 0.0
    %4035 = vmatpush.msra.mxu0 0.0
    %4036 = vmatpush.msra.mxu0 0.0
    %4037 = vmatpush.msra.mxu0 0.0
    %4038 = vmatpush.msra.mxu0 0.0
    %4039 = vmatpush.msra.mxu0 0.0
    %4040 = vmatpush.msra.mxu0 0.0
    %4041 = vmatpush.msra.mxu0 0.0
    %4042 = vmatpush.msra.mxu0 0.0
    %4043 = vmatpush.msra.mxu0 0.0
    %v4044 = vand.u32 %v3834, 4294901760
    %v4045 = vsub.f32 %v3834, %v4044
    %v4046 = vand.u32 %v4045, 4294901760
    %4047 = vmatpush.msra.mxu0 %v4046
    %v4048 = vand.u32 %v3833, 4294901760
    %v4049 = vsub.f32 %v3833, %v4048
    %v4050 = vand.u32 %v4049, 4294901760
    %4051 = vmatpush.msra.mxu0 %v4050
    %v4052 = vand.u32 %v3841, 4294901760
    %4053 = vmatmul.f32.gmra.mxu0 %v4052
    %v4054 = vpop.f32.mrf.mxu0
    %v4055 = vadd.f32 %v4010, %v4054
    %v4056 = vand.u32 %v3844, 4294901760
    %4057 = vmatmul.f32.gmra.mxu0 %v4056
    %v4058 = vpop.f32.mrf.mxu0
    %v4059 = vadd.f32 %v4016, %v4058
    %v4060 = vand.u32 %v3847, 4294901760
    %4061 = vmatmul.f32.gmra.mxu0 %v4060
    %v4062 = vpop.f32.mrf.mxu0
    %v4063 = vadd.f32 %v4022, %v4062
    %v4064 = vand.u32 %v3850, 4294901760
    %4065 = vmatmul.f32.gmra.mxu0 %v4064
    %v4066 = vpop.f32.mrf.mxu0
    %v4067 = vadd.f32 %v4028, %v4066
    %4068 = vdwg.mxu0
    %4069 = vmatpush.msra.mxu0 0.0
    %4070 = vmatpush.msra.mxu0 0.0
    %4071 = vmatpush.msra.mxu0 0.0
    %4072 = vmatpush.msra.mxu0 0.0
    %4073 = vmatpush.msra.mxu0 0.0
    %4074 = vmatpush.msra.mxu0 0.0
    %4075 = vmatpush.msra.mxu0 0.0
    %4076 = vmatpush.msra.mxu0 0.0
    %4077 = vmatpush.msra.mxu0 0.0
    %4078 = vmatpush.msra.mxu0 0.0
    %4079 = vmatpush.msra.mxu0 0.0
    %4080 = vmatpush.msra.mxu0 0.0
    %4081 = vmatpush.msra.mxu0 0.0
    %4082 = vmatpush.msra.mxu0 0.0
    %v4083 = vand.u32 %v3834, 4294901760
    %4084 = vmatpush.msra.mxu0 %v4083
    %v4085 = vand.u32 %v3833, 4294901760
    %4086 = vmatpush.msra.mxu0 %v4085
    %v4087 = vand.u32 %v3841, 4294901760
    %4088 = vmatmul.f32.gmra.mxu0 %v4087
    %v4089 = vpop.f32.mrf.mxu0
    %v4090 = vadd.f32 %v4055, %v4089
    %v4091 = vand.u32 %v3844, 4294901760
    %4092 = vmatmul.f32.gmra.mxu0 %v4091
    %v4093 = vpop.f32.mrf.mxu0
    %v4094 = vadd.f32 %v4059, %v4093
    %v4095 = vand.u32 %v3847, 4294901760
    %4096 = vmatmul.f32.gmra.mxu0 %v4095
    %v4097 = vpop.f32.mrf.mxu0
    %v4098 = vadd.f32 %v4063, %v4097
    %v4099 = vand.u32 %v3850, 4294901760
    %4100 = vmatmul.f32.gmra.mxu0 %v4099
    %v4101 = vpop.f32.mrf.mxu0
    %v4102 = vadd.f32 %v4067, %v4101
    %4103 = vdwg.mxu0
    %v4104 = vld [vmem:[%s47] sm:$0xff]
    %v4105 = vld [vmem:[%s47 + $0x8] sm:$0xff]
    %v4106 = vld [vmem:[%s47 + $0x10] sm:$0xff]
    %v4107 = vld [vmem:[%s47 + $0x18] sm:$0xff]
    %v4108 = vld [vmem:[%s49] sm:$0xff]
    %v4109 = vld [vmem:[%s49 + $0x8] sm:$0xff]
    %v4110 = vld [vmem:[%s49 + $0x10] sm:$0xff]
    %v4111 = vld [vmem:[%s49 + $0x18] sm:$0xff]
    %4113 = vset.pattern.permute.xlu0 0
    %4114 = vperm.xlu0 %4113, %v4108
    %v4115 = vpop.permute.xlu0 %4114
    %4118 = vset.pattern.permute.xlu0 0
    %4119 = vperm.xlu0 %4118, %v4109
    %v4120 = vpop.permute.xlu0 %4119
    %4123 = vset.pattern.permute.xlu0 0
    %4124 = vperm.xlu0 %4123, %v4110
    %v4125 = vpop.permute.xlu0 %4124
    %4128 = vset.pattern.permute.xlu0 0
    %4129 = vperm.xlu0 %4128, %v4111
    %v4130 = vpop.permute.xlu0 %4129
    %v4133 = vsel %vm326, %v4104, 0
    %v4136 = vsel %vm326, %v4105, 0
    %v4139 = vsel %vm326, %v4106, 0
    %v4142 = vsel %vm326, %v4107, 0
    %4144 = vmatpush.msra.mxu0 0.0
    %4145 = vmatpush.msra.mxu0 0.0
    %4146 = vmatpush.msra.mxu0 0.0
    %4147 = vmatpush.msra.mxu0 0.0
    %4148 = vmatpush.msra.mxu0 0.0
    %4149 = vmatpush.msra.mxu0 0.0
    %4150 = vmatpush.msra.mxu0 0.0
    %4151 = vmatpush.msra.mxu0 0.0
    %4152 = vmatpush.msra.mxu0 0.0
    %4153 = vmatpush.msra.mxu0 0.0
    %4154 = vmatpush.msra.mxu0 0.0
    %4155 = vmatpush.msra.mxu0 0.0
    %v4156 = vand.u32 %v4102, 4294901760
    %4157 = vmatpush.msra.mxu0 %v4156
    %v4158 = vand.u32 %v4098, 4294901760
    %4159 = vmatpush.msra.mxu0 %v4158
    %v4160 = vand.u32 %v4094, 4294901760
    %4161 = vmatpush.msra.mxu0 %v4160
    %v4162 = vand.u32 %v4090, 4294901760
    %4163 = vmatpush.msra.mxu0 %v4162
    %v4164 = vand.u32 %v4133, 4294901760
    %v4165 = vsub.f32 %v4133, %v4164
    %v4166 = vand.u32 %v4165, 4294901760
    %v4167 = vsub.f32 %v4165, %v4166
    %v4168 = vand.u32 %v4167, 4294901760
    %4169 = vmatmul.f32.gmra.mxu0 %v4168
    %v4170 = vpop.f32.mrf.mxu0
    %v4171 = vadd.f32 %v4115, %v4170
    %v4172 = vand.u32 %v4136, 4294901760
    %v4173 = vsub.f32 %v4136, %v4172
    %v4174 = vand.u32 %v4173, 4294901760
    %v4175 = vsub.f32 %v4173, %v4174
    %v4176 = vand.u32 %v4175, 4294901760
    %4177 = vmatmul.f32.gmra.mxu0 %v4176
    %v4178 = vpop.f32.mrf.mxu0
    %v4179 = vadd.f32 %v4120, %v4178
    %v4180 = vand.u32 %v4139, 4294901760
    %v4181 = vsub.f32 %v4139, %v4180
    %v4182 = vand.u32 %v4181, 4294901760
    %v4183 = vsub.f32 %v4181, %v4182
    %v4184 = vand.u32 %v4183, 4294901760
    %4185 = vmatmul.f32.gmra.mxu0 %v4184
    %v4186 = vpop.f32.mrf.mxu0
    %v4187 = vadd.f32 %v4125, %v4186
    %v4188 = vand.u32 %v4142, 4294901760
    %v4189 = vsub.f32 %v4142, %v4188
    %v4190 = vand.u32 %v4189, 4294901760
    %v4191 = vsub.f32 %v4189, %v4190
    %v4192 = vand.u32 %v4191, 4294901760
    %4193 = vmatmul.f32.gmra.mxu0 %v4192
    %v4194 = vpop.f32.mrf.mxu0
    %v4195 = vadd.f32 %v4130, %v4194
    %4196 = vdwg.mxu0
    %4197 = vmatpush.msra.mxu0 0.0
    %4198 = vmatpush.msra.mxu0 0.0
    %4199 = vmatpush.msra.mxu0 0.0
    %4200 = vmatpush.msra.mxu0 0.0
    %4201 = vmatpush.msra.mxu0 0.0
    %4202 = vmatpush.msra.mxu0 0.0
    %4203 = vmatpush.msra.mxu0 0.0
    %4204 = vmatpush.msra.mxu0 0.0
    %4205 = vmatpush.msra.mxu0 0.0
    %4206 = vmatpush.msra.mxu0 0.0
    %4207 = vmatpush.msra.mxu0 0.0
    %4208 = vmatpush.msra.mxu0 0.0
    %v4209 = vand.u32 %v4102, 4294901760
    %v4210 = vsub.f32 %v4102, %v4209
    %v4211 = vand.u32 %v4210, 4294901760
    %v4212 = vsub.f32 %v4210, %v4211
    %v4213 = vand.u32 %v4212, 4294901760
    %4214 = vmatpush.msra.mxu0 %v4213
    %v4215 = vand.u32 %v4098, 4294901760
    %v4216 = vsub.f32 %v4098, %v4215
    %v4217 = vand.u32 %v4216, 4294901760
    %v4218 = vsub.f32 %v4216, %v4217
    %v4219 = vand.u32 %v4218, 4294901760
    %4220 = vmatpush.msra.mxu0 %v4219
    %v4221 = vand.u32 %v4094, 4294901760
    %v4222 = vsub.f32 %v4094, %v4221
    %v4223 = vand.u32 %v4222, 4294901760
    %v4224 = vsub.f32 %v4222, %v4223
    %v4225 = vand.u32 %v4224, 4294901760
    %4226 = vmatpush.msra.mxu0 %v4225
    %v4227 = vand.u32 %v4090, 4294901760
    %v4228 = vsub.f32 %v4090, %v4227
    %v4229 = vand.u32 %v4228, 4294901760
    %v4230 = vsub.f32 %v4228, %v4229
    %v4231 = vand.u32 %v4230, 4294901760
    %4232 = vmatpush.msra.mxu0 %v4231
    %v4233 = vand.u32 %v4133, 4294901760
    %4234 = vmatmul.f32.gmra.mxu0 %v4233
    %v4235 = vpop.f32.mrf.mxu0
    %v4236 = vadd.f32 %v4171, %v4235
    %v4237 = vand.u32 %v4136, 4294901760
    %4238 = vmatmul.f32.gmra.mxu0 %v4237
    %v4239 = vpop.f32.mrf.mxu0
    %v4240 = vadd.f32 %v4179, %v4239
    %v4241 = vand.u32 %v4139, 4294901760
    %4242 = vmatmul.f32.gmra.mxu0 %v4241
    %v4243 = vpop.f32.mrf.mxu0
    %v4244 = vadd.f32 %v4187, %v4243
    %v4245 = vand.u32 %v4142, 4294901760
    %4246 = vmatmul.f32.gmra.mxu0 %v4245
    %v4247 = vpop.f32.mrf.mxu0
    %v4248 = vadd.f32 %v4195, %v4247
    %4249 = vdwg.mxu0
    %4250 = vmatpush.msra.mxu0 0.0
    %4251 = vmatpush.msra.mxu0 0.0
    %4252 = vmatpush.msra.mxu0 0.0
    %4253 = vmatpush.msra.mxu0 0.0
    %4254 = vmatpush.msra.mxu0 0.0
    %4255 = vmatpush.msra.mxu0 0.0
    %4256 = vmatpush.msra.mxu0 0.0
    %4257 = vmatpush.msra.mxu0 0.0
    %4258 = vmatpush.msra.mxu0 0.0
    %4259 = vmatpush.msra.mxu0 0.0
    %4260 = vmatpush.msra.mxu0 0.0
    %4261 = vmatpush.msra.mxu0 0.0
    %v4262 = vand.u32 %v4102, 4294901760
    %v4263 = vsub.f32 %v4102, %v4262
    %4264 = vmatpush.msra.mxu0 %v4263
    %v4265 = vand.u32 %v4098, 4294901760
    %v4266 = vsub.f32 %v4098, %v4265
    %4267 = vmatpush.msra.mxu0 %v4266
    %v4268 = vand.u32 %v4094, 4294901760
    %v4269 = vsub.f32 %v4094, %v4268
    %4270 = vmatpush.msra.mxu0 %v4269
    %v4271 = vand.u32 %v4090, 4294901760
    %v4272 = vsub.f32 %v4090, %v4271
    %4273 = vmatpush.msra.mxu0 %v4272
    %v4274 = vand.u32 %v4133, 4294901760
    %v4275 = vsub.f32 %v4133, %v4274
    %4276 = vmatmul.f32.gmra.mxu0 %v4275
    %v4277 = vpop.f32.mrf.mxu0
    %v4278 = vadd.f32 %v4236, %v4277
    %v4279 = vand.u32 %v4136, 4294901760
    %v4280 = vsub.f32 %v4136, %v4279
    %4281 = vmatmul.f32.gmra.mxu0 %v4280
    %v4282 = vpop.f32.mrf.mxu0
    %v4283 = vadd.f32 %v4240, %v4282
    %v4284 = vand.u32 %v4139, 4294901760
    %v4285 = vsub.f32 %v4139, %v4284
    %4286 = vmatmul.f32.gmra.mxu0 %v4285
    %v4287 = vpop.f32.mrf.mxu0
    %v4288 = vadd.f32 %v4244, %v4287
    %v4289 = vand.u32 %v4142, 4294901760
    %v4290 = vsub.f32 %v4142, %v4289
    %4291 = vmatmul.f32.gmra.mxu0 %v4290
    %v4292 = vpop.f32.mrf.mxu0
    %v4293 = vadd.f32 %v4248, %v4292
    %4294 = vdwg.mxu0
    %4295 = vmatpush.msra.mxu0 0.0
    %4296 = vmatpush.msra.mxu0 0.0
    %4297 = vmatpush.msra.mxu0 0.0
    %4298 = vmatpush.msra.mxu0 0.0
    %4299 = vmatpush.msra.mxu0 0.0
    %4300 = vmatpush.msra.mxu0 0.0
    %4301 = vmatpush.msra.mxu0 0.0
    %4302 = vmatpush.msra.mxu0 0.0
    %4303 = vmatpush.msra.mxu0 0.0
    %4304 = vmatpush.msra.mxu0 0.0
    %4305 = vmatpush.msra.mxu0 0.0
    %4306 = vmatpush.msra.mxu0 0.0
    %v4307 = vand.u32 %v4102, 4294901760
    %4308 = vmatpush.msra.mxu0 %v4307
    %v4309 = vand.u32 %v4098, 4294901760
    %4310 = vmatpush.msra.mxu0 %v4309
    %v4311 = vand.u32 %v4094, 4294901760
    %4312 = vmatpush.msra.mxu0 %v4311
    %v4313 = vand.u32 %v4090, 4294901760
    %4314 = vmatpush.msra.mxu0 %v4313
    %v4315 = vand.u32 %v4133, 4294901760
    %v4316 = vsub.f32 %v4133, %v4315
    %v4317 = vand.u32 %v4316, 4294901760
    %4318 = vmatmul.f32.gmra.mxu0 %v4317
    %v4319 = vpop.f32.mrf.mxu0
    %v4320 = vadd.f32 %v4278, %v4319
    %v4321 = vand.u32 %v4136, 4294901760
    %v4322 = vsub.f32 %v4136, %v4321
    %v4323 = vand.u32 %v4322, 4294901760
    %4324 = vmatmul.f32.gmra.mxu0 %v4323
    %v4325 = vpop.f32.mrf.mxu0
    %v4326 = vadd.f32 %v4283, %v4325
    %v4327 = vand.u32 %v4139, 4294901760
    %v4328 = vsub.f32 %v4139, %v4327
    %v4329 = vand.u32 %v4328, 4294901760
    %4330 = vmatmul.f32.gmra.mxu0 %v4329
    %v4331 = vpop.f32.mrf.mxu0
    %v4332 = vadd.f32 %v4288, %v4331
    %v4333 = vand.u32 %v4142, 4294901760
    %v4334 = vsub.f32 %v4142, %v4333
    %v4335 = vand.u32 %v4334, 4294901760
    %4336 = vmatmul.f32.gmra.mxu0 %v4335
    %v4337 = vpop.f32.mrf.mxu0
    %v4338 = vadd.f32 %v4293, %v4337
    %4339 = vdwg.mxu0
    %4340 = vmatpush.msra.mxu0 0.0
    %4341 = vmatpush.msra.mxu0 0.0
    %4342 = vmatpush.msra.mxu0 0.0
    %4343 = vmatpush.msra.mxu0 0.0
    %4344 = vmatpush.msra.mxu0 0.0
    %4345 = vmatpush.msra.mxu0 0.0
    %4346 = vmatpush.msra.mxu0 0.0
    %4347 = vmatpush.msra.mxu0 0.0
    %4348 = vmatpush.msra.mxu0 0.0
    %4349 = vmatpush.msra.mxu0 0.0
    %4350 = vmatpush.msra.mxu0 0.0
    %4351 = vmatpush.msra.mxu0 0.0
    %v4352 = vand.u32 %v4102, 4294901760
    %v4353 = vsub.f32 %v4102, %v4352
    %v4354 = vand.u32 %v4353, 4294901760
    %4355 = vmatpush.msra.mxu0 %v4354
    %v4356 = vand.u32 %v4098, 4294901760
    %v4357 = vsub.f32 %v4098, %v4356
    %v4358 = vand.u32 %v4357, 4294901760
    %4359 = vmatpush.msra.mxu0 %v4358
    %v4360 = vand.u32 %v4094, 4294901760
    %v4361 = vsub.f32 %v4094, %v4360
    %v4362 = vand.u32 %v4361, 4294901760
    %4363 = vmatpush.msra.mxu0 %v4362
    %v4364 = vand.u32 %v4090, 4294901760
    %v4365 = vsub.f32 %v4090, %v4364
    %v4366 = vand.u32 %v4365, 4294901760
    %4367 = vmatpush.msra.mxu0 %v4366
    %v4368 = vand.u32 %v4133, 4294901760
    %4369 = vmatmul.f32.gmra.mxu0 %v4368
    %v4370 = vpop.f32.mrf.mxu0
    %v4371 = vadd.f32 %v4320, %v4370
    %v4372 = vand.u32 %v4136, 4294901760
    %4373 = vmatmul.f32.gmra.mxu0 %v4372
    %v4374 = vpop.f32.mrf.mxu0
    %v4375 = vadd.f32 %v4326, %v4374
    %v4376 = vand.u32 %v4139, 4294901760
    %4377 = vmatmul.f32.gmra.mxu0 %v4376
    %v4378 = vpop.f32.mrf.mxu0
    %v4379 = vadd.f32 %v4332, %v4378
    %v4380 = vand.u32 %v4142, 4294901760
    %4381 = vmatmul.f32.gmra.mxu0 %v4380
    %v4382 = vpop.f32.mrf.mxu0
    %v4383 = vadd.f32 %v4338, %v4382
    %4384 = vdwg.mxu0
    %4385 = vmatpush.msra.mxu0 0.0
    %4386 = vmatpush.msra.mxu0 0.0
    %4387 = vmatpush.msra.mxu0 0.0
    %4388 = vmatpush.msra.mxu0 0.0
    %4389 = vmatpush.msra.mxu0 0.0
    %4390 = vmatpush.msra.mxu0 0.0
    %4391 = vmatpush.msra.mxu0 0.0
    %4392 = vmatpush.msra.mxu0 0.0
    %4393 = vmatpush.msra.mxu0 0.0
    %4394 = vmatpush.msra.mxu0 0.0
    %4395 = vmatpush.msra.mxu0 0.0
    %4396 = vmatpush.msra.mxu0 0.0
    %v4397 = vand.u32 %v4102, 4294901760
    %4398 = vmatpush.msra.mxu0 %v4397
    %v4399 = vand.u32 %v4098, 4294901760
    %4400 = vmatpush.msra.mxu0 %v4399
    %v4401 = vand.u32 %v4094, 4294901760
    %4402 = vmatpush.msra.mxu0 %v4401
    %v4403 = vand.u32 %v4090, 4294901760
    %4404 = vmatpush.msra.mxu0 %v4403
    %v4405 = vand.u32 %v4133, 4294901760
    %4406 = vmatmul.f32.gmra.mxu0 %v4405
    %v4407 = vpop.f32.mrf.mxu0
    %v4408 = vadd.f32 %v4371, %v4407
    %v4409 = vand.u32 %v4136, 4294901760
    %4410 = vmatmul.f32.gmra.mxu0 %v4409
    %v4411 = vpop.f32.mrf.mxu0
    %v4412 = vadd.f32 %v4375, %v4411
    %v4413 = vand.u32 %v4139, 4294901760
    %4414 = vmatmul.f32.gmra.mxu0 %v4413
    %v4415 = vpop.f32.mrf.mxu0
    %v4416 = vadd.f32 %v4379, %v4415
    %v4417 = vand.u32 %v4142, 4294901760
    %4418 = vmatmul.f32.gmra.mxu0 %v4417
    %v4419 = vpop.f32.mrf.mxu0
    %v4420 = vadd.f32 %v4383, %v4419
    %4421 = vdwg.mxu0
    %v4422 = vld [vmem:[%s67] sm:$0xff]
    %v4423 = vld [vmem:[%s67 + $0x8] sm:$0xff]
    %4424 = vmatpush.msra.mxu0 0.0
    %4425 = vmatpush.msra.mxu0 0.0
    %4426 = vmatpush.msra.mxu0 0.0
    %4427 = vmatpush.msra.mxu0 0.0
    %4428 = vmatpush.msra.mxu0 0.0
    %4429 = vmatpush.msra.mxu0 0.0
    %4430 = vmatpush.msra.mxu0 0.0
    %4431 = vmatpush.msra.mxu0 0.0
    %4432 = vmatpush.msra.mxu0 0.0
    %4433 = vmatpush.msra.mxu0 0.0
    %4434 = vmatpush.msra.mxu0 0.0
    %4435 = vmatpush.msra.mxu0 0.0
    %4436 = vmatpush.msra.mxu0 0.0
    %4437 = vmatpush.msra.mxu0 0.0
    %v4438 = vand.u32 %v4423, 4294901760
    %4439 = vmatpush.msra.mxu0 %v4438
    %v4440 = vand.u32 %v4422, 4294901760
    %4441 = vmatpush.msra.mxu0 %v4440
    %v4442 = vand.u32 %v3841, 4294901760
    %v4443 = vsub.f32 %v3841, %v4442
    %v4444 = vand.u32 %v4443, 4294901760
    %v4445 = vsub.f32 %v4443, %v4444
    %v4446 = vand.u32 %v4445, 4294901760
    %4447 = vmatmul.f32.gmra.mxu0 %v4446
    %v4448 = vpop.f32.mrf.mxu0
    %v4449 = vadd.f32 0.0, %v4448
    %v4450 = vand.u32 %v3844, 4294901760
    %v4451 = vsub.f32 %v3844, %v4450
    %v4452 = vand.u32 %v4451, 4294901760
    %v4453 = vsub.f32 %v4451, %v4452
    %v4454 = vand.u32 %v4453, 4294901760
    %4455 = vmatmul.f32.gmra.mxu0 %v4454
    %v4456 = vpop.f32.mrf.mxu0
    %v4457 = vadd.f32 0.0, %v4456
    %v4458 = vand.u32 %v3847, 4294901760
    %v4459 = vsub.f32 %v3847, %v4458
    %v4460 = vand.u32 %v4459, 4294901760
    %v4461 = vsub.f32 %v4459, %v4460
    %v4462 = vand.u32 %v4461, 4294901760
    %4463 = vmatmul.f32.gmra.mxu0 %v4462
    %v4464 = vpop.f32.mrf.mxu0
    %v4465 = vadd.f32 0.0, %v4464
    %v4466 = vand.u32 %v3850, 4294901760
    %v4467 = vsub.f32 %v3850, %v4466
    %v4468 = vand.u32 %v4467, 4294901760
    %v4469 = vsub.f32 %v4467, %v4468
    %v4470 = vand.u32 %v4469, 4294901760
    %4471 = vmatmul.f32.gmra.mxu0 %v4470
    %v4472 = vpop.f32.mrf.mxu0
    %v4473 = vadd.f32 0.0, %v4472
    %4474 = vdwg.mxu0
    %4475 = vmatpush.msra.mxu0 0.0
    %4476 = vmatpush.msra.mxu0 0.0
    %4477 = vmatpush.msra.mxu0 0.0
    %4478 = vmatpush.msra.mxu0 0.0
    %4479 = vmatpush.msra.mxu0 0.0
    %4480 = vmatpush.msra.mxu0 0.0
    %4481 = vmatpush.msra.mxu0 0.0
    %4482 = vmatpush.msra.mxu0 0.0
    %4483 = vmatpush.msra.mxu0 0.0
    %4484 = vmatpush.msra.mxu0 0.0
    %4485 = vmatpush.msra.mxu0 0.0
    %4486 = vmatpush.msra.mxu0 0.0
    %4487 = vmatpush.msra.mxu0 0.0
    %4488 = vmatpush.msra.mxu0 0.0
    %v4489 = vand.u32 %v4423, 4294901760
    %v4490 = vsub.f32 %v4423, %v4489
    %v4491 = vand.u32 %v4490, 4294901760
    %v4492 = vsub.f32 %v4490, %v4491
    %v4493 = vand.u32 %v4492, 4294901760
    %4494 = vmatpush.msra.mxu0 %v4493
    %v4495 = vand.u32 %v4422, 4294901760
    %v4496 = vsub.f32 %v4422, %v4495
    %v4497 = vand.u32 %v4496, 4294901760
    %v4498 = vsub.f32 %v4496, %v4497
    %v4499 = vand.u32 %v4498, 4294901760
    %4500 = vmatpush.msra.mxu0 %v4499
    %v4501 = vand.u32 %v3841, 4294901760
    %4502 = vmatmul.f32.gmra.mxu0 %v4501
    %v4503 = vpop.f32.mrf.mxu0
    %v4504 = vadd.f32 %v4449, %v4503
    %v4505 = vand.u32 %v3844, 4294901760
    %4506 = vmatmul.f32.gmra.mxu0 %v4505
    %v4507 = vpop.f32.mrf.mxu0
    %v4508 = vadd.f32 %v4457, %v4507
    %v4509 = vand.u32 %v3847, 4294901760
    %4510 = vmatmul.f32.gmra.mxu0 %v4509
    %v4511 = vpop.f32.mrf.mxu0
    %v4512 = vadd.f32 %v4465, %v4511
    %v4513 = vand.u32 %v3850, 4294901760
    %4514 = vmatmul.f32.gmra.mxu0 %v4513
    %v4515 = vpop.f32.mrf.mxu0
    %v4516 = vadd.f32 %v4473, %v4515
    %4517 = vdwg.mxu0
    %4518 = vmatpush.msra.mxu0 0.0
    %4519 = vmatpush.msra.mxu0 0.0
    %4520 = vmatpush.msra.mxu0 0.0
    %4521 = vmatpush.msra.mxu0 0.0
    %4522 = vmatpush.msra.mxu0 0.0
    %4523 = vmatpush.msra.mxu0 0.0
    %4524 = vmatpush.msra.mxu0 0.0
    %4525 = vmatpush.msra.mxu0 0.0
    %4526 = vmatpush.msra.mxu0 0.0
    %4527 = vmatpush.msra.mxu0 0.0
    %4528 = vmatpush.msra.mxu0 0.0
    %4529 = vmatpush.msra.mxu0 0.0
    %4530 = vmatpush.msra.mxu0 0.0
    %4531 = vmatpush.msra.mxu0 0.0
    %v4532 = vand.u32 %v4423, 4294901760
    %v4533 = vsub.f32 %v4423, %v4532
    %4534 = vmatpush.msra.mxu0 %v4533
    %v4535 = vand.u32 %v4422, 4294901760
    %v4536 = vsub.f32 %v4422, %v4535
    %4537 = vmatpush.msra.mxu0 %v4536
    %v4538 = vand.u32 %v3841, 4294901760
    %v4539 = vsub.f32 %v3841, %v4538
    %4540 = vmatmul.f32.gmra.mxu0 %v4539
    %v4541 = vpop.f32.mrf.mxu0
    %v4542 = vadd.f32 %v4504, %v4541
    %v4543 = vand.u32 %v3844, 4294901760
    %v4544 = vsub.f32 %v3844, %v4543
    %4545 = vmatmul.f32.gmra.mxu0 %v4544
    %v4546 = vpop.f32.mrf.mxu0
    %v4547 = vadd.f32 %v4508, %v4546
    %v4548 = vand.u32 %v3847, 4294901760
    %v4549 = vsub.f32 %v3847, %v4548
    %4550 = vmatmul.f32.gmra.mxu0 %v4549
    %v4551 = vpop.f32.mrf.mxu0
    %v4552 = vadd.f32 %v4512, %v4551
    %v4553 = vand.u32 %v3850, 4294901760
    %v4554 = vsub.f32 %v3850, %v4553
    %4555 = vmatmul.f32.gmra.mxu0 %v4554
    %v4556 = vpop.f32.mrf.mxu0
    %v4557 = vadd.f32 %v4516, %v4556
    %4558 = vdwg.mxu0
    %4559 = vmatpush.msra.mxu0 0.0
    %4560 = vmatpush.msra.mxu0 0.0
    %4561 = vmatpush.msra.mxu0 0.0
    %4562 = vmatpush.msra.mxu0 0.0
    %4563 = vmatpush.msra.mxu0 0.0
    %4564 = vmatpush.msra.mxu0 0.0
    %4565 = vmatpush.msra.mxu0 0.0
    %4566 = vmatpush.msra.mxu0 0.0
    %4567 = vmatpush.msra.mxu0 0.0
    %4568 = vmatpush.msra.mxu0 0.0
    %4569 = vmatpush.msra.mxu0 0.0
    %4570 = vmatpush.msra.mxu0 0.0
    %4571 = vmatpush.msra.mxu0 0.0
    %4572 = vmatpush.msra.mxu0 0.0
    %v4573 = vand.u32 %v4423, 4294901760
    %4574 = vmatpush.msra.mxu0 %v4573
    %v4575 = vand.u32 %v4422, 4294901760
    %4576 = vmatpush.msra.mxu0 %v4575
    %v4577 = vand.u32 %v3841, 4294901760
    %v4578 = vsub.f32 %v3841, %v4577
    %v4579 = vand.u32 %v4578, 4294901760
    %4580 = vmatmul.f32.gmra.mxu0 %v4579
    %v4581 = vpop.f32.mrf.mxu0
    %v4582 = vadd.f32 %v4542, %v4581
    %v4583 = vand.u32 %v3844, 4294901760
    %v4584 = vsub.f32 %v3844, %v4583
    %v4585 = vand.u32 %v4584, 4294901760
    %4586 = vmatmul.f32.gmra.mxu0 %v4585
    %v4587 = vpop.f32.mrf.mxu0
    %v4588 = vadd.f32 %v4547, %v4587
    %v4589 = vand.u32 %v3847, 4294901760
    %v4590 = vsub.f32 %v3847, %v4589
    %v4591 = vand.u32 %v4590, 4294901760
    %4592 = vmatmul.f32.gmra.mxu0 %v4591
    %v4593 = vpop.f32.mrf.mxu0
    %v4594 = vadd.f32 %v4552, %v4593
    %v4595 = vand.u32 %v3850, 4294901760
    %v4596 = vsub.f32 %v3850, %v4595
    %v4597 = vand.u32 %v4596, 4294901760
    %4598 = vmatmul.f32.gmra.mxu0 %v4597
    %v4599 = vpop.f32.mrf.mxu0
    %v4600 = vadd.f32 %v4557, %v4599
    %4601 = vdwg.mxu0
    %4602 = vmatpush.msra.mxu0 0.0
    %4603 = vmatpush.msra.mxu0 0.0
    %4604 = vmatpush.msra.mxu0 0.0
    %4605 = vmatpush.msra.mxu0 0.0
    %4606 = vmatpush.msra.mxu0 0.0
    %4607 = vmatpush.msra.mxu0 0.0
    %4608 = vmatpush.msra.mxu0 0.0
    %4609 = vmatpush.msra.mxu0 0.0
    %4610 = vmatpush.msra.mxu0 0.0
    %4611 = vmatpush.msra.mxu0 0.0
    %4612 = vmatpush.msra.mxu0 0.0
    %4613 = vmatpush.msra.mxu0 0.0
    %4614 = vmatpush.msra.mxu0 0.0
    %4615 = vmatpush.msra.mxu0 0.0
    %v4616 = vand.u32 %v4423, 4294901760
    %v4617 = vsub.f32 %v4423, %v4616
    %v4618 = vand.u32 %v4617, 4294901760
    %4619 = vmatpush.msra.mxu0 %v4618
    %v4620 = vand.u32 %v4422, 4294901760
    %v4621 = vsub.f32 %v4422, %v4620
    %v4622 = vand.u32 %v4621, 4294901760
    %4623 = vmatpush.msra.mxu0 %v4622
    %v4624 = vand.u32 %v3841, 4294901760
    %4625 = vmatmul.f32.gmra.mxu0 %v4624
    %v4626 = vpop.f32.mrf.mxu0
    %v4627 = vadd.f32 %v4582, %v4626
    %v4628 = vand.u32 %v3844, 4294901760
    %4629 = vmatmul.f32.gmra.mxu0 %v4628
    %v4630 = vpop.f32.mrf.mxu0
    %v4631 = vadd.f32 %v4588, %v4630
    %v4632 = vand.u32 %v3847, 4294901760
    %4633 = vmatmul.f32.gmra.mxu0 %v4632
    %v4634 = vpop.f32.mrf.mxu0
    %v4635 = vadd.f32 %v4594, %v4634
    %v4636 = vand.u32 %v3850, 4294901760
    %4637 = vmatmul.f32.gmra.mxu0 %v4636
    %v4638 = vpop.f32.mrf.mxu0
    %v4639 = vadd.f32 %v4600, %v4638
    %4640 = vdwg.mxu0
    %4641 = vmatpush.msra.mxu0 0.0
    %4642 = vmatpush.msra.mxu0 0.0
    %4643 = vmatpush.msra.mxu0 0.0
    %4644 = vmatpush.msra.mxu0 0.0
    %4645 = vmatpush.msra.mxu0 0.0
    %4646 = vmatpush.msra.mxu0 0.0
    %4647 = vmatpush.msra.mxu0 0.0
    %4648 = vmatpush.msra.mxu0 0.0
    %4649 = vmatpush.msra.mxu0 0.0
    %4650 = vmatpush.msra.mxu0 0.0
    %4651 = vmatpush.msra.mxu0 0.0
    %4652 = vmatpush.msra.mxu0 0.0
    %4653 = vmatpush.msra.mxu0 0.0
    %4654 = vmatpush.msra.mxu0 0.0
    %v4655 = vand.u32 %v4423, 4294901760
    %4656 = vmatpush.msra.mxu0 %v4655
    %v4657 = vand.u32 %v4422, 4294901760
    %4658 = vmatpush.msra.mxu0 %v4657
    %v4659 = vand.u32 %v3841, 4294901760
    %4660 = vmatmul.f32.gmra.mxu0 %v4659
    %v4661 = vpop.f32.mrf.mxu0
    %v4662 = vadd.f32 %v4627, %v4661
    %v4663 = vand.u32 %v3844, 4294901760
    %4664 = vmatmul.f32.gmra.mxu0 %v4663
    %v4665 = vpop.f32.mrf.mxu0
    %v4666 = vadd.f32 %v4631, %v4665
    %v4667 = vand.u32 %v3847, 4294901760
    %4668 = vmatmul.f32.gmra.mxu0 %v4667
    %v4669 = vpop.f32.mrf.mxu0
    %v4670 = vadd.f32 %v4635, %v4669
    %v4671 = vand.u32 %v3850, 4294901760
    %4672 = vmatmul.f32.gmra.mxu0 %v4671
    %v4673 = vpop.f32.mrf.mxu0
    %v4674 = vadd.f32 %v4639, %v4673
    %4675 = vdwg.mxu0
    %v4676 = vld [vmem:[%s43] sm:$0xff]
    %v4677 = vld [vmem:[%s43 + $0x8] sm:$0xff]
    %v4678 = vld [vmem:[%s43 + $0x10] sm:$0xff]
    %v4679 = vld [vmem:[%s43 + $0x18] sm:$0xff]
    %v4680 = vld [vmem:[%s45] sm:$0xff]
    %v4681 = vld [vmem:[%s45 + $0x8] sm:$0xff]
    %v4682 = vld [vmem:[%s45 + $0x10] sm:$0xff]
    %v4683 = vld [vmem:[%s45 + $0x18] sm:$0xff]
    %4685 = vset.pattern.permute.xlu0 0
    %4686 = vperm.xlu0 %4685, %v4680
    %v4687 = vpop.permute.xlu0 %4686
    %4690 = vset.pattern.permute.xlu0 0
    %4691 = vperm.xlu0 %4690, %v4681
    %v4692 = vpop.permute.xlu0 %4691
    %4695 = vset.pattern.permute.xlu0 0
    %4696 = vperm.xlu0 %4695, %v4682
    %v4697 = vpop.permute.xlu0 %4696
    %4700 = vset.pattern.permute.xlu0 0
    %4701 = vperm.xlu0 %4700, %v4683
    %v4702 = vpop.permute.xlu0 %4701
    %v4705 = vsel %vm326, %v4676, 0
    %v4708 = vsel %vm326, %v4677, 0
    %v4711 = vsel %vm326, %v4678, 0
    %v4714 = vsel %vm326, %v4679, 0
    %4716 = vmatpush.msra.mxu0 0.0
    %4717 = vmatpush.msra.mxu0 0.0
    %4718 = vmatpush.msra.mxu0 0.0
    %4719 = vmatpush.msra.mxu0 0.0
    %4720 = vmatpush.msra.mxu0 0.0
    %4721 = vmatpush.msra.mxu0 0.0
    %4722 = vmatpush.msra.mxu0 0.0
    %4723 = vmatpush.msra.mxu0 0.0
    %4724 = vmatpush.msra.mxu0 0.0
    %4725 = vmatpush.msra.mxu0 0.0
    %4726 = vmatpush.msra.mxu0 0.0
    %4727 = vmatpush.msra.mxu0 0.0
    %v4728 = vand.u32 %v4674, 4294901760
    %4729 = vmatpush.msra.mxu0 %v4728
    %v4730 = vand.u32 %v4670, 4294901760
    %4731 = vmatpush.msra.mxu0 %v4730
    %v4732 = vand.u32 %v4666, 4294901760
    %4733 = vmatpush.msra.mxu0 %v4732
    %v4734 = vand.u32 %v4662, 4294901760
    %4735 = vmatpush.msra.mxu0 %v4734
    %v4736 = vand.u32 %v4705, 4294901760
    %v4737 = vsub.f32 %v4705, %v4736
    %v4738 = vand.u32 %v4737, 4294901760
    %v4739 = vsub.f32 %v4737, %v4738
    %v4740 = vand.u32 %v4739, 4294901760
    %4741 = vmatmul.f32.gmra.mxu0 %v4740
    %v4742 = vpop.f32.mrf.mxu0
    %v4743 = vadd.f32 %v4687, %v4742
    %v4744 = vand.u32 %v4708, 4294901760
    %v4745 = vsub.f32 %v4708, %v4744
    %v4746 = vand.u32 %v4745, 4294901760
    %v4747 = vsub.f32 %v4745, %v4746
    %v4748 = vand.u32 %v4747, 4294901760
    %4749 = vmatmul.f32.gmra.mxu0 %v4748
    %v4750 = vpop.f32.mrf.mxu0
    %v4751 = vadd.f32 %v4692, %v4750
    %v4752 = vand.u32 %v4711, 4294901760
    %v4753 = vsub.f32 %v4711, %v4752
    %v4754 = vand.u32 %v4753, 4294901760
    %v4755 = vsub.f32 %v4753, %v4754
    %v4756 = vand.u32 %v4755, 4294901760
    %4757 = vmatmul.f32.gmra.mxu0 %v4756
    %v4758 = vpop.f32.mrf.mxu0
    %v4759 = vadd.f32 %v4697, %v4758
    %v4760 = vand.u32 %v4714, 4294901760
    %v4761 = vsub.f32 %v4714, %v4760
    %v4762 = vand.u32 %v4761, 4294901760
    %v4763 = vsub.f32 %v4761, %v4762
    %v4764 = vand.u32 %v4763, 4294901760
    %4765 = vmatmul.f32.gmra.mxu0 %v4764
    %v4766 = vpop.f32.mrf.mxu0
    %v4767 = vadd.f32 %v4702, %v4766
    %4768 = vdwg.mxu0
    %4769 = vmatpush.msra.mxu0 0.0
    %4770 = vmatpush.msra.mxu0 0.0
    %4771 = vmatpush.msra.mxu0 0.0
    %4772 = vmatpush.msra.mxu0 0.0
    %4773 = vmatpush.msra.mxu0 0.0
    %4774 = vmatpush.msra.mxu0 0.0
    %4775 = vmatpush.msra.mxu0 0.0
    %4776 = vmatpush.msra.mxu0 0.0
    %4777 = vmatpush.msra.mxu0 0.0
    %4778 = vmatpush.msra.mxu0 0.0
    %4779 = vmatpush.msra.mxu0 0.0
    %4780 = vmatpush.msra.mxu0 0.0
    %v4781 = vand.u32 %v4674, 4294901760
    %v4782 = vsub.f32 %v4674, %v4781
    %v4783 = vand.u32 %v4782, 4294901760
    %v4784 = vsub.f32 %v4782, %v4783
    %v4785 = vand.u32 %v4784, 4294901760
    %4786 = vmatpush.msra.mxu0 %v4785
    %v4787 = vand.u32 %v4670, 4294901760
    %v4788 = vsub.f32 %v4670, %v4787
    %v4789 = vand.u32 %v4788, 4294901760
    %v4790 = vsub.f32 %v4788, %v4789
    %v4791 = vand.u32 %v4790, 4294901760
    %4792 = vmatpush.msra.mxu0 %v4791
    %v4793 = vand.u32 %v4666, 4294901760
    %v4794 = vsub.f32 %v4666, %v4793
    %v4795 = vand.u32 %v4794, 4294901760
    %v4796 = vsub.f32 %v4794, %v4795
    %v4797 = vand.u32 %v4796, 4294901760
    %4798 = vmatpush.msra.mxu0 %v4797
    %v4799 = vand.u32 %v4662, 4294901760
    %v4800 = vsub.f32 %v4662, %v4799
    %v4801 = vand.u32 %v4800, 4294901760
    %v4802 = vsub.f32 %v4800, %v4801
    %v4803 = vand.u32 %v4802, 4294901760
    %4804 = vmatpush.msra.mxu0 %v4803
    %v4805 = vand.u32 %v4705, 4294901760
    %4806 = vmatmul.f32.gmra.mxu0 %v4805
    %v4807 = vpop.f32.mrf.mxu0
    %v4808 = vadd.f32 %v4743, %v4807
    %v4809 = vand.u32 %v4708, 4294901760
    %4810 = vmatmul.f32.gmra.mxu0 %v4809
    %v4811 = vpop.f32.mrf.mxu0
    %v4812 = vadd.f32 %v4751, %v4811
    %v4813 = vand.u32 %v4711, 4294901760
    %4814 = vmatmul.f32.gmra.mxu0 %v4813
    %v4815 = vpop.f32.mrf.mxu0
    %v4816 = vadd.f32 %v4759, %v4815
    %v4817 = vand.u32 %v4714, 4294901760
    %4818 = vmatmul.f32.gmra.mxu0 %v4817
    %v4819 = vpop.f32.mrf.mxu0
    %v4820 = vadd.f32 %v4767, %v4819
    %4821 = vdwg.mxu0
    %4822 = vmatpush.msra.mxu0 0.0
    %4823 = vmatpush.msra.mxu0 0.0
    %4824 = vmatpush.msra.mxu0 0.0
    %4825 = vmatpush.msra.mxu0 0.0
    %4826 = vmatpush.msra.mxu0 0.0
    %4827 = vmatpush.msra.mxu0 0.0
    %4828 = vmatpush.msra.mxu0 0.0
    %4829 = vmatpush.msra.mxu0 0.0
    %4830 = vmatpush.msra.mxu0 0.0
    %4831 = vmatpush.msra.mxu0 0.0
    %4832 = vmatpush.msra.mxu0 0.0
    %4833 = vmatpush.msra.mxu0 0.0
    %v4834 = vand.u32 %v4674, 4294901760
    %v4835 = vsub.f32 %v4674, %v4834
    %4836 = vmatpush.msra.mxu0 %v4835
    %v4837 = vand.u32 %v4670, 4294901760
    %v4838 = vsub.f32 %v4670, %v4837
    %4839 = vmatpush.msra.mxu0 %v4838
    %v4840 = vand.u32 %v4666, 4294901760
    %v4841 = vsub.f32 %v4666, %v4840
    %4842 = vmatpush.msra.mxu0 %v4841
    %v4843 = vand.u32 %v4662, 4294901760
    %v4844 = vsub.f32 %v4662, %v4843
    %4845 = vmatpush.msra.mxu0 %v4844
    %v4846 = vand.u32 %v4705, 4294901760
    %v4847 = vsub.f32 %v4705, %v4846
    %4848 = vmatmul.f32.gmra.mxu0 %v4847
    %v4849 = vpop.f32.mrf.mxu0
    %v4850 = vadd.f32 %v4808, %v4849
    %v4851 = vand.u32 %v4708, 4294901760
    %v4852 = vsub.f32 %v4708, %v4851
    %4853 = vmatmul.f32.gmra.mxu0 %v4852
    %v4854 = vpop.f32.mrf.mxu0
    %v4855 = vadd.f32 %v4812, %v4854
    %v4856 = vand.u32 %v4711, 4294901760
    %v4857 = vsub.f32 %v4711, %v4856
    %4858 = vmatmul.f32.gmra.mxu0 %v4857
    %v4859 = vpop.f32.mrf.mxu0
    %v4860 = vadd.f32 %v4816, %v4859
    %v4861 = vand.u32 %v4714, 4294901760
    %v4862 = vsub.f32 %v4714, %v4861
    %4863 = vmatmul.f32.gmra.mxu0 %v4862
    %v4864 = vpop.f32.mrf.mxu0
    %v4865 = vadd.f32 %v4820, %v4864
    %4866 = vdwg.mxu0
    %4867 = vmatpush.msra.mxu0 0.0
    %4868 = vmatpush.msra.mxu0 0.0
    %4869 = vmatpush.msra.mxu0 0.0
    %4870 = vmatpush.msra.mxu0 0.0
    %4871 = vmatpush.msra.mxu0 0.0
    %4872 = vmatpush.msra.mxu0 0.0
    %4873 = vmatpush.msra.mxu0 0.0
    %4874 = vmatpush.msra.mxu0 0.0
    %4875 = vmatpush.msra.mxu0 0.0
    %4876 = vmatpush.msra.mxu0 0.0
    %4877 = vmatpush.msra.mxu0 0.0
    %4878 = vmatpush.msra.mxu0 0.0
    %v4879 = vand.u32 %v4674, 4294901760
    %4880 = vmatpush.msra.mxu0 %v4879
    %v4881 = vand.u32 %v4670, 4294901760
    %4882 = vmatpush.msra.mxu0 %v4881
    %v4883 = vand.u32 %v4666, 4294901760
    %4884 = vmatpush.msra.mxu0 %v4883
    %v4885 = vand.u32 %v4662, 4294901760
    %4886 = vmatpush.msra.mxu0 %v4885
    %v4887 = vand.u32 %v4705, 4294901760
    %v4888 = vsub.f32 %v4705, %v4887
    %v4889 = vand.u32 %v4888, 4294901760
    %4890 = vmatmul.f32.gmra.mxu0 %v4889
    %v4891 = vpop.f32.mrf.mxu0
    %v4892 = vadd.f32 %v4850, %v4891
    %v4893 = vand.u32 %v4708, 4294901760
    %v4894 = vsub.f32 %v4708, %v4893
    %v4895 = vand.u32 %v4894, 4294901760
    %4896 = vmatmul.f32.gmra.mxu0 %v4895
    %v4897 = vpop.f32.mrf.mxu0
    %v4898 = vadd.f32 %v4855, %v4897
    %v4899 = vand.u32 %v4711, 4294901760
    %v4900 = vsub.f32 %v4711, %v4899
    %v4901 = vand.u32 %v4900, 4294901760
    %4902 = vmatmul.f32.gmra.mxu0 %v4901
    %v4903 = vpop.f32.mrf.mxu0
    %v4904 = vadd.f32 %v4860, %v4903
    %v4905 = vand.u32 %v4714, 4294901760
    %v4906 = vsub.f32 %v4714, %v4905
    %v4907 = vand.u32 %v4906, 4294901760
    %4908 = vmatmul.f32.gmra.mxu0 %v4907
    %v4909 = vpop.f32.mrf.mxu0
    %v4910 = vadd.f32 %v4865, %v4909
    %4911 = vdwg.mxu0
    %4912 = vmatpush.msra.mxu0 0.0
    %4913 = vmatpush.msra.mxu0 0.0
    %4914 = vmatpush.msra.mxu0 0.0
    %4915 = vmatpush.msra.mxu0 0.0
    %4916 = vmatpush.msra.mxu0 0.0
    %4917 = vmatpush.msra.mxu0 0.0
    %4918 = vmatpush.msra.mxu0 0.0
    %4919 = vmatpush.msra.mxu0 0.0
    %4920 = vmatpush.msra.mxu0 0.0
    %4921 = vmatpush.msra.mxu0 0.0
    %4922 = vmatpush.msra.mxu0 0.0
    %4923 = vmatpush.msra.mxu0 0.0
    %v4924 = vand.u32 %v4674, 4294901760
    %v4925 = vsub.f32 %v4674, %v4924
    %v4926 = vand.u32 %v4925, 4294901760
    %4927 = vmatpush.msra.mxu0 %v4926
    %v4928 = vand.u32 %v4670, 4294901760
    %v4929 = vsub.f32 %v4670, %v4928
    %v4930 = vand.u32 %v4929, 4294901760
    %4931 = vmatpush.msra.mxu0 %v4930
    %v4932 = vand.u32 %v4666, 4294901760
    %v4933 = vsub.f32 %v4666, %v4932
    %v4934 = vand.u32 %v4933, 4294901760
    %4935 = vmatpush.msra.mxu0 %v4934
    %v4936 = vand.u32 %v4662, 4294901760
    %v4937 = vsub.f32 %v4662, %v4936
    %v4938 = vand.u32 %v4937, 4294901760
    %4939 = vmatpush.msra.mxu0 %v4938
    %v4940 = vand.u32 %v4705, 4294901760
    %4941 = vmatmul.f32.gmra.mxu0 %v4940
    %v4942 = vpop.f32.mrf.mxu0
    %v4943 = vadd.f32 %v4892, %v4942
    %v4944 = vand.u32 %v4708, 4294901760
    %4945 = vmatmul.f32.gmra.mxu0 %v4944
    %v4946 = vpop.f32.mrf.mxu0
    %v4947 = vadd.f32 %v4898, %v4946
    %v4948 = vand.u32 %v4711, 4294901760
    %4949 = vmatmul.f32.gmra.mxu0 %v4948
    %v4950 = vpop.f32.mrf.mxu0
    %v4951 = vadd.f32 %v4904, %v4950
    %v4952 = vand.u32 %v4714, 4294901760
    %4953 = vmatmul.f32.gmra.mxu0 %v4952
    %v4954 = vpop.f32.mrf.mxu0
    %v4955 = vadd.f32 %v4910, %v4954
    %4956 = vdwg.mxu0
    %4957 = vmatpush.msra.mxu0 0.0
    %4958 = vmatpush.msra.mxu0 0.0
    %4959 = vmatpush.msra.mxu0 0.0
    %4960 = vmatpush.msra.mxu0 0.0
    %4961 = vmatpush.msra.mxu0 0.0
    %4962 = vmatpush.msra.mxu0 0.0
    %4963 = vmatpush.msra.mxu0 0.0
    %4964 = vmatpush.msra.mxu0 0.0
    %4965 = vmatpush.msra.mxu0 0.0
    %4966 = vmatpush.msra.mxu0 0.0
    %4967 = vmatpush.msra.mxu0 0.0
    %4968 = vmatpush.msra.mxu0 0.0
    %v4969 = vand.u32 %v4674, 4294901760
    %4970 = vmatpush.msra.mxu0 %v4969
    %v4971 = vand.u32 %v4670, 4294901760
    %4972 = vmatpush.msra.mxu0 %v4971
    %v4973 = vand.u32 %v4666, 4294901760
    %4974 = vmatpush.msra.mxu0 %v4973
    %v4975 = vand.u32 %v4662, 4294901760
    %4976 = vmatpush.msra.mxu0 %v4975
    %v4977 = vand.u32 %v4705, 4294901760
    %4978 = vmatmul.f32.gmra.mxu0 %v4977
    %v4979 = vpop.f32.mrf.mxu0
    %v4980 = vadd.f32 %v4943, %v4979
    %v4981 = vand.u32 %v4708, 4294901760
    %4982 = vmatmul.f32.gmra.mxu0 %v4981
    %v4983 = vpop.f32.mrf.mxu0
    %v4984 = vadd.f32 %v4947, %v4983
    %v4985 = vand.u32 %v4711, 4294901760
    %4986 = vmatmul.f32.gmra.mxu0 %v4985
    %v4987 = vpop.f32.mrf.mxu0
    %v4988 = vadd.f32 %v4951, %v4987
    %v4989 = vand.u32 %v4714, 4294901760
    %4990 = vmatmul.f32.gmra.mxu0 %v4989
    %v4991 = vpop.f32.mrf.mxu0
    %v4992 = vadd.f32 %v4955, %v4991
    %4993 = vdwg.mxu0
    %v4994 = vmul.f32 %v4980, 0.041666668
    %v4995 = vmul.f32 %v4984, 0.041666668
    %v4996 = vmul.f32 %v4988, 0.041666668
    %v4997 = vmul.f32 %v4992, 0.041666668
    %v4998 = vstv %s175
    %v4999 = vmul.f32 %v4998, %v2612
    %v5000 = vmul.f32 %v4998, %v2613
    %v5001 = vmul.f32 %v4998, %v2614
    %v5002 = vmul.f32 %v4998, %v2615
    %v5003 = vstv %s176
    %v5004 = vmul.f32 %v5003, %v4408
    %v5005 = vmul.f32 %v5003, %v4412
    %v5006 = vmul.f32 %v5003, %v4416
    %v5007 = vmul.f32 %v5003, %v4420
    %v5008 = vadd.f32 %v4999, %v5004
    %v5009 = vadd.f32 %v5000, %v5005
    %v5010 = vadd.f32 %v5001, %v5006
    %v5011 = vadd.f32 %v5002, %v5007
    %v5012 = vstv %s177
    %v5013 = vmul.f32 %v5012, %v4994
    %v5014 = vmul.f32 %v5012, %v4995
    %v5015 = vmul.f32 %v5012, %v4996
    %v5016 = vmul.f32 %v5012, %v4997
    %v5017 = vadd.f32 %v5008, %v5013
    %v5018 = vadd.f32 %v5009, %v5014
    %v5019 = vadd.f32 %v5010, %v5015
    %v5020 = vadd.f32 %v5011, %v5016
    %v5021 = vmax.f32 %v5017, 0.0
    %v5022 = vmax.f32 %v5018, 0.0
    %v5023 = vmax.f32 %v5019, 0.0
    %v5024 = vmax.f32 %v5020, 0.0
    %v5025 = vld [vmem:[%s69] sm:$0xff]
    %v5026 = vld [vmem:[%s69 + $0x8] sm:$0xff]
    %v5027 = vld [vmem:[%s69 + $0x10] sm:$0xff]
    %v5028 = vld [vmem:[%s69 + $0x18] sm:$0xff]
    %v5029 = vld [vmem:[%s69 + $0x20] sm:$0xff]
    %v5030 = vld [vmem:[%s69 + $0x28] sm:$0xff]
    %v5031 = vld [vmem:[%s71] sm:$0x1]
    %v5033 = vperm.slane %v5031, 0
    %v5036 = vsel %vm2626, %v5021, 0
    %v5039 = vsel %vm2626, %v5022, 0
    %v5042 = vsel %vm2626, %v5023, 0
    %v5045 = vsel %vm2626, %v5024, 0
    %5047 = vmatpush.msra.mxu0 0.0
    %5048 = vmatpush.msra.mxu0 0.0
    %5049 = vmatpush.msra.mxu0 0.0
    %5050 = vmatpush.msra.mxu0 0.0
    %5051 = vmatpush.msra.mxu0 0.0
    %5052 = vmatpush.msra.mxu0 0.0
    %5053 = vmatpush.msra.mxu0 0.0
    %5054 = vmatpush.msra.mxu0 0.0
    %5055 = vmatpush.msra.mxu0 0.0
    %5056 = vmatpush.msra.mxu0 0.0
    %v5057 = vand.u32 %v5030, 4294901760
    %5058 = vmatpush.msra.mxu0 %v5057
    %v5059 = vand.u32 %v5029, 4294901760
    %5060 = vmatpush.msra.mxu0 %v5059
    %v5061 = vand.u32 %v5028, 4294901760
    %5062 = vmatpush.msra.mxu0 %v5061
    %v5063 = vand.u32 %v5027, 4294901760
    %5064 = vmatpush.msra.mxu0 %v5063
    %v5065 = vand.u32 %v5026, 4294901760
    %5066 = vmatpush.msra.mxu0 %v5065
    %v5067 = vand.u32 %v5025, 4294901760
    %5068 = vmatpush.msra.mxu0 %v5067
    %v5069 = vand.u32 %v5036, 4294901760
    %v5070 = vsub.f32 %v5036, %v5069
    %v5071 = vand.u32 %v5070, 4294901760
    %v5072 = vsub.f32 %v5070, %v5071
    %v5073 = vand.u32 %v5072, 4294901760
    %5074 = vmatmul.f32.gmra.mxu0 %v5073
    %v5075 = vpop.f32.mrf.mxu0
    %v5076 = vadd.f32 %v5033, %v5075
    %v5077 = vand.u32 %v5039, 4294901760
    %v5078 = vsub.f32 %v5039, %v5077
    %v5079 = vand.u32 %v5078, 4294901760
    %v5080 = vsub.f32 %v5078, %v5079
    %v5081 = vand.u32 %v5080, 4294901760
    %5082 = vmatmul.f32.gmra.mxu0 %v5081
    %v5083 = vpop.f32.mrf.mxu0
    %v5084 = vadd.f32 %v5033, %v5083
    %v5085 = vand.u32 %v5042, 4294901760
    %v5086 = vsub.f32 %v5042, %v5085
    %v5087 = vand.u32 %v5086, 4294901760
    %v5088 = vsub.f32 %v5086, %v5087
    %v5089 = vand.u32 %v5088, 4294901760
    %5090 = vmatmul.f32.gmra.mxu0 %v5089
    %v5091 = vpop.f32.mrf.mxu0
    %v5092 = vadd.f32 %v5033, %v5091
    %v5093 = vand.u32 %v5045, 4294901760
    %v5094 = vsub.f32 %v5045, %v5093
    %v5095 = vand.u32 %v5094, 4294901760
    %v5096 = vsub.f32 %v5094, %v5095
    %v5097 = vand.u32 %v5096, 4294901760
    %5098 = vmatmul.f32.gmra.mxu0 %v5097
    %v5099 = vpop.f32.mrf.mxu0
    %v5100 = vadd.f32 %v5033, %v5099
    %5101 = vdwg.mxu0
    %5102 = vmatpush.msra.mxu0 0.0
    %5103 = vmatpush.msra.mxu0 0.0
    %5104 = vmatpush.msra.mxu0 0.0
    %5105 = vmatpush.msra.mxu0 0.0
    %5106 = vmatpush.msra.mxu0 0.0
    %5107 = vmatpush.msra.mxu0 0.0
    %5108 = vmatpush.msra.mxu0 0.0
    %5109 = vmatpush.msra.mxu0 0.0
    %5110 = vmatpush.msra.mxu0 0.0
    %5111 = vmatpush.msra.mxu0 0.0
    %v5112 = vand.u32 %v5030, 4294901760
    %v5113 = vsub.f32 %v5030, %v5112
    %v5114 = vand.u32 %v5113, 4294901760
    %v5115 = vsub.f32 %v5113, %v5114
    %v5116 = vand.u32 %v5115, 4294901760
    %5117 = vmatpush.msra.mxu0 %v5116
    %v5118 = vand.u32 %v5029, 4294901760
    %v5119 = vsub.f32 %v5029, %v5118
    %v5120 = vand.u32 %v5119, 4294901760
    %v5121 = vsub.f32 %v5119, %v5120
    %v5122 = vand.u32 %v5121, 4294901760
    %5123 = vmatpush.msra.mxu0 %v5122
    %v5124 = vand.u32 %v5028, 4294901760
    %v5125 = vsub.f32 %v5028, %v5124
    %v5126 = vand.u32 %v5125, 4294901760
    %v5127 = vsub.f32 %v5125, %v5126
    %v5128 = vand.u32 %v5127, 4294901760
    %5129 = vmatpush.msra.mxu0 %v5128
    %v5130 = vand.u32 %v5027, 4294901760
    %v5131 = vsub.f32 %v5027, %v5130
    %v5132 = vand.u32 %v5131, 4294901760
    %v5133 = vsub.f32 %v5131, %v5132
    %v5134 = vand.u32 %v5133, 4294901760
    %5135 = vmatpush.msra.mxu0 %v5134
    %v5136 = vand.u32 %v5026, 4294901760
    %v5137 = vsub.f32 %v5026, %v5136
    %v5138 = vand.u32 %v5137, 4294901760
    %v5139 = vsub.f32 %v5137, %v5138
    %v5140 = vand.u32 %v5139, 4294901760
    %5141 = vmatpush.msra.mxu0 %v5140
    %v5142 = vand.u32 %v5025, 4294901760
    %v5143 = vsub.f32 %v5025, %v5142
    %v5144 = vand.u32 %v5143, 4294901760
    %v5145 = vsub.f32 %v5143, %v5144
    %v5146 = vand.u32 %v5145, 4294901760
    %5147 = vmatpush.msra.mxu0 %v5146
    %v5148 = vand.u32 %v5036, 4294901760
    %5149 = vmatmul.f32.gmra.mxu0 %v5148
    %v5150 = vpop.f32.mrf.mxu0
    %v5151 = vadd.f32 %v5076, %v5150
    %v5152 = vand.u32 %v5039, 4294901760
    %5153 = vmatmul.f32.gmra.mxu0 %v5152
    %v5154 = vpop.f32.mrf.mxu0
    %v5155 = vadd.f32 %v5084, %v5154
    %v5156 = vand.u32 %v5042, 4294901760
    %5157 = vmatmul.f32.gmra.mxu0 %v5156
    %v5158 = vpop.f32.mrf.mxu0
    %v5159 = vadd.f32 %v5092, %v5158
    %v5160 = vand.u32 %v5045, 4294901760
    %5161 = vmatmul.f32.gmra.mxu0 %v5160
    %v5162 = vpop.f32.mrf.mxu0
    %v5163 = vadd.f32 %v5100, %v5162
    %5164 = vdwg.mxu0
    %5165 = vmatpush.msra.mxu0 0.0
    %5166 = vmatpush.msra.mxu0 0.0
    %5167 = vmatpush.msra.mxu0 0.0
    %5168 = vmatpush.msra.mxu0 0.0
    %5169 = vmatpush.msra.mxu0 0.0
    %5170 = vmatpush.msra.mxu0 0.0
    %5171 = vmatpush.msra.mxu0 0.0
    %5172 = vmatpush.msra.mxu0 0.0
    %5173 = vmatpush.msra.mxu0 0.0
    %5174 = vmatpush.msra.mxu0 0.0
    %v5175 = vand.u32 %v5030, 4294901760
    %v5176 = vsub.f32 %v5030, %v5175
    %5177 = vmatpush.msra.mxu0 %v5176
    %v5178 = vand.u32 %v5029, 4294901760
    %v5179 = vsub.f32 %v5029, %v5178
    %5180 = vmatpush.msra.mxu0 %v5179
    %v5181 = vand.u32 %v5028, 4294901760
    %v5182 = vsub.f32 %v5028, %v5181
    %5183 = vmatpush.msra.mxu0 %v5182
    %v5184 = vand.u32 %v5027, 4294901760
    %v5185 = vsub.f32 %v5027, %v5184
    %5186 = vmatpush.msra.mxu0 %v5185
    %v5187 = vand.u32 %v5026, 4294901760
    %v5188 = vsub.f32 %v5026, %v5187
    %5189 = vmatpush.msra.mxu0 %v5188
    %v5190 = vand.u32 %v5025, 4294901760
    %v5191 = vsub.f32 %v5025, %v5190
    %5192 = vmatpush.msra.mxu0 %v5191
    %v5193 = vand.u32 %v5036, 4294901760
    %v5194 = vsub.f32 %v5036, %v5193
    %5195 = vmatmul.f32.gmra.mxu0 %v5194
    %v5196 = vpop.f32.mrf.mxu0
    %v5197 = vadd.f32 %v5151, %v5196
    %v5198 = vand.u32 %v5039, 4294901760
    %v5199 = vsub.f32 %v5039, %v5198
    %5200 = vmatmul.f32.gmra.mxu0 %v5199
    %v5201 = vpop.f32.mrf.mxu0
    %v5202 = vadd.f32 %v5155, %v5201
    %v5203 = vand.u32 %v5042, 4294901760
    %v5204 = vsub.f32 %v5042, %v5203
    %5205 = vmatmul.f32.gmra.mxu0 %v5204
    %v5206 = vpop.f32.mrf.mxu0
    %v5207 = vadd.f32 %v5159, %v5206
    %v5208 = vand.u32 %v5045, 4294901760
    %v5209 = vsub.f32 %v5045, %v5208
    %5210 = vmatmul.f32.gmra.mxu0 %v5209
    %v5211 = vpop.f32.mrf.mxu0
    %v5212 = vadd.f32 %v5163, %v5211
    %5213 = vdwg.mxu0
    %5214 = vmatpush.msra.mxu0 0.0
    %5215 = vmatpush.msra.mxu0 0.0
    %5216 = vmatpush.msra.mxu0 0.0
    %5217 = vmatpush.msra.mxu0 0.0
    %5218 = vmatpush.msra.mxu0 0.0
    %5219 = vmatpush.msra.mxu0 0.0
    %5220 = vmatpush.msra.mxu0 0.0
    %5221 = vmatpush.msra.mxu0 0.0
    %5222 = vmatpush.msra.mxu0 0.0
    %5223 = vmatpush.msra.mxu0 0.0
    %v5224 = vand.u32 %v5030, 4294901760
    %5225 = vmatpush.msra.mxu0 %v5224
    %v5226 = vand.u32 %v5029, 4294901760
    %5227 = vmatpush.msra.mxu0 %v5226
    %v5228 = vand.u32 %v5028, 4294901760
    %5229 = vmatpush.msra.mxu0 %v5228
    %v5230 = vand.u32 %v5027, 4294901760
    %5231 = vmatpush.msra.mxu0 %v5230
    %v5232 = vand.u32 %v5026, 4294901760
    %5233 = vmatpush.msra.mxu0 %v5232
    %v5234 = vand.u32 %v5025, 4294901760
    %5235 = vmatpush.msra.mxu0 %v5234
    %v5236 = vand.u32 %v5036, 4294901760
    %v5237 = vsub.f32 %v5036, %v5236
    %v5238 = vand.u32 %v5237, 4294901760
    %5239 = vmatmul.f32.gmra.mxu0 %v5238
    %v5240 = vpop.f32.mrf.mxu0
    %v5241 = vadd.f32 %v5197, %v5240
    %v5242 = vand.u32 %v5039, 4294901760
    %v5243 = vsub.f32 %v5039, %v5242
    %v5244 = vand.u32 %v5243, 4294901760
    %5245 = vmatmul.f32.gmra.mxu0 %v5244
    %v5246 = vpop.f32.mrf.mxu0
    %v5247 = vadd.f32 %v5202, %v5246
    %v5248 = vand.u32 %v5042, 4294901760
    %v5249 = vsub.f32 %v5042, %v5248
    %v5250 = vand.u32 %v5249, 4294901760
    %5251 = vmatmul.f32.gmra.mxu0 %v5250
    %v5252 = vpop.f32.mrf.mxu0
    %v5253 = vadd.f32 %v5207, %v5252
    %v5254 = vand.u32 %v5045, 4294901760
    %v5255 = vsub.f32 %v5045, %v5254
    %v5256 = vand.u32 %v5255, 4294901760
    %5257 = vmatmul.f32.gmra.mxu0 %v5256
    %v5258 = vpop.f32.mrf.mxu0
    %v5259 = vadd.f32 %v5212, %v5258
    %5260 = vdwg.mxu0
    %5261 = vmatpush.msra.mxu0 0.0
    %5262 = vmatpush.msra.mxu0 0.0
    %5263 = vmatpush.msra.mxu0 0.0
    %5264 = vmatpush.msra.mxu0 0.0
    %5265 = vmatpush.msra.mxu0 0.0
    %5266 = vmatpush.msra.mxu0 0.0
    %5267 = vmatpush.msra.mxu0 0.0
    %5268 = vmatpush.msra.mxu0 0.0
    %5269 = vmatpush.msra.mxu0 0.0
    %5270 = vmatpush.msra.mxu0 0.0
    %v5271 = vand.u32 %v5030, 4294901760
    %v5272 = vsub.f32 %v5030, %v5271
    %v5273 = vand.u32 %v5272, 4294901760
    %5274 = vmatpush.msra.mxu0 %v5273
    %v5275 = vand.u32 %v5029, 4294901760
    %v5276 = vsub.f32 %v5029, %v5275
    %v5277 = vand.u32 %v5276, 4294901760
    %5278 = vmatpush.msra.mxu0 %v5277
    %v5279 = vand.u32 %v5028, 4294901760
    %v5280 = vsub.f32 %v5028, %v5279
    %v5281 = vand.u32 %v5280, 4294901760
    %5282 = vmatpush.msra.mxu0 %v5281
    %v5283 = vand.u32 %v5027, 4294901760
    %v5284 = vsub.f32 %v5027, %v5283
    %v5285 = vand.u32 %v5284, 4294901760
    %5286 = vmatpush.msra.mxu0 %v5285
    %v5287 = vand.u32 %v5026, 4294901760
    %v5288 = vsub.f32 %v5026, %v5287
    %v5289 = vand.u32 %v5288, 4294901760
    %5290 = vmatpush.msra.mxu0 %v5289
    %v5291 = vand.u32 %v5025, 4294901760
    %v5292 = vsub.f32 %v5025, %v5291
    %v5293 = vand.u32 %v5292, 4294901760
    %5294 = vmatpush.msra.mxu0 %v5293
    %v5295 = vand.u32 %v5036, 4294901760
    %5296 = vmatmul.f32.gmra.mxu0 %v5295
    %v5297 = vpop.f32.mrf.mxu0
    %v5298 = vadd.f32 %v5241, %v5297
    %v5299 = vand.u32 %v5039, 4294901760
    %5300 = vmatmul.f32.gmra.mxu0 %v5299
    %v5301 = vpop.f32.mrf.mxu0
    %v5302 = vadd.f32 %v5247, %v5301
    %v5303 = vand.u32 %v5042, 4294901760
    %5304 = vmatmul.f32.gmra.mxu0 %v5303
    %v5305 = vpop.f32.mrf.mxu0
    %v5306 = vadd.f32 %v5253, %v5305
    %v5307 = vand.u32 %v5045, 4294901760
    %5308 = vmatmul.f32.gmra.mxu0 %v5307
    %v5309 = vpop.f32.mrf.mxu0
    %v5310 = vadd.f32 %v5259, %v5309
    %5311 = vdwg.mxu0
    %5312 = vmatpush.msra.mxu0 0.0
    %5313 = vmatpush.msra.mxu0 0.0
    %5314 = vmatpush.msra.mxu0 0.0
    %5315 = vmatpush.msra.mxu0 0.0
    %5316 = vmatpush.msra.mxu0 0.0
    %5317 = vmatpush.msra.mxu0 0.0
    %5318 = vmatpush.msra.mxu0 0.0
    %5319 = vmatpush.msra.mxu0 0.0
    %5320 = vmatpush.msra.mxu0 0.0
    %5321 = vmatpush.msra.mxu0 0.0
    %v5322 = vand.u32 %v5030, 4294901760
    %5323 = vmatpush.msra.mxu0 %v5322
    %v5324 = vand.u32 %v5029, 4294901760
    %5325 = vmatpush.msra.mxu0 %v5324
    %v5326 = vand.u32 %v5028, 4294901760
    %5327 = vmatpush.msra.mxu0 %v5326
    %v5328 = vand.u32 %v5027, 4294901760
    %5329 = vmatpush.msra.mxu0 %v5328
    %v5330 = vand.u32 %v5026, 4294901760
    %5331 = vmatpush.msra.mxu0 %v5330
    %v5332 = vand.u32 %v5025, 4294901760
    %5333 = vmatpush.msra.mxu0 %v5332
    %v5334 = vand.u32 %v5036, 4294901760
    %5335 = vmatmul.f32.gmra.mxu0 %v5334
    %v5336 = vpop.f32.mrf.mxu0
    %v5337 = vadd.f32 %v5298, %v5336
    %v5338 = vand.u32 %v5039, 4294901760
    %5339 = vmatmul.f32.gmra.mxu0 %v5338
    %v5340 = vpop.f32.mrf.mxu0
    %v5341 = vadd.f32 %v5302, %v5340
    %v5342 = vand.u32 %v5042, 4294901760
    %5343 = vmatmul.f32.gmra.mxu0 %v5342
    %v5344 = vpop.f32.mrf.mxu0
    %v5345 = vadd.f32 %v5306, %v5344
    %v5346 = vand.u32 %v5045, 4294901760
    %5347 = vmatmul.f32.gmra.mxu0 %v5346
    %v5348 = vpop.f32.mrf.mxu0
    %v5349 = vadd.f32 %v5310, %v5348
    %5350 = vdwg.mxu0
    %5351 = vmatpush.msra.mxu0 0.0
    %5352 = vmatpush.msra.mxu0 0.0
    %5353 = vmatpush.msra.mxu0 0.0
    %5354 = vmatpush.msra.mxu0 0.0
    %5355 = vmatpush.msra.mxu0 0.0
    %5356 = vmatpush.msra.mxu0 0.0
    %5357 = vmatpush.msra.mxu0 0.0
    %5358 = vmatpush.msra.mxu0 0.0
    %5359 = vmatpush.msra.mxu0 0.0
    %5360 = vmatpush.msra.mxu0 0.0
    %5361 = vmatpush.msra.mxu0 0.0
    %5362 = vmatpush.msra.mxu0 0.0
    %v5363 = vand.u32 %v5349, 4294901760
    %5364 = vmatpush.msra.mxu0 %v5363
    %v5365 = vand.u32 %v5345, 4294901760
    %5366 = vmatpush.msra.mxu0 %v5365
    %v5367 = vand.u32 %v5341, 4294901760
    %5368 = vmatpush.msra.mxu0 %v5367
    %v5369 = vand.u32 %v5337, 4294901760
    %5370 = vmatpush.msra.mxu0 %v5369
    %v5371 = vand.u32 %v4133, 4294901760
    %v5372 = vsub.f32 %v4133, %v5371
    %v5373 = vand.u32 %v5372, 4294901760
    %v5374 = vsub.f32 %v5372, %v5373
    %v5375 = vand.u32 %v5374, 4294901760
    %5376 = vmatmul.f32.gmra.mxu0 %v5375
    %v5377 = vpop.f32.mrf.mxu0
    %v5378 = vadd.f32 %v4115, %v5377
    %v5379 = vand.u32 %v4136, 4294901760
    %v5380 = vsub.f32 %v4136, %v5379
    %v5381 = vand.u32 %v5380, 4294901760
    %v5382 = vsub.f32 %v5380, %v5381
    %v5383 = vand.u32 %v5382, 4294901760
    %5384 = vmatmul.f32.gmra.mxu0 %v5383
    %v5385 = vpop.f32.mrf.mxu0
    %v5386 = vadd.f32 %v4120, %v5385
    %v5387 = vand.u32 %v4139, 4294901760
    %v5388 = vsub.f32 %v4139, %v5387
    %v5389 = vand.u32 %v5388, 4294901760
    %v5390 = vsub.f32 %v5388, %v5389
    %v5391 = vand.u32 %v5390, 4294901760
    %5392 = vmatmul.f32.gmra.mxu0 %v5391
    %v5393 = vpop.f32.mrf.mxu0
    %v5394 = vadd.f32 %v4125, %v5393
    %v5395 = vand.u32 %v4142, 4294901760
    %v5396 = vsub.f32 %v4142, %v5395
    %v5397 = vand.u32 %v5396, 4294901760
    %v5398 = vsub.f32 %v5396, %v5397
    %v5399 = vand.u32 %v5398, 4294901760
    %5400 = vmatmul.f32.gmra.mxu0 %v5399
    %v5401 = vpop.f32.mrf.mxu0
    %v5402 = vadd.f32 %v4130, %v5401
    %5403 = vdwg.mxu0
    %5404 = vmatpush.msra.mxu0 0.0
    %5405 = vmatpush.msra.mxu0 0.0
    %5406 = vmatpush.msra.mxu0 0.0
    %5407 = vmatpush.msra.mxu0 0.0
    %5408 = vmatpush.msra.mxu0 0.0
    %5409 = vmatpush.msra.mxu0 0.0
    %5410 = vmatpush.msra.mxu0 0.0
    %5411 = vmatpush.msra.mxu0 0.0
    %5412 = vmatpush.msra.mxu0 0.0
    %5413 = vmatpush.msra.mxu0 0.0
    %5414 = vmatpush.msra.mxu0 0.0
    %5415 = vmatpush.msra.mxu0 0.0
    %v5416 = vand.u32 %v5349, 4294901760
    %v5417 = vsub.f32 %v5349, %v5416
    %v5418 = vand.u32 %v5417, 4294901760
    %v5419 = vsub.f32 %v5417, %v5418
    %v5420 = vand.u32 %v5419, 4294901760
    %5421 = vmatpush.msra.mxu0 %v5420
    %v5422 = vand.u32 %v5345, 4294901760
    %v5423 = vsub.f32 %v5345, %v5422
    %v5424 = vand.u32 %v5423, 4294901760
    %v5425 = vsub.f32 %v5423, %v5424
    %v5426 = vand.u32 %v5425, 4294901760
    %5427 = vmatpush.msra.mxu0 %v5426
    %v5428 = vand.u32 %v5341, 4294901760
    %v5429 = vsub.f32 %v5341, %v5428
    %v5430 = vand.u32 %v5429, 4294901760
    %v5431 = vsub.f32 %v5429, %v5430
    %v5432 = vand.u32 %v5431, 4294901760
    %5433 = vmatpush.msra.mxu0 %v5432
    %v5434 = vand.u32 %v5337, 4294901760
    %v5435 = vsub.f32 %v5337, %v5434
    %v5436 = vand.u32 %v5435, 4294901760
    %v5437 = vsub.f32 %v5435, %v5436
    %v5438 = vand.u32 %v5437, 4294901760
    %5439 = vmatpush.msra.mxu0 %v5438
    %v5440 = vand.u32 %v4133, 4294901760
    %5441 = vmatmul.f32.gmra.mxu0 %v5440
    %v5442 = vpop.f32.mrf.mxu0
    %v5443 = vadd.f32 %v5378, %v5442
    %v5444 = vand.u32 %v4136, 4294901760
    %5445 = vmatmul.f32.gmra.mxu0 %v5444
    %v5446 = vpop.f32.mrf.mxu0
    %v5447 = vadd.f32 %v5386, %v5446
    %v5448 = vand.u32 %v4139, 4294901760
    %5449 = vmatmul.f32.gmra.mxu0 %v5448
    %v5450 = vpop.f32.mrf.mxu0
    %v5451 = vadd.f32 %v5394, %v5450
    %v5452 = vand.u32 %v4142, 4294901760
    %5453 = vmatmul.f32.gmra.mxu0 %v5452
    %v5454 = vpop.f32.mrf.mxu0
    %v5455 = vadd.f32 %v5402, %v5454
    %5456 = vdwg.mxu0
    %5457 = vmatpush.msra.mxu0 0.0
    %5458 = vmatpush.msra.mxu0 0.0
    %5459 = vmatpush.msra.mxu0 0.0
    %5460 = vmatpush.msra.mxu0 0.0
    %5461 = vmatpush.msra.mxu0 0.0
    %5462 = vmatpush.msra.mxu0 0.0
    %5463 = vmatpush.msra.mxu0 0.0
    %5464 = vmatpush.msra.mxu0 0.0
    %5465 = vmatpush.msra.mxu0 0.0
    %5466 = vmatpush.msra.mxu0 0.0
    %5467 = vmatpush.msra.mxu0 0.0
    %5468 = vmatpush.msra.mxu0 0.0
    %v5469 = vand.u32 %v5349, 4294901760
    %v5470 = vsub.f32 %v5349, %v5469
    %5471 = vmatpush.msra.mxu0 %v5470
    %v5472 = vand.u32 %v5345, 4294901760
    %v5473 = vsub.f32 %v5345, %v5472
    %5474 = vmatpush.msra.mxu0 %v5473
    %v5475 = vand.u32 %v5341, 4294901760
    %v5476 = vsub.f32 %v5341, %v5475
    %5477 = vmatpush.msra.mxu0 %v5476
    %v5478 = vand.u32 %v5337, 4294901760
    %v5479 = vsub.f32 %v5337, %v5478
    %5480 = vmatpush.msra.mxu0 %v5479
    %v5481 = vand.u32 %v4133, 4294901760
    %v5482 = vsub.f32 %v4133, %v5481
    %5483 = vmatmul.f32.gmra.mxu0 %v5482
    %v5484 = vpop.f32.mrf.mxu0
    %v5485 = vadd.f32 %v5443, %v5484
    %v5486 = vand.u32 %v4136, 4294901760
    %v5487 = vsub.f32 %v4136, %v5486
    %5488 = vmatmul.f32.gmra.mxu0 %v5487
    %v5489 = vpop.f32.mrf.mxu0
    %v5490 = vadd.f32 %v5447, %v5489
    %v5491 = vand.u32 %v4139, 4294901760
    %v5492 = vsub.f32 %v4139, %v5491
    %5493 = vmatmul.f32.gmra.mxu0 %v5492
    %v5494 = vpop.f32.mrf.mxu0
    %v5495 = vadd.f32 %v5451, %v5494
    %v5496 = vand.u32 %v4142, 4294901760
    %v5497 = vsub.f32 %v4142, %v5496
    %5498 = vmatmul.f32.gmra.mxu0 %v5497
    %v5499 = vpop.f32.mrf.mxu0
    %v5500 = vadd.f32 %v5455, %v5499
    %5501 = vdwg.mxu0
    %5502 = vmatpush.msra.mxu0 0.0
    %5503 = vmatpush.msra.mxu0 0.0
    %5504 = vmatpush.msra.mxu0 0.0
    %5505 = vmatpush.msra.mxu0 0.0
    %5506 = vmatpush.msra.mxu0 0.0
    %5507 = vmatpush.msra.mxu0 0.0
    %5508 = vmatpush.msra.mxu0 0.0
    %5509 = vmatpush.msra.mxu0 0.0
    %5510 = vmatpush.msra.mxu0 0.0
    %5511 = vmatpush.msra.mxu0 0.0
    %5512 = vmatpush.msra.mxu0 0.0
    %5513 = vmatpush.msra.mxu0 0.0
    %v5514 = vand.u32 %v5349, 4294901760
    %5515 = vmatpush.msra.mxu0 %v5514
    %v5516 = vand.u32 %v5345, 4294901760
    %5517 = vmatpush.msra.mxu0 %v5516
    %v5518 = vand.u32 %v5341, 4294901760
    %5519 = vmatpush.msra.mxu0 %v5518
    %v5520 = vand.u32 %v5337, 4294901760
    %5521 = vmatpush.msra.mxu0 %v5520
    %v5522 = vand.u32 %v4133, 4294901760
    %v5523 = vsub.f32 %v4133, %v5522
    %v5524 = vand.u32 %v5523, 4294901760
    %5525 = vmatmul.f32.gmra.mxu0 %v5524
    %v5526 = vpop.f32.mrf.mxu0
    %v5527 = vadd.f32 %v5485, %v5526
    %v5528 = vand.u32 %v4136, 4294901760
    %v5529 = vsub.f32 %v4136, %v5528
    %v5530 = vand.u32 %v5529, 4294901760
    %5531 = vmatmul.f32.gmra.mxu0 %v5530
    %v5532 = vpop.f32.mrf.mxu0
    %v5533 = vadd.f32 %v5490, %v5532
    %v5534 = vand.u32 %v4139, 4294901760
    %v5535 = vsub.f32 %v4139, %v5534
    %v5536 = vand.u32 %v5535, 4294901760
    %5537 = vmatmul.f32.gmra.mxu0 %v5536
    %v5538 = vpop.f32.mrf.mxu0
    %v5539 = vadd.f32 %v5495, %v5538
    %v5540 = vand.u32 %v4142, 4294901760
    %v5541 = vsub.f32 %v4142, %v5540
    %v5542 = vand.u32 %v5541, 4294901760
    %5543 = vmatmul.f32.gmra.mxu0 %v5542
    %v5544 = vpop.f32.mrf.mxu0
    %v5545 = vadd.f32 %v5500, %v5544
    %5546 = vdwg.mxu0
    %5547 = vmatpush.msra.mxu0 0.0
    %5548 = vmatpush.msra.mxu0 0.0
    %5549 = vmatpush.msra.mxu0 0.0
    %5550 = vmatpush.msra.mxu0 0.0
    %5551 = vmatpush.msra.mxu0 0.0
    %5552 = vmatpush.msra.mxu0 0.0
    %5553 = vmatpush.msra.mxu0 0.0
    %5554 = vmatpush.msra.mxu0 0.0
    %5555 = vmatpush.msra.mxu0 0.0
    %5556 = vmatpush.msra.mxu0 0.0
    %5557 = vmatpush.msra.mxu0 0.0
    %5558 = vmatpush.msra.mxu0 0.0
    %v5559 = vand.u32 %v5349, 4294901760
    %v5560 = vsub.f32 %v5349, %v5559
    %v5561 = vand.u32 %v5560, 4294901760
    %5562 = vmatpush.msra.mxu0 %v5561
    %v5563 = vand.u32 %v5345, 4294901760
    %v5564 = vsub.f32 %v5345, %v5563
    %v5565 = vand.u32 %v5564, 4294901760
    %5566 = vmatpush.msra.mxu0 %v5565
    %v5567 = vand.u32 %v5341, 4294901760
    %v5568 = vsub.f32 %v5341, %v5567
    %v5569 = vand.u32 %v5568, 4294901760
    %5570 = vmatpush.msra.mxu0 %v5569
    %v5571 = vand.u32 %v5337, 4294901760
    %v5572 = vsub.f32 %v5337, %v5571
    %v5573 = vand.u32 %v5572, 4294901760
    %5574 = vmatpush.msra.mxu0 %v5573
    %v5575 = vand.u32 %v4133, 4294901760
    %5576 = vmatmul.f32.gmra.mxu0 %v5575
    %v5577 = vpop.f32.mrf.mxu0
    %v5578 = vadd.f32 %v5527, %v5577
    %v5579 = vand.u32 %v4136, 4294901760
    %5580 = vmatmul.f32.gmra.mxu0 %v5579
    %v5581 = vpop.f32.mrf.mxu0
    %v5582 = vadd.f32 %v5533, %v5581
    %v5583 = vand.u32 %v4139, 4294901760
    %5584 = vmatmul.f32.gmra.mxu0 %v5583
    %v5585 = vpop.f32.mrf.mxu0
    %v5586 = vadd.f32 %v5539, %v5585
    %v5587 = vand.u32 %v4142, 4294901760
    %5588 = vmatmul.f32.gmra.mxu0 %v5587
    %v5589 = vpop.f32.mrf.mxu0
    %v5590 = vadd.f32 %v5545, %v5589
    %5591 = vdwg.mxu0
    %5592 = vmatpush.msra.mxu0 0.0
    %5593 = vmatpush.msra.mxu0 0.0
    %5594 = vmatpush.msra.mxu0 0.0
    %5595 = vmatpush.msra.mxu0 0.0
    %5596 = vmatpush.msra.mxu0 0.0
    %5597 = vmatpush.msra.mxu0 0.0
    %5598 = vmatpush.msra.mxu0 0.0
    %5599 = vmatpush.msra.mxu0 0.0
    %5600 = vmatpush.msra.mxu0 0.0
    %5601 = vmatpush.msra.mxu0 0.0
    %5602 = vmatpush.msra.mxu0 0.0
    %5603 = vmatpush.msra.mxu0 0.0
    %v5604 = vand.u32 %v5349, 4294901760
    %5605 = vmatpush.msra.mxu0 %v5604
    %v5606 = vand.u32 %v5345, 4294901760
    %5607 = vmatpush.msra.mxu0 %v5606
    %v5608 = vand.u32 %v5341, 4294901760
    %5609 = vmatpush.msra.mxu0 %v5608
    %v5610 = vand.u32 %v5337, 4294901760
    %5611 = vmatpush.msra.mxu0 %v5610
    %v5612 = vand.u32 %v4133, 4294901760
    %5613 = vmatmul.f32.gmra.mxu0 %v5612
    %v5614 = vpop.f32.mrf.mxu0
    %v5615 = vadd.f32 %v5578, %v5614
    %v5616 = vand.u32 %v4136, 4294901760
    %5617 = vmatmul.f32.gmra.mxu0 %v5616
    %v5618 = vpop.f32.mrf.mxu0
    %v5619 = vadd.f32 %v5582, %v5618
    %v5620 = vand.u32 %v4139, 4294901760
    %5621 = vmatmul.f32.gmra.mxu0 %v5620
    %v5622 = vpop.f32.mrf.mxu0
    %v5623 = vadd.f32 %v5586, %v5622
    %v5624 = vand.u32 %v4142, 4294901760
    %5625 = vmatmul.f32.gmra.mxu0 %v5624
    %v5626 = vpop.f32.mrf.mxu0
    %v5627 = vadd.f32 %v5590, %v5626
    %5628 = vdwg.mxu0
    %v5629 = vld [vmem:[%s73] sm:$0xff]
    %v5630 = vld [vmem:[%s73 + $0x8] sm:$0xff]
    %v5631 = vld [vmem:[%s73 + $0x10] sm:$0xff]
    %v5632 = vld [vmem:[%s73 + $0x18] sm:$0xff]
    %v5633 = vld [vmem:[%s73 + $0x20] sm:$0xff]
    %v5634 = vld [vmem:[%s73 + $0x28] sm:$0xff]
    %5635 = vmatpush.msra.mxu0 0.0
    %5636 = vmatpush.msra.mxu0 0.0
    %5637 = vmatpush.msra.mxu0 0.0
    %5638 = vmatpush.msra.mxu0 0.0
    %5639 = vmatpush.msra.mxu0 0.0
    %5640 = vmatpush.msra.mxu0 0.0
    %5641 = vmatpush.msra.mxu0 0.0
    %5642 = vmatpush.msra.mxu0 0.0
    %5643 = vmatpush.msra.mxu0 0.0
    %5644 = vmatpush.msra.mxu0 0.0
    %v5645 = vand.u32 %v5634, 4294901760
    %5646 = vmatpush.msra.mxu0 %v5645
    %v5647 = vand.u32 %v5633, 4294901760
    %5648 = vmatpush.msra.mxu0 %v5647
    %v5649 = vand.u32 %v5632, 4294901760
    %5650 = vmatpush.msra.mxu0 %v5649
    %v5651 = vand.u32 %v5631, 4294901760
    %5652 = vmatpush.msra.mxu0 %v5651
    %v5653 = vand.u32 %v5630, 4294901760
    %5654 = vmatpush.msra.mxu0 %v5653
    %v5655 = vand.u32 %v5629, 4294901760
    %5656 = vmatpush.msra.mxu0 %v5655
    %v5657 = vand.u32 %v5036, 4294901760
    %v5658 = vsub.f32 %v5036, %v5657
    %v5659 = vand.u32 %v5658, 4294901760
    %v5660 = vsub.f32 %v5658, %v5659
    %v5661 = vand.u32 %v5660, 4294901760
    %5662 = vmatmul.f32.gmra.mxu0 %v5661
    %v5663 = vpop.f32.mrf.mxu0
    %v5664 = vadd.f32 0.0, %v5663
    %v5665 = vand.u32 %v5039, 4294901760
    %v5666 = vsub.f32 %v5039, %v5665
    %v5667 = vand.u32 %v5666, 4294901760
    %v5668 = vsub.f32 %v5666, %v5667
    %v5669 = vand.u32 %v5668, 4294901760
    %5670 = vmatmul.f32.gmra.mxu0 %v5669
    %v5671 = vpop.f32.mrf.mxu0
    %v5672 = vadd.f32 0.0, %v5671
    %v5673 = vand.u32 %v5042, 4294901760
    %v5674 = vsub.f32 %v5042, %v5673
    %v5675 = vand.u32 %v5674, 4294901760
    %v5676 = vsub.f32 %v5674, %v5675
    %v5677 = vand.u32 %v5676, 4294901760
    %5678 = vmatmul.f32.gmra.mxu0 %v5677
    %v5679 = vpop.f32.mrf.mxu0
    %v5680 = vadd.f32 0.0, %v5679
    %v5681 = vand.u32 %v5045, 4294901760
    %v5682 = vsub.f32 %v5045, %v5681
    %v5683 = vand.u32 %v5682, 4294901760
    %v5684 = vsub.f32 %v5682, %v5683
    %v5685 = vand.u32 %v5684, 4294901760
    %5686 = vmatmul.f32.gmra.mxu0 %v5685
    %v5687 = vpop.f32.mrf.mxu0
    %v5688 = vadd.f32 0.0, %v5687
    %5689 = vdwg.mxu0
    %5690 = vmatpush.msra.mxu0 0.0
    %5691 = vmatpush.msra.mxu0 0.0
    %5692 = vmatpush.msra.mxu0 0.0
    %5693 = vmatpush.msra.mxu0 0.0
    %5694 = vmatpush.msra.mxu0 0.0
    %5695 = vmatpush.msra.mxu0 0.0
    %5696 = vmatpush.msra.mxu0 0.0
    %5697 = vmatpush.msra.mxu0 0.0
    %5698 = vmatpush.msra.mxu0 0.0
    %5699 = vmatpush.msra.mxu0 0.0
    %v5700 = vand.u32 %v5634, 4294901760
    %v5701 = vsub.f32 %v5634, %v5700
    %v5702 = vand.u32 %v5701, 4294901760
    %v5703 = vsub.f32 %v5701, %v5702
    %v5704 = vand.u32 %v5703, 4294901760
    %5705 = vmatpush.msra.mxu0 %v5704
    %v5706 = vand.u32 %v5633, 4294901760
    %v5707 = vsub.f32 %v5633, %v5706
    %v5708 = vand.u32 %v5707, 4294901760
    %v5709 = vsub.f32 %v5707, %v5708
    %v5710 = vand.u32 %v5709, 4294901760
    %5711 = vmatpush.msra.mxu0 %v5710
    %v5712 = vand.u32 %v5632, 4294901760
    %v5713 = vsub.f32 %v5632, %v5712
    %v5714 = vand.u32 %v5713, 4294901760
    %v5715 = vsub.f32 %v5713, %v5714
    %v5716 = vand.u32 %v5715, 4294901760
    %5717 = vmatpush.msra.mxu0 %v5716
    %v5718 = vand.u32 %v5631, 4294901760
    %v5719 = vsub.f32 %v5631, %v5718
    %v5720 = vand.u32 %v5719, 4294901760
    %v5721 = vsub.f32 %v5719, %v5720
    %v5722 = vand.u32 %v5721, 4294901760
    %5723 = vmatpush.msra.mxu0 %v5722
    %v5724 = vand.u32 %v5630, 4294901760
    %v5725 = vsub.f32 %v5630, %v5724
    %v5726 = vand.u32 %v5725, 4294901760
    %v5727 = vsub.f32 %v5725, %v5726
    %v5728 = vand.u32 %v5727, 4294901760
    %5729 = vmatpush.msra.mxu0 %v5728
    %v5730 = vand.u32 %v5629, 4294901760
    %v5731 = vsub.f32 %v5629, %v5730
    %v5732 = vand.u32 %v5731, 4294901760
    %v5733 = vsub.f32 %v5731, %v5732
    %v5734 = vand.u32 %v5733, 4294901760
    %5735 = vmatpush.msra.mxu0 %v5734
    %v5736 = vand.u32 %v5036, 4294901760
    %5737 = vmatmul.f32.gmra.mxu0 %v5736
    %v5738 = vpop.f32.mrf.mxu0
    %v5739 = vadd.f32 %v5664, %v5738
    %v5740 = vand.u32 %v5039, 4294901760
    %5741 = vmatmul.f32.gmra.mxu0 %v5740
    %v5742 = vpop.f32.mrf.mxu0
    %v5743 = vadd.f32 %v5672, %v5742
    %v5744 = vand.u32 %v5042, 4294901760
    %5745 = vmatmul.f32.gmra.mxu0 %v5744
    %v5746 = vpop.f32.mrf.mxu0
    %v5747 = vadd.f32 %v5680, %v5746
    %v5748 = vand.u32 %v5045, 4294901760
    %5749 = vmatmul.f32.gmra.mxu0 %v5748
    %v5750 = vpop.f32.mrf.mxu0
    %v5751 = vadd.f32 %v5688, %v5750
    %5752 = vdwg.mxu0
    %5753 = vmatpush.msra.mxu0 0.0
    %5754 = vmatpush.msra.mxu0 0.0
    %5755 = vmatpush.msra.mxu0 0.0
    %5756 = vmatpush.msra.mxu0 0.0
    %5757 = vmatpush.msra.mxu0 0.0
    %5758 = vmatpush.msra.mxu0 0.0
    %5759 = vmatpush.msra.mxu0 0.0
    %5760 = vmatpush.msra.mxu0 0.0
    %5761 = vmatpush.msra.mxu0 0.0
    %5762 = vmatpush.msra.mxu0 0.0
    %v5763 = vand.u32 %v5634, 4294901760
    %v5764 = vsub.f32 %v5634, %v5763
    %5765 = vmatpush.msra.mxu0 %v5764
    %v5766 = vand.u32 %v5633, 4294901760
    %v5767 = vsub.f32 %v5633, %v5766
    %5768 = vmatpush.msra.mxu0 %v5767
    %v5769 = vand.u32 %v5632, 4294901760
    %v5770 = vsub.f32 %v5632, %v5769
    %5771 = vmatpush.msra.mxu0 %v5770
    %v5772 = vand.u32 %v5631, 4294901760
    %v5773 = vsub.f32 %v5631, %v5772
    %5774 = vmatpush.msra.mxu0 %v5773
    %v5775 = vand.u32 %v5630, 4294901760
    %v5776 = vsub.f32 %v5630, %v5775
    %5777 = vmatpush.msra.mxu0 %v5776
    %v5778 = vand.u32 %v5629, 4294901760
    %v5779 = vsub.f32 %v5629, %v5778
    %5780 = vmatpush.msra.mxu0 %v5779
    %v5781 = vand.u32 %v5036, 4294901760
    %v5782 = vsub.f32 %v5036, %v5781
    %5783 = vmatmul.f32.gmra.mxu0 %v5782
    %v5784 = vpop.f32.mrf.mxu0
    %v5785 = vadd.f32 %v5739, %v5784
    %v5786 = vand.u32 %v5039, 4294901760
    %v5787 = vsub.f32 %v5039, %v5786
    %5788 = vmatmul.f32.gmra.mxu0 %v5787
    %v5789 = vpop.f32.mrf.mxu0
    %v5790 = vadd.f32 %v5743, %v5789
    %v5791 = vand.u32 %v5042, 4294901760
    %v5792 = vsub.f32 %v5042, %v5791
    %5793 = vmatmul.f32.gmra.mxu0 %v5792
    %v5794 = vpop.f32.mrf.mxu0
    %v5795 = vadd.f32 %v5747, %v5794
    %v5796 = vand.u32 %v5045, 4294901760
    %v5797 = vsub.f32 %v5045, %v5796
    %5798 = vmatmul.f32.gmra.mxu0 %v5797
    %v5799 = vpop.f32.mrf.mxu0
    %v5800 = vadd.f32 %v5751, %v5799
    %5801 = vdwg.mxu0
    %5802 = vmatpush.msra.mxu0 0.0
    %5803 = vmatpush.msra.mxu0 0.0
    %5804 = vmatpush.msra.mxu0 0.0
    %5805 = vmatpush.msra.mxu0 0.0
    %5806 = vmatpush.msra.mxu0 0.0
    %5807 = vmatpush.msra.mxu0 0.0
    %5808 = vmatpush.msra.mxu0 0.0
    %5809 = vmatpush.msra.mxu0 0.0
    %5810 = vmatpush.msra.mxu0 0.0
    %5811 = vmatpush.msra.mxu0 0.0
    %v5812 = vand.u32 %v5634, 4294901760
    %5813 = vmatpush.msra.mxu0 %v5812
    %v5814 = vand.u32 %v5633, 4294901760
    %5815 = vmatpush.msra.mxu0 %v5814
    %v5816 = vand.u32 %v5632, 4294901760
    %5817 = vmatpush.msra.mxu0 %v5816
    %v5818 = vand.u32 %v5631, 4294901760
    %5819 = vmatpush.msra.mxu0 %v5818
    %v5820 = vand.u32 %v5630, 4294901760
    %5821 = vmatpush.msra.mxu0 %v5820
    %v5822 = vand.u32 %v5629, 4294901760
    %5823 = vmatpush.msra.mxu0 %v5822
    %v5824 = vand.u32 %v5036, 4294901760
    %v5825 = vsub.f32 %v5036, %v5824
    %v5826 = vand.u32 %v5825, 4294901760
    %5827 = vmatmul.f32.gmra.mxu0 %v5826
    %v5828 = vpop.f32.mrf.mxu0
    %v5829 = vadd.f32 %v5785, %v5828
    %v5830 = vand.u32 %v5039, 4294901760
    %v5831 = vsub.f32 %v5039, %v5830
    %v5832 = vand.u32 %v5831, 4294901760
    %5833 = vmatmul.f32.gmra.mxu0 %v5832
    %v5834 = vpop.f32.mrf.mxu0
    %v5835 = vadd.f32 %v5790, %v5834
    %v5836 = vand.u32 %v5042, 4294901760
    %v5837 = vsub.f32 %v5042, %v5836
    %v5838 = vand.u32 %v5837, 4294901760
    %5839 = vmatmul.f32.gmra.mxu0 %v5838
    %v5840 = vpop.f32.mrf.mxu0
    %v5841 = vadd.f32 %v5795, %v5840
    %v5842 = vand.u32 %v5045, 4294901760
    %v5843 = vsub.f32 %v5045, %v5842
    %v5844 = vand.u32 %v5843, 4294901760
    %5845 = vmatmul.f32.gmra.mxu0 %v5844
    %v5846 = vpop.f32.mrf.mxu0
    %v5847 = vadd.f32 %v5800, %v5846
    %5848 = vdwg.mxu0
    %5849 = vmatpush.msra.mxu0 0.0
    %5850 = vmatpush.msra.mxu0 0.0
    %5851 = vmatpush.msra.mxu0 0.0
    %5852 = vmatpush.msra.mxu0 0.0
    %5853 = vmatpush.msra.mxu0 0.0
    %5854 = vmatpush.msra.mxu0 0.0
    %5855 = vmatpush.msra.mxu0 0.0
    %5856 = vmatpush.msra.mxu0 0.0
    %5857 = vmatpush.msra.mxu0 0.0
    %5858 = vmatpush.msra.mxu0 0.0
    %v5859 = vand.u32 %v5634, 4294901760
    %v5860 = vsub.f32 %v5634, %v5859
    %v5861 = vand.u32 %v5860, 4294901760
    %5862 = vmatpush.msra.mxu0 %v5861
    %v5863 = vand.u32 %v5633, 4294901760
    %v5864 = vsub.f32 %v5633, %v5863
    %v5865 = vand.u32 %v5864, 4294901760
    %5866 = vmatpush.msra.mxu0 %v5865
    %v5867 = vand.u32 %v5632, 4294901760
    %v5868 = vsub.f32 %v5632, %v5867
    %v5869 = vand.u32 %v5868, 4294901760
    %5870 = vmatpush.msra.mxu0 %v5869
    %v5871 = vand.u32 %v5631, 4294901760
    %v5872 = vsub.f32 %v5631, %v5871
    %v5873 = vand.u32 %v5872, 4294901760
    %5874 = vmatpush.msra.mxu0 %v5873
    %v5875 = vand.u32 %v5630, 4294901760
    %v5876 = vsub.f32 %v5630, %v5875
    %v5877 = vand.u32 %v5876, 4294901760
    %5878 = vmatpush.msra.mxu0 %v5877
    %v5879 = vand.u32 %v5629, 4294901760
    %v5880 = vsub.f32 %v5629, %v5879
    %v5881 = vand.u32 %v5880, 4294901760
    %5882 = vmatpush.msra.mxu0 %v5881
    %v5883 = vand.u32 %v5036, 4294901760
    %5884 = vmatmul.f32.gmra.mxu0 %v5883
    %v5885 = vpop.f32.mrf.mxu0
    %v5886 = vadd.f32 %v5829, %v5885
    %v5887 = vand.u32 %v5039, 4294901760
    %5888 = vmatmul.f32.gmra.mxu0 %v5887
    %v5889 = vpop.f32.mrf.mxu0
    %v5890 = vadd.f32 %v5835, %v5889
    %v5891 = vand.u32 %v5042, 4294901760
    %5892 = vmatmul.f32.gmra.mxu0 %v5891
    %v5893 = vpop.f32.mrf.mxu0
    %v5894 = vadd.f32 %v5841, %v5893
    %v5895 = vand.u32 %v5045, 4294901760
    %5896 = vmatmul.f32.gmra.mxu0 %v5895
    %v5897 = vpop.f32.mrf.mxu0
    %v5898 = vadd.f32 %v5847, %v5897
    %5899 = vdwg.mxu0
    %5900 = vmatpush.msra.mxu0 0.0
    %5901 = vmatpush.msra.mxu0 0.0
    %5902 = vmatpush.msra.mxu0 0.0
    %5903 = vmatpush.msra.mxu0 0.0
    %5904 = vmatpush.msra.mxu0 0.0
    %5905 = vmatpush.msra.mxu0 0.0
    %5906 = vmatpush.msra.mxu0 0.0
    %5907 = vmatpush.msra.mxu0 0.0
    %5908 = vmatpush.msra.mxu0 0.0
    %5909 = vmatpush.msra.mxu0 0.0
    %v5910 = vand.u32 %v5634, 4294901760
    %5911 = vmatpush.msra.mxu0 %v5910
    %v5912 = vand.u32 %v5633, 4294901760
    %5913 = vmatpush.msra.mxu0 %v5912
    %v5914 = vand.u32 %v5632, 4294901760
    %5915 = vmatpush.msra.mxu0 %v5914
    %v5916 = vand.u32 %v5631, 4294901760
    %5917 = vmatpush.msra.mxu0 %v5916
    %v5918 = vand.u32 %v5630, 4294901760
    %5919 = vmatpush.msra.mxu0 %v5918
    %v5920 = vand.u32 %v5629, 4294901760
    %5921 = vmatpush.msra.mxu0 %v5920
    %v5922 = vand.u32 %v5036, 4294901760
    %5923 = vmatmul.f32.gmra.mxu0 %v5922
    %v5924 = vpop.f32.mrf.mxu0
    %v5925 = vadd.f32 %v5886, %v5924
    %v5926 = vand.u32 %v5039, 4294901760
    %5927 = vmatmul.f32.gmra.mxu0 %v5926
    %v5928 = vpop.f32.mrf.mxu0
    %v5929 = vadd.f32 %v5890, %v5928
    %v5930 = vand.u32 %v5042, 4294901760
    %5931 = vmatmul.f32.gmra.mxu0 %v5930
    %v5932 = vpop.f32.mrf.mxu0
    %v5933 = vadd.f32 %v5894, %v5932
    %v5934 = vand.u32 %v5045, 4294901760
    %5935 = vmatmul.f32.gmra.mxu0 %v5934
    %v5936 = vpop.f32.mrf.mxu0
    %v5937 = vadd.f32 %v5898, %v5936
    %5938 = vdwg.mxu0
    %5939 = vmatpush.msra.mxu0 0.0
    %5940 = vmatpush.msra.mxu0 0.0
    %5941 = vmatpush.msra.mxu0 0.0
    %5942 = vmatpush.msra.mxu0 0.0
    %5943 = vmatpush.msra.mxu0 0.0
    %5944 = vmatpush.msra.mxu0 0.0
    %5945 = vmatpush.msra.mxu0 0.0
    %5946 = vmatpush.msra.mxu0 0.0
    %5947 = vmatpush.msra.mxu0 0.0
    %5948 = vmatpush.msra.mxu0 0.0
    %5949 = vmatpush.msra.mxu0 0.0
    %5950 = vmatpush.msra.mxu0 0.0
    %v5951 = vand.u32 %v5937, 4294901760
    %5952 = vmatpush.msra.mxu0 %v5951
    %v5953 = vand.u32 %v5933, 4294901760
    %5954 = vmatpush.msra.mxu0 %v5953
    %v5955 = vand.u32 %v5929, 4294901760
    %5956 = vmatpush.msra.mxu0 %v5955
    %v5957 = vand.u32 %v5925, 4294901760
    %5958 = vmatpush.msra.mxu0 %v5957
    %v5959 = vand.u32 %v4705, 4294901760
    %v5960 = vsub.f32 %v4705, %v5959
    %v5961 = vand.u32 %v5960, 4294901760
    %v5962 = vsub.f32 %v5960, %v5961
    %v5963 = vand.u32 %v5962, 4294901760
    %5964 = vmatmul.f32.gmra.mxu0 %v5963
    %v5965 = vpop.f32.mrf.mxu0
    %v5966 = vadd.f32 %v4687, %v5965
    %v5967 = vand.u32 %v4708, 4294901760
    %v5968 = vsub.f32 %v4708, %v5967
    %v5969 = vand.u32 %v5968, 4294901760
    %v5970 = vsub.f32 %v5968, %v5969
    %v5971 = vand.u32 %v5970, 4294901760
    %5972 = vmatmul.f32.gmra.mxu0 %v5971
    %v5973 = vpop.f32.mrf.mxu0
    %v5974 = vadd.f32 %v4692, %v5973
    %v5975 = vand.u32 %v4711, 4294901760
    %v5976 = vsub.f32 %v4711, %v5975
    %v5977 = vand.u32 %v5976, 4294901760
    %v5978 = vsub.f32 %v5976, %v5977
    %v5979 = vand.u32 %v5978, 4294901760
    %5980 = vmatmul.f32.gmra.mxu0 %v5979
    %v5981 = vpop.f32.mrf.mxu0
    %v5982 = vadd.f32 %v4697, %v5981
    %v5983 = vand.u32 %v4714, 4294901760
    %v5984 = vsub.f32 %v4714, %v5983
    %v5985 = vand.u32 %v5984, 4294901760
    %v5986 = vsub.f32 %v5984, %v5985
    %v5987 = vand.u32 %v5986, 4294901760
    %5988 = vmatmul.f32.gmra.mxu0 %v5987
    %v5989 = vpop.f32.mrf.mxu0
    %v5990 = vadd.f32 %v4702, %v5989
    %5991 = vdwg.mxu0
    %5992 = vmatpush.msra.mxu0 0.0
    %5993 = vmatpush.msra.mxu0 0.0
    %5994 = vmatpush.msra.mxu0 0.0
    %5995 = vmatpush.msra.mxu0 0.0
    %5996 = vmatpush.msra.mxu0 0.0
    %5997 = vmatpush.msra.mxu0 0.0
    %5998 = vmatpush.msra.mxu0 0.0
    %5999 = vmatpush.msra.mxu0 0.0
    %6000 = vmatpush.msra.mxu0 0.0
    %6001 = vmatpush.msra.mxu0 0.0
    %6002 = vmatpush.msra.mxu0 0.0
    %6003 = vmatpush.msra.mxu0 0.0
    %v6004 = vand.u32 %v5937, 4294901760
    %v6005 = vsub.f32 %v5937, %v6004
    %v6006 = vand.u32 %v6005, 4294901760
    %v6007 = vsub.f32 %v6005, %v6006
    %v6008 = vand.u32 %v6007, 4294901760
    %6009 = vmatpush.msra.mxu0 %v6008
    %v6010 = vand.u32 %v5933, 4294901760
    %v6011 = vsub.f32 %v5933, %v6010
    %v6012 = vand.u32 %v6011, 4294901760
    %v6013 = vsub.f32 %v6011, %v6012
    %v6014 = vand.u32 %v6013, 4294901760
    %6015 = vmatpush.msra.mxu0 %v6014
    %v6016 = vand.u32 %v5929, 4294901760
    %v6017 = vsub.f32 %v5929, %v6016
    %v6018 = vand.u32 %v6017, 4294901760
    %v6019 = vsub.f32 %v6017, %v6018
    %v6020 = vand.u32 %v6019, 4294901760
    %6021 = vmatpush.msra.mxu0 %v6020
    %v6022 = vand.u32 %v5925, 4294901760
    %v6023 = vsub.f32 %v5925, %v6022
    %v6024 = vand.u32 %v6023, 4294901760
    %v6025 = vsub.f32 %v6023, %v6024
    %v6026 = vand.u32 %v6025, 4294901760
    %6027 = vmatpush.msra.mxu0 %v6026
    %v6028 = vand.u32 %v4705, 4294901760
    %6029 = vmatmul.f32.gmra.mxu0 %v6028
    %v6030 = vpop.f32.mrf.mxu0
    %v6031 = vadd.f32 %v5966, %v6030
    %v6032 = vand.u32 %v4708, 4294901760
    %6033 = vmatmul.f32.gmra.mxu0 %v6032
    %v6034 = vpop.f32.mrf.mxu0
    %v6035 = vadd.f32 %v5974, %v6034
    %v6036 = vand.u32 %v4711, 4294901760
    %6037 = vmatmul.f32.gmra.mxu0 %v6036
    %v6038 = vpop.f32.mrf.mxu0
    %v6039 = vadd.f32 %v5982, %v6038
    %v6040 = vand.u32 %v4714, 4294901760
    %6041 = vmatmul.f32.gmra.mxu0 %v6040
    %v6042 = vpop.f32.mrf.mxu0
    %v6043 = vadd.f32 %v5990, %v6042
    %6044 = vdwg.mxu0
    %6045 = vmatpush.msra.mxu0 0.0
    %6046 = vmatpush.msra.mxu0 0.0
    %6047 = vmatpush.msra.mxu0 0.0
    %6048 = vmatpush.msra.mxu0 0.0
    %6049 = vmatpush.msra.mxu0 0.0
    %6050 = vmatpush.msra.mxu0 0.0
    %6051 = vmatpush.msra.mxu0 0.0
    %6052 = vmatpush.msra.mxu0 0.0
    %6053 = vmatpush.msra.mxu0 0.0
    %6054 = vmatpush.msra.mxu0 0.0
    %6055 = vmatpush.msra.mxu0 0.0
    %6056 = vmatpush.msra.mxu0 0.0
    %v6057 = vand.u32 %v5937, 4294901760
    %v6058 = vsub.f32 %v5937, %v6057
    %6059 = vmatpush.msra.mxu0 %v6058
    %v6060 = vand.u32 %v5933, 4294901760
    %v6061 = vsub.f32 %v5933, %v6060
    %6062 = vmatpush.msra.mxu0 %v6061
    %v6063 = vand.u32 %v5929, 4294901760
    %v6064 = vsub.f32 %v5929, %v6063
    %6065 = vmatpush.msra.mxu0 %v6064
    %v6066 = vand.u32 %v5925, 4294901760
    %v6067 = vsub.f32 %v5925, %v6066
    %6068 = vmatpush.msra.mxu0 %v6067
    %v6069 = vand.u32 %v4705, 4294901760
    %v6070 = vsub.f32 %v4705, %v6069
    %6071 = vmatmul.f32.gmra.mxu0 %v6070
    %v6072 = vpop.f32.mrf.mxu0
    %v6073 = vadd.f32 %v6031, %v6072
    %v6074 = vand.u32 %v4708, 4294901760
    %v6075 = vsub.f32 %v4708, %v6074
    %6076 = vmatmul.f32.gmra.mxu0 %v6075
    %v6077 = vpop.f32.mrf.mxu0
    %v6078 = vadd.f32 %v6035, %v6077
    %v6079 = vand.u32 %v4711, 4294901760
    %v6080 = vsub.f32 %v4711, %v6079
    %6081 = vmatmul.f32.gmra.mxu0 %v6080
    %v6082 = vpop.f32.mrf.mxu0
    %v6083 = vadd.f32 %v6039, %v6082
    %v6084 = vand.u32 %v4714, 4294901760
    %v6085 = vsub.f32 %v4714, %v6084
    %6086 = vmatmul.f32.gmra.mxu0 %v6085
    %v6087 = vpop.f32.mrf.mxu0
    %v6088 = vadd.f32 %v6043, %v6087
    %6089 = vdwg.mxu0
    %6090 = vmatpush.msra.mxu0 0.0
    %6091 = vmatpush.msra.mxu0 0.0
    %6092 = vmatpush.msra.mxu0 0.0
    %6093 = vmatpush.msra.mxu0 0.0
    %6094 = vmatpush.msra.mxu0 0.0
    %6095 = vmatpush.msra.mxu0 0.0
    %6096 = vmatpush.msra.mxu0 0.0
    %6097 = vmatpush.msra.mxu0 0.0
    %6098 = vmatpush.msra.mxu0 0.0
    %6099 = vmatpush.msra.mxu0 0.0
    %6100 = vmatpush.msra.mxu0 0.0
    %6101 = vmatpush.msra.mxu0 0.0
    %v6102 = vand.u32 %v5937, 4294901760
    %6103 = vmatpush.msra.mxu0 %v6102
    %v6104 = vand.u32 %v5933, 4294901760
    %6105 = vmatpush.msra.mxu0 %v6104
    %v6106 = vand.u32 %v5929, 4294901760
    %6107 = vmatpush.msra.mxu0 %v6106
    %v6108 = vand.u32 %v5925, 4294901760
    %6109 = vmatpush.msra.mxu0 %v6108
    %v6110 = vand.u32 %v4705, 4294901760
    %v6111 = vsub.f32 %v4705, %v6110
    %v6112 = vand.u32 %v6111, 4294901760
    %6113 = vmatmul.f32.gmra.mxu0 %v6112
    %v6114 = vpop.f32.mrf.mxu0
    %v6115 = vadd.f32 %v6073, %v6114
    %v6116 = vand.u32 %v4708, 4294901760
    %v6117 = vsub.f32 %v4708, %v6116
    %v6118 = vand.u32 %v6117, 4294901760
    %6119 = vmatmul.f32.gmra.mxu0 %v6118
    %v6120 = vpop.f32.mrf.mxu0
    %v6121 = vadd.f32 %v6078, %v6120
    %v6122 = vand.u32 %v4711, 4294901760
    %v6123 = vsub.f32 %v4711, %v6122
    %v6124 = vand.u32 %v6123, 4294901760
    %6125 = vmatmul.f32.gmra.mxu0 %v6124
    %v6126 = vpop.f32.mrf.mxu0
    %v6127 = vadd.f32 %v6083, %v6126
    %v6128 = vand.u32 %v4714, 4294901760
    %v6129 = vsub.f32 %v4714, %v6128
    %v6130 = vand.u32 %v6129, 4294901760
    %6131 = vmatmul.f32.gmra.mxu0 %v6130
    %v6132 = vpop.f32.mrf.mxu0
    %v6133 = vadd.f32 %v6088, %v6132
    %6134 = vdwg.mxu0
    %6135 = vmatpush.msra.mxu0 0.0
    %6136 = vmatpush.msra.mxu0 0.0
    %6137 = vmatpush.msra.mxu0 0.0
    %6138 = vmatpush.msra.mxu0 0.0
    %6139 = vmatpush.msra.mxu0 0.0
    %6140 = vmatpush.msra.mxu0 0.0
    %6141 = vmatpush.msra.mxu0 0.0
    %6142 = vmatpush.msra.mxu0 0.0
    %6143 = vmatpush.msra.mxu0 0.0
    %6144 = vmatpush.msra.mxu0 0.0
    %6145 = vmatpush.msra.mxu0 0.0
    %6146 = vmatpush.msra.mxu0 0.0
    %v6147 = vand.u32 %v5937, 4294901760
    %v6148 = vsub.f32 %v5937, %v6147
    %v6149 = vand.u32 %v6148, 4294901760
    %6150 = vmatpush.msra.mxu0 %v6149
    %v6151 = vand.u32 %v5933, 4294901760
    %v6152 = vsub.f32 %v5933, %v6151
    %v6153 = vand.u32 %v6152, 4294901760
    %6154 = vmatpush.msra.mxu0 %v6153
    %v6155 = vand.u32 %v5929, 4294901760
    %v6156 = vsub.f32 %v5929, %v6155
    %v6157 = vand.u32 %v6156, 4294901760
    %6158 = vmatpush.msra.mxu0 %v6157
    %v6159 = vand.u32 %v5925, 4294901760
    %v6160 = vsub.f32 %v5925, %v6159
    %v6161 = vand.u32 %v6160, 4294901760
    %6162 = vmatpush.msra.mxu0 %v6161
    %v6163 = vand.u32 %v4705, 4294901760
    %6164 = vmatmul.f32.gmra.mxu0 %v6163
    %v6165 = vpop.f32.mrf.mxu0
    %v6166 = vadd.f32 %v6115, %v6165
    %v6167 = vand.u32 %v4708, 4294901760
    %6168 = vmatmul.f32.gmra.mxu0 %v6167
    %v6169 = vpop.f32.mrf.mxu0
    %v6170 = vadd.f32 %v6121, %v6169
    %v6171 = vand.u32 %v4711, 4294901760
    %6172 = vmatmul.f32.gmra.mxu0 %v6171
    %v6173 = vpop.f32.mrf.mxu0
    %v6174 = vadd.f32 %v6127, %v6173
    %v6175 = vand.u32 %v4714, 4294901760
    %6176 = vmatmul.f32.gmra.mxu0 %v6175
    %v6177 = vpop.f32.mrf.mxu0
    %v6178 = vadd.f32 %v6133, %v6177
    %6179 = vdwg.mxu0
    %6180 = vmatpush.msra.mxu0 0.0
    %6181 = vmatpush.msra.mxu0 0.0
    %6182 = vmatpush.msra.mxu0 0.0
    %6183 = vmatpush.msra.mxu0 0.0
    %6184 = vmatpush.msra.mxu0 0.0
    %6185 = vmatpush.msra.mxu0 0.0
    %6186 = vmatpush.msra.mxu0 0.0
    %6187 = vmatpush.msra.mxu0 0.0
    %6188 = vmatpush.msra.mxu0 0.0
    %6189 = vmatpush.msra.mxu0 0.0
    %6190 = vmatpush.msra.mxu0 0.0
    %6191 = vmatpush.msra.mxu0 0.0
    %v6192 = vand.u32 %v5937, 4294901760
    %6193 = vmatpush.msra.mxu0 %v6192
    %v6194 = vand.u32 %v5933, 4294901760
    %6195 = vmatpush.msra.mxu0 %v6194
    %v6196 = vand.u32 %v5929, 4294901760
    %6197 = vmatpush.msra.mxu0 %v6196
    %v6198 = vand.u32 %v5925, 4294901760
    %6199 = vmatpush.msra.mxu0 %v6198
    %v6200 = vand.u32 %v4705, 4294901760
    %6201 = vmatmul.f32.gmra.mxu0 %v6200
    %v6202 = vpop.f32.mrf.mxu0
    %v6203 = vadd.f32 %v6166, %v6202
    %v6204 = vand.u32 %v4708, 4294901760
    %6205 = vmatmul.f32.gmra.mxu0 %v6204
    %v6206 = vpop.f32.mrf.mxu0
    %v6207 = vadd.f32 %v6170, %v6206
    %v6208 = vand.u32 %v4711, 4294901760
    %6209 = vmatmul.f32.gmra.mxu0 %v6208
    %v6210 = vpop.f32.mrf.mxu0
    %v6211 = vadd.f32 %v6174, %v6210
    %v6212 = vand.u32 %v4714, 4294901760
    %6213 = vmatmul.f32.gmra.mxu0 %v6212
    %v6214 = vpop.f32.mrf.mxu0
    %v6215 = vadd.f32 %v6178, %v6214
    %6216 = vdwg.mxu0
    %v6217 = vmul.f32 %v6203, 0.0625
    %v6218 = vmul.f32 %v6207, 0.0625
    %v6219 = vmul.f32 %v6211, 0.0625
    %v6220 = vmul.f32 %v6215, 0.0625
    %v6221 = vmul.f32 %v4998, %v617
    %v6222 = vmul.f32 %v4998, %v618
    %v6223 = vmul.f32 %v4998, %v619
    %v6224 = vmul.f32 %v4998, %v620
    %v6225 = vmul.f32 %v5003, %v5615
    %v6226 = vmul.f32 %v5003, %v5619
    %v6227 = vmul.f32 %v5003, %v5623
    %v6228 = vmul.f32 %v5003, %v5627
    %v6229 = vadd.f32 %v6221, %v6225
    %v6230 = vadd.f32 %v6222, %v6226
    %v6231 = vadd.f32 %v6223, %v6227
    %v6232 = vadd.f32 %v6224, %v6228
    %v6233 = vmul.f32 %v5012, %v6217
    %v6234 = vmul.f32 %v5012, %v6218
    %v6235 = vmul.f32 %v5012, %v6219
    %v6236 = vmul.f32 %v5012, %v6220
    %v6237 = vadd.f32 %v6229, %v6233
    %v6238 = vadd.f32 %v6230, %v6234
    %v6239 = vadd.f32 %v6231, %v6235
    %v6240 = vadd.f32 %v6232, %v6236
    %v6241 = vmax.f32 %v6237, 0.0
    %v6242 = vmax.f32 %v6238, 0.0
    %v6243 = vmax.f32 %v6239, 0.0
    %v6244 = vmax.f32 %v6240, 0.0
    %6245 = vst.msk [vmem:[%s75] sm:$0xff] %vm326, %v6241
    %6246 = vst.msk [vmem:[%s75 + $0x8] sm:$0xff] %vm326, %v6242
    %6247 = vst.msk [vmem:[%s75 + $0x10] sm:$0xff] %vm326, %v6243
    %6248 = vst.msk [vmem:[%s75 + $0x18] sm:$0xff] %vm326, %v6244
    %6249 = vst.msk [vmem:[%s77] sm:$0xff] %vm2626, %v5021
    %6250 = vst.msk [vmem:[%s77 + $0x8] sm:$0xff] %vm2626, %v5022
    %6251 = vst.msk [vmem:[%s77 + $0x10] sm:$0xff] %vm2626, %v5023
    %6252 = vst.msk [vmem:[%s77 + $0x18] sm:$0xff] %vm2626, %v5024
    %6253 = vst.msk [vmem:[%s79] sm:$0xff] %vm3839, %v3829
    %6254 = vst.msk [vmem:[%s79 + $0x8] sm:$0xff] %vm3839, %v3830
    %6255 = vst.msk [vmem:[%s79 + $0x10] sm:$0xff] %vm3839, %v3831
    %6256 = vst.msk [vmem:[%s79 + $0x18] sm:$0xff] %vm3839, %v3832
    // Predicated region
    $region154: #{forward.1} parent=1 // pred_check
      _
    $region155: #{forward.1} parent=1 // pred_check_branch
      %6258 = sbr.rel (0) target = $region157
    $region156: #{forward.1} parent=1 // pred_region
      _
    $region157: #{forward.1} parent=1 // pred_fallthru
      _
    // Predicated region
    $region158: #{forward.1} parent=1 // pred_check
      _
    $region159: #{forward.1} parent=1 // pred_check_branch
      %6260 = sbr.rel (0) target = $region161
    $region160: #{forward.1} parent=1 // pred_region
      _
    $region161: #{forward.1} parent=1 // pred_fallthru
      _
    // Predicated region
    $region162: #{forward.1} parent=1 // pred_check
      _
    $region163: #{forward.1} parent=1 // pred_check_branch
      %6262 = sbr.rel (0) target = $region165
    $region164: #{forward.1} parent=1 // pred_region
      _
    $region165: #{forward.1} parent=1 // pred_fallthru
      _
    // Predicated region
    $region166: #{forward.1} parent=1 // pred_check
      _
    $region167: #{forward.1} parent=1 // pred_check_branch
      %6264 = sbr.rel (0) target = $region169
    $region168: #{forward.1} parent=1 // pred_region
      _
    $region169: #{forward.1} parent=1 // pred_fallthru
      _
    // Predicated region
    $region170: #{forward.1} parent=1 // pred_check
      _
    $region171: #{forward.1} parent=1 // pred_check_branch
      %6266 = sbr.rel (0) target = $region173
    $region172: #{forward.1} parent=1 // pred_region
      _
    $region173: #{forward.1} parent=1 // pred_fallthru
      _
    // Predicated region
    $region174: #{forward.1} parent=1 // pred_check
      _
    $region175: #{forward.1} parent=1 // pred_check_branch
      %6268 = sbr.rel (0) target = $region177
    $region176: #{forward.1} parent=1 // pred_region
      _
    $region177: #{forward.1} parent=1 // pred_fallthru
      _
    %6269 = vsyncpa [#allocation3], 1

</llo_original>
